<compile_context>
chip_gen: v7x
topology: tpu7x:2x2x1
jax: 0.10.0
libtpu: 0.0.40
codegen_flags: <defaults>
</compile_context>

<pallas_src>
import jax
import jax.numpy as jnp
from jax.experimental import pallas as pl
from jax.experimental.pallas import tpu as pltpu

POOL_K = 5
POOL_S = 3
OUT_HW = 4          # (14 - 5) // 3 + 1
CONV_OUT = 128
HIDDEN = 1024
FLAT_DIM = CONV_OUT * OUT_HW * OUT_HW   # 2048
BN_EPS = 1e-5


def aux_classifier_kernel(x_ref, wc_ref, scale_ref, shift_ref,
                          w1_ref, b1_ref, w2_ref, b2_ref, out_ref):
    # x_ref:   (bt, 14, 14, Cp)  bf16   (NHWC, channel-padded)
    # wc_ref:  (Cp, 128)         bf16
    # scale/shift: (1, 128)      f32    (eval BN folded with conv bias)
    # w1_ref:  (2048, 1024)      bf16   (rows in (h, w, c) order)
    # b1_ref:  (1, 1024)         f32
    # w2_ref:  (1024, NCp)       bf16
    # b2_ref:  (1, NCp)          f32
    bt = x_ref.shape[0]
    cp = x_ref.shape[3]

    x = x_ref[...].astype(jnp.float32)                      # (bt, 14, 14, Cp)

    # Separable 5x5 / stride-3 average pool (vertical 5-sums, then horizontal 5-sums).
    v = jnp.stack(
        [jnp.sum(x[:, POOL_S * oh:POOL_S * oh + POOL_K], axis=1) for oh in range(OUT_HW)],
        axis=1)                                             # (bt, 4, 14, Cp)
    p = jnp.stack(
        [jnp.sum(v[:, :, POOL_S * ow:POOL_S * ow + POOL_K], axis=2) for ow in range(OUT_HW)],
        axis=2)                                             # (bt, 4, 4, Cp)
    pooled = (p * (1.0 / (POOL_K * POOL_K))).reshape(bt * OUT_HW * OUT_HW, cp)
    pooled = pooled.astype(jnp.bfloat16)                    # (bt*16, Cp)

    # 1x1 conv as one batched matmul, fused eval-BN (scale/shift) + ReLU.
    y = jnp.dot(pooled, wc_ref[...], preferred_element_type=jnp.float32)   # (bt*16, 128)
    y = jnp.maximum(y * scale_ref[...] + shift_ref[...], 0.0)

    # Flatten windows -> (bt, 2048) in (h, w, c) column order; single fc1 matmul.
    flat = y.reshape(bt, FLAT_DIM).astype(jnp.bfloat16)
    h1 = jnp.dot(flat, w1_ref[...], preferred_element_type=jnp.float32) + b1_ref[...]
    h1 = jnp.maximum(h1, 0.0).astype(jnp.bfloat16)

    # Dropout(p=0.7) is identity in eval mode.
    out_ref[...] = jnp.dot(h1, w2_ref[...],
                           preferred_element_type=jnp.float32) + b2_ref[...]


def auxiliary_classifier(x, params, *, batch_tile=128):
    """x: (B, C, 14, 14) float32.  params: PyTorch-shaped parameter tuple."""
    wc, bc, gamma, beta, mean, var, w1, b1, w2, b2 = params
    B, C, H, W = x.shape
    assert H == 14 and W == 14, "AuxiliaryClassifier expects 14x14 spatial input"
    num_classes = w2.shape[0]

    cp = ((C + 127) // 128) * 128                # channel pad -> lane-dense
    ncp = ((num_classes + 127) // 128) * 128     # class pad   -> lane-dense output
    bt = min(batch_tile, B)
    bp = pl.cdiv(B, bt) * bt                     # batch pad to a multiple of the tile

    # NCHW -> NHWC, pad batch & channels, bf16 for DMA.
    x_nhwc = jnp.transpose(x.astype(jnp.float32), (0, 2, 3, 1))
    x_nhwc = jnp.pad(x_nhwc, ((0, bp - B), (0, 0), (0, 0), (0, cp - C)))
    x_nhwc = x_nhwc.astype(jnp.bfloat16)

    # 1x1 conv weight (128, C, 1, 1) -> (Cp, 128), zero-padded rows, bf16.
    wc_t = jnp.pad(wc.reshape(CONV_OUT, C).T, ((0, cp - C), (0, 0))).astype(jnp.bfloat16)

    # Fold eval-mode BatchNorm and the conv bias into a per-channel scale/shift (f32).
    inv_std = jax.lax.rsqrt(var.astype(jnp.float32) + BN_EPS)
    scale = (gamma * inv_std).reshape(1, CONV_OUT).astype(jnp.float32)
    shift = (beta + (bc - mean) * gamma * inv_std).reshape(1, CONV_OUT).astype(jnp.float32)

    # fc1 weight: permute columns from PyTorch flatten order (c, h, w) to (h, w, c),
    # transpose to (2048, 1024), bf16.
    w1_t = (w1.reshape(HIDDEN, CONV_OUT, OUT_HW, OUT_HW)
              .transpose(0, 2, 3, 1)
              .reshape(HIDDEN, FLAT_DIM)).T.astype(jnp.bfloat16)
    b1_r = b1.reshape(1, HIDDEN).astype(jnp.float32)

    # fc2: (num_classes, 1024) -> (1024, NCp), zero-padded columns, bf16.
    w2_t = jnp.pad(w2.T, ((0, 0), (0, ncp - num_classes))).astype(jnp.bfloat16)
    b2_r = jnp.pad(b2.reshape(1, -1), ((0, 0), (0, ncp - num_classes))).astype(jnp.float32)

    grid = (bp // bt,)
    out = pl.pallas_call(
        aux_classifier_kernel,
        out_shape=jax.ShapeDtypeStruct((bp, ncp), jnp.float32),
        grid_spec=pltpu.PrefetchScalarGridSpec(
            num_scalar_prefetch=0,
            grid=grid,
            in_specs=[
                pl.BlockSpec((bt, 14, 14, cp), lambda i: (i, 0, 0, 0)),   # x tile per step
                pl.BlockSpec((cp, CONV_OUT), lambda i: (0, 0)),           # resident weights
                pl.BlockSpec((1, CONV_OUT), lambda i: (0, 0)),
                pl.BlockSpec((1, CONV_OUT), lambda i: (0, 0)),
                pl.BlockSpec((FLAT_DIM, HIDDEN), lambda i: (0, 0)),
                pl.BlockSpec((1, HIDDEN), lambda i: (0, 0)),
                pl.BlockSpec((HIDDEN, ncp), lambda i: (0, 0)),
                pl.BlockSpec((1, ncp), lambda i: (0, 0)),
            ],
            out_specs=pl.BlockSpec((bt, ncp), lambda i: (i, 0)),
        ),
        compiler_params=pltpu.CompilerParams(
            dimension_semantics=("parallel",),
            vmem_limit_bytes=32 << 20,
        ),
    )(x_nhwc, wc_t, scale, shift, w1_t, b1_r, w2_t, b2_r)

    return out[:B, :num_classes]


def reference(x, params):
    """Pure-JAX f32 reference matching the PyTorch forward (eval-mode BN / dropout)."""
    wc, bc, gamma, beta, mean, var, w1, b1, w2, b2 = params
    B, C, H, W = x.shape
    pooled = jnp.stack([
        jnp.stack([
            jnp.mean(x[:, :, oh * 3:oh * 3 + 5, ow * 3:ow * 3 + 5], axis=(2, 3))
            for ow in range(OUT_HW)], axis=-1)
        for oh in range(OUT_HW)], axis=-2)                           # (B, C, 4, 4)
    y = jnp.einsum('bchw,oc->bohw', pooled, wc.reshape(CONV_OUT, C))
    y = y + bc[None, :, None, None]
    y = ((y - mean[None, :, None, None])
         / jnp.sqrt(var[None, :, None, None] + BN_EPS)
         * gamma[None, :, None, None] + beta[None, :, None, None])
    y = jnp.maximum(y, 0.0)
    flat = y.reshape(B, -1)                                          # torch.flatten(x, 1) order
    h1 = jnp.maximum(flat @ w1.T + b1, 0.0)
    return h1 @ w2.T + b2


def make_params(key, in_channels, num_classes):
    ks = jax.random.split(key, 10)
    wc = jax.random.normal(ks[0], (CONV_OUT, in_channels, 1, 1), jnp.float32) * 0.05
    bc = jax.random.normal(ks[1], (CONV_OUT,), jnp.float32) * 0.05
    gamma = 1.0 + 0.1 * jax.random.normal(ks[2], (CONV_OUT,), jnp.float32)
    beta = 0.1 * jax.random.normal(ks[3], (CONV_OUT,), jnp.float32)
    mean = 0.1 * jax.random.normal(ks[4], (CONV_OUT,), jnp.float32)
    var = jax.random.uniform(ks[5], (CONV_OUT,), jnp.float32, 0.5, 1.5)
    w1 = jax.random.normal(ks[6], (HIDDEN, FLAT_DIM), jnp.float32) * 0.02
    b1 = jax.random.normal(ks[7], (HIDDEN,), jnp.float32) * 0.02
    w2 = jax.random.normal(ks[8], (num_classes, HIDDEN), jnp.float32) * 0.02
    b2 = jax.random.normal(ks[9], (num_classes,), jnp.float32) * 0.02
    return (wc, bc, gamma, beta, mean, var, w1, b1, w2, b2)


if __name__ == "__main__":
    B, C, NUM_CLASSES = 2, 4, 10
    key = jax.random.PRNGKey(0)
    kx, kp = jax.random.split(key)
    x = jax.random.normal(kx, (B, C, 14, 14), jnp.float32)
    params = make_params(kp, C, NUM_CLASSES)

    out = jax.block_until_ready(auxiliary_classifier(x, params))
    ref = jax.block_until_ready(reference(x, params))

    assert out.shape == (B, NUM_CLASSES), out.shape
    # bf16 weights/activations vs. f32 reference -> loosened tolerance.
    if not jnp.allclose(out, ref, atol=2e-2, rtol=2e-2):
        raise AssertionError(f"mismatch: max abs err {jnp.max(jnp.abs(out - ref))}")
    print("KERNEL_OK")
</pallas_src>

<mosaic_0001>
module attributes {stable_mosaic.version = 11 : i64} {
  func.func @aux_classifier_kernel(%arg0: i32, %arg1: memref<2x14x14x128xbf16, #tpu.memory_space<vmem>>, %arg2: memref<128x128xbf16, #tpu.memory_space<vmem>>, %arg3: memref<1x128xf32, #tpu.memory_space<vmem>>, %arg4: memref<1x128xf32, #tpu.memory_space<vmem>>, %arg5: memref<2048x1024xbf16, #tpu.memory_space<vmem>>, %arg6: memref<1x1024xf32, #tpu.memory_space<vmem>>, %arg7: memref<1024x128xbf16, #tpu.memory_space<vmem>>, %arg8: memref<1x128xf32, #tpu.memory_space<vmem>>, %arg9: memref<2x128xf32, #tpu.memory_space<vmem>>) attributes {dimension_semantics = [#tpu.dimension_semantics<parallel>], iteration_bounds = array<i64: 1>, scalar_prefetch = 0 : i64, scratch_operands = 0 : i64, tpu.core_type = #tpu.core_type<tc>, window_params = [{transform_indices = @transform_0, window_bounds = array<i64: 2, 14, 14, 128>}, {pipeline_mode = #tpu.pipeline_mode<synchronous>, transform_indices = @transform_1, window_bounds = array<i64: 128, 128>}, {pipeline_mode = #tpu.pipeline_mode<synchronous>, transform_indices = @transform_2, window_bounds = array<i64: 1, 128>}, {pipeline_mode = #tpu.pipeline_mode<synchronous>, transform_indices = @transform_3, window_bounds = array<i64: 1, 128>}, {pipeline_mode = #tpu.pipeline_mode<synchronous>, transform_indices = @transform_4, window_bounds = array<i64: 2048, 1024>}, {pipeline_mode = #tpu.pipeline_mode<synchronous>, transform_indices = @transform_5, window_bounds = array<i64: 1, 1024>}, {pipeline_mode = #tpu.pipeline_mode<synchronous>, transform_indices = @transform_6, window_bounds = array<i64: 1024, 128>}, {pipeline_mode = #tpu.pipeline_mode<synchronous>, transform_indices = @transform_7, window_bounds = array<i64: 1, 128>}, {transform_indices = @transform_8, window_bounds = array<i64: 2, 128>}]} {
    %c0 = arith.constant 0 : index
    %c0_0 = arith.constant 0 : index
    %c0_1 = arith.constant 0 : index
    %c0_2 = arith.constant 0 : index
    %0 = vector.load %arg1[%c0, %c0_0, %c0_1, %c0_2] : memref<2x14x14x128xbf16, #tpu.memory_space<vmem>>, vector<2x14x14x128xbf16>
    %1 = arith.extf %0 : vector<2x14x14x128xbf16> to vector<2x14x14x128xf32>
    %2 = vector.extract_strided_slice %1 {offsets = [0, 0, 0, 0], sizes = [2, 5, 14, 128], strides = [1, 1, 1, 1]} : vector<2x14x14x128xf32> to vector<2x5x14x128xf32>
    %cst = arith.constant dense<0.000000e+00> : vector<2x14x128xf32>
    %3 = vector.multi_reduction <add>, %2, %cst [1] : vector<2x5x14x128xf32> to vector<2x14x128xf32>
    %4 = vector.extract_strided_slice %1 {offsets = [0, 3, 0, 0], sizes = [2, 5, 14, 128], strides = [1, 1, 1, 1]} : vector<2x14x14x128xf32> to vector<2x5x14x128xf32>
    %cst_3 = arith.constant dense<0.000000e+00> : vector<2x14x128xf32>
    %5 = vector.multi_reduction <add>, %4, %cst_3 [1] : vector<2x5x14x128xf32> to vector<2x14x128xf32>
    %6 = vector.extract_strided_slice %1 {offsets = [0, 6, 0, 0], sizes = [2, 5, 14, 128], strides = [1, 1, 1, 1]} : vector<2x14x14x128xf32> to vector<2x5x14x128xf32>
    %cst_4 = arith.constant dense<0.000000e+00> : vector<2x14x128xf32>
    %7 = vector.multi_reduction <add>, %6, %cst_4 [1] : vector<2x5x14x128xf32> to vector<2x14x128xf32>
    %8 = vector.extract_strided_slice %1 {offsets = [0, 9, 0, 0], sizes = [2, 5, 14, 128], strides = [1, 1, 1, 1]} : vector<2x14x14x128xf32> to vector<2x5x14x128xf32>
    %cst_5 = arith.constant dense<0.000000e+00> : vector<2x14x128xf32>
    %9 = vector.multi_reduction <add>, %8, %cst_5 [1] : vector<2x5x14x128xf32> to vector<2x14x128xf32>
    %10 = vector.shape_cast %3 : vector<2x14x128xf32> to vector<2x1x14x128xf32>
    %11 = vector.shape_cast %5 : vector<2x14x128xf32> to vector<2x1x14x128xf32>
    %12 = vector.shape_cast %7 : vector<2x14x128xf32> to vector<2x1x14x128xf32>
    %13 = vector.shape_cast %9 : vector<2x14x128xf32> to vector<2x1x14x128xf32>
    %14 = tpu.concatenate %10, %11, %12, %13 in 1 : vector<2x1x14x128xf32>, vector<2x1x14x128xf32>, vector<2x1x14x128xf32>, vector<2x1x14x128xf32> -> vector<2x4x14x128xf32>
    %15 = vector.extract_strided_slice %14 {offsets = [0, 0, 0, 0], sizes = [2, 4, 5, 128], strides = [1, 1, 1, 1]} : vector<2x4x14x128xf32> to vector<2x4x5x128xf32>
    %cst_6 = arith.constant dense<0.000000e+00> : vector<2x4x128xf32>
    %16 = vector.multi_reduction <add>, %15, %cst_6 [2] : vector<2x4x5x128xf32> to vector<2x4x128xf32>
    %17 = vector.extract_strided_slice %14 {offsets = [0, 0, 3, 0], sizes = [2, 4, 5, 128], strides = [1, 1, 1, 1]} : vector<2x4x14x128xf32> to vector<2x4x5x128xf32>
    %cst_7 = arith.constant dense<0.000000e+00> : vector<2x4x128xf32>
    %18 = vector.multi_reduction <add>, %17, %cst_7 [2] : vector<2x4x5x128xf32> to vector<2x4x128xf32>
    %19 = vector.extract_strided_slice %14 {offsets = [0, 0, 6, 0], sizes = [2, 4, 5, 128], strides = [1, 1, 1, 1]} : vector<2x4x14x128xf32> to vector<2x4x5x128xf32>
    %cst_8 = arith.constant dense<0.000000e+00> : vector<2x4x128xf32>
    %20 = vector.multi_reduction <add>, %19, %cst_8 [2] : vector<2x4x5x128xf32> to vector<2x4x128xf32>
    %21 = vector.extract_strided_slice %14 {offsets = [0, 0, 9, 0], sizes = [2, 4, 5, 128], strides = [1, 1, 1, 1]} : vector<2x4x14x128xf32> to vector<2x4x5x128xf32>
    %cst_9 = arith.constant dense<0.000000e+00> : vector<2x4x128xf32>
    %22 = vector.multi_reduction <add>, %21, %cst_9 [2] : vector<2x4x5x128xf32> to vector<2x4x128xf32>
    %23 = vector.shape_cast %16 : vector<2x4x128xf32> to vector<2x4x1x128xf32>
    %24 = vector.shape_cast %18 : vector<2x4x128xf32> to vector<2x4x1x128xf32>
    %25 = vector.shape_cast %20 : vector<2x4x128xf32> to vector<2x4x1x128xf32>
    %26 = vector.shape_cast %22 : vector<2x4x128xf32> to vector<2x4x1x128xf32>
    %27 = tpu.concatenate %23, %24, %25, %26 in 2 : vector<2x4x1x128xf32>, vector<2x4x1x128xf32>, vector<2x4x1x128xf32>, vector<2x4x1x128xf32> -> vector<2x4x4x128xf32>
    %cst_10 = arith.constant 4.000000e-02 : f32
    %28 = vector.broadcast %cst_10 : f32 to vector<2x4x4x128xf32>
    %29 = arith.mulf %27, %28 : vector<2x4x4x128xf32>
    %30 = vector.shape_cast %29 : vector<2x4x4x128xf32> to vector<32x128xf32>
    %31 = arith.truncf %30 : vector<32x128xf32> to vector<32x128xbf16>
    %c0_11 = arith.constant 0 : index
    %c0_12 = arith.constant 0 : index
    %32 = vector.load %arg2[%c0_11, %c0_12] : memref<128x128xbf16, #tpu.memory_space<vmem>>, vector<128x128xbf16>
    %cst_13 = arith.constant dense<0.000000e+00> : vector<32x128xf32>
    %33 = tpu.matmul %31, %32, %cst_13 {dimension_numbers = #tpu.dot_dimension_numbers<[1], [0], [0], [1], [0, 0, 1, 1], [], []>} : vector<32x128xbf16>, vector<128x128xbf16>, vector<32x128xf32> -> vector<32x128xf32>
    %c0_14 = arith.constant 0 : index
    %c0_15 = arith.constant 0 : index
    %34 = vector.load %arg3[%c0_14, %c0_15] : memref<1x128xf32, #tpu.memory_space<vmem>>, vector<1x128xf32>
    %35 = vector.broadcast %34 : vector<1x128xf32> to vector<32x128xf32>
    %36 = arith.mulf %33, %35 : vector<32x128xf32>
    %c0_16 = arith.constant 0 : index
    %c0_17 = arith.constant 0 : index
    %37 = vector.load %arg4[%c0_16, %c0_17] : memref<1x128xf32, #tpu.memory_space<vmem>>, vector<1x128xf32>
    %38 = vector.broadcast %37 : vector<1x128xf32> to vector<32x128xf32>
    %39 = arith.addf %36, %38 : vector<32x128xf32>
    %cst_18 = arith.constant 0.000000e+00 : f32
    %40 = vector.broadcast %cst_18 : f32 to vector<32x128xf32>
    %41 = arith.maximumf %39, %40 : vector<32x128xf32>
    %42 = vector.shape_cast %41 : vector<32x128xf32> to vector<2x2048xf32>
    %43 = arith.truncf %42 : vector<2x2048xf32> to vector<2x2048xbf16>
    %c0_19 = arith.constant 0 : index
    %c0_20 = arith.constant 0 : index
    %44 = vector.load %arg5[%c0_19, %c0_20] : memref<2048x1024xbf16, #tpu.memory_space<vmem>>, vector<2048x1024xbf16>
    %cst_21 = arith.constant dense<0.000000e+00> : vector<2x1024xf32>
    %45 = tpu.matmul %43, %44, %cst_21 {dimension_numbers = #tpu.dot_dimension_numbers<[1], [0], [0], [1], [0, 0, 1, 1], [], []>} : vector<2x2048xbf16>, vector<2048x1024xbf16>, vector<2x1024xf32> -> vector<2x1024xf32>
    %c0_22 = arith.constant 0 : index
    %c0_23 = arith.constant 0 : index
    %46 = vector.load %arg6[%c0_22, %c0_23] : memref<1x1024xf32, #tpu.memory_space<vmem>>, vector<1x1024xf32>
    %47 = vector.broadcast %46 : vector<1x1024xf32> to vector<2x1024xf32>
    %48 = arith.addf %45, %47 : vector<2x1024xf32>
    %cst_24 = arith.constant 0.000000e+00 : f32
    %49 = vector.broadcast %cst_24 : f32 to vector<2x1024xf32>
    %50 = arith.maximumf %48, %49 : vector<2x1024xf32>
    %51 = arith.truncf %50 : vector<2x1024xf32> to vector<2x1024xbf16>
    %c0_25 = arith.constant 0 : index
    %c0_26 = arith.constant 0 : index
    %52 = vector.load %arg7[%c0_25, %c0_26] : memref<1024x128xbf16, #tpu.memory_space<vmem>>, vector<1024x128xbf16>
    %cst_27 = arith.constant dense<0.000000e+00> : vector<2x128xf32>
    %53 = tpu.matmul %51, %52, %cst_27 {dimension_numbers = #tpu.dot_dimension_numbers<[1], [0], [0], [1], [0, 0, 1, 1], [], []>} : vector<2x1024xbf16>, vector<1024x128xbf16>, vector<2x128xf32> -> vector<2x128xf32>
    %c0_28 = arith.constant 0 : index
    %c0_29 = arith.constant 0 : index
    %54 = vector.load %arg8[%c0_28, %c0_29] : memref<1x128xf32, #tpu.memory_space<vmem>>, vector<1x128xf32>
    %55 = vector.broadcast %54 : vector<1x128xf32> to vector<2x128xf32>
    %56 = arith.addf %53, %55 : vector<2x128xf32>
    %c0_30 = arith.constant 0 : index
    %c0_31 = arith.constant 0 : index
    %57 = vector.load %arg9[%c0_30, %c0_31] : memref<2x128xf32, #tpu.memory_space<vmem>>, vector<2x128xf32>
    tpu.vector_store %arg9[%c0_30, %c0_31], %56 {strides = array<i32>} : memref<2x128xf32, #tpu.memory_space<vmem>>, vector<2x128xf32>,
    return
  }
  func.func @transform_0(%arg0: i32) -> (i32, i32, i32, i32) {
    %c0_i32 = arith.constant 0 : i32
    %c0_i32_0 = arith.constant 0 : i32
    %c0_i32_1 = arith.constant 0 : i32
    %c0_i32_2 = arith.constant 0 : i32
    return %arg0, %c0_i32, %c0_i32_0, %c0_i32_1 : i32, i32, i32, i32
  }
  func.func @transform_1(%arg0: i32) -> (i32, i32) {
    %c0_i32 = arith.constant 0 : i32
    %c0_i32_0 = arith.constant 0 : i32
    %c0_i32_1 = arith.constant 0 : i32
    return %c0_i32, %c0_i32_0 : i32, i32
  }
  func.func @transform_2(%arg0: i32) -> (i32, i32) {
    %c0_i32 = arith.constant 0 : i32
    %c0_i32_0 = arith.constant 0 : i32
    %c0_i32_1 = arith.constant 0 : i32
    return %c0_i32, %c0_i32_0 : i32, i32
  }
  func.func @transform_3(%arg0: i32) -> (i32, i32) {
    %c0_i32 = arith.constant 0 : i32
    %c0_i32_0 = arith.constant 0 : i32
    %c0_i32_1 = arith.constant 0 : i32
    return %c0_i32, %c0_i32_0 : i32, i32
  }
  func.func @transform_4(%arg0: i32) -> (i32, i32) {
    %c0_i32 = arith.constant 0 : i32
    %c0_i32_0 = arith.constant 0 : i32
    %c0_i32_1 = arith.constant 0 : i32
    return %c0_i32, %c0_i32_0 : i32, i32
  }
  func.func @transform_5(%arg0: i32) -> (i32, i32) {
    %c0_i32 = arith.constant 0 : i32
    %c0_i32_0 = arith.constant 0 : i32
    %c0_i32_1 = arith.constant 0 : i32
    return %c0_i32, %c0_i32_0 : i32, i32
  }
  func.func @transform_6(%arg0: i32) -> (i32, i32) {
    %c0_i32 = arith.constant 0 : i32
    %c0_i32_0 = arith.constant 0 : i32
    %c0_i32_1 = arith.constant 0 : i32
    return %c0_i32, %c0_i32_0 : i32, i32
  }
  func.func @transform_7(%arg0: i32) -> (i32, i32) {
    %c0_i32 = arith.constant 0 : i32
    %c0_i32_0 = arith.constant 0 : i32
    %c0_i32_1 = arith.constant 0 : i32
    return %c0_i32, %c0_i32_0 : i32, i32
  }
  func.func @transform_8(%arg0: i32) -> (i32, i32) {
    %c0_i32 = arith.constant 0 : i32
    %c0_i32_0 = arith.constant 0 : i32
    return %arg0, %c0_i32 : i32, i32
  }
}

</mosaic_0001>

<llo_original>
// kernel: tpu_custom_call.1
$region0: #{tpu_custom_call.1}
  #allocation0 [shape = 'u32[]', space=smem, size = 0x4, offset = 0x4, fixed_abs, tag = 'smem constant byte address 0x4 - core index']
  #allocation1 [shape = 'u32[144,128]{1,0:T(1,128)}', space=vmem, size = 0x12000, scoped, tag = 'internal scratch']
  %s0 = inlined_call_operand.vmem [shape: bf16[2,14,14,128], index: 0, kind: input, shape index: {}]
  %s1 = inlined_call_operand.hbm [shape: bf16[128,128], index: 1, kind: input, shape index: {}]
  %s2 = inlined_call_operand.hbm [shape: f32[1,128], index: 2, kind: input, shape index: {}]
  %s3 = inlined_call_operand.hbm [shape: f32[1,128], index: 3, kind: input, shape index: {}]
  %s4 = inlined_call_operand.hbm [shape: bf16[2048,1024], index: 4, kind: input, shape index: {}]
  %s5 = inlined_call_operand.hbm [shape: f32[1,1024], index: 5, kind: input, shape index: {}]
  %s6 = inlined_call_operand.hbm [shape: bf16[1024,128], index: 6, kind: input, shape index: {}]
  %s7 = inlined_call_operand.hbm [shape: f32[1,128], index: 7, kind: input, shape index: {}]
  %s8 = inlined_call_operand.hbm [shape: f32[2,128], index: 8, kind: output, shape index: {}]
  %s9 = sld [smem:[#allocation0]]
  $region70: #{tpu_custom_call.1} parent=0
    _
  %s11 = ssub.s32 1, %s9
  %s12 = scalar_select 0, %s11, %s9
  $region1: #{tpu_custom_call.1} parent=0
    #allocation2 [shape = 'u8[32768]{0}', space=vmem, size = 0x8000, scoped, tag = 'input window, operand 1, single buffered']
    #allocation3 [shape = 's32[1]{0}', space=sflag, size = 0x4, scoped, tag = 'scoped memory for tpu_custom_call.1']
    #allocation4 [shape = 's32[1]{0}', space=sflag, size = 0x4, scoped, tag = 'scoped memory for tpu_custom_call.1']
    #allocation5 [shape = 'u8[512]{0}', space=vmem, size = 0x400, scoped, tag = 'input window, operand 2, single buffered']
    #allocation6 [shape = 's32[1]{0}', space=sflag, size = 0x4, scoped, tag = 'scoped memory for tpu_custom_call.1']
    #allocation7 [shape = 'u8[512]{0}', space=vmem, size = 0x400, scoped, tag = 'input window, operand 3, single buffered']
    #allocation8 [shape = 'u8[4194304]{0}', space=vmem, size = 0x400000, scoped, tag = 'input window, operand 4, single buffered']
    #allocation9 [shape = 's32[1]{0}', space=sflag, size = 0x4, scoped, tag = 'scoped memory for tpu_custom_call.1']
    #allocation10 [shape = 'u8[4096]{0}', space=vmem, size = 0x1000, scoped, tag = 'input window, operand 5, single buffered']
    #allocation11 [shape = 'u8[262144]{0}', space=vmem, size = 0x40000, scoped, tag = 'input window, operand 6, single buffered']
    #allocation12 [shape = 's32[1]{0}', space=sflag, size = 0x4, scoped, tag = 'scoped memory for tpu_custom_call.1']
    #allocation13 [shape = 'u8[512]{0}', space=vmem, size = 0x400, scoped, tag = 'input window, operand 7, single buffered']
    #allocation14 [shape = 'u8[1024]{0}', space=vmem, size = 0x400, scoped, tag = 'output window, operand 0, single buffered']
    %13 = vsyncpa [#allocation3], 0
    %14 = vsyncpa [#allocation6], 0
    %15 = vsyncpa [#allocation9], 0
    %16 = vsyncpa [#allocation12], 0
    %17 = vsyncpa [#allocation4], 0
    // Predicated region
    $region2: #{tpu_custom_call.1} parent=1 // pred_check
      _
    $region3: #{tpu_custom_call.1} parent=1 // pred_check_branch
      %19 = sbr.rel (0) target = $region5
    $region4: #{tpu_custom_call.1} parent=1 // pred_region
      _
    $region5: #{tpu_custom_call.1} parent=1 // pred_fallthru
      _
    // Predicated region
    $region6: #{tpu_custom_call.1} parent=1 // pred_check
      _
    $region7: #{tpu_custom_call.1} parent=1 // pred_check_branch
      %21 = sbr.rel (0) target = $region9
    $region8: #{tpu_custom_call.1} parent=1 // pred_region
      %s23 = ssub.s32 1024, 1024
      %24 = vsyncadd [#allocation3], %s23
      %s25 = sshll.u32 [#allocation2], 4
      %s26 = int_to_ptr.vmem [resolvable:$true] %s25
      %31 = dma.hbm_to_vmem [thread:$0]  %s1, 1024, %s26, [#allocation3], 64, 64, 4
    $region9: #{tpu_custom_call.1} parent=1 // pred_fallthru
      _
    // Predicated region
    $region10: #{tpu_custom_call.1} parent=1 // pred_check
      _
    $region11: #{tpu_custom_call.1} parent=1 // pred_check_branch
      %33 = sbr.rel (0) target = $region13
    $region12: #{tpu_custom_call.1} parent=1 // pred_region
      %s35 = ssub.s32 16, 16
      %36 = vsyncadd [#allocation6], %s35
      %s38 = sshll.u32 [#allocation5], 4
      %s39 = int_to_ptr.vmem [resolvable:$true] %s38
      %41 = dma.hbm_to_vmem [thread:$0]  %s2, 16, %s39, [#allocation6]
    $region13: #{tpu_custom_call.1} parent=1 // pred_fallthru
      _
    // Predicated region
    $region14: #{tpu_custom_call.1} parent=1 // pred_check
      _
    $region15: #{tpu_custom_call.1} parent=1 // pred_check_branch
      %43 = sbr.rel (0) target = $region17
    $region16: #{tpu_custom_call.1} parent=1 // pred_region
      %s45 = ssub.s32 16, 16
      %46 = vsyncadd [#allocation6], %s45
      %s48 = sshll.u32 [#allocation7], 4
      %s49 = int_to_ptr.vmem [resolvable:$true] %s48
      %51 = dma.hbm_to_vmem [thread:$0]  %s3, 16, %s49, [#allocation6]
    $region17: #{tpu_custom_call.1} parent=1 // pred_fallthru
      _
    // Predicated region
    $region18: #{tpu_custom_call.1} parent=1 // pred_check
      _
    $region19: #{tpu_custom_call.1} parent=1 // pred_check_branch
      %53 = sbr.rel (0) target = $region21
    $region20: #{tpu_custom_call.1} parent=1 // pred_region
      %s55 = ssub.s32 131072, 131072
      %56 = vsyncadd [#allocation9], %s55
      %s57 = sshll.u32 [#allocation8], 4
      %s58 = int_to_ptr.vmem [resolvable:$true] %s57
      %63 = dma.hbm_to_vmem [thread:$0]  %s4, 131072, %s58, [#allocation9], 512, 512, 32
    $region21: #{tpu_custom_call.1} parent=1 // pred_fallthru
      _
    // Predicated region
    $region22: #{tpu_custom_call.1} parent=1 // pred_check
      _
    $region23: #{tpu_custom_call.1} parent=1 // pred_check_branch
      %65 = sbr.rel (0) target = $region25
    $region24: #{tpu_custom_call.1} parent=1 // pred_region
      %s67 = ssub.s32 128, 128
      %68 = vsyncadd [#allocation9], %s67
      %s70 = sshll.u32 [#allocation10], 4
      %s71 = int_to_ptr.vmem [resolvable:$true] %s70
      %73 = dma.hbm_to_vmem [thread:$0]  %s5, 128, %s71, [#allocation9]
    $region25: #{tpu_custom_call.1} parent=1 // pred_fallthru
      _
    // Predicated region
    $region26: #{tpu_custom_call.1} parent=1 // pred_check
      _
    $region27: #{tpu_custom_call.1} parent=1 // pred_check_branch
      %75 = sbr.rel (0) target = $region29
    $region28: #{tpu_custom_call.1} parent=1 // pred_region
      %s77 = ssub.s32 8192, 8192
      %78 = vsyncadd [#allocation12], %s77
      %s79 = sshll.u32 [#allocation11], 4
      %s80 = int_to_ptr.vmem [resolvable:$true] %s79
      %85 = dma.hbm_to_vmem [thread:$0]  %s6, 8192, %s80, [#allocation12], 64, 64, 4
    $region29: #{tpu_custom_call.1} parent=1 // pred_fallthru
      _
    // Predicated region
    $region30: #{tpu_custom_call.1} parent=1 // pred_check
      _
    $region31: #{tpu_custom_call.1} parent=1 // pred_check_branch
      %87 = sbr.rel (0) target = $region33
    $region32: #{tpu_custom_call.1} parent=1 // pred_region
      %s89 = ssub.s32 16, 16
      %90 = vsyncadd [#allocation12], %s89
      %s92 = sshll.u32 [#allocation13], 4
      %s93 = int_to_ptr.vmem [resolvable:$true] %s92
      %95 = dma.hbm_to_vmem [thread:$0]  %s7, 16, %s93, [#allocation12]
    $region33: #{tpu_custom_call.1} parent=1 // pred_fallthru
      _
    // Predicated region
    $region34: #{tpu_custom_call.1} parent=1 // pred_check
      _
    $region35: #{tpu_custom_call.1} parent=1 // pred_check_branch
      %97 = sbr.rel (0) target = $region37
    $region36: #{tpu_custom_call.1} parent=1 // pred_region
      %98 = dma.done [#allocation3], 1024
    $region37: #{tpu_custom_call.1} parent=1 // pred_fallthru
      _
    // Predicated region
    $region38: #{tpu_custom_call.1} parent=1 // pred_check
      _
    $region39: #{tpu_custom_call.1} parent=1 // pred_check_branch
      %100 = sbr.rel (0) target = $region41
    $region40: #{tpu_custom_call.1} parent=1 // pred_region
      %101 = dma.done [#allocation6], 16
    $region41: #{tpu_custom_call.1} parent=1 // pred_fallthru
      _
    // Predicated region
    $region42: #{tpu_custom_call.1} parent=1 // pred_check
      _
    $region43: #{tpu_custom_call.1} parent=1 // pred_check_branch
      %103 = sbr.rel (0) target = $region45
    $region44: #{tpu_custom_call.1} parent=1 // pred_region
      %104 = dma.done [#allocation6], 16
    $region45: #{tpu_custom_call.1} parent=1 // pred_fallthru
      _
    // Predicated region
    $region46: #{tpu_custom_call.1} parent=1 // pred_check
      _
    $region47: #{tpu_custom_call.1} parent=1 // pred_check_branch
      %106 = sbr.rel (0) target = $region49
    $region48: #{tpu_custom_call.1} parent=1 // pred_region
      %107 = dma.done [#allocation9], 131072
    $region49: #{tpu_custom_call.1} parent=1 // pred_fallthru
      _
    // Predicated region
    $region50: #{tpu_custom_call.1} parent=1 // pred_check
      _
    $region51: #{tpu_custom_call.1} parent=1 // pred_check_branch
      %109 = sbr.rel (0) target = $region53
    $region52: #{tpu_custom_call.1} parent=1 // pred_region
      %110 = dma.done [#allocation9], 128
    $region53: #{tpu_custom_call.1} parent=1 // pred_fallthru
      _
    // Predicated region
    $region54: #{tpu_custom_call.1} parent=1 // pred_check
      _
    $region55: #{tpu_custom_call.1} parent=1 // pred_check_branch
      %112 = sbr.rel (0) target = $region57
    $region56: #{tpu_custom_call.1} parent=1 // pred_region
      %113 = dma.done [#allocation12], 8192
    $region57: #{tpu_custom_call.1} parent=1 // pred_fallthru
      _
    // Predicated region
    $region58: #{tpu_custom_call.1} parent=1 // pred_check
      _
    $region59: #{tpu_custom_call.1} parent=1 // pred_check_branch
      %115 = sbr.rel (0) target = $region61
    $region60: #{tpu_custom_call.1} parent=1 // pred_region
      %116 = dma.done [#allocation12], 16
    $region61: #{tpu_custom_call.1} parent=1 // pred_fallthru
      _
    %v118 = vld [vmem:[%s0] sm:$0xf]
    %v119 = vld [vmem:[%s0 + $0x4] sm:$0x7]
    %v120 = vld [vmem:[%s0 + $0x8] sm:$0xf]
    %v121 = vld [vmem:[%s0 + $0xc] sm:$0x7]
    %v122 = vld [vmem:[%s0 + $0x10] sm:$0xf]
    %v123 = vld [vmem:[%s0 + $0x14] sm:$0x7]
    %v124 = vld [vmem:[%s0 + $0x18] sm:$0xf]
    %v125 = vld [vmem:[%s0 + $0x1c] sm:$0x7]
    %v126 = vld [vmem:[%s0 + $0x20] sm:$0xf]
    %v127 = vld [vmem:[%s0 + $0x24] sm:$0x7]
    %v128 = vld [vmem:[%s0 + $0x28] sm:$0xf]
    %v129 = vld [vmem:[%s0 + $0x2c] sm:$0x7]
    %v130 = vld [vmem:[%s0 + $0x30] sm:$0xf]
    %v131 = vld [vmem:[%s0 + $0x34] sm:$0x7]
    %v132 = vld [vmem:[%s0 + $0x38] sm:$0xf]
    %v133 = vld [vmem:[%s0 + $0x3c] sm:$0x7]
    %v134 = vld [vmem:[%s0 + $0x40] sm:$0xf]
    %v135 = vld [vmem:[%s0 + $0x44] sm:$0x7]
    %v136 = vld [vmem:[%s0 + $0x48] sm:$0xf]
    %v137 = vld [vmem:[%s0 + $0x4c] sm:$0x7]
    %v138 = vld [vmem:[%s0 + $0x50] sm:$0xf]
    %v139 = vld [vmem:[%s0 + $0x54] sm:$0x7]
    %v140 = vld [vmem:[%s0 + $0x58] sm:$0xf]
    %v141 = vld [vmem:[%s0 + $0x5c] sm:$0x7]
    %v142 = vld [vmem:[%s0 + $0x60] sm:$0xf]
    %v143 = vld [vmem:[%s0 + $0x64] sm:$0x7]
    %v144 = vld [vmem:[%s0 + $0x68] sm:$0xf]
    %v145 = vld [vmem:[%s0 + $0x6c] sm:$0x7]
    %v146 = vld [vmem:[%s0 + $0x70] sm:$0xf]
    %v147 = vld [vmem:[%s0 + $0x74] sm:$0x7]
    %v148 = vld [vmem:[%s0 + $0x78] sm:$0xf]
    %v149 = vld [vmem:[%s0 + $0x7c] sm:$0x7]
    %v150 = vld [vmem:[%s0 + $0x80] sm:$0xf]
    %v151 = vld [vmem:[%s0 + $0x84] sm:$0x7]
    %v152 = vld [vmem:[%s0 + $0x88] sm:$0xf]
    %v153 = vld [vmem:[%s0 + $0x8c] sm:$0x7]
    %v154 = vld [vmem:[%s0 + $0x90] sm:$0xf]
    %v155 = vld [vmem:[%s0 + $0x94] sm:$0x7]
    %v156 = vld [vmem:[%s0 + $0x98] sm:$0xf]
    %v157 = vld [vmem:[%s0 + $0x9c] sm:$0x7]
    %v158 = vld [vmem:[%s0 + $0xa0] sm:$0xf]
    %v159 = vld [vmem:[%s0 + $0xa4] sm:$0x7]
    %v160 = vld [vmem:[%s0 + $0xa8] sm:$0xf]
    %v161 = vld [vmem:[%s0 + $0xac] sm:$0x7]
    %v162 = vld [vmem:[%s0 + $0xb0] sm:$0xf]
    %v163 = vld [vmem:[%s0 + $0xb4] sm:$0x7]
    %v164 = vld [vmem:[%s0 + $0xb8] sm:$0xf]
    %v165 = vld [vmem:[%s0 + $0xbc] sm:$0x7]
    %v166 = vld [vmem:[%s0 + $0xc0] sm:$0xf]
    %v167 = vld [vmem:[%s0 + $0xc4] sm:$0x7]
    %v168 = vld [vmem:[%s0 + $0xc8] sm:$0xf]
    %v169 = vld [vmem:[%s0 + $0xcc] sm:$0x7]
    %v170 = vld [vmem:[%s0 + $0xd0] sm:$0xf]
    %v171 = vld [vmem:[%s0 + $0xd4] sm:$0x7]
    %v172 = vld [vmem:[%s0 + $0xd8] sm:$0xf]
    %v173 = vld [vmem:[%s0 + $0xdc] sm:$0x7]
    %v174 = vunpack.c.l.bf16 %v118
    %v175 = vunpack.c.l.bf16 %v119
    %v176 = vunpack.c.l.bf16 %v120
    %v177 = vunpack.c.l.bf16 %v121
    %v178 = vunpack.c.l.bf16 %v122
    %v179 = vunpack.c.l.bf16 %v123
    %v180 = vunpack.c.l.bf16 %v124
    %v181 = vunpack.c.l.bf16 %v125
    %v182 = vunpack.c.l.bf16 %v126
    %v183 = vunpack.c.l.bf16 %v127
    %v184 = vunpack.c.l.bf16 %v128
    %v185 = vunpack.c.l.bf16 %v129
    %v186 = vunpack.c.l.bf16 %v130
    %v187 = vunpack.c.l.bf16 %v131
    %v188 = vunpack.c.l.bf16 %v132
    %v189 = vunpack.c.l.bf16 %v133
    %v190 = vunpack.c.l.bf16 %v134
    %v191 = vunpack.c.l.bf16 %v135
    %v192 = vunpack.c.l.bf16 %v136
    %v193 = vunpack.c.l.bf16 %v137
    %v194 = vunpack.c.l.bf16 %v138
    %v195 = vunpack.c.l.bf16 %v139
    %v196 = vunpack.c.l.bf16 %v140
    %v197 = vunpack.c.l.bf16 %v141
    %v198 = vunpack.c.l.bf16 %v142
    %v199 = vunpack.c.l.bf16 %v143
    %v200 = vunpack.c.l.bf16 %v144
    %v201 = vunpack.c.l.bf16 %v145
    %v202 = vunpack.c.l.bf16 %v146
    %v203 = vunpack.c.l.bf16 %v147
    %v204 = vunpack.c.l.bf16 %v148
    %v205 = vunpack.c.l.bf16 %v149
    %v206 = vunpack.c.l.bf16 %v150
    %v207 = vunpack.c.l.bf16 %v151
    %v208 = vunpack.c.l.bf16 %v152
    %v209 = vunpack.c.l.bf16 %v153
    %v210 = vunpack.c.l.bf16 %v154
    %v211 = vunpack.c.l.bf16 %v155
    %v212 = vunpack.c.l.bf16 %v156
    %v213 = vunpack.c.l.bf16 %v157
    %v214 = vunpack.c.l.bf16 %v158
    %v215 = vunpack.c.l.bf16 %v159
    %v216 = vunpack.c.l.bf16 %v160
    %v217 = vunpack.c.l.bf16 %v161
    %v218 = vunpack.c.l.bf16 %v162
    %v219 = vunpack.c.l.bf16 %v163
    %v220 = vunpack.c.l.bf16 %v164
    %v221 = vunpack.c.l.bf16 %v165
    %v222 = vunpack.c.l.bf16 %v166
    %v223 = vunpack.c.l.bf16 %v167
    %v224 = vunpack.c.l.bf16 %v168
    %v225 = vunpack.c.l.bf16 %v169
    %v226 = vunpack.c.l.bf16 %v170
    %v227 = vunpack.c.l.bf16 %v171
    %v228 = vunpack.c.l.bf16 %v172
    %v229 = vunpack.c.l.bf16 %v173
    %v230 = vadd.f32 %v174, %v176
    %v231 = vadd.f32 %v230, %v178
    %v232 = vadd.f32 %v231, %v180
    %v233 = vadd.f32 %v232, %v182
    %vm234 = vcmask 1045504
    %v235 = vsel %vm234, %v175, 0.0
    %v236 = vsel %vm234, %v177, 0.0
    %v237 = vadd.f32 %v235, %v236
    %v238 = vsel %vm234, %v179, 0.0
    %v239 = vadd.f32 %v237, %v238
    %v240 = vsel %vm234, %v181, 0.0
    %v241 = vadd.f32 %v239, %v240
    %v242 = vsel %vm234, %v183, 0.0
    %v243 = vadd.f32 %v241, %v242
    %v244 = vadd.f32 %v202, %v204
    %v245 = vadd.f32 %v244, %v206
    %v246 = vadd.f32 %v245, %v208
    %v247 = vadd.f32 %v246, %v210
    %v248 = vsel %vm234, %v203, 0.0
    %v249 = vsel %vm234, %v205, 0.0
    %v250 = vadd.f32 %v248, %v249
    %v251 = vsel %vm234, %v207, 0.0
    %v252 = vadd.f32 %v250, %v251
    %v253 = vsel %vm234, %v209, 0.0
    %v254 = vadd.f32 %v252, %v253
    %v255 = vsel %vm234, %v211, 0.0
    %v256 = vadd.f32 %v254, %v255
    %v257 = vadd.f32 %v180, %v182
    %v258 = vadd.f32 %v257, %v184
    %v259 = vadd.f32 %v258, %v186
    %v260 = vadd.f32 %v259, %v188
    %v261 = vadd.f32 %v240, %v242
    %v262 = vsel %vm234, %v185, 0.0
    %v263 = vadd.f32 %v261, %v262
    %v264 = vsel %vm234, %v187, 0.0
    %v265 = vadd.f32 %v263, %v264
    %v266 = vsel %vm234, %v189, 0.0
    %v267 = vadd.f32 %v265, %v266
    %v268 = vadd.f32 %v208, %v210
    %v269 = vadd.f32 %v268, %v212
    %v270 = vadd.f32 %v269, %v214
    %v271 = vadd.f32 %v270, %v216
    %v272 = vadd.f32 %v253, %v255
    %v273 = vsel %vm234, %v213, 0.0
    %v274 = vadd.f32 %v272, %v273
    %v275 = vsel %vm234, %v215, 0.0
    %v276 = vadd.f32 %v274, %v275
    %v277 = vsel %vm234, %v217, 0.0
    %v278 = vadd.f32 %v276, %v277
    %v279 = vadd.f32 %v186, %v188
    %v280 = vadd.f32 %v279, %v190
    %v281 = vadd.f32 %v280, %v192
    %v282 = vadd.f32 %v281, %v194
    %v283 = vadd.f32 %v264, %v266
    %v284 = vsel %vm234, %v191, 0.0
    %v285 = vadd.f32 %v283, %v284
    %v286 = vsel %vm234, %v193, 0.0
    %v287 = vadd.f32 %v285, %v286
    %v288 = vsel %vm234, %v195, 0.0
    %v289 = vadd.f32 %v287, %v288
    %v290 = vadd.f32 %v214, %v216
    %v291 = vadd.f32 %v290, %v218
    %v292 = vadd.f32 %v291, %v220
    %v293 = vadd.f32 %v292, %v222
    %v294 = vadd.f32 %v275, %v277
    %v295 = vsel %vm234, %v219, 0.0
    %v296 = vadd.f32 %v294, %v295
    %v297 = vsel %vm234, %v221, 0.0
    %v298 = vadd.f32 %v296, %v297
    %v299 = vsel %vm234, %v223, 0.0
    %v300 = vadd.f32 %v298, %v299
    %v301 = vadd.f32 %v192, %v194
    %v302 = vadd.f32 %v301, %v196
    %v303 = vadd.f32 %v302, %v198
    %v304 = vadd.f32 %v303, %v200
    %v305 = vadd.f32 %v286, %v288
    %v306 = vsel %vm234, %v197, 0.0
    %v307 = vadd.f32 %v305, %v306
    %v308 = vsel %vm234, %v199, 0.0
    %v309 = vadd.f32 %v307, %v308
    %v310 = vsel %vm234, %v201, 0.0
    %v311 = vadd.f32 %v309, %v310
    %v312 = vadd.f32 %v220, %v222
    %v313 = vadd.f32 %v312, %v224
    %v314 = vadd.f32 %v313, %v226
    %v315 = vadd.f32 %v314, %v228
    %v316 = vadd.f32 %v297, %v299
    %v317 = vsel %vm234, %v225, 0.0
    %v318 = vadd.f32 %v316, %v317
    %v319 = vsel %vm234, %v227, 0.0
    %v320 = vadd.f32 %v318, %v319
    %v321 = vsel %vm234, %v229, 0.0
    %v322 = vadd.f32 %v320, %v321
    %vm323 = vcmask 1044480
    %v324 = vsel %vm323, %v233, 0.0
    %v325 = vrot.slane %v324, 4
    %v326 = vadd.f32 %v324, %v325
    %v327 = vrot.slane %v326, 2
    %v328 = vadd.f32 %v326, %v327
    %v329 = vrot.slane %v328, 1
    %v330 = vadd.f32 %v328, %v329
    %v331 = vsel %vm323, %v260, 0.0
    %v332 = vrot.slane %v331, 4
    %v333 = vadd.f32 %v331, %v332
    %v334 = vrot.slane %v333, 2
    %v335 = vadd.f32 %v333, %v334
    %v336 = vrot.slane %v335, 1
    %v337 = vadd.f32 %v335, %v336
    %v338 = vsel %vm323, %v282, 0.0
    %v339 = vrot.slane %v338, 4
    %v340 = vadd.f32 %v338, %v339
    %v341 = vrot.slane %v340, 2
    %v342 = vadd.f32 %v340, %v341
    %v343 = vrot.slane %v342, 1
    %v344 = vadd.f32 %v342, %v343
    %v345 = vsel %vm323, %v304, 0.0
    %v346 = vrot.slane %v345, 4
    %v347 = vadd.f32 %v345, %v346
    %v348 = vrot.slane %v347, 2
    %v349 = vadd.f32 %v347, %v348
    %v350 = vrot.slane %v349, 1
    %v351 = vadd.f32 %v349, %v350
    %v352 = vsel %vm323, %v247, 0.0
    %v353 = vrot.slane %v352, 4
    %v354 = vadd.f32 %v352, %v353
    %v355 = vrot.slane %v354, 2
    %v356 = vadd.f32 %v354, %v355
    %v357 = vrot.slane %v356, 1
    %v358 = vadd.f32 %v356, %v357
    %v359 = vsel %vm323, %v271, 0.0
    %v360 = vrot.slane %v359, 4
    %v361 = vadd.f32 %v359, %v360
    %v362 = vrot.slane %v361, 2
    %v363 = vadd.f32 %v361, %v362
    %v364 = vrot.slane %v363, 1
    %v365 = vadd.f32 %v363, %v364
    %v366 = vsel %vm323, %v293, 0.0
    %v367 = vrot.slane %v366, 4
    %v368 = vadd.f32 %v366, %v367
    %v369 = vrot.slane %v368, 2
    %v370 = vadd.f32 %v368, %v369
    %v371 = vrot.slane %v370, 1
    %v372 = vadd.f32 %v370, %v371
    %v373 = vsel %vm323, %v315, 0.0
    %v374 = vrot.slane %v373, 4
    %v375 = vadd.f32 %v373, %v374
    %v376 = vrot.slane %v375, 2
    %v377 = vadd.f32 %v375, %v376
    %v378 = vrot.slane %v377, 1
    %v379 = vadd.f32 %v377, %v378
    %v388 = vrot.slane %v233, 3
    %v389 = vrot.slane %v260, 3
    %v390 = vrot.slane %v282, 3
    %v391 = vrot.slane %v304, 3
    %v392 = vrot.slane %v247, 3
    %v393 = vrot.slane %v271, 3
    %v394 = vrot.slane %v293, 3
    %v395 = vrot.slane %v315, 3
    %v404 = vsel %vm323, %v388, 0.0
    %v405 = vrot.slane %v404, 4
    %v406 = vadd.f32 %v404, %v405
    %v407 = vrot.slane %v406, 2
    %v408 = vadd.f32 %v406, %v407
    %v409 = vrot.slane %v408, 1
    %v410 = vadd.f32 %v408, %v409
    %v411 = vsel %vm323, %v389, 0.0
    %v412 = vrot.slane %v411, 4
    %v413 = vadd.f32 %v411, %v412
    %v414 = vrot.slane %v413, 2
    %v415 = vadd.f32 %v413, %v414
    %v416 = vrot.slane %v415, 1
    %v417 = vadd.f32 %v415, %v416
    %v418 = vsel %vm323, %v390, 0.0
    %v419 = vrot.slane %v418, 4
    %v420 = vadd.f32 %v418, %v419
    %v421 = vrot.slane %v420, 2
    %v422 = vadd.f32 %v420, %v421
    %v423 = vrot.slane %v422, 1
    %v424 = vadd.f32 %v422, %v423
    %v425 = vsel %vm323, %v391, 0.0
    %v426 = vrot.slane %v425, 4
    %v427 = vadd.f32 %v425, %v426
    %v428 = vrot.slane %v427, 2
    %v429 = vadd.f32 %v427, %v428
    %v430 = vrot.slane %v429, 1
    %v431 = vadd.f32 %v429, %v430
    %v432 = vsel %vm323, %v392, 0.0
    %v433 = vrot.slane %v432, 4
    %v434 = vadd.f32 %v432, %v433
    %v435 = vrot.slane %v434, 2
    %v436 = vadd.f32 %v434, %v435
    %v437 = vrot.slane %v436, 1
    %v438 = vadd.f32 %v436, %v437
    %v439 = vsel %vm323, %v393, 0.0
    %v440 = vrot.slane %v439, 4
    %v441 = vadd.f32 %v439, %v440
    %v442 = vrot.slane %v441, 2
    %v443 = vadd.f32 %v441, %v442
    %v444 = vrot.slane %v443, 1
    %v445 = vadd.f32 %v443, %v444
    %v446 = vsel %vm323, %v394, 0.0
    %v447 = vrot.slane %v446, 4
    %v448 = vadd.f32 %v446, %v447
    %v449 = vrot.slane %v448, 2
    %v450 = vadd.f32 %v448, %v449
    %v451 = vrot.slane %v450, 1
    %v452 = vadd.f32 %v450, %v451
    %v453 = vsel %vm323, %v395, 0.0
    %v454 = vrot.slane %v453, 4
    %v455 = vadd.f32 %v453, %v454
    %v456 = vrot.slane %v455, 2
    %v457 = vadd.f32 %v455, %v456
    %v458 = vrot.slane %v457, 1
    %v459 = vadd.f32 %v457, %v458
    %vm468 = vcmask 1041408
    %v469 = vrot.slane %v233, 6
    %v470 = vrot.slane %v243, 6
    %v471 = vsel %vm468, %v469, %v470
    %v472 = vrot.slane %v260, 6
    %v473 = vrot.slane %v267, 6
    %v474 = vsel %vm468, %v472, %v473
    %v475 = vrot.slane %v282, 6
    %v476 = vrot.slane %v289, 6
    %v477 = vsel %vm468, %v475, %v476
    %v478 = vrot.slane %v304, 6
    %v479 = vrot.slane %v311, 6
    %v480 = vsel %vm468, %v478, %v479
    %v481 = vrot.slane %v247, 6
    %v482 = vrot.slane %v256, 6
    %v483 = vsel %vm468, %v481, %v482
    %v484 = vrot.slane %v271, 6
    %v485 = vrot.slane %v278, 6
    %v486 = vsel %vm468, %v484, %v485
    %v487 = vrot.slane %v293, 6
    %v488 = vrot.slane %v300, 6
    %v489 = vsel %vm468, %v487, %v488
    %v490 = vrot.slane %v315, 6
    %v491 = vrot.slane %v322, 6
    %v492 = vsel %vm468, %v490, %v491
    %v501 = vsel %vm323, %v471, 0.0
    %v502 = vrot.slane %v501, 4
    %v503 = vadd.f32 %v501, %v502
    %v504 = vrot.slane %v503, 2
    %v505 = vadd.f32 %v503, %v504
    %v506 = vrot.slane %v505, 1
    %v507 = vadd.f32 %v505, %v506
    %v508 = vsel %vm323, %v474, 0.0
    %v509 = vrot.slane %v508, 4
    %v510 = vadd.f32 %v508, %v509
    %v511 = vrot.slane %v510, 2
    %v512 = vadd.f32 %v510, %v511
    %v513 = vrot.slane %v512, 1
    %v514 = vadd.f32 %v512, %v513
    %v515 = vsel %vm323, %v477, 0.0
    %v516 = vrot.slane %v515, 4
    %v517 = vadd.f32 %v515, %v516
    %v518 = vrot.slane %v517, 2
    %v519 = vadd.f32 %v517, %v518
    %v520 = vrot.slane %v519, 1
    %v521 = vadd.f32 %v519, %v520
    %v522 = vsel %vm323, %v480, 0.0
    %v523 = vrot.slane %v522, 4
    %v524 = vadd.f32 %v522, %v523
    %v525 = vrot.slane %v524, 2
    %v526 = vadd.f32 %v524, %v525
    %v527 = vrot.slane %v526, 1
    %v528 = vadd.f32 %v526, %v527
    %v529 = vsel %vm323, %v483, 0.0
    %v530 = vrot.slane %v529, 4
    %v531 = vadd.f32 %v529, %v530
    %v532 = vrot.slane %v531, 2
    %v533 = vadd.f32 %v531, %v532
    %v534 = vrot.slane %v533, 1
    %v535 = vadd.f32 %v533, %v534
    %v536 = vsel %vm323, %v486, 0.0
    %v537 = vrot.slane %v536, 4
    %v538 = vadd.f32 %v536, %v537
    %v539 = vrot.slane %v538, 2
    %v540 = vadd.f32 %v538, %v539
    %v541 = vrot.slane %v540, 1
    %v542 = vadd.f32 %v540, %v541
    %v543 = vsel %vm323, %v489, 0.0
    %v544 = vrot.slane %v543, 4
    %v545 = vadd.f32 %v543, %v544
    %v546 = vrot.slane %v545, 2
    %v547 = vadd.f32 %v545, %v546
    %v548 = vrot.slane %v547, 1
    %v549 = vadd.f32 %v547, %v548
    %v550 = vsel %vm323, %v492, 0.0
    %v551 = vrot.slane %v550, 4
    %v552 = vadd.f32 %v550, %v551
    %v553 = vrot.slane %v552, 2
    %v554 = vadd.f32 %v552, %v553
    %v555 = vrot.slane %v554, 1
    %v556 = vadd.f32 %v554, %v555
    %v557 = vrot.slane %v243, 1
    %v558 = vrot.slane %v267, 1
    %v559 = vrot.slane %v289, 1
    %v560 = vrot.slane %v311, 1
    %v561 = vrot.slane %v256, 1
    %v562 = vrot.slane %v278, 1
    %v563 = vrot.slane %v300, 1
    %v564 = vrot.slane %v322, 1
    %v573 = vsel %vm323, %v557, 0.0
    %v574 = vrot.slane %v573, 4
    %v575 = vadd.f32 %v573, %v574
    %v576 = vrot.slane %v575, 2
    %v577 = vadd.f32 %v575, %v576
    %v578 = vrot.slane %v577, 1
    %v579 = vadd.f32 %v577, %v578
    %v580 = vsel %vm323, %v558, 0.0
    %v581 = vrot.slane %v580, 4
    %v582 = vadd.f32 %v580, %v581
    %v583 = vrot.slane %v582, 2
    %v584 = vadd.f32 %v582, %v583
    %v585 = vrot.slane %v584, 1
    %v586 = vadd.f32 %v584, %v585
    %v587 = vsel %vm323, %v559, 0.0
    %v588 = vrot.slane %v587, 4
    %v589 = vadd.f32 %v587, %v588
    %v590 = vrot.slane %v589, 2
    %v591 = vadd.f32 %v589, %v590
    %v592 = vrot.slane %v591, 1
    %v593 = vadd.f32 %v591, %v592
    %v594 = vsel %vm323, %v560, 0.0
    %v595 = vrot.slane %v594, 4
    %v596 = vadd.f32 %v594, %v595
    %v597 = vrot.slane %v596, 2
    %v598 = vadd.f32 %v596, %v597
    %v599 = vrot.slane %v598, 1
    %v600 = vadd.f32 %v598, %v599
    %v601 = vsel %vm323, %v561, 0.0
    %v602 = vrot.slane %v601, 4
    %v603 = vadd.f32 %v601, %v602
    %v604 = vrot.slane %v603, 2
    %v605 = vadd.f32 %v603, %v604
    %v606 = vrot.slane %v605, 1
    %v607 = vadd.f32 %v605, %v606
    %v608 = vsel %vm323, %v562, 0.0
    %v609 = vrot.slane %v608, 4
    %v610 = vadd.f32 %v608, %v609
    %v611 = vrot.slane %v610, 2
    %v612 = vadd.f32 %v610, %v611
    %v613 = vrot.slane %v612, 1
    %v614 = vadd.f32 %v612, %v613
    %v615 = vsel %vm323, %v563, 0.0
    %v616 = vrot.slane %v615, 4
    %v617 = vadd.f32 %v615, %v616
    %v618 = vrot.slane %v617, 2
    %v619 = vadd.f32 %v617, %v618
    %v620 = vrot.slane %v619, 1
    %v621 = vadd.f32 %v619, %v620
    %v622 = vsel %vm323, %v564, 0.0
    %v623 = vrot.slane %v622, 4
    %v624 = vadd.f32 %v622, %v623
    %v625 = vrot.slane %v624, 2
    %v626 = vadd.f32 %v624, %v625
    %v627 = vrot.slane %v626, 1
    %v628 = vadd.f32 %v626, %v627
    %vm629 = vcmask 1040384
    %v630 = vsel %vm629, %v330, %v410
    %v631 = vsel %vm629, %v337, %v417
    %v632 = vsel %vm629, %v344, %v424
    %v633 = vsel %vm629, %v351, %v431
    %v634 = vsel %vm629, %v358, %v438
    %v635 = vsel %vm629, %v365, %v445
    %v636 = vsel %vm629, %v372, %v452
    %v637 = vsel %vm629, %v379, %v459
    %v638 = vsel %vm468, %v630, %v507
    %v639 = vsel %vm468, %v631, %v514
    %v640 = vsel %vm468, %v632, %v521
    %v641 = vsel %vm468, %v633, %v528
    %v642 = vsel %vm468, %v634, %v535
    %v643 = vsel %vm468, %v635, %v542
    %v644 = vsel %vm468, %v636, %v549
    %v645 = vsel %vm468, %v637, %v556
    %vm646 = vcmask 1042432
    %v647 = vsel %vm646, %v638, %v579
    %v648 = vsel %vm646, %v639, %v586
    %v649 = vsel %vm646, %v640, %v593
    %v650 = vsel %vm646, %v641, %v600
    %v651 = vsel %vm646, %v642, %v607
    %v652 = vsel %vm646, %v643, %v614
    %v653 = vsel %vm646, %v644, %v621
    %v654 = vsel %vm646, %v645, %v628
    %v655 = vmul.f32 %v647, 0.04
    %v656 = vmul.f32 %v648, 0.04
    %v657 = vmul.f32 %v649, 0.04
    %v658 = vmul.f32 %v650, 0.04
    %v659 = vmul.f32 %v651, 0.04
    %v660 = vmul.f32 %v652, 0.04
    %v661 = vmul.f32 %v653, 0.04
    %v662 = vmul.f32 %v654, 0.04
    %v671 = vcombine.low %v655, %v656
    %v672 = vcombine.low %v657, %v658
    %v673 = vcombine.low %v659, %v660
    %v674 = vcombine.low %v661, %v662
    %v679 = vpack.c.bf16 %v672, %v671
    %v680 = vpack.c.bf16 %v674, %v673
    %v681 = vld [vmem:[#allocation2] sm:$0xf]
    %v682 = vld [vmem:[#allocation2 + $0x4] sm:$0xf]
    %v683 = vld [vmem:[#allocation2 + $0x8] sm:$0xf]
    %v684 = vld [vmem:[#allocation2 + $0xc] sm:$0xf]
    %v685 = vld [vmem:[#allocation2 + $0x10] sm:$0xf]
    %v686 = vld [vmem:[#allocation2 + $0x14] sm:$0xf]
    %v687 = vld [vmem:[#allocation2 + $0x18] sm:$0xf]
    %v688 = vld [vmem:[#allocation2 + $0x1c] sm:$0xf]
    %v689 = vld [vmem:[#allocation2 + $0x20] sm:$0xf]
    %v690 = vld [vmem:[#allocation2 + $0x24] sm:$0xf]
    %v691 = vld [vmem:[#allocation2 + $0x28] sm:$0xf]
    %v692 = vld [vmem:[#allocation2 + $0x2c] sm:$0xf]
    %v693 = vld [vmem:[#allocation2 + $0x30] sm:$0xf]
    %v694 = vld [vmem:[#allocation2 + $0x34] sm:$0xf]
    %v695 = vld [vmem:[#allocation2 + $0x38] sm:$0xf]
    %v696 = vld [vmem:[#allocation2 + $0x3c] sm:$0xf]
    %v713 = vunpack.c.l.b16 %v681
    %v714 = vunpack.c.l.b16 %v682
    %v715 = vunpack.c.l.b16 %v683
    %v716 = vunpack.c.l.b16 %v684
    %v717 = vunpack.c.l.b16 %v685
    %v718 = vunpack.c.l.b16 %v686
    %v719 = vunpack.c.l.b16 %v687
    %v720 = vunpack.c.l.b16 %v688
    %v721 = vunpack.c.l.b16 %v689
    %v722 = vunpack.c.l.b16 %v690
    %v723 = vunpack.c.l.b16 %v691
    %v724 = vunpack.c.l.b16 %v692
    %v725 = vunpack.c.l.b16 %v693
    %v726 = vunpack.c.l.b16 %v694
    %v727 = vunpack.c.l.b16 %v695
    %v728 = vunpack.c.l.b16 %v696
    %v729 = vpack.c.b16 %v714, %v713
    %v730 = vpack.c.b16 %v716, %v715
    %v731 = vpack.c.b16 %v718, %v717
    %v732 = vpack.c.b16 %v720, %v719
    %v733 = vpack.c.b16 %v722, %v721
    %v734 = vpack.c.b16 %v724, %v723
    %v735 = vpack.c.b16 %v726, %v725
    %v736 = vpack.c.b16 %v728, %v727
    %745 = vmatprep.subr.bf16.mxu0 0
    %746 = vmatpush1.bf16.msra.mxu0 %v729
    %747 = vmatprep.subr.bf16.mxu0 0
    %748 = vmatpush1.bf16.msra.mxu0 %v730
    %749 = vmatprep.subr.bf16.mxu0 0
    %750 = vmatpush1.bf16.msra.mxu0 %v731
    %751 = vmatprep.subr.bf16.mxu0 0
    %752 = vmatpush1.bf16.msra.mxu0 %v732
    %753 = vmatprep.subr.bf16.mxu0 0
    %754 = vmatpush1.bf16.msra.mxu0 %v733
    %755 = vmatprep.subr.bf16.mxu0 0
    %756 = vmatpush1.bf16.msra.mxu0 %v734
    %757 = vmatprep.subr.bf16.mxu0 0
    %758 = vmatpush1.bf16.msra.mxu0 %v735
    %759 = vmatprep.subr.bf16.mxu0 0
    %760 = vmatpush1.bf16.msra.mxu0 %v736
    %761 = vmatprep.subr.bf16.mxu0 0
    %762 = vmatpush1.bf16.msra.mxu0 0
    %763 = vmatprep.subr.bf16.mxu0 0
    %764 = vmatpush1.bf16.msra.mxu0 0
    %765 = vmatprep.subr.bf16.mxu0 0
    %766 = vmatpush1.bf16.msra.mxu0 0
    %767 = vmatprep.subr.bf16.mxu0 0
    %768 = vmatpush1.bf16.msra.mxu0 0
    %769 = vmatprep.subr.bf16.mxu0 0
    %770 = vmatpush1.bf16.msra.mxu0 0
    %771 = vmatprep.subr.bf16.mxu0 0
    %772 = vmatpush1.bf16.msra.mxu0 0
    %773 = vmatprep.subr.bf16.mxu0 0
    %774 = vmatpush1.bf16.msra.mxu0 0
    %775 = vmatprep.subr.bf16.mxu0 0
    %776 = vmatpush1.bf16.msra.mxu0 0
    %777 = vmatprep.mubr.bf16.mxu0 0
    %778 = vmatmul.mubr.bf16.gmra.mrb[0].mxu0 %v679
    %v779 = vpop.f32.mrb[0].mxu0
    %v780 = vadd.f32 0.0, %v779
    %v781 = vpop.f32.mrb[0].mxu0
    %v782 = vpop.f32.mrb[0].mxu0
    %v783 = vadd.f32 0.0, %v782
    %v784 = vpop.f32.mrb[0].mxu0
    %785 = vmatprep.mubr.bf16.mxu0 0
    %786 = vmatmul.mubr.bf16.gmra.mrb[0].mxu0 %v680
    %v787 = vpop.f32.mrb[0].mxu0
    %v788 = vadd.f32 0.0, %v787
    %v789 = vpop.f32.mrb[0].mxu0
    %v790 = vpop.f32.mrb[0].mxu0
    %v791 = vadd.f32 0.0, %v790
    %v792 = vpop.f32.mrb[0].mxu0
    %793 = vdwg.mxu0
    %v794 = vld [vmem:[#allocation5] sm:$0x1]
    %v796 = vlaneseq
    %v797 = vshrl.u32 %v796, 7
    %v798 = vsub.s32 0, %v797
    %v799 = vrot.slane %v794, %v798
    %v801 = vmul.f32 %v780, %v799
    %v802 = vmul.f32 %v783, %v799
    %v803 = vmul.f32 %v788, %v799
    %v804 = vmul.f32 %v791, %v799
    %v805 = vld [vmem:[#allocation7] sm:$0x1]
    %v807 = vlaneseq
    %v808 = vshrl.u32 %v807, 7
    %v809 = vsub.s32 0, %v808
    %v810 = vrot.slane %v805, %v809
    %v812 = vadd.f32 %v801, %v810
    %v813 = vadd.f32 %v802, %v810
    %v814 = vadd.f32 %v803, %v810
    %v815 = vadd.f32 %v804, %v810
    %v816 = vmax.f32 %v812, 0.0
    %v817 = vmax.f32 %v813, 0.0
    %v818 = vmax.f32 %v814, 0.0
    %v819 = vmax.f32 %v815, 0.0
    %v824 = vcombine.low %v816, %v818
    %v825 = vcombine.high %v816, %v818
    %v827 = vunpack.c.l.s4 1966171168
    %v828 = vunpack.c.0.s8 %v827
    %v829 = vlaneseq
    %v830 = vshrl.u32 %v829, 7
    %v831 = vsub.s32 %v828, %v830
    %v832 = vrot.slane %v824, %v831
    %v834 = vunpack.c.l.s4 1966171168
    %v835 = vunpack.c.0.s8 %v834
    %v836 = vlaneseq
    %v837 = vshrl.u32 %v836, 7
    %v838 = vsub.s32 %v835, %v837
    %v839 = vrot.slane %v825, %v838
    %v840 = vcombine.high %v832, %v832
    %v841 = vcombine.high %v839, %v839
    %v843 = vunpack.c.l.s4 1966171168
    %v844 = vunpack.c.0.s8 %v843
    %v845 = vlaneseq
    %v846 = vshrl.u32 %v845, 7
    %v847 = vsub.s32 %v844, %v846
    %v848 = vrot.slane %v832, %v847
    %v850 = vunpack.c.l.s4 1966171168
    %v851 = vunpack.c.0.s8 %v850
    %v852 = vlaneseq
    %v853 = vshrl.u32 %v852, 7
    %v854 = vsub.s32 %v851, %v853
    %v855 = vrot.slane %v839, %v854
    %v857 = vunpack.c.l.s4 1966171168
    %v858 = vunpack.c.0.s8 %v857
    %v859 = vlaneseq
    %v860 = vshrl.u32 %v859, 7
    %v861 = vsub.s32 %v858, %v860
    %v862 = vrot.slane %v840, %v861
    %v864 = vunpack.c.l.s4 1966171168
    %v865 = vunpack.c.0.s8 %v864
    %v866 = vlaneseq
    %v867 = vshrl.u32 %v866, 7
    %v868 = vsub.s32 %v865, %v867
    %v869 = vrot.slane %v841, %v868
    %v870 = vcombine.high %v848, %v848
    %v871 = vcombine.high %v855, %v855
    %v872 = vcombine.high %v862, %v862
    %v873 = vcombine.high %v869, %v869
    %v874 = vcombine.low %v817, %v819
    %v875 = vcombine.high %v817, %v819
    %v877 = vunpack.c.l.s4 1966171168
    %v878 = vunpack.c.0.s8 %v877
    %v879 = vlaneseq
    %v880 = vshrl.u32 %v879, 7
    %v881 = vsub.s32 %v878, %v880
    %v882 = vrot.slane %v874, %v881
    %v884 = vunpack.c.l.s4 1966171168
    %v885 = vunpack.c.0.s8 %v884
    %v886 = vlaneseq
    %v887 = vshrl.u32 %v886, 7
    %v888 = vsub.s32 %v885, %v887
    %v889 = vrot.slane %v875, %v888
    %v890 = vcombine.high %v882, %v882
    %v891 = vcombine.high %v889, %v889
    %v893 = vunpack.c.l.s4 1966171168
    %v894 = vunpack.c.0.s8 %v893
    %v895 = vlaneseq
    %v896 = vshrl.u32 %v895, 7
    %v897 = vsub.s32 %v894, %v896
    %v898 = vrot.slane %v882, %v897
    %v900 = vunpack.c.l.s4 1966171168
    %v901 = vunpack.c.0.s8 %v900
    %v902 = vlaneseq
    %v903 = vshrl.u32 %v902, 7
    %v904 = vsub.s32 %v901, %v903
    %v905 = vrot.slane %v889, %v904
    %v907 = vunpack.c.l.s4 1966171168
    %v908 = vunpack.c.0.s8 %v907
    %v909 = vlaneseq
    %v910 = vshrl.u32 %v909, 7
    %v911 = vsub.s32 %v908, %v910
    %v912 = vrot.slane %v890, %v911
    %v914 = vunpack.c.l.s4 1966171168
    %v915 = vunpack.c.0.s8 %v914
    %v916 = vlaneseq
    %v917 = vshrl.u32 %v916, 7
    %v918 = vsub.s32 %v915, %v917
    %v919 = vrot.slane %v891, %v918
    %v920 = vcombine.high %v898, %v898
    %v921 = vcombine.high %v905, %v905
    %v922 = vcombine.high %v912, %v912
    %v923 = vcombine.high %v919, %v919
    %v940 = vpack.c.bf16 %v848, %v848
    %v941 = vpack.c.bf16 %v862, %v862
    %v942 = vpack.c.bf16 %v870, %v870
    %v943 = vpack.c.bf16 %v872, %v872
    %v944 = vpack.c.bf16 %v855, %v855
    %v945 = vpack.c.bf16 %v869, %v869
    %v946 = vpack.c.bf16 %v871, %v871
    %v947 = vpack.c.bf16 %v873, %v873
    %v948 = vpack.c.bf16 %v898, %v898
    %v949 = vpack.c.bf16 %v912, %v912
    %v950 = vpack.c.bf16 %v920, %v920
    %v951 = vpack.c.bf16 %v922, %v922
    %v952 = vpack.c.bf16 %v905, %v905
    %v953 = vpack.c.bf16 %v919, %v919
    %v954 = vpack.c.bf16 %v921, %v921
    %v955 = vpack.c.bf16 %v923, %v923
    %v956 = vld [vmem:[#allocation8] sm:$0xff]
    %v957 = vld [vmem:[#allocation8 + $0x8] sm:$0xff]
    %v958 = vld [vmem:[#allocation8 + $0x10] sm:$0xff]
    %v959 = vld [vmem:[#allocation8 + $0x18] sm:$0xff]
    %v960 = vld [vmem:[#allocation8 + $0x20] sm:$0xff]
    %v961 = vld [vmem:[#allocation8 + $0x28] sm:$0xff]
    %v962 = vld [vmem:[#allocation8 + $0x30] sm:$0xff]
    %v963 = vld [vmem:[#allocation8 + $0x38] sm:$0xff]
    %v964 = vld [vmem:[#allocation8 + $0x40] sm:$0xff]
    %v965 = vld [vmem:[#allocation8 + $0x48] sm:$0xff]
    %v966 = vld [vmem:[#allocation8 + $0x50] sm:$0xff]
    %v967 = vld [vmem:[#allocation8 + $0x58] sm:$0xff]
    %v968 = vld [vmem:[#allocation8 + $0x60] sm:$0xff]
    %v969 = vld [vmem:[#allocation8 + $0x68] sm:$0xff]
    %v970 = vld [vmem:[#allocation8 + $0x70] sm:$0xff]
    %v971 = vld [vmem:[#allocation8 + $0x78] sm:$0xff]
    %v972 = vld [vmem:[#allocation8 + $0x80] sm:$0xff]
    %v973 = vld [vmem:[#allocation8 + $0x88] sm:$0xff]
    %v974 = vld [vmem:[#allocation8 + $0x90] sm:$0xff]
    %v975 = vld [vmem:[#allocation8 + $0x98] sm:$0xff]
    %v976 = vld [vmem:[#allocation8 + $0xa0] sm:$0xff]
    %v977 = vld [vmem:[#allocation8 + $0xa8] sm:$0xff]
    %v978 = vld [vmem:[#allocation8 + $0xb0] sm:$0xff]
    %v979 = vld [vmem:[#allocation8 + $0xb8] sm:$0xff]
    %v980 = vld [vmem:[#allocation8 + $0xc0] sm:$0xff]
    %v981 = vld [vmem:[#allocation8 + $0xc8] sm:$0xff]
    %v982 = vld [vmem:[#allocation8 + $0xd0] sm:$0xff]
    %v983 = vld [vmem:[#allocation8 + $0xd8] sm:$0xff]
    %v984 = vld [vmem:[#allocation8 + $0xe0] sm:$0xff]
    %v985 = vld [vmem:[#allocation8 + $0xe8] sm:$0xff]
    %v986 = vld [vmem:[#allocation8 + $0xf0] sm:$0xff]
    %v987 = vld [vmem:[#allocation8 + $0xf8] sm:$0xff]
    %v988 = vld [vmem:[#allocation8 + $0x100] sm:$0xff]
    %v989 = vld [vmem:[#allocation8 + $0x108] sm:$0xff]
    %v990 = vld [vmem:[#allocation8 + $0x110] sm:$0xff]
    %v991 = vld [vmem:[#allocation8 + $0x118] sm:$0xff]
    %v992 = vld [vmem:[#allocation8 + $0x120] sm:$0xff]
    %v993 = vld [vmem:[#allocation8 + $0x128] sm:$0xff]
    %v994 = vld [vmem:[#allocation8 + $0x130] sm:$0xff]
    %v995 = vld [vmem:[#allocation8 + $0x138] sm:$0xff]
    %v996 = vld [vmem:[#allocation8 + $0x140] sm:$0xff]
    %v997 = vld [vmem:[#allocation8 + $0x148] sm:$0xff]
    %v998 = vld [vmem:[#allocation8 + $0x150] sm:$0xff]
    %v999 = vld [vmem:[#allocation8 + $0x158] sm:$0xff]
    %v1000 = vld [vmem:[#allocation8 + $0x160] sm:$0xff]
    %v1001 = vld [vmem:[#allocation8 + $0x168] sm:$0xff]
    %v1002 = vld [vmem:[#allocation8 + $0x170] sm:$0xff]
    %v1003 = vld [vmem:[#allocation8 + $0x178] sm:$0xff]
    %v1004 = vld [vmem:[#allocation8 + $0x180] sm:$0xff]
    %v1005 = vld [vmem:[#allocation8 + $0x188] sm:$0xff]
    %v1006 = vld [vmem:[#allocation8 + $0x190] sm:$0xff]
    %v1007 = vld [vmem:[#allocation8 + $0x198] sm:$0xff]
    %v1008 = vld [vmem:[#allocation8 + $0x1a0] sm:$0xff]
    %v1009 = vld [vmem:[#allocation8 + $0x1a8] sm:$0xff]
    %v1010 = vld [vmem:[#allocation8 + $0x1b0] sm:$0xff]
    %v1011 = vld [vmem:[#allocation8 + $0x1b8] sm:$0xff]
    %v1012 = vld [vmem:[#allocation8 + $0x1c0] sm:$0xff]
    %v1013 = vld [vmem:[#allocation8 + $0x1c8] sm:$0xff]
    %v1014 = vld [vmem:[#allocation8 + $0x1d0] sm:$0xff]
    %v1015 = vld [vmem:[#allocation8 + $0x1d8] sm:$0xff]
    %v1016 = vld [vmem:[#allocation8 + $0x1e0] sm:$0xff]
    %v1017 = vld [vmem:[#allocation8 + $0x1e8] sm:$0xff]
    %v1018 = vld [vmem:[#allocation8 + $0x1f0] sm:$0xff]
    %v1019 = vld [vmem:[#allocation8 + $0x1f8] sm:$0xff]
    %v1020 = vld [vmem:[#allocation8 + $0x200] sm:$0xff]
    %v1021 = vld [vmem:[#allocation8 + $0x208] sm:$0xff]
    %v1022 = vld [vmem:[#allocation8 + $0x210] sm:$0xff]
    %v1023 = vld [vmem:[#allocation8 + $0x218] sm:$0xff]
    %v1024 = vld [vmem:[#allocation8 + $0x220] sm:$0xff]
    %v1025 = vld [vmem:[#allocation8 + $0x228] sm:$0xff]
    %v1026 = vld [vmem:[#allocation8 + $0x230] sm:$0xff]
    %v1027 = vld [vmem:[#allocation8 + $0x238] sm:$0xff]
    %v1028 = vld [vmem:[#allocation8 + $0x240] sm:$0xff]
    %v1029 = vld [vmem:[#allocation8 + $0x248] sm:$0xff]
    %v1030 = vld [vmem:[#allocation8 + $0x250] sm:$0xff]
    %v1031 = vld [vmem:[#allocation8 + $0x258] sm:$0xff]
    %v1032 = vld [vmem:[#allocation8 + $0x260] sm:$0xff]
    %v1033 = vld [vmem:[#allocation8 + $0x268] sm:$0xff]
    %v1034 = vld [vmem:[#allocation8 + $0x270] sm:$0xff]
    %v1035 = vld [vmem:[#allocation8 + $0x278] sm:$0xff]
    %v1036 = vld [vmem:[#allocation8 + $0x280] sm:$0xff]
    %v1037 = vld [vmem:[#allocation8 + $0x288] sm:$0xff]
    %v1038 = vld [vmem:[#allocation8 + $0x290] sm:$0xff]
    %v1039 = vld [vmem:[#allocation8 + $0x298] sm:$0xff]
    %v1040 = vld [vmem:[#allocation8 + $0x2a0] sm:$0xff]
    %v1041 = vld [vmem:[#allocation8 + $0x2a8] sm:$0xff]
    %v1042 = vld [vmem:[#allocation8 + $0x2b0] sm:$0xff]
    %v1043 = vld [vmem:[#allocation8 + $0x2b8] sm:$0xff]
    %v1044 = vld [vmem:[#allocation8 + $0x2c0] sm:$0xff]
    %v1045 = vld [vmem:[#allocation8 + $0x2c8] sm:$0xff]
    %v1046 = vld [vmem:[#allocation8 + $0x2d0] sm:$0xff]
    %v1047 = vld [vmem:[#allocation8 + $0x2d8] sm:$0xff]
    %v1048 = vld [vmem:[#allocation8 + $0x2e0] sm:$0xff]
    %v1049 = vld [vmem:[#allocation8 + $0x2e8] sm:$0xff]
    %v1050 = vld [vmem:[#allocation8 + $0x2f0] sm:$0xff]
    %v1051 = vld [vmem:[#allocation8 + $0x2f8] sm:$0xff]
    %v1052 = vld [vmem:[#allocation8 + $0x300] sm:$0xff]
    %v1053 = vld [vmem:[#allocation8 + $0x308] sm:$0xff]
    %v1054 = vld [vmem:[#allocation8 + $0x310] sm:$0xff]
    %v1055 = vld [vmem:[#allocation8 + $0x318] sm:$0xff]
    %v1056 = vld [vmem:[#allocation8 + $0x320] sm:$0xff]
    %v1057 = vld [vmem:[#allocation8 + $0x328] sm:$0xff]
    %v1058 = vld [vmem:[#allocation8 + $0x330] sm:$0xff]
    %v1059 = vld [vmem:[#allocation8 + $0x338] sm:$0xff]
    %v1060 = vld [vmem:[#allocation8 + $0x340] sm:$0xff]
    %v1061 = vld [vmem:[#allocation8 + $0x348] sm:$0xff]
    %v1062 = vld [vmem:[#allocation8 + $0x350] sm:$0xff]
    %v1063 = vld [vmem:[#allocation8 + $0x358] sm:$0xff]
    %v1064 = vld [vmem:[#allocation8 + $0x360] sm:$0xff]
    %v1065 = vld [vmem:[#allocation8 + $0x368] sm:$0xff]
    %v1066 = vld [vmem:[#allocation8 + $0x370] sm:$0xff]
    %v1067 = vld [vmem:[#allocation8 + $0x378] sm:$0xff]
    %v1068 = vld [vmem:[#allocation8 + $0x380] sm:$0xff]
    %v1069 = vld [vmem:[#allocation8 + $0x388] sm:$0xff]
    %v1070 = vld [vmem:[#allocation8 + $0x390] sm:$0xff]
    %v1071 = vld [vmem:[#allocation8 + $0x398] sm:$0xff]
    %v1072 = vld [vmem:[#allocation8 + $0x3a0] sm:$0xff]
    %v1073 = vld [vmem:[#allocation8 + $0x3a8] sm:$0xff]
    %v1074 = vld [vmem:[#allocation8 + $0x3b0] sm:$0xff]
    %v1075 = vld [vmem:[#allocation8 + $0x3b8] sm:$0xff]
    %v1076 = vld [vmem:[#allocation8 + $0x3c0] sm:$0xff]
    %v1077 = vld [vmem:[#allocation8 + $0x3c8] sm:$0xff]
    %v1078 = vld [vmem:[#allocation8 + $0x3d0] sm:$0xff]
    %v1079 = vld [vmem:[#allocation8 + $0x3d8] sm:$0xff]
    %v1080 = vld [vmem:[#allocation8 + $0x3e0] sm:$0xff]
    %v1081 = vld [vmem:[#allocation8 + $0x3e8] sm:$0xff]
    %v1082 = vld [vmem:[#allocation8 + $0x3f0] sm:$0xff]
    %v1083 = vld [vmem:[#allocation8 + $0x3f8] sm:$0xff]
    %v1084 = vld [vmem:[#allocation8 + $0x400] sm:$0xff]
    %v1085 = vld [vmem:[#allocation8 + $0x408] sm:$0xff]
    %v1086 = vld [vmem:[#allocation8 + $0x410] sm:$0xff]
    %v1087 = vld [vmem:[#allocation8 + $0x418] sm:$0xff]
    %v1088 = vld [vmem:[#allocation8 + $0x420] sm:$0xff]
    %v1089 = vld [vmem:[#allocation8 + $0x428] sm:$0xff]
    %v1090 = vld [vmem:[#allocation8 + $0x430] sm:$0xff]
    %v1091 = vld [vmem:[#allocation8 + $0x438] sm:$0xff]
    %v1092 = vld [vmem:[#allocation8 + $0x440] sm:$0xff]
    %v1093 = vld [vmem:[#allocation8 + $0x448] sm:$0xff]
    %v1094 = vld [vmem:[#allocation8 + $0x450] sm:$0xff]
    %v1095 = vld [vmem:[#allocation8 + $0x458] sm:$0xff]
    %v1096 = vld [vmem:[#allocation8 + $0x460] sm:$0xff]
    %v1097 = vld [vmem:[#allocation8 + $0x468] sm:$0xff]
    %v1098 = vld [vmem:[#allocation8 + $0x470] sm:$0xff]
    %v1099 = vld [vmem:[#allocation8 + $0x478] sm:$0xff]
    %v1100 = vld [vmem:[#allocation8 + $0x480] sm:$0xff]
    %v1101 = vld [vmem:[#allocation8 + $0x488] sm:$0xff]
    %v1102 = vld [vmem:[#allocation8 + $0x490] sm:$0xff]
    %v1103 = vld [vmem:[#allocation8 + $0x498] sm:$0xff]
    %v1104 = vld [vmem:[#allocation8 + $0x4a0] sm:$0xff]
    %v1105 = vld [vmem:[#allocation8 + $0x4a8] sm:$0xff]
    %v1106 = vld [vmem:[#allocation8 + $0x4b0] sm:$0xff]
    %v1107 = vld [vmem:[#allocation8 + $0x4b8] sm:$0xff]
    %v1108 = vld [vmem:[#allocation8 + $0x4c0] sm:$0xff]
    %v1109 = vld [vmem:[#allocation8 + $0x4c8] sm:$0xff]
    %v1110 = vld [vmem:[#allocation8 + $0x4d0] sm:$0xff]
    %v1111 = vld [vmem:[#allocation8 + $0x4d8] sm:$0xff]
    %v1112 = vld [vmem:[#allocation8 + $0x4e0] sm:$0xff]
    %v1113 = vld [vmem:[#allocation8 + $0x4e8] sm:$0xff]
    %v1114 = vld [vmem:[#allocation8 + $0x4f0] sm:$0xff]
    %v1115 = vld [vmem:[#allocation8 + $0x4f8] sm:$0xff]
    %v1116 = vld [vmem:[#allocation8 + $0x500] sm:$0xff]
    %v1117 = vld [vmem:[#allocation8 + $0x508] sm:$0xff]
    %v1118 = vld [vmem:[#allocation8 + $0x510] sm:$0xff]
    %v1119 = vld [vmem:[#allocation8 + $0x518] sm:$0xff]
    %v1120 = vld [vmem:[#allocation8 + $0x520] sm:$0xff]
    %v1121 = vld [vmem:[#allocation8 + $0x528] sm:$0xff]
    %v1122 = vld [vmem:[#allocation8 + $0x530] sm:$0xff]
    %v1123 = vld [vmem:[#allocation8 + $0x538] sm:$0xff]
    %v1124 = vld [vmem:[#allocation8 + $0x540] sm:$0xff]
    %v1125 = vld [vmem:[#allocation8 + $0x548] sm:$0xff]
    %v1126 = vld [vmem:[#allocation8 + $0x550] sm:$0xff]
    %v1127 = vld [vmem:[#allocation8 + $0x558] sm:$0xff]
    %v1128 = vld [vmem:[#allocation8 + $0x560] sm:$0xff]
    %v1129 = vld [vmem:[#allocation8 + $0x568] sm:$0xff]
    %v1130 = vld [vmem:[#allocation8 + $0x570] sm:$0xff]
    %v1131 = vld [vmem:[#allocation8 + $0x578] sm:$0xff]
    %v1132 = vld [vmem:[#allocation8 + $0x580] sm:$0xff]
    %v1133 = vld [vmem:[#allocation8 + $0x588] sm:$0xff]
    %v1134 = vld [vmem:[#allocation8 + $0x590] sm:$0xff]
    %v1135 = vld [vmem:[#allocation8 + $0x598] sm:$0xff]
    %v1136 = vld [vmem:[#allocation8 + $0x5a0] sm:$0xff]
    %v1137 = vld [vmem:[#allocation8 + $0x5a8] sm:$0xff]
    %v1138 = vld [vmem:[#allocation8 + $0x5b0] sm:$0xff]
    %v1139 = vld [vmem:[#allocation8 + $0x5b8] sm:$0xff]
    %v1140 = vld [vmem:[#allocation8 + $0x5c0] sm:$0xff]
    %v1141 = vld [vmem:[#allocation8 + $0x5c8] sm:$0xff]
    %v1142 = vld [vmem:[#allocation8 + $0x5d0] sm:$0xff]
    %v1143 = vld [vmem:[#allocation8 + $0x5d8] sm:$0xff]
    %v1144 = vld [vmem:[#allocation8 + $0x5e0] sm:$0xff]
    %v1145 = vld [vmem:[#allocation8 + $0x5e8] sm:$0xff]
    %v1146 = vld [vmem:[#allocation8 + $0x5f0] sm:$0xff]
    %v1147 = vld [vmem:[#allocation8 + $0x5f8] sm:$0xff]
    %v1148 = vld [vmem:[#allocation8 + $0x600] sm:$0xff]
    %v1149 = vld [vmem:[#allocation8 + $0x608] sm:$0xff]
    %v1150 = vld [vmem:[#allocation8 + $0x610] sm:$0xff]
    %v1151 = vld [vmem:[#allocation8 + $0x618] sm:$0xff]
    %v1152 = vld [vmem:[#allocation8 + $0x620] sm:$0xff]
    %v1153 = vld [vmem:[#allocation8 + $0x628] sm:$0xff]
    %v1154 = vld [vmem:[#allocation8 + $0x630] sm:$0xff]
    %v1155 = vld [vmem:[#allocation8 + $0x638] sm:$0xff]
    %v1156 = vld [vmem:[#allocation8 + $0x640] sm:$0xff]
    %v1157 = vld [vmem:[#allocation8 + $0x648] sm:$0xff]
    %v1158 = vld [vmem:[#allocation8 + $0x650] sm:$0xff]
    %v1159 = vld [vmem:[#allocation8 + $0x658] sm:$0xff]
    %v1160 = vld [vmem:[#allocation8 + $0x660] sm:$0xff]
    %v1161 = vld [vmem:[#allocation8 + $0x668] sm:$0xff]
    %v1162 = vld [vmem:[#allocation8 + $0x670] sm:$0xff]
    %v1163 = vld [vmem:[#allocation8 + $0x678] sm:$0xff]
    %v1164 = vld [vmem:[#allocation8 + $0x680] sm:$0xff]
    %v1165 = vld [vmem:[#allocation8 + $0x688] sm:$0xff]
    %v1166 = vld [vmem:[#allocation8 + $0x690] sm:$0xff]
    %v1167 = vld [vmem:[#allocation8 + $0x698] sm:$0xff]
    %v1168 = vld [vmem:[#allocation8 + $0x6a0] sm:$0xff]
    %v1169 = vld [vmem:[#allocation8 + $0x6a8] sm:$0xff]
    %v1170 = vld [vmem:[#allocation8 + $0x6b0] sm:$0xff]
    %v1171 = vld [vmem:[#allocation8 + $0x6b8] sm:$0xff]
    %v1172 = vld [vmem:[#allocation8 + $0x6c0] sm:$0xff]
    %v1173 = vld [vmem:[#allocation8 + $0x6c8] sm:$0xff]
    %v1174 = vld [vmem:[#allocation8 + $0x6d0] sm:$0xff]
    %v1175 = vld [vmem:[#allocation8 + $0x6d8] sm:$0xff]
    %v1176 = vld [vmem:[#allocation8 + $0x6e0] sm:$0xff]
    %v1177 = vld [vmem:[#allocation8 + $0x6e8] sm:$0xff]
    %v1178 = vld [vmem:[#allocation8 + $0x6f0] sm:$0xff]
    %v1179 = vld [vmem:[#allocation8 + $0x6f8] sm:$0xff]
    %v1180 = vld [vmem:[#allocation8 + $0x700] sm:$0xff]
    %v1181 = vld [vmem:[#allocation8 + $0x708] sm:$0xff]
    %v1182 = vld [vmem:[#allocation8 + $0x710] sm:$0xff]
    %v1183 = vld [vmem:[#allocation8 + $0x718] sm:$0xff]
    %v1184 = vld [vmem:[#allocation8 + $0x720] sm:$0xff]
    %v1185 = vld [vmem:[#allocation8 + $0x728] sm:$0xff]
    %v1186 = vld [vmem:[#allocation8 + $0x730] sm:$0xff]
    %v1187 = vld [vmem:[#allocation8 + $0x738] sm:$0xff]
    %v1188 = vld [vmem:[#allocation8 + $0x740] sm:$0xff]
    %v1189 = vld [vmem:[#allocation8 + $0x748] sm:$0xff]
    %v1190 = vld [vmem:[#allocation8 + $0x750] sm:$0xff]
    %v1191 = vld [vmem:[#allocation8 + $0x758] sm:$0xff]
    %v1192 = vld [vmem:[#allocation8 + $0x760] sm:$0xff]
    %v1193 = vld [vmem:[#allocation8 + $0x768] sm:$0xff]
    %v1194 = vld [vmem:[#allocation8 + $0x770] sm:$0xff]
    %v1195 = vld [vmem:[#allocation8 + $0x778] sm:$0xff]
    %v1196 = vld [vmem:[#allocation8 + $0x780] sm:$0xff]
    %v1197 = vld [vmem:[#allocation8 + $0x788] sm:$0xff]
    %v1198 = vld [vmem:[#allocation8 + $0x790] sm:$0xff]
    %v1199 = vld [vmem:[#allocation8 + $0x798] sm:$0xff]
    %v1200 = vld [vmem:[#allocation8 + $0x7a0] sm:$0xff]
    %v1201 = vld [vmem:[#allocation8 + $0x7a8] sm:$0xff]
    %v1202 = vld [vmem:[#allocation8 + $0x7b0] sm:$0xff]
    %v1203 = vld [vmem:[#allocation8 + $0x7b8] sm:$0xff]
    %v1204 = vld [vmem:[#allocation8 + $0x7c0] sm:$0xff]
    %v1205 = vld [vmem:[#allocation8 + $0x7c8] sm:$0xff]
    %v1206 = vld [vmem:[#allocation8 + $0x7d0] sm:$0xff]
    %v1207 = vld [vmem:[#allocation8 + $0x7d8] sm:$0xff]
    %v1208 = vld [vmem:[#allocation8 + $0x7e0] sm:$0xff]
    %v1209 = vld [vmem:[#allocation8 + $0x7e8] sm:$0xff]
    %v1210 = vld [vmem:[#allocation8 + $0x7f0] sm:$0xff]
    %v1211 = vld [vmem:[#allocation8 + $0x7f8] sm:$0xff]
    %v1212 = vld [vmem:[#allocation8 + $0x800] sm:$0xff]
    %v1213 = vld [vmem:[#allocation8 + $0x808] sm:$0xff]
    %v1214 = vld [vmem:[#allocation8 + $0x810] sm:$0xff]
    %v1215 = vld [vmem:[#allocation8 + $0x818] sm:$0xff]
    %v1216 = vld [vmem:[#allocation8 + $0x820] sm:$0xff]
    %v1217 = vld [vmem:[#allocation8 + $0x828] sm:$0xff]
    %v1218 = vld [vmem:[#allocation8 + $0x830] sm:$0xff]
    %v1219 = vld [vmem:[#allocation8 + $0x838] sm:$0xff]
    %v1220 = vld [vmem:[#allocation8 + $0x840] sm:$0xff]
    %v1221 = vld [vmem:[#allocation8 + $0x848] sm:$0xff]
    %v1222 = vld [vmem:[#allocation8 + $0x850] sm:$0xff]
    %v1223 = vld [vmem:[#allocation8 + $0x858] sm:$0xff]
    %v1224 = vld [vmem:[#allocation8 + $0x860] sm:$0xff]
    %v1225 = vld [vmem:[#allocation8 + $0x868] sm:$0xff]
    %v1226 = vld [vmem:[#allocation8 + $0x870] sm:$0xff]
    %v1227 = vld [vmem:[#allocation8 + $0x878] sm:$0xff]
    %v1228 = vld [vmem:[#allocation8 + $0x880] sm:$0xff]
    %v1229 = vld [vmem:[#allocation8 + $0x888] sm:$0xff]
    %v1230 = vld [vmem:[#allocation8 + $0x890] sm:$0xff]
    %v1231 = vld [vmem:[#allocation8 + $0x898] sm:$0xff]
    %v1232 = vld [vmem:[#allocation8 + $0x8a0] sm:$0xff]
    %v1233 = vld [vmem:[#allocation8 + $0x8a8] sm:$0xff]
    %v1234 = vld [vmem:[#allocation8 + $0x8b0] sm:$0xff]
    %v1235 = vld [vmem:[#allocation8 + $0x8b8] sm:$0xff]
    %v1236 = vld [vmem:[#allocation8 + $0x8c0] sm:$0xff]
    %v1237 = vld [vmem:[#allocation8 + $0x8c8] sm:$0xff]
    %v1238 = vld [vmem:[#allocation8 + $0x8d0] sm:$0xff]
    %v1239 = vld [vmem:[#allocation8 + $0x8d8] sm:$0xff]
    %v1240 = vld [vmem:[#allocation8 + $0x8e0] sm:$0xff]
    %v1241 = vld [vmem:[#allocation8 + $0x8e8] sm:$0xff]
    %v1242 = vld [vmem:[#allocation8 + $0x8f0] sm:$0xff]
    %v1243 = vld [vmem:[#allocation8 + $0x8f8] sm:$0xff]
    %v1244 = vld [vmem:[#allocation8 + $0x900] sm:$0xff]
    %v1245 = vld [vmem:[#allocation8 + $0x908] sm:$0xff]
    %v1246 = vld [vmem:[#allocation8 + $0x910] sm:$0xff]
    %v1247 = vld [vmem:[#allocation8 + $0x918] sm:$0xff]
    %v1248 = vld [vmem:[#allocation8 + $0x920] sm:$0xff]
    %v1249 = vld [vmem:[#allocation8 + $0x928] sm:$0xff]
    %v1250 = vld [vmem:[#allocation8 + $0x930] sm:$0xff]
    %v1251 = vld [vmem:[#allocation8 + $0x938] sm:$0xff]
    %v1252 = vld [vmem:[#allocation8 + $0x940] sm:$0xff]
    %v1253 = vld [vmem:[#allocation8 + $0x948] sm:$0xff]
    %v1254 = vld [vmem:[#allocation8 + $0x950] sm:$0xff]
    %v1255 = vld [vmem:[#allocation8 + $0x958] sm:$0xff]
    %v1256 = vld [vmem:[#allocation8 + $0x960] sm:$0xff]
    %v1257 = vld [vmem:[#allocation8 + $0x968] sm:$0xff]
    %v1258 = vld [vmem:[#allocation8 + $0x970] sm:$0xff]
    %v1259 = vld [vmem:[#allocation8 + $0x978] sm:$0xff]
    %v1260 = vld [vmem:[#allocation8 + $0x980] sm:$0xff]
    %v1261 = vld [vmem:[#allocation8 + $0x988] sm:$0xff]
    %v1262 = vld [vmem:[#allocation8 + $0x990] sm:$0xff]
    %v1263 = vld [vmem:[#allocation8 + $0x998] sm:$0xff]
    %v1264 = vld [vmem:[#allocation8 + $0x9a0] sm:$0xff]
    %v1265 = vld [vmem:[#allocation8 + $0x9a8] sm:$0xff]
    %v1266 = vld [vmem:[#allocation8 + $0x9b0] sm:$0xff]
    %v1267 = vld [vmem:[#allocation8 + $0x9b8] sm:$0xff]
    %v1268 = vld [vmem:[#allocation8 + $0x9c0] sm:$0xff]
    %v1269 = vld [vmem:[#allocation8 + $0x9c8] sm:$0xff]
    %v1270 = vld [vmem:[#allocation8 + $0x9d0] sm:$0xff]
    %v1271 = vld [vmem:[#allocation8 + $0x9d8] sm:$0xff]
    %v1272 = vld [vmem:[#allocation8 + $0x9e0] sm:$0xff]
    %v1273 = vld [vmem:[#allocation8 + $0x9e8] sm:$0xff]
    %v1274 = vld [vmem:[#allocation8 + $0x9f0] sm:$0xff]
    %v1275 = vld [vmem:[#allocation8 + $0x9f8] sm:$0xff]
    %v1276 = vld [vmem:[#allocation8 + $0xa00] sm:$0xff]
    %v1277 = vld [vmem:[#allocation8 + $0xa08] sm:$0xff]
    %v1278 = vld [vmem:[#allocation8 + $0xa10] sm:$0xff]
    %v1279 = vld [vmem:[#allocation8 + $0xa18] sm:$0xff]
    %v1280 = vld [vmem:[#allocation8 + $0xa20] sm:$0xff]
    %v1281 = vld [vmem:[#allocation8 + $0xa28] sm:$0xff]
    %v1282 = vld [vmem:[#allocation8 + $0xa30] sm:$0xff]
    %v1283 = vld [vmem:[#allocation8 + $0xa38] sm:$0xff]
    %v1284 = vld [vmem:[#allocation8 + $0xa40] sm:$0xff]
    %v1285 = vld [vmem:[#allocation8 + $0xa48] sm:$0xff]
    %v1286 = vld [vmem:[#allocation8 + $0xa50] sm:$0xff]
    %v1287 = vld [vmem:[#allocation8 + $0xa58] sm:$0xff]
    %v1288 = vld [vmem:[#allocation8 + $0xa60] sm:$0xff]
    %v1289 = vld [vmem:[#allocation8 + $0xa68] sm:$0xff]
    %v1290 = vld [vmem:[#allocation8 + $0xa70] sm:$0xff]
    %v1291 = vld [vmem:[#allocation8 + $0xa78] sm:$0xff]
    %v1292 = vld [vmem:[#allocation8 + $0xa80] sm:$0xff]
    %v1293 = vld [vmem:[#allocation8 + $0xa88] sm:$0xff]
    %v1294 = vld [vmem:[#allocation8 + $0xa90] sm:$0xff]
    %v1295 = vld [vmem:[#allocation8 + $0xa98] sm:$0xff]
    %v1296 = vld [vmem:[#allocation8 + $0xaa0] sm:$0xff]
    %v1297 = vld [vmem:[#allocation8 + $0xaa8] sm:$0xff]
    %v1298 = vld [vmem:[#allocation8 + $0xab0] sm:$0xff]
    %v1299 = vld [vmem:[#allocation8 + $0xab8] sm:$0xff]
    %v1300 = vld [vmem:[#allocation8 + $0xac0] sm:$0xff]
    %v1301 = vld [vmem:[#allocation8 + $0xac8] sm:$0xff]
    %v1302 = vld [vmem:[#allocation8 + $0xad0] sm:$0xff]
    %v1303 = vld [vmem:[#allocation8 + $0xad8] sm:$0xff]
    %v1304 = vld [vmem:[#allocation8 + $0xae0] sm:$0xff]
    %v1305 = vld [vmem:[#allocation8 + $0xae8] sm:$0xff]
    %v1306 = vld [vmem:[#allocation8 + $0xaf0] sm:$0xff]
    %v1307 = vld [vmem:[#allocation8 + $0xaf8] sm:$0xff]
    %v1308 = vld [vmem:[#allocation8 + $0xb00] sm:$0xff]
    %v1309 = vld [vmem:[#allocation8 + $0xb08] sm:$0xff]
    %v1310 = vld [vmem:[#allocation8 + $0xb10] sm:$0xff]
    %v1311 = vld [vmem:[#allocation8 + $0xb18] sm:$0xff]
    %v1312 = vld [vmem:[#allocation8 + $0xb20] sm:$0xff]
    %v1313 = vld [vmem:[#allocation8 + $0xb28] sm:$0xff]
    %v1314 = vld [vmem:[#allocation8 + $0xb30] sm:$0xff]
    %v1315 = vld [vmem:[#allocation8 + $0xb38] sm:$0xff]
    %v1316 = vld [vmem:[#allocation8 + $0xb40] sm:$0xff]
    %v1317 = vld [vmem:[#allocation8 + $0xb48] sm:$0xff]
    %v1318 = vld [vmem:[#allocation8 + $0xb50] sm:$0xff]
    %v1319 = vld [vmem:[#allocation8 + $0xb58] sm:$0xff]
    %v1320 = vld [vmem:[#allocation8 + $0xb60] sm:$0xff]
    %v1321 = vld [vmem:[#allocation8 + $0xb68] sm:$0xff]
    %v1322 = vld [vmem:[#allocation8 + $0xb70] sm:$0xff]
    %v1323 = vld [vmem:[#allocation8 + $0xb78] sm:$0xff]
    %v1324 = vld [vmem:[#allocation8 + $0xb80] sm:$0xff]
    %v1325 = vld [vmem:[#allocation8 + $0xb88] sm:$0xff]
    %v1326 = vld [vmem:[#allocation8 + $0xb90] sm:$0xff]
    %v1327 = vld [vmem:[#allocation8 + $0xb98] sm:$0xff]
    %v1328 = vld [vmem:[#allocation8 + $0xba0] sm:$0xff]
    %v1329 = vld [vmem:[#allocation8 + $0xba8] sm:$0xff]
    %v1330 = vld [vmem:[#allocation8 + $0xbb0] sm:$0xff]
    %v1331 = vld [vmem:[#allocation8 + $0xbb8] sm:$0xff]
    %v1332 = vld [vmem:[#allocation8 + $0xbc0] sm:$0xff]
    %v1333 = vld [vmem:[#allocation8 + $0xbc8] sm:$0xff]
    %v1334 = vld [vmem:[#allocation8 + $0xbd0] sm:$0xff]
    %v1335 = vld [vmem:[#allocation8 + $0xbd8] sm:$0xff]
    %v1336 = vld [vmem:[#allocation8 + $0xbe0] sm:$0xff]
    %v1337 = vld [vmem:[#allocation8 + $0xbe8] sm:$0xff]
    %v1338 = vld [vmem:[#allocation8 + $0xbf0] sm:$0xff]
    %v1339 = vld [vmem:[#allocation8 + $0xbf8] sm:$0xff]
    %v1340 = vld [vmem:[#allocation8 + $0xc00] sm:$0xff]
    %v1341 = vld [vmem:[#allocation8 + $0xc08] sm:$0xff]
    %v1342 = vld [vmem:[#allocation8 + $0xc10] sm:$0xff]
    %v1343 = vld [vmem:[#allocation8 + $0xc18] sm:$0xff]
    %v1344 = vld [vmem:[#allocation8 + $0xc20] sm:$0xff]
    %v1345 = vld [vmem:[#allocation8 + $0xc28] sm:$0xff]
    %v1346 = vld [vmem:[#allocation8 + $0xc30] sm:$0xff]
    %v1347 = vld [vmem:[#allocation8 + $0xc38] sm:$0xff]
    %v1348 = vld [vmem:[#allocation8 + $0xc40] sm:$0xff]
    %v1349 = vld [vmem:[#allocation8 + $0xc48] sm:$0xff]
    %v1350 = vld [vmem:[#allocation8 + $0xc50] sm:$0xff]
    %v1351 = vld [vmem:[#allocation8 + $0xc58] sm:$0xff]
    %v1352 = vld [vmem:[#allocation8 + $0xc60] sm:$0xff]
    %v1353 = vld [vmem:[#allocation8 + $0xc68] sm:$0xff]
    %v1354 = vld [vmem:[#allocation8 + $0xc70] sm:$0xff]
    %v1355 = vld [vmem:[#allocation8 + $0xc78] sm:$0xff]
    %v1356 = vld [vmem:[#allocation8 + $0xc80] sm:$0xff]
    %v1357 = vld [vmem:[#allocation8 + $0xc88] sm:$0xff]
    %v1358 = vld [vmem:[#allocation8 + $0xc90] sm:$0xff]
    %v1359 = vld [vmem:[#allocation8 + $0xc98] sm:$0xff]
    %v1360 = vld [vmem:[#allocation8 + $0xca0] sm:$0xff]
    %v1361 = vld [vmem:[#allocation8 + $0xca8] sm:$0xff]
    %v1362 = vld [vmem:[#allocation8 + $0xcb0] sm:$0xff]
    %v1363 = vld [vmem:[#allocation8 + $0xcb8] sm:$0xff]
    %v1364 = vld [vmem:[#allocation8 + $0xcc0] sm:$0xff]
    %v1365 = vld [vmem:[#allocation8 + $0xcc8] sm:$0xff]
    %v1366 = vld [vmem:[#allocation8 + $0xcd0] sm:$0xff]
    %v1367 = vld [vmem:[#allocation8 + $0xcd8] sm:$0xff]
    %v1368 = vld [vmem:[#allocation8 + $0xce0] sm:$0xff]
    %v1369 = vld [vmem:[#allocation8 + $0xce8] sm:$0xff]
    %v1370 = vld [vmem:[#allocation8 + $0xcf0] sm:$0xff]
    %v1371 = vld [vmem:[#allocation8 + $0xcf8] sm:$0xff]
    %v1372 = vld [vmem:[#allocation8 + $0xd00] sm:$0xff]
    %v1373 = vld [vmem:[#allocation8 + $0xd08] sm:$0xff]
    %v1374 = vld [vmem:[#allocation8 + $0xd10] sm:$0xff]
    %v1375 = vld [vmem:[#allocation8 + $0xd18] sm:$0xff]
    %v1376 = vld [vmem:[#allocation8 + $0xd20] sm:$0xff]
    %v1377 = vld [vmem:[#allocation8 + $0xd28] sm:$0xff]
    %v1378 = vld [vmem:[#allocation8 + $0xd30] sm:$0xff]
    %v1379 = vld [vmem:[#allocation8 + $0xd38] sm:$0xff]
    %v1380 = vld [vmem:[#allocation8 + $0xd40] sm:$0xff]
    %v1381 = vld [vmem:[#allocation8 + $0xd48] sm:$0xff]
    %v1382 = vld [vmem:[#allocation8 + $0xd50] sm:$0xff]
    %v1383 = vld [vmem:[#allocation8 + $0xd58] sm:$0xff]
    %v1384 = vld [vmem:[#allocation8 + $0xd60] sm:$0xff]
    %v1385 = vld [vmem:[#allocation8 + $0xd68] sm:$0xff]
    %v1386 = vld [vmem:[#allocation8 + $0xd70] sm:$0xff]
    %v1387 = vld [vmem:[#allocation8 + $0xd78] sm:$0xff]
    %v1388 = vld [vmem:[#allocation8 + $0xd80] sm:$0xff]
    %v1389 = vld [vmem:[#allocation8 + $0xd88] sm:$0xff]
    %v1390 = vld [vmem:[#allocation8 + $0xd90] sm:$0xff]
    %v1391 = vld [vmem:[#allocation8 + $0xd98] sm:$0xff]
    %v1392 = vld [vmem:[#allocation8 + $0xda0] sm:$0xff]
    %v1393 = vld [vmem:[#allocation8 + $0xda8] sm:$0xff]
    %v1394 = vld [vmem:[#allocation8 + $0xdb0] sm:$0xff]
    %v1395 = vld [vmem:[#allocation8 + $0xdb8] sm:$0xff]
    %v1396 = vld [vmem:[#allocation8 + $0xdc0] sm:$0xff]
    %v1397 = vld [vmem:[#allocation8 + $0xdc8] sm:$0xff]
    %v1398 = vld [vmem:[#allocation8 + $0xdd0] sm:$0xff]
    %v1399 = vld [vmem:[#allocation8 + $0xdd8] sm:$0xff]
    %v1400 = vld [vmem:[#allocation8 + $0xde0] sm:$0xff]
    %v1401 = vld [vmem:[#allocation8 + $0xde8] sm:$0xff]
    %v1402 = vld [vmem:[#allocation8 + $0xdf0] sm:$0xff]
    %v1403 = vld [vmem:[#allocation8 + $0xdf8] sm:$0xff]
    %v1404 = vld [vmem:[#allocation8 + $0xe00] sm:$0xff]
    %v1405 = vld [vmem:[#allocation8 + $0xe08] sm:$0xff]
    %v1406 = vld [vmem:[#allocation8 + $0xe10] sm:$0xff]
    %v1407 = vld [vmem:[#allocation8 + $0xe18] sm:$0xff]
    %v1408 = vld [vmem:[#allocation8 + $0xe20] sm:$0xff]
    %v1409 = vld [vmem:[#allocation8 + $0xe28] sm:$0xff]
    %v1410 = vld [vmem:[#allocation8 + $0xe30] sm:$0xff]
    %v1411 = vld [vmem:[#allocation8 + $0xe38] sm:$0xff]
    %v1412 = vld [vmem:[#allocation8 + $0xe40] sm:$0xff]
    %v1413 = vld [vmem:[#allocation8 + $0xe48] sm:$0xff]
    %v1414 = vld [vmem:[#allocation8 + $0xe50] sm:$0xff]
    %v1415 = vld [vmem:[#allocation8 + $0xe58] sm:$0xff]
    %v1416 = vld [vmem:[#allocation8 + $0xe60] sm:$0xff]
    %v1417 = vld [vmem:[#allocation8 + $0xe68] sm:$0xff]
    %v1418 = vld [vmem:[#allocation8 + $0xe70] sm:$0xff]
    %v1419 = vld [vmem:[#allocation8 + $0xe78] sm:$0xff]
    %v1420 = vld [vmem:[#allocation8 + $0xe80] sm:$0xff]
    %v1421 = vld [vmem:[#allocation8 + $0xe88] sm:$0xff]
    %v1422 = vld [vmem:[#allocation8 + $0xe90] sm:$0xff]
    %v1423 = vld [vmem:[#allocation8 + $0xe98] sm:$0xff]
    %v1424 = vld [vmem:[#allocation8 + $0xea0] sm:$0xff]
    %v1425 = vld [vmem:[#allocation8 + $0xea8] sm:$0xff]
    %v1426 = vld [vmem:[#allocation8 + $0xeb0] sm:$0xff]
    %v1427 = vld [vmem:[#allocation8 + $0xeb8] sm:$0xff]
    %v1428 = vld [vmem:[#allocation8 + $0xec0] sm:$0xff]
    %v1429 = vld [vmem:[#allocation8 + $0xec8] sm:$0xff]
    %v1430 = vld [vmem:[#allocation8 + $0xed0] sm:$0xff]
    %v1431 = vld [vmem:[#allocation8 + $0xed8] sm:$0xff]
    %v1432 = vld [vmem:[#allocation8 + $0xee0] sm:$0xff]
    %v1433 = vld [vmem:[#allocation8 + $0xee8] sm:$0xff]
    %v1434 = vld [vmem:[#allocation8 + $0xef0] sm:$0xff]
    %v1435 = vld [vmem:[#allocation8 + $0xef8] sm:$0xff]
    %v1436 = vld [vmem:[#allocation8 + $0xf00] sm:$0xff]
    %v1437 = vld [vmem:[#allocation8 + $0xf08] sm:$0xff]
    %v1438 = vld [vmem:[#allocation8 + $0xf10] sm:$0xff]
    %v1439 = vld [vmem:[#allocation8 + $0xf18] sm:$0xff]
    %v1440 = vld [vmem:[#allocation8 + $0xf20] sm:$0xff]
    %v1441 = vld [vmem:[#allocation8 + $0xf28] sm:$0xff]
    %v1442 = vld [vmem:[#allocation8 + $0xf30] sm:$0xff]
    %v1443 = vld [vmem:[#allocation8 + $0xf38] sm:$0xff]
    %v1444 = vld [vmem:[#allocation8 + $0xf40] sm:$0xff]
    %v1445 = vld [vmem:[#allocation8 + $0xf48] sm:$0xff]
    %v1446 = vld [vmem:[#allocation8 + $0xf50] sm:$0xff]
    %v1447 = vld [vmem:[#allocation8 + $0xf58] sm:$0xff]
    %v1448 = vld [vmem:[#allocation8 + $0xf60] sm:$0xff]
    %v1449 = vld [vmem:[#allocation8 + $0xf68] sm:$0xff]
    %v1450 = vld [vmem:[#allocation8 + $0xf70] sm:$0xff]
    %v1451 = vld [vmem:[#allocation8 + $0xf78] sm:$0xff]
    %v1452 = vld [vmem:[#allocation8 + $0xf80] sm:$0xff]
    %v1453 = vld [vmem:[#allocation8 + $0xf88] sm:$0xff]
    %v1454 = vld [vmem:[#allocation8 + $0xf90] sm:$0xff]
    %v1455 = vld [vmem:[#allocation8 + $0xf98] sm:$0xff]
    %v1456 = vld [vmem:[#allocation8 + $0xfa0] sm:$0xff]
    %v1457 = vld [vmem:[#allocation8 + $0xfa8] sm:$0xff]
    %v1458 = vld [vmem:[#allocation8 + $0xfb0] sm:$0xff]
    %v1459 = vld [vmem:[#allocation8 + $0xfb8] sm:$0xff]
    %v1460 = vld [vmem:[#allocation8 + $0xfc0] sm:$0xff]
    %v1461 = vld [vmem:[#allocation8 + $0xfc8] sm:$0xff]
    %v1462 = vld [vmem:[#allocation8 + $0xfd0] sm:$0xff]
    %v1463 = vld [vmem:[#allocation8 + $0xfd8] sm:$0xff]
    %v1464 = vld [vmem:[#allocation8 + $0xfe0] sm:$0xff]
    %v1465 = vld [vmem:[#allocation8 + $0xfe8] sm:$0xff]
    %v1466 = vld [vmem:[#allocation8 + $0xff0] sm:$0xff]
    %v1467 = vld [vmem:[#allocation8 + $0xff8] sm:$0xff]
    %v1468 = vld [vmem:[#allocation8 + $0x1000] sm:$0xff]
    %v1469 = vld [vmem:[#allocation8 + $0x1008] sm:$0xff]
    %v1470 = vld [vmem:[#allocation8 + $0x1010] sm:$0xff]
    %v1471 = vld [vmem:[#allocation8 + $0x1018] sm:$0xff]
    %v1472 = vld [vmem:[#allocation8 + $0x1020] sm:$0xff]
    %v1473 = vld [vmem:[#allocation8 + $0x1028] sm:$0xff]
    %v1474 = vld [vmem:[#allocation8 + $0x1030] sm:$0xff]
    %v1475 = vld [vmem:[#allocation8 + $0x1038] sm:$0xff]
    %v1476 = vld [vmem:[#allocation8 + $0x1040] sm:$0xff]
    %v1477 = vld [vmem:[#allocation8 + $0x1048] sm:$0xff]
    %v1478 = vld [vmem:[#allocation8 + $0x1050] sm:$0xff]
    %v1479 = vld [vmem:[#allocation8 + $0x1058] sm:$0xff]
    %v1480 = vld [vmem:[#allocation8 + $0x1060] sm:$0xff]
    %v1481 = vld [vmem:[#allocation8 + $0x1068] sm:$0xff]
    %v1482 = vld [vmem:[#allocation8 + $0x1070] sm:$0xff]
    %v1483 = vld [vmem:[#allocation8 + $0x1078] sm:$0xff]
    %v1484 = vld [vmem:[#allocation8 + $0x1080] sm:$0xff]
    %v1485 = vld [vmem:[#allocation8 + $0x1088] sm:$0xff]
    %v1486 = vld [vmem:[#allocation8 + $0x1090] sm:$0xff]
    %v1487 = vld [vmem:[#allocation8 + $0x1098] sm:$0xff]
    %v1488 = vld [vmem:[#allocation8 + $0x10a0] sm:$0xff]
    %v1489 = vld [vmem:[#allocation8 + $0x10a8] sm:$0xff]
    %v1490 = vld [vmem:[#allocation8 + $0x10b0] sm:$0xff]
    %v1491 = vld [vmem:[#allocation8 + $0x10b8] sm:$0xff]
    %v1492 = vld [vmem:[#allocation8 + $0x10c0] sm:$0xff]
    %v1493 = vld [vmem:[#allocation8 + $0x10c8] sm:$0xff]
    %v1494 = vld [vmem:[#allocation8 + $0x10d0] sm:$0xff]
    %v1495 = vld [vmem:[#allocation8 + $0x10d8] sm:$0xff]
    %v1496 = vld [vmem:[#allocation8 + $0x10e0] sm:$0xff]
    %v1497 = vld [vmem:[#allocation8 + $0x10e8] sm:$0xff]
    %v1498 = vld [vmem:[#allocation8 + $0x10f0] sm:$0xff]
    %v1499 = vld [vmem:[#allocation8 + $0x10f8] sm:$0xff]
    %v1500 = vld [vmem:[#allocation8 + $0x1100] sm:$0xff]
    %v1501 = vld [vmem:[#allocation8 + $0x1108] sm:$0xff]
    %v1502 = vld [vmem:[#allocation8 + $0x1110] sm:$0xff]
    %v1503 = vld [vmem:[#allocation8 + $0x1118] sm:$0xff]
    %v1504 = vld [vmem:[#allocation8 + $0x1120] sm:$0xff]
    %v1505 = vld [vmem:[#allocation8 + $0x1128] sm:$0xff]
    %v1506 = vld [vmem:[#allocation8 + $0x1130] sm:$0xff]
    %v1507 = vld [vmem:[#allocation8 + $0x1138] sm:$0xff]
    %v1508 = vld [vmem:[#allocation8 + $0x1140] sm:$0xff]
    %v1509 = vld [vmem:[#allocation8 + $0x1148] sm:$0xff]
    %v1510 = vld [vmem:[#allocation8 + $0x1150] sm:$0xff]
    %v1511 = vld [vmem:[#allocation8 + $0x1158] sm:$0xff]
    %v1512 = vld [vmem:[#allocation8 + $0x1160] sm:$0xff]
    %v1513 = vld [vmem:[#allocation8 + $0x1168] sm:$0xff]
    %v1514 = vld [vmem:[#allocation8 + $0x1170] sm:$0xff]
    %v1515 = vld [vmem:[#allocation8 + $0x1178] sm:$0xff]
    %v1516 = vld [vmem:[#allocation8 + $0x1180] sm:$0xff]
    %v1517 = vld [vmem:[#allocation8 + $0x1188] sm:$0xff]
    %v1518 = vld [vmem:[#allocation8 + $0x1190] sm:$0xff]
    %v1519 = vld [vmem:[#allocation8 + $0x1198] sm:$0xff]
    %v1520 = vld [vmem:[#allocation8 + $0x11a0] sm:$0xff]
    %v1521 = vld [vmem:[#allocation8 + $0x11a8] sm:$0xff]
    %v1522 = vld [vmem:[#allocation8 + $0x11b0] sm:$0xff]
    %v1523 = vld [vmem:[#allocation8 + $0x11b8] sm:$0xff]
    %v1524 = vld [vmem:[#allocation8 + $0x11c0] sm:$0xff]
    %v1525 = vld [vmem:[#allocation8 + $0x11c8] sm:$0xff]
    %v1526 = vld [vmem:[#allocation8 + $0x11d0] sm:$0xff]
    %v1527 = vld [vmem:[#allocation8 + $0x11d8] sm:$0xff]
    %v1528 = vld [vmem:[#allocation8 + $0x11e0] sm:$0xff]
    %v1529 = vld [vmem:[#allocation8 + $0x11e8] sm:$0xff]
    %v1530 = vld [vmem:[#allocation8 + $0x11f0] sm:$0xff]
    %v1531 = vld [vmem:[#allocation8 + $0x11f8] sm:$0xff]
    %v1532 = vld [vmem:[#allocation8 + $0x1200] sm:$0xff]
    %v1533 = vld [vmem:[#allocation8 + $0x1208] sm:$0xff]
    %v1534 = vld [vmem:[#allocation8 + $0x1210] sm:$0xff]
    %v1535 = vld [vmem:[#allocation8 + $0x1218] sm:$0xff]
    %v1536 = vld [vmem:[#allocation8 + $0x1220] sm:$0xff]
    %v1537 = vld [vmem:[#allocation8 + $0x1228] sm:$0xff]
    %v1538 = vld [vmem:[#allocation8 + $0x1230] sm:$0xff]
    %v1539 = vld [vmem:[#allocation8 + $0x1238] sm:$0xff]
    %v1540 = vld [vmem:[#allocation8 + $0x1240] sm:$0xff]
    %v1541 = vld [vmem:[#allocation8 + $0x1248] sm:$0xff]
    %v1542 = vld [vmem:[#allocation8 + $0x1250] sm:$0xff]
    %v1543 = vld [vmem:[#allocation8 + $0x1258] sm:$0xff]
    %v1544 = vld [vmem:[#allocation8 + $0x1260] sm:$0xff]
    %v1545 = vld [vmem:[#allocation8 + $0x1268] sm:$0xff]
    %v1546 = vld [vmem:[#allocation8 + $0x1270] sm:$0xff]
    %v1547 = vld [vmem:[#allocation8 + $0x1278] sm:$0xff]
    %v1548 = vld [vmem:[#allocation8 + $0x1280] sm:$0xff]
    %v1549 = vld [vmem:[#allocation8 + $0x1288] sm:$0xff]
    %v1550 = vld [vmem:[#allocation8 + $0x1290] sm:$0xff]
    %v1551 = vld [vmem:[#allocation8 + $0x1298] sm:$0xff]
    %v1552 = vld [vmem:[#allocation8 + $0x12a0] sm:$0xff]
    %v1553 = vld [vmem:[#allocation8 + $0x12a8] sm:$0xff]
    %v1554 = vld [vmem:[#allocation8 + $0x12b0] sm:$0xff]
    %v1555 = vld [vmem:[#allocation8 + $0x12b8] sm:$0xff]
    %v1556 = vld [vmem:[#allocation8 + $0x12c0] sm:$0xff]
    %v1557 = vld [vmem:[#allocation8 + $0x12c8] sm:$0xff]
    %v1558 = vld [vmem:[#allocation8 + $0x12d0] sm:$0xff]
    %v1559 = vld [vmem:[#allocation8 + $0x12d8] sm:$0xff]
    %v1560 = vld [vmem:[#allocation8 + $0x12e0] sm:$0xff]
    %v1561 = vld [vmem:[#allocation8 + $0x12e8] sm:$0xff]
    %v1562 = vld [vmem:[#allocation8 + $0x12f0] sm:$0xff]
    %v1563 = vld [vmem:[#allocation8 + $0x12f8] sm:$0xff]
    %v1564 = vld [vmem:[#allocation8 + $0x1300] sm:$0xff]
    %v1565 = vld [vmem:[#allocation8 + $0x1308] sm:$0xff]
    %v1566 = vld [vmem:[#allocation8 + $0x1310] sm:$0xff]
    %v1567 = vld [vmem:[#allocation8 + $0x1318] sm:$0xff]
    %v1568 = vld [vmem:[#allocation8 + $0x1320] sm:$0xff]
    %v1569 = vld [vmem:[#allocation8 + $0x1328] sm:$0xff]
    %v1570 = vld [vmem:[#allocation8 + $0x1330] sm:$0xff]
    %v1571 = vld [vmem:[#allocation8 + $0x1338] sm:$0xff]
    %v1572 = vld [vmem:[#allocation8 + $0x1340] sm:$0xff]
    %v1573 = vld [vmem:[#allocation8 + $0x1348] sm:$0xff]
    %v1574 = vld [vmem:[#allocation8 + $0x1350] sm:$0xff]
    %v1575 = vld [vmem:[#allocation8 + $0x1358] sm:$0xff]
    %v1576 = vld [vmem:[#allocation8 + $0x1360] sm:$0xff]
    %v1577 = vld [vmem:[#allocation8 + $0x1368] sm:$0xff]
    %v1578 = vld [vmem:[#allocation8 + $0x1370] sm:$0xff]
    %v1579 = vld [vmem:[#allocation8 + $0x1378] sm:$0xff]
    %v1580 = vld [vmem:[#allocation8 + $0x1380] sm:$0xff]
    %v1581 = vld [vmem:[#allocation8 + $0x1388] sm:$0xff]
    %v1582 = vld [vmem:[#allocation8 + $0x1390] sm:$0xff]
    %v1583 = vld [vmem:[#allocation8 + $0x1398] sm:$0xff]
    %v1584 = vld [vmem:[#allocation8 + $0x13a0] sm:$0xff]
    %v1585 = vld [vmem:[#allocation8 + $0x13a8] sm:$0xff]
    %v1586 = vld [vmem:[#allocation8 + $0x13b0] sm:$0xff]
    %v1587 = vld [vmem:[#allocation8 + $0x13b8] sm:$0xff]
    %v1588 = vld [vmem:[#allocation8 + $0x13c0] sm:$0xff]
    %v1589 = vld [vmem:[#allocation8 + $0x13c8] sm:$0xff]
    %v1590 = vld [vmem:[#allocation8 + $0x13d0] sm:$0xff]
    %v1591 = vld [vmem:[#allocation8 + $0x13d8] sm:$0xff]
    %v1592 = vld [vmem:[#allocation8 + $0x13e0] sm:$0xff]
    %v1593 = vld [vmem:[#allocation8 + $0x13e8] sm:$0xff]
    %v1594 = vld [vmem:[#allocation8 + $0x13f0] sm:$0xff]
    %v1595 = vld [vmem:[#allocation8 + $0x13f8] sm:$0xff]
    %v1596 = vld [vmem:[#allocation8 + $0x1400] sm:$0xff]
    %v1597 = vld [vmem:[#allocation8 + $0x1408] sm:$0xff]
    %v1598 = vld [vmem:[#allocation8 + $0x1410] sm:$0xff]
    %v1599 = vld [vmem:[#allocation8 + $0x1418] sm:$0xff]
    %v1600 = vld [vmem:[#allocation8 + $0x1420] sm:$0xff]
    %v1601 = vld [vmem:[#allocation8 + $0x1428] sm:$0xff]
    %v1602 = vld [vmem:[#allocation8 + $0x1430] sm:$0xff]
    %v1603 = vld [vmem:[#allocation8 + $0x1438] sm:$0xff]
    %v1604 = vld [vmem:[#allocation8 + $0x1440] sm:$0xff]
    %v1605 = vld [vmem:[#allocation8 + $0x1448] sm:$0xff]
    %v1606 = vld [vmem:[#allocation8 + $0x1450] sm:$0xff]
    %v1607 = vld [vmem:[#allocation8 + $0x1458] sm:$0xff]
    %v1608 = vld [vmem:[#allocation8 + $0x1460] sm:$0xff]
    %v1609 = vld [vmem:[#allocation8 + $0x1468] sm:$0xff]
    %v1610 = vld [vmem:[#allocation8 + $0x1470] sm:$0xff]
    %v1611 = vld [vmem:[#allocation8 + $0x1478] sm:$0xff]
    %v1612 = vld [vmem:[#allocation8 + $0x1480] sm:$0xff]
    %v1613 = vld [vmem:[#allocation8 + $0x1488] sm:$0xff]
    %v1614 = vld [vmem:[#allocation8 + $0x1490] sm:$0xff]
    %v1615 = vld [vmem:[#allocation8 + $0x1498] sm:$0xff]
    %v1616 = vld [vmem:[#allocation8 + $0x14a0] sm:$0xff]
    %v1617 = vld [vmem:[#allocation8 + $0x14a8] sm:$0xff]
    %v1618 = vld [vmem:[#allocation8 + $0x14b0] sm:$0xff]
    %v1619 = vld [vmem:[#allocation8 + $0x14b8] sm:$0xff]
    %v1620 = vld [vmem:[#allocation8 + $0x14c0] sm:$0xff]
    %v1621 = vld [vmem:[#allocation8 + $0x14c8] sm:$0xff]
    %v1622 = vld [vmem:[#allocation8 + $0x14d0] sm:$0xff]
    %v1623 = vld [vmem:[#allocation8 + $0x14d8] sm:$0xff]
    %v1624 = vld [vmem:[#allocation8 + $0x14e0] sm:$0xff]
    %v1625 = vld [vmem:[#allocation8 + $0x14e8] sm:$0xff]
    %v1626 = vld [vmem:[#allocation8 + $0x14f0] sm:$0xff]
    %v1627 = vld [vmem:[#allocation8 + $0x14f8] sm:$0xff]
    %v1628 = vld [vmem:[#allocation8 + $0x1500] sm:$0xff]
    %v1629 = vld [vmem:[#allocation8 + $0x1508] sm:$0xff]
    %v1630 = vld [vmem:[#allocation8 + $0x1510] sm:$0xff]
    %v1631 = vld [vmem:[#allocation8 + $0x1518] sm:$0xff]
    %v1632 = vld [vmem:[#allocation8 + $0x1520] sm:$0xff]
    %v1633 = vld [vmem:[#allocation8 + $0x1528] sm:$0xff]
    %v1634 = vld [vmem:[#allocation8 + $0x1530] sm:$0xff]
    %v1635 = vld [vmem:[#allocation8 + $0x1538] sm:$0xff]
    %v1636 = vld [vmem:[#allocation8 + $0x1540] sm:$0xff]
    %v1637 = vld [vmem:[#allocation8 + $0x1548] sm:$0xff]
    %v1638 = vld [vmem:[#allocation8 + $0x1550] sm:$0xff]
    %v1639 = vld [vmem:[#allocation8 + $0x1558] sm:$0xff]
    %v1640 = vld [vmem:[#allocation8 + $0x1560] sm:$0xff]
    %v1641 = vld [vmem:[#allocation8 + $0x1568] sm:$0xff]
    %v1642 = vld [vmem:[#allocation8 + $0x1570] sm:$0xff]
    %v1643 = vld [vmem:[#allocation8 + $0x1578] sm:$0xff]
    %v1644 = vld [vmem:[#allocation8 + $0x1580] sm:$0xff]
    %v1645 = vld [vmem:[#allocation8 + $0x1588] sm:$0xff]
    %v1646 = vld [vmem:[#allocation8 + $0x1590] sm:$0xff]
    %v1647 = vld [vmem:[#allocation8 + $0x1598] sm:$0xff]
    %v1648 = vld [vmem:[#allocation8 + $0x15a0] sm:$0xff]
    %v1649 = vld [vmem:[#allocation8 + $0x15a8] sm:$0xff]
    %v1650 = vld [vmem:[#allocation8 + $0x15b0] sm:$0xff]
    %v1651 = vld [vmem:[#allocation8 + $0x15b8] sm:$0xff]
    %v1652 = vld [vmem:[#allocation8 + $0x15c0] sm:$0xff]
    %v1653 = vld [vmem:[#allocation8 + $0x15c8] sm:$0xff]
    %v1654 = vld [vmem:[#allocation8 + $0x15d0] sm:$0xff]
    %v1655 = vld [vmem:[#allocation8 + $0x15d8] sm:$0xff]
    %v1656 = vld [vmem:[#allocation8 + $0x15e0] sm:$0xff]
    %v1657 = vld [vmem:[#allocation8 + $0x15e8] sm:$0xff]
    %v1658 = vld [vmem:[#allocation8 + $0x15f0] sm:$0xff]
    %v1659 = vld [vmem:[#allocation8 + $0x15f8] sm:$0xff]
    %v1660 = vld [vmem:[#allocation8 + $0x1600] sm:$0xff]
    %v1661 = vld [vmem:[#allocation8 + $0x1608] sm:$0xff]
    %v1662 = vld [vmem:[#allocation8 + $0x1610] sm:$0xff]
    %v1663 = vld [vmem:[#allocation8 + $0x1618] sm:$0xff]
    %v1664 = vld [vmem:[#allocation8 + $0x1620] sm:$0xff]
    %v1665 = vld [vmem:[#allocation8 + $0x1628] sm:$0xff]
    %v1666 = vld [vmem:[#allocation8 + $0x1630] sm:$0xff]
    %v1667 = vld [vmem:[#allocation8 + $0x1638] sm:$0xff]
    %v1668 = vld [vmem:[#allocation8 + $0x1640] sm:$0xff]
    %v1669 = vld [vmem:[#allocation8 + $0x1648] sm:$0xff]
    %v1670 = vld [vmem:[#allocation8 + $0x1650] sm:$0xff]
    %v1671 = vld [vmem:[#allocation8 + $0x1658] sm:$0xff]
    %v1672 = vld [vmem:[#allocation8 + $0x1660] sm:$0xff]
    %v1673 = vld [vmem:[#allocation8 + $0x1668] sm:$0xff]
    %v1674 = vld [vmem:[#allocation8 + $0x1670] sm:$0xff]
    %v1675 = vld [vmem:[#allocation8 + $0x1678] sm:$0xff]
    %v1676 = vld [vmem:[#allocation8 + $0x1680] sm:$0xff]
    %v1677 = vld [vmem:[#allocation8 + $0x1688] sm:$0xff]
    %v1678 = vld [vmem:[#allocation8 + $0x1690] sm:$0xff]
    %v1679 = vld [vmem:[#allocation8 + $0x1698] sm:$0xff]
    %v1680 = vld [vmem:[#allocation8 + $0x16a0] sm:$0xff]
    %v1681 = vld [vmem:[#allocation8 + $0x16a8] sm:$0xff]
    %v1682 = vld [vmem:[#allocation8 + $0x16b0] sm:$0xff]
    %v1683 = vld [vmem:[#allocation8 + $0x16b8] sm:$0xff]
    %v1684 = vld [vmem:[#allocation8 + $0x16c0] sm:$0xff]
    %v1685 = vld [vmem:[#allocation8 + $0x16c8] sm:$0xff]
    %v1686 = vld [vmem:[#allocation8 + $0x16d0] sm:$0xff]
    %v1687 = vld [vmem:[#allocation8 + $0x16d8] sm:$0xff]
    %v1688 = vld [vmem:[#allocation8 + $0x16e0] sm:$0xff]
    %v1689 = vld [vmem:[#allocation8 + $0x16e8] sm:$0xff]
    %v1690 = vld [vmem:[#allocation8 + $0x16f0] sm:$0xff]
    %v1691 = vld [vmem:[#allocation8 + $0x16f8] sm:$0xff]
    %v1692 = vld [vmem:[#allocation8 + $0x1700] sm:$0xff]
    %v1693 = vld [vmem:[#allocation8 + $0x1708] sm:$0xff]
    %v1694 = vld [vmem:[#allocation8 + $0x1710] sm:$0xff]
    %v1695 = vld [vmem:[#allocation8 + $0x1718] sm:$0xff]
    %v1696 = vld [vmem:[#allocation8 + $0x1720] sm:$0xff]
    %v1697 = vld [vmem:[#allocation8 + $0x1728] sm:$0xff]
    %v1698 = vld [vmem:[#allocation8 + $0x1730] sm:$0xff]
    %v1699 = vld [vmem:[#allocation8 + $0x1738] sm:$0xff]
    %v1700 = vld [vmem:[#allocation8 + $0x1740] sm:$0xff]
    %v1701 = vld [vmem:[#allocation8 + $0x1748] sm:$0xff]
    %v1702 = vld [vmem:[#allocation8 + $0x1750] sm:$0xff]
    %v1703 = vld [vmem:[#allocation8 + $0x1758] sm:$0xff]
    %v1704 = vld [vmem:[#allocation8 + $0x1760] sm:$0xff]
    %v1705 = vld [vmem:[#allocation8 + $0x1768] sm:$0xff]
    %v1706 = vld [vmem:[#allocation8 + $0x1770] sm:$0xff]
    %v1707 = vld [vmem:[#allocation8 + $0x1778] sm:$0xff]
    %v1708 = vld [vmem:[#allocation8 + $0x1780] sm:$0xff]
    %v1709 = vld [vmem:[#allocation8 + $0x1788] sm:$0xff]
    %v1710 = vld [vmem:[#allocation8 + $0x1790] sm:$0xff]
    %v1711 = vld [vmem:[#allocation8 + $0x1798] sm:$0xff]
    %v1712 = vld [vmem:[#allocation8 + $0x17a0] sm:$0xff]
    %v1713 = vld [vmem:[#allocation8 + $0x17a8] sm:$0xff]
    %v1714 = vld [vmem:[#allocation8 + $0x17b0] sm:$0xff]
    %v1715 = vld [vmem:[#allocation8 + $0x17b8] sm:$0xff]
    %v1716 = vld [vmem:[#allocation8 + $0x17c0] sm:$0xff]
    %v1717 = vld [vmem:[#allocation8 + $0x17c8] sm:$0xff]
    %v1718 = vld [vmem:[#allocation8 + $0x17d0] sm:$0xff]
    %v1719 = vld [vmem:[#allocation8 + $0x17d8] sm:$0xff]
    %v1720 = vld [vmem:[#allocation8 + $0x17e0] sm:$0xff]
    %v1721 = vld [vmem:[#allocation8 + $0x17e8] sm:$0xff]
    %v1722 = vld [vmem:[#allocation8 + $0x17f0] sm:$0xff]
    %v1723 = vld [vmem:[#allocation8 + $0x17f8] sm:$0xff]
    %v1724 = vld [vmem:[#allocation8 + $0x1800] sm:$0xff]
    %v1725 = vld [vmem:[#allocation8 + $0x1808] sm:$0xff]
    %v1726 = vld [vmem:[#allocation8 + $0x1810] sm:$0xff]
    %v1727 = vld [vmem:[#allocation8 + $0x1818] sm:$0xff]
    %v1728 = vld [vmem:[#allocation8 + $0x1820] sm:$0xff]
    %v1729 = vld [vmem:[#allocation8 + $0x1828] sm:$0xff]
    %v1730 = vld [vmem:[#allocation8 + $0x1830] sm:$0xff]
    %v1731 = vld [vmem:[#allocation8 + $0x1838] sm:$0xff]
    %v1732 = vld [vmem:[#allocation8 + $0x1840] sm:$0xff]
    %v1733 = vld [vmem:[#allocation8 + $0x1848] sm:$0xff]
    %v1734 = vld [vmem:[#allocation8 + $0x1850] sm:$0xff]
    %v1735 = vld [vmem:[#allocation8 + $0x1858] sm:$0xff]
    %v1736 = vld [vmem:[#allocation8 + $0x1860] sm:$0xff]
    %v1737 = vld [vmem:[#allocation8 + $0x1868] sm:$0xff]
    %v1738 = vld [vmem:[#allocation8 + $0x1870] sm:$0xff]
    %v1739 = vld [vmem:[#allocation8 + $0x1878] sm:$0xff]
    %v1740 = vld [vmem:[#allocation8 + $0x1880] sm:$0xff]
    %v1741 = vld [vmem:[#allocation8 + $0x1888] sm:$0xff]
    %v1742 = vld [vmem:[#allocation8 + $0x1890] sm:$0xff]
    %v1743 = vld [vmem:[#allocation8 + $0x1898] sm:$0xff]
    %v1744 = vld [vmem:[#allocation8 + $0x18a0] sm:$0xff]
    %v1745 = vld [vmem:[#allocation8 + $0x18a8] sm:$0xff]
    %v1746 = vld [vmem:[#allocation8 + $0x18b0] sm:$0xff]
    %v1747 = vld [vmem:[#allocation8 + $0x18b8] sm:$0xff]
    %v1748 = vld [vmem:[#allocation8 + $0x18c0] sm:$0xff]
    %v1749 = vld [vmem:[#allocation8 + $0x18c8] sm:$0xff]
    %v1750 = vld [vmem:[#allocation8 + $0x18d0] sm:$0xff]
    %v1751 = vld [vmem:[#allocation8 + $0x18d8] sm:$0xff]
    %v1752 = vld [vmem:[#allocation8 + $0x18e0] sm:$0xff]
    %v1753 = vld [vmem:[#allocation8 + $0x18e8] sm:$0xff]
    %v1754 = vld [vmem:[#allocation8 + $0x18f0] sm:$0xff]
    %v1755 = vld [vmem:[#allocation8 + $0x18f8] sm:$0xff]
    %v1756 = vld [vmem:[#allocation8 + $0x1900] sm:$0xff]
    %v1757 = vld [vmem:[#allocation8 + $0x1908] sm:$0xff]
    %v1758 = vld [vmem:[#allocation8 + $0x1910] sm:$0xff]
    %v1759 = vld [vmem:[#allocation8 + $0x1918] sm:$0xff]
    %v1760 = vld [vmem:[#allocation8 + $0x1920] sm:$0xff]
    %v1761 = vld [vmem:[#allocation8 + $0x1928] sm:$0xff]
    %v1762 = vld [vmem:[#allocation8 + $0x1930] sm:$0xff]
    %v1763 = vld [vmem:[#allocation8 + $0x1938] sm:$0xff]
    %v1764 = vld [vmem:[#allocation8 + $0x1940] sm:$0xff]
    %v1765 = vld [vmem:[#allocation8 + $0x1948] sm:$0xff]
    %v1766 = vld [vmem:[#allocation8 + $0x1950] sm:$0xff]
    %v1767 = vld [vmem:[#allocation8 + $0x1958] sm:$0xff]
    %v1768 = vld [vmem:[#allocation8 + $0x1960] sm:$0xff]
    %v1769 = vld [vmem:[#allocation8 + $0x1968] sm:$0xff]
    %v1770 = vld [vmem:[#allocation8 + $0x1970] sm:$0xff]
    %v1771 = vld [vmem:[#allocation8 + $0x1978] sm:$0xff]
    %v1772 = vld [vmem:[#allocation8 + $0x1980] sm:$0xff]
    %v1773 = vld [vmem:[#allocation8 + $0x1988] sm:$0xff]
    %v1774 = vld [vmem:[#allocation8 + $0x1990] sm:$0xff]
    %v1775 = vld [vmem:[#allocation8 + $0x1998] sm:$0xff]
    %v1776 = vld [vmem:[#allocation8 + $0x19a0] sm:$0xff]
    %v1777 = vld [vmem:[#allocation8 + $0x19a8] sm:$0xff]
    %v1778 = vld [vmem:[#allocation8 + $0x19b0] sm:$0xff]
    %v1779 = vld [vmem:[#allocation8 + $0x19b8] sm:$0xff]
    %v1780 = vld [vmem:[#allocation8 + $0x19c0] sm:$0xff]
    %v1781 = vld [vmem:[#allocation8 + $0x19c8] sm:$0xff]
    %v1782 = vld [vmem:[#allocation8 + $0x19d0] sm:$0xff]
    %v1783 = vld [vmem:[#allocation8 + $0x19d8] sm:$0xff]
    %v1784 = vld [vmem:[#allocation8 + $0x19e0] sm:$0xff]
    %v1785 = vld [vmem:[#allocation8 + $0x19e8] sm:$0xff]
    %v1786 = vld [vmem:[#allocation8 + $0x19f0] sm:$0xff]
    %v1787 = vld [vmem:[#allocation8 + $0x19f8] sm:$0xff]
    %v1788 = vld [vmem:[#allocation8 + $0x1a00] sm:$0xff]
    %v1789 = vld [vmem:[#allocation8 + $0x1a08] sm:$0xff]
    %v1790 = vld [vmem:[#allocation8 + $0x1a10] sm:$0xff]
    %v1791 = vld [vmem:[#allocation8 + $0x1a18] sm:$0xff]
    %v1792 = vld [vmem:[#allocation8 + $0x1a20] sm:$0xff]
    %v1793 = vld [vmem:[#allocation8 + $0x1a28] sm:$0xff]
    %v1794 = vld [vmem:[#allocation8 + $0x1a30] sm:$0xff]
    %v1795 = vld [vmem:[#allocation8 + $0x1a38] sm:$0xff]
    %v1796 = vld [vmem:[#allocation8 + $0x1a40] sm:$0xff]
    %v1797 = vld [vmem:[#allocation8 + $0x1a48] sm:$0xff]
    %v1798 = vld [vmem:[#allocation8 + $0x1a50] sm:$0xff]
    %v1799 = vld [vmem:[#allocation8 + $0x1a58] sm:$0xff]
    %v1800 = vld [vmem:[#allocation8 + $0x1a60] sm:$0xff]
    %v1801 = vld [vmem:[#allocation8 + $0x1a68] sm:$0xff]
    %v1802 = vld [vmem:[#allocation8 + $0x1a70] sm:$0xff]
    %v1803 = vld [vmem:[#allocation8 + $0x1a78] sm:$0xff]
    %v1804 = vld [vmem:[#allocation8 + $0x1a80] sm:$0xff]
    %v1805 = vld [vmem:[#allocation8 + $0x1a88] sm:$0xff]
    %v1806 = vld [vmem:[#allocation8 + $0x1a90] sm:$0xff]
    %v1807 = vld [vmem:[#allocation8 + $0x1a98] sm:$0xff]
    %v1808 = vld [vmem:[#allocation8 + $0x1aa0] sm:$0xff]
    %v1809 = vld [vmem:[#allocation8 + $0x1aa8] sm:$0xff]
    %v1810 = vld [vmem:[#allocation8 + $0x1ab0] sm:$0xff]
    %v1811 = vld [vmem:[#allocation8 + $0x1ab8] sm:$0xff]
    %v1812 = vld [vmem:[#allocation8 + $0x1ac0] sm:$0xff]
    %v1813 = vld [vmem:[#allocation8 + $0x1ac8] sm:$0xff]
    %v1814 = vld [vmem:[#allocation8 + $0x1ad0] sm:$0xff]
    %v1815 = vld [vmem:[#allocation8 + $0x1ad8] sm:$0xff]
    %v1816 = vld [vmem:[#allocation8 + $0x1ae0] sm:$0xff]
    %v1817 = vld [vmem:[#allocation8 + $0x1ae8] sm:$0xff]
    %v1818 = vld [vmem:[#allocation8 + $0x1af0] sm:$0xff]
    %v1819 = vld [vmem:[#allocation8 + $0x1af8] sm:$0xff]
    %v1820 = vld [vmem:[#allocation8 + $0x1b00] sm:$0xff]
    %v1821 = vld [vmem:[#allocation8 + $0x1b08] sm:$0xff]
    %v1822 = vld [vmem:[#allocation8 + $0x1b10] sm:$0xff]
    %v1823 = vld [vmem:[#allocation8 + $0x1b18] sm:$0xff]
    %v1824 = vld [vmem:[#allocation8 + $0x1b20] sm:$0xff]
    %v1825 = vld [vmem:[#allocation8 + $0x1b28] sm:$0xff]
    %v1826 = vld [vmem:[#allocation8 + $0x1b30] sm:$0xff]
    %v1827 = vld [vmem:[#allocation8 + $0x1b38] sm:$0xff]
    %v1828 = vld [vmem:[#allocation8 + $0x1b40] sm:$0xff]
    %v1829 = vld [vmem:[#allocation8 + $0x1b48] sm:$0xff]
    %v1830 = vld [vmem:[#allocation8 + $0x1b50] sm:$0xff]
    %v1831 = vld [vmem:[#allocation8 + $0x1b58] sm:$0xff]
    %v1832 = vld [vmem:[#allocation8 + $0x1b60] sm:$0xff]
    %v1833 = vld [vmem:[#allocation8 + $0x1b68] sm:$0xff]
    %v1834 = vld [vmem:[#allocation8 + $0x1b70] sm:$0xff]
    %v1835 = vld [vmem:[#allocation8 + $0x1b78] sm:$0xff]
    %v1836 = vld [vmem:[#allocation8 + $0x1b80] sm:$0xff]
    %v1837 = vld [vmem:[#allocation8 + $0x1b88] sm:$0xff]
    %v1838 = vld [vmem:[#allocation8 + $0x1b90] sm:$0xff]
    %v1839 = vld [vmem:[#allocation8 + $0x1b98] sm:$0xff]
    %v1840 = vld [vmem:[#allocation8 + $0x1ba0] sm:$0xff]
    %v1841 = vld [vmem:[#allocation8 + $0x1ba8] sm:$0xff]
    %v1842 = vld [vmem:[#allocation8 + $0x1bb0] sm:$0xff]
    %v1843 = vld [vmem:[#allocation8 + $0x1bb8] sm:$0xff]
    %v1844 = vld [vmem:[#allocation8 + $0x1bc0] sm:$0xff]
    %v1845 = vld [vmem:[#allocation8 + $0x1bc8] sm:$0xff]
    %v1846 = vld [vmem:[#allocation8 + $0x1bd0] sm:$0xff]
    %v1847 = vld [vmem:[#allocation8 + $0x1bd8] sm:$0xff]
    %v1848 = vld [vmem:[#allocation8 + $0x1be0] sm:$0xff]
    %v1849 = vld [vmem:[#allocation8 + $0x1be8] sm:$0xff]
    %v1850 = vld [vmem:[#allocation8 + $0x1bf0] sm:$0xff]
    %v1851 = vld [vmem:[#allocation8 + $0x1bf8] sm:$0xff]
    %v1852 = vld [vmem:[#allocation8 + $0x1c00] sm:$0xff]
    %v1853 = vld [vmem:[#allocation8 + $0x1c08] sm:$0xff]
    %v1854 = vld [vmem:[#allocation8 + $0x1c10] sm:$0xff]
    %v1855 = vld [vmem:[#allocation8 + $0x1c18] sm:$0xff]
    %v1856 = vld [vmem:[#allocation8 + $0x1c20] sm:$0xff]
    %v1857 = vld [vmem:[#allocation8 + $0x1c28] sm:$0xff]
    %v1858 = vld [vmem:[#allocation8 + $0x1c30] sm:$0xff]
    %v1859 = vld [vmem:[#allocation8 + $0x1c38] sm:$0xff]
    %v1860 = vld [vmem:[#allocation8 + $0x1c40] sm:$0xff]
    %v1861 = vld [vmem:[#allocation8 + $0x1c48] sm:$0xff]
    %v1862 = vld [vmem:[#allocation8 + $0x1c50] sm:$0xff]
    %v1863 = vld [vmem:[#allocation8 + $0x1c58] sm:$0xff]
    %v1864 = vld [vmem:[#allocation8 + $0x1c60] sm:$0xff]
    %v1865 = vld [vmem:[#allocation8 + $0x1c68] sm:$0xff]
    %v1866 = vld [vmem:[#allocation8 + $0x1c70] sm:$0xff]
    %v1867 = vld [vmem:[#allocation8 + $0x1c78] sm:$0xff]
    %v1868 = vld [vmem:[#allocation8 + $0x1c80] sm:$0xff]
    %v1869 = vld [vmem:[#allocation8 + $0x1c88] sm:$0xff]
    %v1870 = vld [vmem:[#allocation8 + $0x1c90] sm:$0xff]
    %v1871 = vld [vmem:[#allocation8 + $0x1c98] sm:$0xff]
    %v1872 = vld [vmem:[#allocation8 + $0x1ca0] sm:$0xff]
    %v1873 = vld [vmem:[#allocation8 + $0x1ca8] sm:$0xff]
    %v1874 = vld [vmem:[#allocation8 + $0x1cb0] sm:$0xff]
    %v1875 = vld [vmem:[#allocation8 + $0x1cb8] sm:$0xff]
    %v1876 = vld [vmem:[#allocation8 + $0x1cc0] sm:$0xff]
    %v1877 = vld [vmem:[#allocation8 + $0x1cc8] sm:$0xff]
    %v1878 = vld [vmem:[#allocation8 + $0x1cd0] sm:$0xff]
    %v1879 = vld [vmem:[#allocation8 + $0x1cd8] sm:$0xff]
    %v1880 = vld [vmem:[#allocation8 + $0x1ce0] sm:$0xff]
    %v1881 = vld [vmem:[#allocation8 + $0x1ce8] sm:$0xff]
    %v1882 = vld [vmem:[#allocation8 + $0x1cf0] sm:$0xff]
    %v1883 = vld [vmem:[#allocation8 + $0x1cf8] sm:$0xff]
    %v1884 = vld [vmem:[#allocation8 + $0x1d00] sm:$0xff]
    %v1885 = vld [vmem:[#allocation8 + $0x1d08] sm:$0xff]
    %v1886 = vld [vmem:[#allocation8 + $0x1d10] sm:$0xff]
    %v1887 = vld [vmem:[#allocation8 + $0x1d18] sm:$0xff]
    %v1888 = vld [vmem:[#allocation8 + $0x1d20] sm:$0xff]
    %v1889 = vld [vmem:[#allocation8 + $0x1d28] sm:$0xff]
    %v1890 = vld [vmem:[#allocation8 + $0x1d30] sm:$0xff]
    %v1891 = vld [vmem:[#allocation8 + $0x1d38] sm:$0xff]
    %v1892 = vld [vmem:[#allocation8 + $0x1d40] sm:$0xff]
    %v1893 = vld [vmem:[#allocation8 + $0x1d48] sm:$0xff]
    %v1894 = vld [vmem:[#allocation8 + $0x1d50] sm:$0xff]
    %v1895 = vld [vmem:[#allocation8 + $0x1d58] sm:$0xff]
    %v1896 = vld [vmem:[#allocation8 + $0x1d60] sm:$0xff]
    %v1897 = vld [vmem:[#allocation8 + $0x1d68] sm:$0xff]
    %v1898 = vld [vmem:[#allocation8 + $0x1d70] sm:$0xff]
    %v1899 = vld [vmem:[#allocation8 + $0x1d78] sm:$0xff]
    %v1900 = vld [vmem:[#allocation8 + $0x1d80] sm:$0xff]
    %v1901 = vld [vmem:[#allocation8 + $0x1d88] sm:$0xff]
    %v1902 = vld [vmem:[#allocation8 + $0x1d90] sm:$0xff]
    %v1903 = vld [vmem:[#allocation8 + $0x1d98] sm:$0xff]
    %v1904 = vld [vmem:[#allocation8 + $0x1da0] sm:$0xff]
    %v1905 = vld [vmem:[#allocation8 + $0x1da8] sm:$0xff]
    %v1906 = vld [vmem:[#allocation8 + $0x1db0] sm:$0xff]
    %v1907 = vld [vmem:[#allocation8 + $0x1db8] sm:$0xff]
    %v1908 = vld [vmem:[#allocation8 + $0x1dc0] sm:$0xff]
    %v1909 = vld [vmem:[#allocation8 + $0x1dc8] sm:$0xff]
    %v1910 = vld [vmem:[#allocation8 + $0x1dd0] sm:$0xff]
    %v1911 = vld [vmem:[#allocation8 + $0x1dd8] sm:$0xff]
    %v1912 = vld [vmem:[#allocation8 + $0x1de0] sm:$0xff]
    %v1913 = vld [vmem:[#allocation8 + $0x1de8] sm:$0xff]
    %v1914 = vld [vmem:[#allocation8 + $0x1df0] sm:$0xff]
    %v1915 = vld [vmem:[#allocation8 + $0x1df8] sm:$0xff]
    %v1916 = vld [vmem:[#allocation8 + $0x1e00] sm:$0xff]
    %v1917 = vld [vmem:[#allocation8 + $0x1e08] sm:$0xff]
    %v1918 = vld [vmem:[#allocation8 + $0x1e10] sm:$0xff]
    %v1919 = vld [vmem:[#allocation8 + $0x1e18] sm:$0xff]
    %v1920 = vld [vmem:[#allocation8 + $0x1e20] sm:$0xff]
    %v1921 = vld [vmem:[#allocation8 + $0x1e28] sm:$0xff]
    %v1922 = vld [vmem:[#allocation8 + $0x1e30] sm:$0xff]
    %v1923 = vld [vmem:[#allocation8 + $0x1e38] sm:$0xff]
    %v1924 = vld [vmem:[#allocation8 + $0x1e40] sm:$0xff]
    %v1925 = vld [vmem:[#allocation8 + $0x1e48] sm:$0xff]
    %v1926 = vld [vmem:[#allocation8 + $0x1e50] sm:$0xff]
    %v1927 = vld [vmem:[#allocation8 + $0x1e58] sm:$0xff]
    %v1928 = vld [vmem:[#allocation8 + $0x1e60] sm:$0xff]
    %v1929 = vld [vmem:[#allocation8 + $0x1e68] sm:$0xff]
    %v1930 = vld [vmem:[#allocation8 + $0x1e70] sm:$0xff]
    %v1931 = vld [vmem:[#allocation8 + $0x1e78] sm:$0xff]
    %v1932 = vld [vmem:[#allocation8 + $0x1e80] sm:$0xff]
    %v1933 = vld [vmem:[#allocation8 + $0x1e88] sm:$0xff]
    %v1934 = vld [vmem:[#allocation8 + $0x1e90] sm:$0xff]
    %v1935 = vld [vmem:[#allocation8 + $0x1e98] sm:$0xff]
    %v1936 = vld [vmem:[#allocation8 + $0x1ea0] sm:$0xff]
    %v1937 = vld [vmem:[#allocation8 + $0x1ea8] sm:$0xff]
    %v1938 = vld [vmem:[#allocation8 + $0x1eb0] sm:$0xff]
    %v1939 = vld [vmem:[#allocation8 + $0x1eb8] sm:$0xff]
    %v1940 = vld [vmem:[#allocation8 + $0x1ec0] sm:$0xff]
    %v1941 = vld [vmem:[#allocation8 + $0x1ec8] sm:$0xff]
    %v1942 = vld [vmem:[#allocation8 + $0x1ed0] sm:$0xff]
    %v1943 = vld [vmem:[#allocation8 + $0x1ed8] sm:$0xff]
    %v1944 = vld [vmem:[#allocation8 + $0x1ee0] sm:$0xff]
    %v1945 = vld [vmem:[#allocation8 + $0x1ee8] sm:$0xff]
    %v1946 = vld [vmem:[#allocation8 + $0x1ef0] sm:$0xff]
    %v1947 = vld [vmem:[#allocation8 + $0x1ef8] sm:$0xff]
    %v1948 = vld [vmem:[#allocation8 + $0x1f00] sm:$0xff]
    %v1949 = vld [vmem:[#allocation8 + $0x1f08] sm:$0xff]
    %v1950 = vld [vmem:[#allocation8 + $0x1f10] sm:$0xff]
    %v1951 = vld [vmem:[#allocation8 + $0x1f18] sm:$0xff]
    %v1952 = vld [vmem:[#allocation8 + $0x1f20] sm:$0xff]
    %v1953 = vld [vmem:[#allocation8 + $0x1f28] sm:$0xff]
    %v1954 = vld [vmem:[#allocation8 + $0x1f30] sm:$0xff]
    %v1955 = vld [vmem:[#allocation8 + $0x1f38] sm:$0xff]
    %v1956 = vld [vmem:[#allocation8 + $0x1f40] sm:$0xff]
    %v1957 = vld [vmem:[#allocation8 + $0x1f48] sm:$0xff]
    %v1958 = vld [vmem:[#allocation8 + $0x1f50] sm:$0xff]
    %v1959 = vld [vmem:[#allocation8 + $0x1f58] sm:$0xff]
    %v1960 = vld [vmem:[#allocation8 + $0x1f60] sm:$0xff]
    %v1961 = vld [vmem:[#allocation8 + $0x1f68] sm:$0xff]
    %v1962 = vld [vmem:[#allocation8 + $0x1f70] sm:$0xff]
    %v1963 = vld [vmem:[#allocation8 + $0x1f78] sm:$0xff]
    %v1964 = vld [vmem:[#allocation8 + $0x1f80] sm:$0xff]
    %v1965 = vld [vmem:[#allocation8 + $0x1f88] sm:$0xff]
    %v1966 = vld [vmem:[#allocation8 + $0x1f90] sm:$0xff]
    %v1967 = vld [vmem:[#allocation8 + $0x1f98] sm:$0xff]
    %v1968 = vld [vmem:[#allocation8 + $0x1fa0] sm:$0xff]
    %v1969 = vld [vmem:[#allocation8 + $0x1fa8] sm:$0xff]
    %v1970 = vld [vmem:[#allocation8 + $0x1fb0] sm:$0xff]
    %v1971 = vld [vmem:[#allocation8 + $0x1fb8] sm:$0xff]
    %v1972 = vld [vmem:[#allocation8 + $0x1fc0] sm:$0xff]
    %v1973 = vld [vmem:[#allocation8 + $0x1fc8] sm:$0xff]
    %v1974 = vld [vmem:[#allocation8 + $0x1fd0] sm:$0xff]
    %v1975 = vld [vmem:[#allocation8 + $0x1fd8] sm:$0xff]
    %v1976 = vld [vmem:[#allocation8 + $0x1fe0] sm:$0xff]
    %v1977 = vld [vmem:[#allocation8 + $0x1fe8] sm:$0xff]
    %v1978 = vld [vmem:[#allocation8 + $0x1ff0] sm:$0xff]
    %v1979 = vld [vmem:[#allocation8 + $0x1ff8] sm:$0xff]
    %v1980 = vld [vmem:[#allocation10] sm:$0xff]
    %v1982 = vlaneseq
    %v1983 = vshrl.u32 %v1982, 7
    %v1984 = vsub.s32 0, %v1983
    %v1985 = vrot.slane %v1980, %v1984
    %v1986 = vlaneseq
    %v1987 = vshrl.u32 %v1986, 7
    %v1988 = vsub.s32 1, %v1987
    %v1989 = vrot.slane %v1980, %v1988
    %v1990 = vlaneseq
    %v1991 = vshrl.u32 %v1990, 7
    %v1992 = vsub.s32 2, %v1991
    %v1993 = vrot.slane %v1980, %v1992
    %v1994 = vlaneseq
    %v1995 = vshrl.u32 %v1994, 7
    %v1996 = vsub.s32 3, %v1995
    %v1997 = vrot.slane %v1980, %v1996
    %v1998 = vlaneseq
    %v1999 = vshrl.u32 %v1998, 7
    %v2000 = vsub.s32 4, %v1999
    %v2001 = vrot.slane %v1980, %v2000
    %v2002 = vlaneseq
    %v2003 = vshrl.u32 %v2002, 7
    %v2004 = vsub.s32 5, %v2003
    %v2005 = vrot.slane %v1980, %v2004
    %v2006 = vlaneseq
    %v2007 = vshrl.u32 %v2006, 7
    %v2008 = vsub.s32 6, %v2007
    %v2009 = vrot.slane %v1980, %v2008
    %v2010 = vlaneseq
    %v2011 = vshrl.u32 %v2010, 7
    %v2012 = vsub.s32 7, %v2011
    %v2013 = vrot.slane %v1980, %v2012
    %v3046 = vunpack.c.l.b16 %v956
    %v3047 = vunpack.c.h.b16 %v956
    %v3048 = vunpack.c.l.b16 %v957
    %v3049 = vunpack.c.h.b16 %v957
    %v3050 = vunpack.c.l.b16 %v958
    %v3051 = vunpack.c.h.b16 %v958
    %v3052 = vunpack.c.l.b16 %v959
    %v3053 = vunpack.c.h.b16 %v959
    %v3054 = vunpack.c.l.b16 %v960
    %v3055 = vunpack.c.h.b16 %v960
    %v3056 = vunpack.c.l.b16 %v961
    %v3057 = vunpack.c.h.b16 %v961
    %v3058 = vunpack.c.l.b16 %v962
    %v3059 = vunpack.c.h.b16 %v962
    %v3060 = vunpack.c.l.b16 %v963
    %v3061 = vunpack.c.h.b16 %v963
    %v3062 = vunpack.c.l.b16 %v964
    %v3063 = vunpack.c.h.b16 %v964
    %v3064 = vunpack.c.l.b16 %v965
    %v3065 = vunpack.c.h.b16 %v965
    %v3066 = vunpack.c.l.b16 %v966
    %v3067 = vunpack.c.h.b16 %v966
    %v3068 = vunpack.c.l.b16 %v967
    %v3069 = vunpack.c.h.b16 %v967
    %v3070 = vunpack.c.l.b16 %v968
    %v3071 = vunpack.c.h.b16 %v968
    %v3072 = vunpack.c.l.b16 %v969
    %v3073 = vunpack.c.h.b16 %v969
    %v3074 = vunpack.c.l.b16 %v970
    %v3075 = vunpack.c.h.b16 %v970
    %v3076 = vunpack.c.l.b16 %v971
    %v3077 = vunpack.c.h.b16 %v971
    %v3078 = vunpack.c.l.b16 %v972
    %v3079 = vunpack.c.h.b16 %v972
    %v3080 = vunpack.c.l.b16 %v973
    %v3081 = vunpack.c.h.b16 %v973
    %v3082 = vunpack.c.l.b16 %v974
    %v3083 = vunpack.c.h.b16 %v974
    %v3084 = vunpack.c.l.b16 %v975
    %v3085 = vunpack.c.h.b16 %v975
    %v3086 = vunpack.c.l.b16 %v976
    %v3087 = vunpack.c.h.b16 %v976
    %v3088 = vunpack.c.l.b16 %v977
    %v3089 = vunpack.c.h.b16 %v977
    %v3090 = vunpack.c.l.b16 %v978
    %v3091 = vunpack.c.h.b16 %v978
    %v3092 = vunpack.c.l.b16 %v979
    %v3093 = vunpack.c.h.b16 %v979
    %v3094 = vunpack.c.l.b16 %v980
    %v3095 = vunpack.c.h.b16 %v980
    %v3096 = vunpack.c.l.b16 %v981
    %v3097 = vunpack.c.h.b16 %v981
    %v3098 = vunpack.c.l.b16 %v982
    %v3099 = vunpack.c.h.b16 %v982
    %v3100 = vunpack.c.l.b16 %v983
    %v3101 = vunpack.c.h.b16 %v983
    %v3102 = vunpack.c.l.b16 %v984
    %v3103 = vunpack.c.h.b16 %v984
    %v3104 = vunpack.c.l.b16 %v985
    %v3105 = vunpack.c.h.b16 %v985
    %v3106 = vunpack.c.l.b16 %v986
    %v3107 = vunpack.c.h.b16 %v986
    %v3108 = vunpack.c.l.b16 %v987
    %v3109 = vunpack.c.h.b16 %v987
    %v3110 = vunpack.c.l.b16 %v988
    %v3111 = vunpack.c.h.b16 %v988
    %v3112 = vunpack.c.l.b16 %v989
    %v3113 = vunpack.c.h.b16 %v989
    %v3114 = vunpack.c.l.b16 %v990
    %v3115 = vunpack.c.h.b16 %v990
    %v3116 = vunpack.c.l.b16 %v991
    %v3117 = vunpack.c.h.b16 %v991
    %v3118 = vunpack.c.l.b16 %v992
    %v3119 = vunpack.c.h.b16 %v992
    %v3120 = vunpack.c.l.b16 %v993
    %v3121 = vunpack.c.h.b16 %v993
    %v3122 = vunpack.c.l.b16 %v994
    %v3123 = vunpack.c.h.b16 %v994
    %v3124 = vunpack.c.l.b16 %v995
    %v3125 = vunpack.c.h.b16 %v995
    %v3126 = vunpack.c.l.b16 %v996
    %v3127 = vunpack.c.h.b16 %v996
    %v3128 = vunpack.c.l.b16 %v997
    %v3129 = vunpack.c.h.b16 %v997
    %v3130 = vunpack.c.l.b16 %v998
    %v3131 = vunpack.c.h.b16 %v998
    %v3132 = vunpack.c.l.b16 %v999
    %v3133 = vunpack.c.h.b16 %v999
    %v3134 = vunpack.c.l.b16 %v1000
    %v3135 = vunpack.c.h.b16 %v1000
    %v3136 = vunpack.c.l.b16 %v1001
    %v3137 = vunpack.c.h.b16 %v1001
    %v3138 = vunpack.c.l.b16 %v1002
    %v3139 = vunpack.c.h.b16 %v1002
    %v3140 = vunpack.c.l.b16 %v1003
    %v3141 = vunpack.c.h.b16 %v1003
    %v3142 = vunpack.c.l.b16 %v1004
    %v3143 = vunpack.c.h.b16 %v1004
    %v3144 = vunpack.c.l.b16 %v1005
    %v3145 = vunpack.c.h.b16 %v1005
    %v3146 = vunpack.c.l.b16 %v1006
    %v3147 = vunpack.c.h.b16 %v1006
    %v3148 = vunpack.c.l.b16 %v1007
    %v3149 = vunpack.c.h.b16 %v1007
    %v3150 = vunpack.c.l.b16 %v1008
    %v3151 = vunpack.c.h.b16 %v1008
    %v3152 = vunpack.c.l.b16 %v1009
    %v3153 = vunpack.c.h.b16 %v1009
    %v3154 = vunpack.c.l.b16 %v1010
    %v3155 = vunpack.c.h.b16 %v1010
    %v3156 = vunpack.c.l.b16 %v1011
    %v3157 = vunpack.c.h.b16 %v1011
    %v3158 = vunpack.c.l.b16 %v1012
    %v3159 = vunpack.c.h.b16 %v1012
    %v3160 = vunpack.c.l.b16 %v1013
    %v3161 = vunpack.c.h.b16 %v1013
    %v3162 = vunpack.c.l.b16 %v1014
    %v3163 = vunpack.c.h.b16 %v1014
    %v3164 = vunpack.c.l.b16 %v1015
    %v3165 = vunpack.c.h.b16 %v1015
    %v3166 = vunpack.c.l.b16 %v1016
    %v3167 = vunpack.c.h.b16 %v1016
    %v3168 = vunpack.c.l.b16 %v1017
    %v3169 = vunpack.c.h.b16 %v1017
    %v3170 = vunpack.c.l.b16 %v1018
    %v3171 = vunpack.c.h.b16 %v1018
    %v3172 = vunpack.c.l.b16 %v1019
    %v3173 = vunpack.c.h.b16 %v1019
    %v3174 = vunpack.c.l.b16 %v1020
    %v3175 = vunpack.c.h.b16 %v1020
    %v3176 = vunpack.c.l.b16 %v1021
    %v3177 = vunpack.c.h.b16 %v1021
    %v3178 = vunpack.c.l.b16 %v1022
    %v3179 = vunpack.c.h.b16 %v1022
    %v3180 = vunpack.c.l.b16 %v1023
    %v3181 = vunpack.c.h.b16 %v1023
    %v3182 = vunpack.c.l.b16 %v1024
    %v3183 = vunpack.c.h.b16 %v1024
    %v3184 = vunpack.c.l.b16 %v1025
    %v3185 = vunpack.c.h.b16 %v1025
    %v3186 = vunpack.c.l.b16 %v1026
    %v3187 = vunpack.c.h.b16 %v1026
    %v3188 = vunpack.c.l.b16 %v1027
    %v3189 = vunpack.c.h.b16 %v1027
    %v3190 = vunpack.c.l.b16 %v1028
    %v3191 = vunpack.c.h.b16 %v1028
    %v3192 = vunpack.c.l.b16 %v1029
    %v3193 = vunpack.c.h.b16 %v1029
    %v3194 = vunpack.c.l.b16 %v1030
    %v3195 = vunpack.c.h.b16 %v1030
    %v3196 = vunpack.c.l.b16 %v1031
    %v3197 = vunpack.c.h.b16 %v1031
    %v3198 = vunpack.c.l.b16 %v1032
    %v3199 = vunpack.c.h.b16 %v1032
    %v3200 = vunpack.c.l.b16 %v1033
    %v3201 = vunpack.c.h.b16 %v1033
    %v3202 = vunpack.c.l.b16 %v1034
    %v3203 = vunpack.c.h.b16 %v1034
    %v3204 = vunpack.c.l.b16 %v1035
    %v3205 = vunpack.c.h.b16 %v1035
    %v3206 = vunpack.c.l.b16 %v1036
    %v3207 = vunpack.c.h.b16 %v1036
    %v3208 = vunpack.c.l.b16 %v1037
    %v3209 = vunpack.c.h.b16 %v1037
    %v3210 = vunpack.c.l.b16 %v1038
    %v3211 = vunpack.c.h.b16 %v1038
    %v3212 = vunpack.c.l.b16 %v1039
    %v3213 = vunpack.c.h.b16 %v1039
    %v3214 = vunpack.c.l.b16 %v1040
    %v3215 = vunpack.c.h.b16 %v1040
    %v3216 = vunpack.c.l.b16 %v1041
    %v3217 = vunpack.c.h.b16 %v1041
    %v3218 = vunpack.c.l.b16 %v1042
    %v3219 = vunpack.c.h.b16 %v1042
    %v3220 = vunpack.c.l.b16 %v1043
    %v3221 = vunpack.c.h.b16 %v1043
    %v3222 = vunpack.c.l.b16 %v1044
    %v3223 = vunpack.c.h.b16 %v1044
    %v3224 = vunpack.c.l.b16 %v1045
    %v3225 = vunpack.c.h.b16 %v1045
    %v3226 = vunpack.c.l.b16 %v1046
    %v3227 = vunpack.c.h.b16 %v1046
    %v3228 = vunpack.c.l.b16 %v1047
    %v3229 = vunpack.c.h.b16 %v1047
    %v3230 = vunpack.c.l.b16 %v1048
    %v3231 = vunpack.c.h.b16 %v1048
    %v3232 = vunpack.c.l.b16 %v1049
    %v3233 = vunpack.c.h.b16 %v1049
    %v3234 = vunpack.c.l.b16 %v1050
    %v3235 = vunpack.c.h.b16 %v1050
    %v3236 = vunpack.c.l.b16 %v1051
    %v3237 = vunpack.c.h.b16 %v1051
    %v3238 = vunpack.c.l.b16 %v1052
    %v3239 = vunpack.c.h.b16 %v1052
    %v3240 = vunpack.c.l.b16 %v1053
    %v3241 = vunpack.c.h.b16 %v1053
    %v3242 = vunpack.c.l.b16 %v1054
    %v3243 = vunpack.c.h.b16 %v1054
    %v3244 = vunpack.c.l.b16 %v1055
    %v3245 = vunpack.c.h.b16 %v1055
    %v3246 = vunpack.c.l.b16 %v1056
    %v3247 = vunpack.c.h.b16 %v1056
    %v3248 = vunpack.c.l.b16 %v1057
    %v3249 = vunpack.c.h.b16 %v1057
    %v3250 = vunpack.c.l.b16 %v1058
    %v3251 = vunpack.c.h.b16 %v1058
    %v3252 = vunpack.c.l.b16 %v1059
    %v3253 = vunpack.c.h.b16 %v1059
    %v3254 = vunpack.c.l.b16 %v1060
    %v3255 = vunpack.c.h.b16 %v1060
    %v3256 = vunpack.c.l.b16 %v1061
    %v3257 = vunpack.c.h.b16 %v1061
    %v3258 = vunpack.c.l.b16 %v1062
    %v3259 = vunpack.c.h.b16 %v1062
    %v3260 = vunpack.c.l.b16 %v1063
    %v3261 = vunpack.c.h.b16 %v1063
    %v3262 = vunpack.c.l.b16 %v1064
    %v3263 = vunpack.c.h.b16 %v1064
    %v3264 = vunpack.c.l.b16 %v1065
    %v3265 = vunpack.c.h.b16 %v1065
    %v3266 = vunpack.c.l.b16 %v1066
    %v3267 = vunpack.c.h.b16 %v1066
    %v3268 = vunpack.c.l.b16 %v1067
    %v3269 = vunpack.c.h.b16 %v1067
    %v3270 = vunpack.c.l.b16 %v1068
    %v3271 = vunpack.c.h.b16 %v1068
    %v3272 = vunpack.c.l.b16 %v1069
    %v3273 = vunpack.c.h.b16 %v1069
    %v3274 = vunpack.c.l.b16 %v1070
    %v3275 = vunpack.c.h.b16 %v1070
    %v3276 = vunpack.c.l.b16 %v1071
    %v3277 = vunpack.c.h.b16 %v1071
    %v3278 = vunpack.c.l.b16 %v1072
    %v3279 = vunpack.c.h.b16 %v1072
    %v3280 = vunpack.c.l.b16 %v1073
    %v3281 = vunpack.c.h.b16 %v1073
    %v3282 = vunpack.c.l.b16 %v1074
    %v3283 = vunpack.c.h.b16 %v1074
    %v3284 = vunpack.c.l.b16 %v1075
    %v3285 = vunpack.c.h.b16 %v1075
    %v3286 = vunpack.c.l.b16 %v1076
    %v3287 = vunpack.c.h.b16 %v1076
    %v3288 = vunpack.c.l.b16 %v1077
    %v3289 = vunpack.c.h.b16 %v1077
    %v3290 = vunpack.c.l.b16 %v1078
    %v3291 = vunpack.c.h.b16 %v1078
    %v3292 = vunpack.c.l.b16 %v1079
    %v3293 = vunpack.c.h.b16 %v1079
    %v3294 = vunpack.c.l.b16 %v1080
    %v3295 = vunpack.c.h.b16 %v1080
    %v3296 = vunpack.c.l.b16 %v1081
    %v3297 = vunpack.c.h.b16 %v1081
    %v3298 = vunpack.c.l.b16 %v1082
    %v3299 = vunpack.c.h.b16 %v1082
    %v3300 = vunpack.c.l.b16 %v1083
    %v3301 = vunpack.c.h.b16 %v1083
    %v3302 = vunpack.c.l.b16 %v1084
    %v3303 = vunpack.c.h.b16 %v1084
    %v3304 = vunpack.c.l.b16 %v1085
    %v3305 = vunpack.c.h.b16 %v1085
    %v3306 = vunpack.c.l.b16 %v1086
    %v3307 = vunpack.c.h.b16 %v1086
    %v3308 = vunpack.c.l.b16 %v1087
    %v3309 = vunpack.c.h.b16 %v1087
    %v3310 = vunpack.c.l.b16 %v1088
    %v3311 = vunpack.c.h.b16 %v1088
    %v3312 = vunpack.c.l.b16 %v1089
    %v3313 = vunpack.c.h.b16 %v1089
    %v3314 = vunpack.c.l.b16 %v1090
    %v3315 = vunpack.c.h.b16 %v1090
    %v3316 = vunpack.c.l.b16 %v1091
    %v3317 = vunpack.c.h.b16 %v1091
    %v3318 = vunpack.c.l.b16 %v1092
    %v3319 = vunpack.c.h.b16 %v1092
    %v3320 = vunpack.c.l.b16 %v1093
    %v3321 = vunpack.c.h.b16 %v1093
    %v3322 = vunpack.c.l.b16 %v1094
    %v3323 = vunpack.c.h.b16 %v1094
    %v3324 = vunpack.c.l.b16 %v1095
    %v3325 = vunpack.c.h.b16 %v1095
    %v3326 = vunpack.c.l.b16 %v1096
    %v3327 = vunpack.c.h.b16 %v1096
    %v3328 = vunpack.c.l.b16 %v1097
    %v3329 = vunpack.c.h.b16 %v1097
    %v3330 = vunpack.c.l.b16 %v1098
    %v3331 = vunpack.c.h.b16 %v1098
    %v3332 = vunpack.c.l.b16 %v1099
    %v3333 = vunpack.c.h.b16 %v1099
    %v3334 = vunpack.c.l.b16 %v1100
    %v3335 = vunpack.c.h.b16 %v1100
    %v3336 = vunpack.c.l.b16 %v1101
    %v3337 = vunpack.c.h.b16 %v1101
    %v3338 = vunpack.c.l.b16 %v1102
    %v3339 = vunpack.c.h.b16 %v1102
    %v3340 = vunpack.c.l.b16 %v1103
    %v3341 = vunpack.c.h.b16 %v1103
    %v3342 = vunpack.c.l.b16 %v1104
    %v3343 = vunpack.c.h.b16 %v1104
    %v3344 = vunpack.c.l.b16 %v1105
    %v3345 = vunpack.c.h.b16 %v1105
    %v3346 = vunpack.c.l.b16 %v1106
    %v3347 = vunpack.c.h.b16 %v1106
    %v3348 = vunpack.c.l.b16 %v1107
    %v3349 = vunpack.c.h.b16 %v1107
    %v3350 = vunpack.c.l.b16 %v1108
    %v3351 = vunpack.c.h.b16 %v1108
    %v3352 = vunpack.c.l.b16 %v1109
    %v3353 = vunpack.c.h.b16 %v1109
    %v3354 = vunpack.c.l.b16 %v1110
    %v3355 = vunpack.c.h.b16 %v1110
    %v3356 = vunpack.c.l.b16 %v1111
    %v3357 = vunpack.c.h.b16 %v1111
    %v3358 = vunpack.c.l.b16 %v1112
    %v3359 = vunpack.c.h.b16 %v1112
    %v3360 = vunpack.c.l.b16 %v1113
    %v3361 = vunpack.c.h.b16 %v1113
    %v3362 = vunpack.c.l.b16 %v1114
    %v3363 = vunpack.c.h.b16 %v1114
    %v3364 = vunpack.c.l.b16 %v1115
    %v3365 = vunpack.c.h.b16 %v1115
    %v3366 = vunpack.c.l.b16 %v1116
    %v3367 = vunpack.c.h.b16 %v1116
    %v3368 = vunpack.c.l.b16 %v1117
    %v3369 = vunpack.c.h.b16 %v1117
    %v3370 = vunpack.c.l.b16 %v1118
    %v3371 = vunpack.c.h.b16 %v1118
    %v3372 = vunpack.c.l.b16 %v1119
    %v3373 = vunpack.c.h.b16 %v1119
    %v3374 = vunpack.c.l.b16 %v1120
    %v3375 = vunpack.c.h.b16 %v1120
    %v3376 = vunpack.c.l.b16 %v1121
    %v3377 = vunpack.c.h.b16 %v1121
    %v3378 = vunpack.c.l.b16 %v1122
    %v3379 = vunpack.c.h.b16 %v1122
    %v3380 = vunpack.c.l.b16 %v1123
    %v3381 = vunpack.c.h.b16 %v1123
    %v3382 = vunpack.c.l.b16 %v1124
    %v3383 = vunpack.c.h.b16 %v1124
    %v3384 = vunpack.c.l.b16 %v1125
    %v3385 = vunpack.c.h.b16 %v1125
    %v3386 = vunpack.c.l.b16 %v1126
    %v3387 = vunpack.c.h.b16 %v1126
    %v3388 = vunpack.c.l.b16 %v1127
    %v3389 = vunpack.c.h.b16 %v1127
    %v3390 = vunpack.c.l.b16 %v1128
    %v3391 = vunpack.c.h.b16 %v1128
    %v3392 = vunpack.c.l.b16 %v1129
    %v3393 = vunpack.c.h.b16 %v1129
    %v3394 = vunpack.c.l.b16 %v1130
    %v3395 = vunpack.c.h.b16 %v1130
    %v3396 = vunpack.c.l.b16 %v1131
    %v3397 = vunpack.c.h.b16 %v1131
    %v3398 = vunpack.c.l.b16 %v1132
    %v3399 = vunpack.c.h.b16 %v1132
    %v3400 = vunpack.c.l.b16 %v1133
    %v3401 = vunpack.c.h.b16 %v1133
    %v3402 = vunpack.c.l.b16 %v1134
    %v3403 = vunpack.c.h.b16 %v1134
    %v3404 = vunpack.c.l.b16 %v1135
    %v3405 = vunpack.c.h.b16 %v1135
    %v3406 = vunpack.c.l.b16 %v1136
    %v3407 = vunpack.c.h.b16 %v1136
    %v3408 = vunpack.c.l.b16 %v1137
    %v3409 = vunpack.c.h.b16 %v1137
    %v3410 = vunpack.c.l.b16 %v1138
    %v3411 = vunpack.c.h.b16 %v1138
    %v3412 = vunpack.c.l.b16 %v1139
    %v3413 = vunpack.c.h.b16 %v1139
    %v3414 = vunpack.c.l.b16 %v1140
    %v3415 = vunpack.c.h.b16 %v1140
    %v3416 = vunpack.c.l.b16 %v1141
    %v3417 = vunpack.c.h.b16 %v1141
    %v3418 = vunpack.c.l.b16 %v1142
    %v3419 = vunpack.c.h.b16 %v1142
    %v3420 = vunpack.c.l.b16 %v1143
    %v3421 = vunpack.c.h.b16 %v1143
    %v3422 = vunpack.c.l.b16 %v1144
    %v3423 = vunpack.c.h.b16 %v1144
    %v3424 = vunpack.c.l.b16 %v1145
    %v3425 = vunpack.c.h.b16 %v1145
    %v3426 = vunpack.c.l.b16 %v1146
    %v3427 = vunpack.c.h.b16 %v1146
    %v3428 = vunpack.c.l.b16 %v1147
    %v3429 = vunpack.c.h.b16 %v1147
    %v3430 = vunpack.c.l.b16 %v1148
    %v3431 = vunpack.c.h.b16 %v1148
    %v3432 = vunpack.c.l.b16 %v1149
    %v3433 = vunpack.c.h.b16 %v1149
    %v3434 = vunpack.c.l.b16 %v1150
    %v3435 = vunpack.c.h.b16 %v1150
    %v3436 = vunpack.c.l.b16 %v1151
    %v3437 = vunpack.c.h.b16 %v1151
    %v3438 = vunpack.c.l.b16 %v1152
    %v3439 = vunpack.c.h.b16 %v1152
    %v3440 = vunpack.c.l.b16 %v1153
    %v3441 = vunpack.c.h.b16 %v1153
    %v3442 = vunpack.c.l.b16 %v1154
    %v3443 = vunpack.c.h.b16 %v1154
    %v3444 = vunpack.c.l.b16 %v1155
    %v3445 = vunpack.c.h.b16 %v1155
    %v3446 = vunpack.c.l.b16 %v1156
    %v3447 = vunpack.c.h.b16 %v1156
    %v3448 = vunpack.c.l.b16 %v1157
    %v3449 = vunpack.c.h.b16 %v1157
    %v3450 = vunpack.c.l.b16 %v1158
    %v3451 = vunpack.c.h.b16 %v1158
    %v3452 = vunpack.c.l.b16 %v1159
    %v3453 = vunpack.c.h.b16 %v1159
    %v3454 = vunpack.c.l.b16 %v1160
    %v3455 = vunpack.c.h.b16 %v1160
    %v3456 = vunpack.c.l.b16 %v1161
    %v3457 = vunpack.c.h.b16 %v1161
    %v3458 = vunpack.c.l.b16 %v1162
    %v3459 = vunpack.c.h.b16 %v1162
    %v3460 = vunpack.c.l.b16 %v1163
    %v3461 = vunpack.c.h.b16 %v1163
    %v3462 = vunpack.c.l.b16 %v1164
    %v3463 = vunpack.c.h.b16 %v1164
    %v3464 = vunpack.c.l.b16 %v1165
    %v3465 = vunpack.c.h.b16 %v1165
    %v3466 = vunpack.c.l.b16 %v1166
    %v3467 = vunpack.c.h.b16 %v1166
    %v3468 = vunpack.c.l.b16 %v1167
    %v3469 = vunpack.c.h.b16 %v1167
    %v3470 = vunpack.c.l.b16 %v1168
    %v3471 = vunpack.c.h.b16 %v1168
    %v3472 = vunpack.c.l.b16 %v1169
    %v3473 = vunpack.c.h.b16 %v1169
    %v3474 = vunpack.c.l.b16 %v1170
    %v3475 = vunpack.c.h.b16 %v1170
    %v3476 = vunpack.c.l.b16 %v1171
    %v3477 = vunpack.c.h.b16 %v1171
    %v3478 = vunpack.c.l.b16 %v1172
    %v3479 = vunpack.c.h.b16 %v1172
    %v3480 = vunpack.c.l.b16 %v1173
    %v3481 = vunpack.c.h.b16 %v1173
    %v3482 = vunpack.c.l.b16 %v1174
    %v3483 = vunpack.c.h.b16 %v1174
    %v3484 = vunpack.c.l.b16 %v1175
    %v3485 = vunpack.c.h.b16 %v1175
    %v3486 = vunpack.c.l.b16 %v1176
    %v3487 = vunpack.c.h.b16 %v1176
    %v3488 = vunpack.c.l.b16 %v1177
    %v3489 = vunpack.c.h.b16 %v1177
    %v3490 = vunpack.c.l.b16 %v1178
    %v3491 = vunpack.c.h.b16 %v1178
    %v3492 = vunpack.c.l.b16 %v1179
    %v3493 = vunpack.c.h.b16 %v1179
    %v3494 = vunpack.c.l.b16 %v1180
    %v3495 = vunpack.c.h.b16 %v1180
    %v3496 = vunpack.c.l.b16 %v1181
    %v3497 = vunpack.c.h.b16 %v1181
    %v3498 = vunpack.c.l.b16 %v1182
    %v3499 = vunpack.c.h.b16 %v1182
    %v3500 = vunpack.c.l.b16 %v1183
    %v3501 = vunpack.c.h.b16 %v1183
    %v3502 = vunpack.c.l.b16 %v1184
    %v3503 = vunpack.c.h.b16 %v1184
    %v3504 = vunpack.c.l.b16 %v1185
    %v3505 = vunpack.c.h.b16 %v1185
    %v3506 = vunpack.c.l.b16 %v1186
    %v3507 = vunpack.c.h.b16 %v1186
    %v3508 = vunpack.c.l.b16 %v1187
    %v3509 = vunpack.c.h.b16 %v1187
    %v3510 = vunpack.c.l.b16 %v1188
    %v3511 = vunpack.c.h.b16 %v1188
    %v3512 = vunpack.c.l.b16 %v1189
    %v3513 = vunpack.c.h.b16 %v1189
    %v3514 = vunpack.c.l.b16 %v1190
    %v3515 = vunpack.c.h.b16 %v1190
    %v3516 = vunpack.c.l.b16 %v1191
    %v3517 = vunpack.c.h.b16 %v1191
    %v3518 = vunpack.c.l.b16 %v1192
    %v3519 = vunpack.c.h.b16 %v1192
    %v3520 = vunpack.c.l.b16 %v1193
    %v3521 = vunpack.c.h.b16 %v1193
    %v3522 = vunpack.c.l.b16 %v1194
    %v3523 = vunpack.c.h.b16 %v1194
    %v3524 = vunpack.c.l.b16 %v1195
    %v3525 = vunpack.c.h.b16 %v1195
    %v3526 = vunpack.c.l.b16 %v1196
    %v3527 = vunpack.c.h.b16 %v1196
    %v3528 = vunpack.c.l.b16 %v1197
    %v3529 = vunpack.c.h.b16 %v1197
    %v3530 = vunpack.c.l.b16 %v1198
    %v3531 = vunpack.c.h.b16 %v1198
    %v3532 = vunpack.c.l.b16 %v1199
    %v3533 = vunpack.c.h.b16 %v1199
    %v3534 = vunpack.c.l.b16 %v1200
    %v3535 = vunpack.c.h.b16 %v1200
    %v3536 = vunpack.c.l.b16 %v1201
    %v3537 = vunpack.c.h.b16 %v1201
    %v3538 = vunpack.c.l.b16 %v1202
    %v3539 = vunpack.c.h.b16 %v1202
    %v3540 = vunpack.c.l.b16 %v1203
    %v3541 = vunpack.c.h.b16 %v1203
    %v3542 = vunpack.c.l.b16 %v1204
    %v3543 = vunpack.c.h.b16 %v1204
    %v3544 = vunpack.c.l.b16 %v1205
    %v3545 = vunpack.c.h.b16 %v1205
    %v3546 = vunpack.c.l.b16 %v1206
    %v3547 = vunpack.c.h.b16 %v1206
    %v3548 = vunpack.c.l.b16 %v1207
    %v3549 = vunpack.c.h.b16 %v1207
    %v3550 = vunpack.c.l.b16 %v1208
    %v3551 = vunpack.c.h.b16 %v1208
    %v3552 = vunpack.c.l.b16 %v1209
    %v3553 = vunpack.c.h.b16 %v1209
    %v3554 = vunpack.c.l.b16 %v1210
    %v3555 = vunpack.c.h.b16 %v1210
    %v3556 = vunpack.c.l.b16 %v1211
    %v3557 = vunpack.c.h.b16 %v1211
    %v3558 = vunpack.c.l.b16 %v1212
    %v3559 = vunpack.c.h.b16 %v1212
    %v3560 = vunpack.c.l.b16 %v1213
    %v3561 = vunpack.c.h.b16 %v1213
    %v3562 = vunpack.c.l.b16 %v1214
    %v3563 = vunpack.c.h.b16 %v1214
    %v3564 = vunpack.c.l.b16 %v1215
    %v3565 = vunpack.c.h.b16 %v1215
    %v3566 = vunpack.c.l.b16 %v1216
    %v3567 = vunpack.c.h.b16 %v1216
    %v3568 = vunpack.c.l.b16 %v1217
    %v3569 = vunpack.c.h.b16 %v1217
    %v3570 = vunpack.c.l.b16 %v1218
    %v3571 = vunpack.c.h.b16 %v1218
    %v3572 = vunpack.c.l.b16 %v1219
    %v3573 = vunpack.c.h.b16 %v1219
    %v3574 = vunpack.c.l.b16 %v1220
    %v3575 = vunpack.c.h.b16 %v1220
    %v3576 = vunpack.c.l.b16 %v1221
    %v3577 = vunpack.c.h.b16 %v1221
    %v3578 = vunpack.c.l.b16 %v1222
    %v3579 = vunpack.c.h.b16 %v1222
    %v3580 = vunpack.c.l.b16 %v1223
    %v3581 = vunpack.c.h.b16 %v1223
    %v3582 = vunpack.c.l.b16 %v1224
    %v3583 = vunpack.c.h.b16 %v1224
    %v3584 = vunpack.c.l.b16 %v1225
    %v3585 = vunpack.c.h.b16 %v1225
    %v3586 = vunpack.c.l.b16 %v1226
    %v3587 = vunpack.c.h.b16 %v1226
    %v3588 = vunpack.c.l.b16 %v1227
    %v3589 = vunpack.c.h.b16 %v1227
    %v3590 = vunpack.c.l.b16 %v1228
    %v3591 = vunpack.c.h.b16 %v1228
    %v3592 = vunpack.c.l.b16 %v1229
    %v3593 = vunpack.c.h.b16 %v1229
    %v3594 = vunpack.c.l.b16 %v1230
    %v3595 = vunpack.c.h.b16 %v1230
    %v3596 = vunpack.c.l.b16 %v1231
    %v3597 = vunpack.c.h.b16 %v1231
    %v3598 = vunpack.c.l.b16 %v1232
    %v3599 = vunpack.c.h.b16 %v1232
    %v3600 = vunpack.c.l.b16 %v1233
    %v3601 = vunpack.c.h.b16 %v1233
    %v3602 = vunpack.c.l.b16 %v1234
    %v3603 = vunpack.c.h.b16 %v1234
    %v3604 = vunpack.c.l.b16 %v1235
    %v3605 = vunpack.c.h.b16 %v1235
    %v3606 = vunpack.c.l.b16 %v1236
    %v3607 = vunpack.c.h.b16 %v1236
    %v3608 = vunpack.c.l.b16 %v1237
    %v3609 = vunpack.c.h.b16 %v1237
    %v3610 = vunpack.c.l.b16 %v1238
    %v3611 = vunpack.c.h.b16 %v1238
    %v3612 = vunpack.c.l.b16 %v1239
    %v3613 = vunpack.c.h.b16 %v1239
    %v3614 = vunpack.c.l.b16 %v1240
    %v3615 = vunpack.c.h.b16 %v1240
    %v3616 = vunpack.c.l.b16 %v1241
    %v3617 = vunpack.c.h.b16 %v1241
    %v3618 = vunpack.c.l.b16 %v1242
    %v3619 = vunpack.c.h.b16 %v1242
    %v3620 = vunpack.c.l.b16 %v1243
    %v3621 = vunpack.c.h.b16 %v1243
    %v3622 = vunpack.c.l.b16 %v1244
    %v3623 = vunpack.c.h.b16 %v1244
    %v3624 = vunpack.c.l.b16 %v1245
    %v3625 = vunpack.c.h.b16 %v1245
    %v3626 = vunpack.c.l.b16 %v1246
    %v3627 = vunpack.c.h.b16 %v1246
    %v3628 = vunpack.c.l.b16 %v1247
    %v3629 = vunpack.c.h.b16 %v1247
    %v3630 = vunpack.c.l.b16 %v1248
    %v3631 = vunpack.c.h.b16 %v1248
    %v3632 = vunpack.c.l.b16 %v1249
    %v3633 = vunpack.c.h.b16 %v1249
    %v3634 = vunpack.c.l.b16 %v1250
    %v3635 = vunpack.c.h.b16 %v1250
    %v3636 = vunpack.c.l.b16 %v1251
    %v3637 = vunpack.c.h.b16 %v1251
    %v3638 = vunpack.c.l.b16 %v1252
    %v3639 = vunpack.c.h.b16 %v1252
    %v3640 = vunpack.c.l.b16 %v1253
    %v3641 = vunpack.c.h.b16 %v1253
    %v3642 = vunpack.c.l.b16 %v1254
    %v3643 = vunpack.c.h.b16 %v1254
    %v3644 = vunpack.c.l.b16 %v1255
    %v3645 = vunpack.c.h.b16 %v1255
    %v3646 = vunpack.c.l.b16 %v1256
    %v3647 = vunpack.c.h.b16 %v1256
    %v3648 = vunpack.c.l.b16 %v1257
    %v3649 = vunpack.c.h.b16 %v1257
    %v3650 = vunpack.c.l.b16 %v1258
    %v3651 = vunpack.c.h.b16 %v1258
    %v3652 = vunpack.c.l.b16 %v1259
    %v3653 = vunpack.c.h.b16 %v1259
    %v3654 = vunpack.c.l.b16 %v1260
    %v3655 = vunpack.c.h.b16 %v1260
    %v3656 = vunpack.c.l.b16 %v1261
    %v3657 = vunpack.c.h.b16 %v1261
    %v3658 = vunpack.c.l.b16 %v1262
    %v3659 = vunpack.c.h.b16 %v1262
    %v3660 = vunpack.c.l.b16 %v1263
    %v3661 = vunpack.c.h.b16 %v1263
    %v3662 = vunpack.c.l.b16 %v1264
    %v3663 = vunpack.c.h.b16 %v1264
    %v3664 = vunpack.c.l.b16 %v1265
    %v3665 = vunpack.c.h.b16 %v1265
    %v3666 = vunpack.c.l.b16 %v1266
    %v3667 = vunpack.c.h.b16 %v1266
    %v3668 = vunpack.c.l.b16 %v1267
    %v3669 = vunpack.c.h.b16 %v1267
    %v3670 = vunpack.c.l.b16 %v1268
    %v3671 = vunpack.c.h.b16 %v1268
    %v3672 = vunpack.c.l.b16 %v1269
    %v3673 = vunpack.c.h.b16 %v1269
    %v3674 = vunpack.c.l.b16 %v1270
    %v3675 = vunpack.c.h.b16 %v1270
    %v3676 = vunpack.c.l.b16 %v1271
    %v3677 = vunpack.c.h.b16 %v1271
    %v3678 = vunpack.c.l.b16 %v1272
    %v3679 = vunpack.c.h.b16 %v1272
    %v3680 = vunpack.c.l.b16 %v1273
    %v3681 = vunpack.c.h.b16 %v1273
    %v3682 = vunpack.c.l.b16 %v1274
    %v3683 = vunpack.c.h.b16 %v1274
    %v3684 = vunpack.c.l.b16 %v1275
    %v3685 = vunpack.c.h.b16 %v1275
    %v3686 = vunpack.c.l.b16 %v1276
    %v3687 = vunpack.c.h.b16 %v1276
    %v3688 = vunpack.c.l.b16 %v1277
    %v3689 = vunpack.c.h.b16 %v1277
    %v3690 = vunpack.c.l.b16 %v1278
    %v3691 = vunpack.c.h.b16 %v1278
    %v3692 = vunpack.c.l.b16 %v1279
    %v3693 = vunpack.c.h.b16 %v1279
    %v3694 = vunpack.c.l.b16 %v1280
    %v3695 = vunpack.c.h.b16 %v1280
    %v3696 = vunpack.c.l.b16 %v1281
    %v3697 = vunpack.c.h.b16 %v1281
    %v3698 = vunpack.c.l.b16 %v1282
    %v3699 = vunpack.c.h.b16 %v1282
    %v3700 = vunpack.c.l.b16 %v1283
    %v3701 = vunpack.c.h.b16 %v1283
    %v3702 = vunpack.c.l.b16 %v1284
    %v3703 = vunpack.c.h.b16 %v1284
    %v3704 = vunpack.c.l.b16 %v1285
    %v3705 = vunpack.c.h.b16 %v1285
    %v3706 = vunpack.c.l.b16 %v1286
    %v3707 = vunpack.c.h.b16 %v1286
    %v3708 = vunpack.c.l.b16 %v1287
    %v3709 = vunpack.c.h.b16 %v1287
    %v3710 = vunpack.c.l.b16 %v1288
    %v3711 = vunpack.c.h.b16 %v1288
    %v3712 = vunpack.c.l.b16 %v1289
    %v3713 = vunpack.c.h.b16 %v1289
    %v3714 = vunpack.c.l.b16 %v1290
    %v3715 = vunpack.c.h.b16 %v1290
    %v3716 = vunpack.c.l.b16 %v1291
    %v3717 = vunpack.c.h.b16 %v1291
    %v3718 = vunpack.c.l.b16 %v1292
    %v3719 = vunpack.c.h.b16 %v1292
    %v3720 = vunpack.c.l.b16 %v1293
    %v3721 = vunpack.c.h.b16 %v1293
    %v3722 = vunpack.c.l.b16 %v1294
    %v3723 = vunpack.c.h.b16 %v1294
    %v3724 = vunpack.c.l.b16 %v1295
    %v3725 = vunpack.c.h.b16 %v1295
    %v3726 = vunpack.c.l.b16 %v1296
    %v3727 = vunpack.c.h.b16 %v1296
    %v3728 = vunpack.c.l.b16 %v1297
    %v3729 = vunpack.c.h.b16 %v1297
    %v3730 = vunpack.c.l.b16 %v1298
    %v3731 = vunpack.c.h.b16 %v1298
    %v3732 = vunpack.c.l.b16 %v1299
    %v3733 = vunpack.c.h.b16 %v1299
    %v3734 = vunpack.c.l.b16 %v1300
    %v3735 = vunpack.c.h.b16 %v1300
    %v3736 = vunpack.c.l.b16 %v1301
    %v3737 = vunpack.c.h.b16 %v1301
    %v3738 = vunpack.c.l.b16 %v1302
    %v3739 = vunpack.c.h.b16 %v1302
    %v3740 = vunpack.c.l.b16 %v1303
    %v3741 = vunpack.c.h.b16 %v1303
    %v3742 = vunpack.c.l.b16 %v1304
    %v3743 = vunpack.c.h.b16 %v1304
    %v3744 = vunpack.c.l.b16 %v1305
    %v3745 = vunpack.c.h.b16 %v1305
    %v3746 = vunpack.c.l.b16 %v1306
    %v3747 = vunpack.c.h.b16 %v1306
    %v3748 = vunpack.c.l.b16 %v1307
    %v3749 = vunpack.c.h.b16 %v1307
    %v3750 = vunpack.c.l.b16 %v1308
    %v3751 = vunpack.c.h.b16 %v1308
    %v3752 = vunpack.c.l.b16 %v1309
    %v3753 = vunpack.c.h.b16 %v1309
    %v3754 = vunpack.c.l.b16 %v1310
    %v3755 = vunpack.c.h.b16 %v1310
    %v3756 = vunpack.c.l.b16 %v1311
    %v3757 = vunpack.c.h.b16 %v1311
    %v3758 = vunpack.c.l.b16 %v1312
    %v3759 = vunpack.c.h.b16 %v1312
    %v3760 = vunpack.c.l.b16 %v1313
    %v3761 = vunpack.c.h.b16 %v1313
    %v3762 = vunpack.c.l.b16 %v1314
    %v3763 = vunpack.c.h.b16 %v1314
    %v3764 = vunpack.c.l.b16 %v1315
    %v3765 = vunpack.c.h.b16 %v1315
    %v3766 = vunpack.c.l.b16 %v1316
    %v3767 = vunpack.c.h.b16 %v1316
    %v3768 = vunpack.c.l.b16 %v1317
    %v3769 = vunpack.c.h.b16 %v1317
    %v3770 = vunpack.c.l.b16 %v1318
    %v3771 = vunpack.c.h.b16 %v1318
    %v3772 = vunpack.c.l.b16 %v1319
    %v3773 = vunpack.c.h.b16 %v1319
    %v3774 = vunpack.c.l.b16 %v1320
    %v3775 = vunpack.c.h.b16 %v1320
    %v3776 = vunpack.c.l.b16 %v1321
    %v3777 = vunpack.c.h.b16 %v1321
    %v3778 = vunpack.c.l.b16 %v1322
    %v3779 = vunpack.c.h.b16 %v1322
    %v3780 = vunpack.c.l.b16 %v1323
    %v3781 = vunpack.c.h.b16 %v1323
    %v3782 = vunpack.c.l.b16 %v1324
    %v3783 = vunpack.c.h.b16 %v1324
    %v3784 = vunpack.c.l.b16 %v1325
    %v3785 = vunpack.c.h.b16 %v1325
    %v3786 = vunpack.c.l.b16 %v1326
    %v3787 = vunpack.c.h.b16 %v1326
    %v3788 = vunpack.c.l.b16 %v1327
    %v3789 = vunpack.c.h.b16 %v1327
    %v3790 = vunpack.c.l.b16 %v1328
    %v3791 = vunpack.c.h.b16 %v1328
    %v3792 = vunpack.c.l.b16 %v1329
    %v3793 = vunpack.c.h.b16 %v1329
    %v3794 = vunpack.c.l.b16 %v1330
    %v3795 = vunpack.c.h.b16 %v1330
    %v3796 = vunpack.c.l.b16 %v1331
    %v3797 = vunpack.c.h.b16 %v1331
    %v3798 = vunpack.c.l.b16 %v1332
    %v3799 = vunpack.c.h.b16 %v1332
    %v3800 = vunpack.c.l.b16 %v1333
    %v3801 = vunpack.c.h.b16 %v1333
    %v3802 = vunpack.c.l.b16 %v1334
    %v3803 = vunpack.c.h.b16 %v1334
    %v3804 = vunpack.c.l.b16 %v1335
    %v3805 = vunpack.c.h.b16 %v1335
    %v3806 = vunpack.c.l.b16 %v1336
    %v3807 = vunpack.c.h.b16 %v1336
    %v3808 = vunpack.c.l.b16 %v1337
    %v3809 = vunpack.c.h.b16 %v1337
    %v3810 = vunpack.c.l.b16 %v1338
    %v3811 = vunpack.c.h.b16 %v1338
    %v3812 = vunpack.c.l.b16 %v1339
    %v3813 = vunpack.c.h.b16 %v1339
    %v3814 = vunpack.c.l.b16 %v1340
    %v3815 = vunpack.c.h.b16 %v1340
    %v3816 = vunpack.c.l.b16 %v1341
    %v3817 = vunpack.c.h.b16 %v1341
    %v3818 = vunpack.c.l.b16 %v1342
    %v3819 = vunpack.c.h.b16 %v1342
    %v3820 = vunpack.c.l.b16 %v1343
    %v3821 = vunpack.c.h.b16 %v1343
    %v3822 = vunpack.c.l.b16 %v1344
    %v3823 = vunpack.c.h.b16 %v1344
    %v3824 = vunpack.c.l.b16 %v1345
    %v3825 = vunpack.c.h.b16 %v1345
    %v3826 = vunpack.c.l.b16 %v1346
    %v3827 = vunpack.c.h.b16 %v1346
    %v3828 = vunpack.c.l.b16 %v1347
    %v3829 = vunpack.c.h.b16 %v1347
    %v3830 = vunpack.c.l.b16 %v1348
    %v3831 = vunpack.c.h.b16 %v1348
    %v3832 = vunpack.c.l.b16 %v1349
    %v3833 = vunpack.c.h.b16 %v1349
    %v3834 = vunpack.c.l.b16 %v1350
    %v3835 = vunpack.c.h.b16 %v1350
    %v3836 = vunpack.c.l.b16 %v1351
    %v3837 = vunpack.c.h.b16 %v1351
    %v3838 = vunpack.c.l.b16 %v1352
    %v3839 = vunpack.c.h.b16 %v1352
    %v3840 = vunpack.c.l.b16 %v1353
    %v3841 = vunpack.c.h.b16 %v1353
    %v3842 = vunpack.c.l.b16 %v1354
    %v3843 = vunpack.c.h.b16 %v1354
    %v3844 = vunpack.c.l.b16 %v1355
    %v3845 = vunpack.c.h.b16 %v1355
    %v3846 = vunpack.c.l.b16 %v1356
    %v3847 = vunpack.c.h.b16 %v1356
    %v3848 = vunpack.c.l.b16 %v1357
    %v3849 = vunpack.c.h.b16 %v1357
    %v3850 = vunpack.c.l.b16 %v1358
    %v3851 = vunpack.c.h.b16 %v1358
    %v3852 = vunpack.c.l.b16 %v1359
    %v3853 = vunpack.c.h.b16 %v1359
    %v3854 = vunpack.c.l.b16 %v1360
    %v3855 = vunpack.c.h.b16 %v1360
    %v3856 = vunpack.c.l.b16 %v1361
    %v3857 = vunpack.c.h.b16 %v1361
    %v3858 = vunpack.c.l.b16 %v1362
    %v3859 = vunpack.c.h.b16 %v1362
    %v3860 = vunpack.c.l.b16 %v1363
    %v3861 = vunpack.c.h.b16 %v1363
    %v3862 = vunpack.c.l.b16 %v1364
    %v3863 = vunpack.c.h.b16 %v1364
    %v3864 = vunpack.c.l.b16 %v1365
    %v3865 = vunpack.c.h.b16 %v1365
    %v3866 = vunpack.c.l.b16 %v1366
    %v3867 = vunpack.c.h.b16 %v1366
    %v3868 = vunpack.c.l.b16 %v1367
    %v3869 = vunpack.c.h.b16 %v1367
    %v3870 = vunpack.c.l.b16 %v1368
    %v3871 = vunpack.c.h.b16 %v1368
    %v3872 = vunpack.c.l.b16 %v1369
    %v3873 = vunpack.c.h.b16 %v1369
    %v3874 = vunpack.c.l.b16 %v1370
    %v3875 = vunpack.c.h.b16 %v1370
    %v3876 = vunpack.c.l.b16 %v1371
    %v3877 = vunpack.c.h.b16 %v1371
    %v3878 = vunpack.c.l.b16 %v1372
    %v3879 = vunpack.c.h.b16 %v1372
    %v3880 = vunpack.c.l.b16 %v1373
    %v3881 = vunpack.c.h.b16 %v1373
    %v3882 = vunpack.c.l.b16 %v1374
    %v3883 = vunpack.c.h.b16 %v1374
    %v3884 = vunpack.c.l.b16 %v1375
    %v3885 = vunpack.c.h.b16 %v1375
    %v3886 = vunpack.c.l.b16 %v1376
    %v3887 = vunpack.c.h.b16 %v1376
    %v3888 = vunpack.c.l.b16 %v1377
    %v3889 = vunpack.c.h.b16 %v1377
    %v3890 = vunpack.c.l.b16 %v1378
    %v3891 = vunpack.c.h.b16 %v1378
    %v3892 = vunpack.c.l.b16 %v1379
    %v3893 = vunpack.c.h.b16 %v1379
    %v3894 = vunpack.c.l.b16 %v1380
    %v3895 = vunpack.c.h.b16 %v1380
    %v3896 = vunpack.c.l.b16 %v1381
    %v3897 = vunpack.c.h.b16 %v1381
    %v3898 = vunpack.c.l.b16 %v1382
    %v3899 = vunpack.c.h.b16 %v1382
    %v3900 = vunpack.c.l.b16 %v1383
    %v3901 = vunpack.c.h.b16 %v1383
    %v3902 = vunpack.c.l.b16 %v1384
    %v3903 = vunpack.c.h.b16 %v1384
    %v3904 = vunpack.c.l.b16 %v1385
    %v3905 = vunpack.c.h.b16 %v1385
    %v3906 = vunpack.c.l.b16 %v1386
    %v3907 = vunpack.c.h.b16 %v1386
    %v3908 = vunpack.c.l.b16 %v1387
    %v3909 = vunpack.c.h.b16 %v1387
    %v3910 = vunpack.c.l.b16 %v1388
    %v3911 = vunpack.c.h.b16 %v1388
    %v3912 = vunpack.c.l.b16 %v1389
    %v3913 = vunpack.c.h.b16 %v1389
    %v3914 = vunpack.c.l.b16 %v1390
    %v3915 = vunpack.c.h.b16 %v1390
    %v3916 = vunpack.c.l.b16 %v1391
    %v3917 = vunpack.c.h.b16 %v1391
    %v3918 = vunpack.c.l.b16 %v1392
    %v3919 = vunpack.c.h.b16 %v1392
    %v3920 = vunpack.c.l.b16 %v1393
    %v3921 = vunpack.c.h.b16 %v1393
    %v3922 = vunpack.c.l.b16 %v1394
    %v3923 = vunpack.c.h.b16 %v1394
    %v3924 = vunpack.c.l.b16 %v1395
    %v3925 = vunpack.c.h.b16 %v1395
    %v3926 = vunpack.c.l.b16 %v1396
    %v3927 = vunpack.c.h.b16 %v1396
    %v3928 = vunpack.c.l.b16 %v1397
    %v3929 = vunpack.c.h.b16 %v1397
    %v3930 = vunpack.c.l.b16 %v1398
    %v3931 = vunpack.c.h.b16 %v1398
    %v3932 = vunpack.c.l.b16 %v1399
    %v3933 = vunpack.c.h.b16 %v1399
    %v3934 = vunpack.c.l.b16 %v1400
    %v3935 = vunpack.c.h.b16 %v1400
    %v3936 = vunpack.c.l.b16 %v1401
    %v3937 = vunpack.c.h.b16 %v1401
    %v3938 = vunpack.c.l.b16 %v1402
    %v3939 = vunpack.c.h.b16 %v1402
    %v3940 = vunpack.c.l.b16 %v1403
    %v3941 = vunpack.c.h.b16 %v1403
    %v3942 = vunpack.c.l.b16 %v1404
    %v3943 = vunpack.c.h.b16 %v1404
    %v3944 = vunpack.c.l.b16 %v1405
    %v3945 = vunpack.c.h.b16 %v1405
    %v3946 = vunpack.c.l.b16 %v1406
    %v3947 = vunpack.c.h.b16 %v1406
    %v3948 = vunpack.c.l.b16 %v1407
    %v3949 = vunpack.c.h.b16 %v1407
    %v3950 = vunpack.c.l.b16 %v1408
    %v3951 = vunpack.c.h.b16 %v1408
    %v3952 = vunpack.c.l.b16 %v1409
    %v3953 = vunpack.c.h.b16 %v1409
    %v3954 = vunpack.c.l.b16 %v1410
    %v3955 = vunpack.c.h.b16 %v1410
    %v3956 = vunpack.c.l.b16 %v1411
    %v3957 = vunpack.c.h.b16 %v1411
    %v3958 = vunpack.c.l.b16 %v1412
    %v3959 = vunpack.c.h.b16 %v1412
    %v3960 = vunpack.c.l.b16 %v1413
    %v3961 = vunpack.c.h.b16 %v1413
    %v3962 = vunpack.c.l.b16 %v1414
    %v3963 = vunpack.c.h.b16 %v1414
    %v3964 = vunpack.c.l.b16 %v1415
    %v3965 = vunpack.c.h.b16 %v1415
    %v3966 = vunpack.c.l.b16 %v1416
    %v3967 = vunpack.c.h.b16 %v1416
    %v3968 = vunpack.c.l.b16 %v1417
    %v3969 = vunpack.c.h.b16 %v1417
    %v3970 = vunpack.c.l.b16 %v1418
    %v3971 = vunpack.c.h.b16 %v1418
    %v3972 = vunpack.c.l.b16 %v1419
    %v3973 = vunpack.c.h.b16 %v1419
    %v3974 = vunpack.c.l.b16 %v1420
    %v3975 = vunpack.c.h.b16 %v1420
    %v3976 = vunpack.c.l.b16 %v1421
    %v3977 = vunpack.c.h.b16 %v1421
    %v3978 = vunpack.c.l.b16 %v1422
    %v3979 = vunpack.c.h.b16 %v1422
    %v3980 = vunpack.c.l.b16 %v1423
    %v3981 = vunpack.c.h.b16 %v1423
    %v3982 = vunpack.c.l.b16 %v1424
    %v3983 = vunpack.c.h.b16 %v1424
    %v3984 = vunpack.c.l.b16 %v1425
    %v3985 = vunpack.c.h.b16 %v1425
    %v3986 = vunpack.c.l.b16 %v1426
    %v3987 = vunpack.c.h.b16 %v1426
    %v3988 = vunpack.c.l.b16 %v1427
    %v3989 = vunpack.c.h.b16 %v1427
    %v3990 = vunpack.c.l.b16 %v1428
    %v3991 = vunpack.c.h.b16 %v1428
    %v3992 = vunpack.c.l.b16 %v1429
    %v3993 = vunpack.c.h.b16 %v1429
    %v3994 = vunpack.c.l.b16 %v1430
    %v3995 = vunpack.c.h.b16 %v1430
    %v3996 = vunpack.c.l.b16 %v1431
    %v3997 = vunpack.c.h.b16 %v1431
    %v3998 = vunpack.c.l.b16 %v1432
    %v3999 = vunpack.c.h.b16 %v1432
    %v4000 = vunpack.c.l.b16 %v1433
    %v4001 = vunpack.c.h.b16 %v1433
    %v4002 = vunpack.c.l.b16 %v1434
    %v4003 = vunpack.c.h.b16 %v1434
    %v4004 = vunpack.c.l.b16 %v1435
    %v4005 = vunpack.c.h.b16 %v1435
    %v4006 = vunpack.c.l.b16 %v1436
    %v4007 = vunpack.c.h.b16 %v1436
    %v4008 = vunpack.c.l.b16 %v1437
    %v4009 = vunpack.c.h.b16 %v1437
    %v4010 = vunpack.c.l.b16 %v1438
    %v4011 = vunpack.c.h.b16 %v1438
    %v4012 = vunpack.c.l.b16 %v1439
    %v4013 = vunpack.c.h.b16 %v1439
    %v4014 = vunpack.c.l.b16 %v1440
    %v4015 = vunpack.c.h.b16 %v1440
    %v4016 = vunpack.c.l.b16 %v1441
    %v4017 = vunpack.c.h.b16 %v1441
    %v4018 = vunpack.c.l.b16 %v1442
    %v4019 = vunpack.c.h.b16 %v1442
    %v4020 = vunpack.c.l.b16 %v1443
    %v4021 = vunpack.c.h.b16 %v1443
    %v4022 = vunpack.c.l.b16 %v1444
    %v4023 = vunpack.c.h.b16 %v1444
    %v4024 = vunpack.c.l.b16 %v1445
    %v4025 = vunpack.c.h.b16 %v1445
    %v4026 = vunpack.c.l.b16 %v1446
    %v4027 = vunpack.c.h.b16 %v1446
    %v4028 = vunpack.c.l.b16 %v1447
    %v4029 = vunpack.c.h.b16 %v1447
    %v4030 = vunpack.c.l.b16 %v1448
    %v4031 = vunpack.c.h.b16 %v1448
    %v4032 = vunpack.c.l.b16 %v1449
    %v4033 = vunpack.c.h.b16 %v1449
    %v4034 = vunpack.c.l.b16 %v1450
    %v4035 = vunpack.c.h.b16 %v1450
    %v4036 = vunpack.c.l.b16 %v1451
    %v4037 = vunpack.c.h.b16 %v1451
    %v4038 = vunpack.c.l.b16 %v1452
    %v4039 = vunpack.c.h.b16 %v1452
    %v4040 = vunpack.c.l.b16 %v1453
    %v4041 = vunpack.c.h.b16 %v1453
    %v4042 = vunpack.c.l.b16 %v1454
    %v4043 = vunpack.c.h.b16 %v1454
    %v4044 = vunpack.c.l.b16 %v1455
    %v4045 = vunpack.c.h.b16 %v1455
    %v4046 = vunpack.c.l.b16 %v1456
    %v4047 = vunpack.c.h.b16 %v1456
    %v4048 = vunpack.c.l.b16 %v1457
    %v4049 = vunpack.c.h.b16 %v1457
    %v4050 = vunpack.c.l.b16 %v1458
    %v4051 = vunpack.c.h.b16 %v1458
    %v4052 = vunpack.c.l.b16 %v1459
    %v4053 = vunpack.c.h.b16 %v1459
    %v4054 = vunpack.c.l.b16 %v1460
    %v4055 = vunpack.c.h.b16 %v1460
    %v4056 = vunpack.c.l.b16 %v1461
    %v4057 = vunpack.c.h.b16 %v1461
    %v4058 = vunpack.c.l.b16 %v1462
    %v4059 = vunpack.c.h.b16 %v1462
    %v4060 = vunpack.c.l.b16 %v1463
    %v4061 = vunpack.c.h.b16 %v1463
    %v4062 = vunpack.c.l.b16 %v1464
    %v4063 = vunpack.c.h.b16 %v1464
    %v4064 = vunpack.c.l.b16 %v1465
    %v4065 = vunpack.c.h.b16 %v1465
    %v4066 = vunpack.c.l.b16 %v1466
    %v4067 = vunpack.c.h.b16 %v1466
    %v4068 = vunpack.c.l.b16 %v1467
    %v4069 = vunpack.c.h.b16 %v1467
    %v4070 = vunpack.c.l.b16 %v1468
    %v4071 = vunpack.c.h.b16 %v1468
    %v4072 = vunpack.c.l.b16 %v1469
    %v4073 = vunpack.c.h.b16 %v1469
    %v4074 = vunpack.c.l.b16 %v1470
    %v4075 = vunpack.c.h.b16 %v1470
    %v4076 = vunpack.c.l.b16 %v1471
    %v4077 = vunpack.c.h.b16 %v1471
    %v4078 = vunpack.c.l.b16 %v1472
    %v4079 = vunpack.c.h.b16 %v1472
    %v4080 = vunpack.c.l.b16 %v1473
    %v4081 = vunpack.c.h.b16 %v1473
    %v4082 = vunpack.c.l.b16 %v1474
    %v4083 = vunpack.c.h.b16 %v1474
    %v4084 = vunpack.c.l.b16 %v1475
    %v4085 = vunpack.c.h.b16 %v1475
    %v4086 = vunpack.c.l.b16 %v1476
    %v4087 = vunpack.c.h.b16 %v1476
    %v4088 = vunpack.c.l.b16 %v1477
    %v4089 = vunpack.c.h.b16 %v1477
    %v4090 = vunpack.c.l.b16 %v1478
    %v4091 = vunpack.c.h.b16 %v1478
    %v4092 = vunpack.c.l.b16 %v1479
    %v4093 = vunpack.c.h.b16 %v1479
    %v4094 = vunpack.c.l.b16 %v1480
    %v4095 = vunpack.c.h.b16 %v1480
    %v4096 = vunpack.c.l.b16 %v1481
    %v4097 = vunpack.c.h.b16 %v1481
    %v4098 = vunpack.c.l.b16 %v1482
    %v4099 = vunpack.c.h.b16 %v1482
    %v4100 = vunpack.c.l.b16 %v1483
    %v4101 = vunpack.c.h.b16 %v1483
    %v4102 = vunpack.c.l.b16 %v1484
    %v4103 = vunpack.c.h.b16 %v1484
    %v4104 = vunpack.c.l.b16 %v1485
    %v4105 = vunpack.c.h.b16 %v1485
    %v4106 = vunpack.c.l.b16 %v1486
    %v4107 = vunpack.c.h.b16 %v1486
    %v4108 = vunpack.c.l.b16 %v1487
    %v4109 = vunpack.c.h.b16 %v1487
    %v4110 = vunpack.c.l.b16 %v1488
    %v4111 = vunpack.c.h.b16 %v1488
    %v4112 = vunpack.c.l.b16 %v1489
    %v4113 = vunpack.c.h.b16 %v1489
    %v4114 = vunpack.c.l.b16 %v1490
    %v4115 = vunpack.c.h.b16 %v1490
    %v4116 = vunpack.c.l.b16 %v1491
    %v4117 = vunpack.c.h.b16 %v1491
    %v4118 = vunpack.c.l.b16 %v1492
    %v4119 = vunpack.c.h.b16 %v1492
    %v4120 = vunpack.c.l.b16 %v1493
    %v4121 = vunpack.c.h.b16 %v1493
    %v4122 = vunpack.c.l.b16 %v1494
    %v4123 = vunpack.c.h.b16 %v1494
    %v4124 = vunpack.c.l.b16 %v1495
    %v4125 = vunpack.c.h.b16 %v1495
    %v4126 = vunpack.c.l.b16 %v1496
    %v4127 = vunpack.c.h.b16 %v1496
    %v4128 = vunpack.c.l.b16 %v1497
    %v4129 = vunpack.c.h.b16 %v1497
    %v4130 = vunpack.c.l.b16 %v1498
    %v4131 = vunpack.c.h.b16 %v1498
    %v4132 = vunpack.c.l.b16 %v1499
    %v4133 = vunpack.c.h.b16 %v1499
    %v4134 = vunpack.c.l.b16 %v1500
    %v4135 = vunpack.c.h.b16 %v1500
    %v4136 = vunpack.c.l.b16 %v1501
    %v4137 = vunpack.c.h.b16 %v1501
    %v4138 = vunpack.c.l.b16 %v1502
    %v4139 = vunpack.c.h.b16 %v1502
    %v4140 = vunpack.c.l.b16 %v1503
    %v4141 = vunpack.c.h.b16 %v1503
    %v4142 = vunpack.c.l.b16 %v1504
    %v4143 = vunpack.c.h.b16 %v1504
    %v4144 = vunpack.c.l.b16 %v1505
    %v4145 = vunpack.c.h.b16 %v1505
    %v4146 = vunpack.c.l.b16 %v1506
    %v4147 = vunpack.c.h.b16 %v1506
    %v4148 = vunpack.c.l.b16 %v1507
    %v4149 = vunpack.c.h.b16 %v1507
    %v4150 = vunpack.c.l.b16 %v1508
    %v4151 = vunpack.c.h.b16 %v1508
    %v4152 = vunpack.c.l.b16 %v1509
    %v4153 = vunpack.c.h.b16 %v1509
    %v4154 = vunpack.c.l.b16 %v1510
    %v4155 = vunpack.c.h.b16 %v1510
    %v4156 = vunpack.c.l.b16 %v1511
    %v4157 = vunpack.c.h.b16 %v1511
    %v4158 = vunpack.c.l.b16 %v1512
    %v4159 = vunpack.c.h.b16 %v1512
    %v4160 = vunpack.c.l.b16 %v1513
    %v4161 = vunpack.c.h.b16 %v1513
    %v4162 = vunpack.c.l.b16 %v1514
    %v4163 = vunpack.c.h.b16 %v1514
    %v4164 = vunpack.c.l.b16 %v1515
    %v4165 = vunpack.c.h.b16 %v1515
    %v4166 = vunpack.c.l.b16 %v1516
    %v4167 = vunpack.c.h.b16 %v1516
    %v4168 = vunpack.c.l.b16 %v1517
    %v4169 = vunpack.c.h.b16 %v1517
    %v4170 = vunpack.c.l.b16 %v1518
    %v4171 = vunpack.c.h.b16 %v1518
    %v4172 = vunpack.c.l.b16 %v1519
    %v4173 = vunpack.c.h.b16 %v1519
    %v4174 = vunpack.c.l.b16 %v1520
    %v4175 = vunpack.c.h.b16 %v1520
    %v4176 = vunpack.c.l.b16 %v1521
    %v4177 = vunpack.c.h.b16 %v1521
    %v4178 = vunpack.c.l.b16 %v1522
    %v4179 = vunpack.c.h.b16 %v1522
    %v4180 = vunpack.c.l.b16 %v1523
    %v4181 = vunpack.c.h.b16 %v1523
    %v4182 = vunpack.c.l.b16 %v1524
    %v4183 = vunpack.c.h.b16 %v1524
    %v4184 = vunpack.c.l.b16 %v1525
    %v4185 = vunpack.c.h.b16 %v1525
    %v4186 = vunpack.c.l.b16 %v1526
    %v4187 = vunpack.c.h.b16 %v1526
    %v4188 = vunpack.c.l.b16 %v1527
    %v4189 = vunpack.c.h.b16 %v1527
    %v4190 = vunpack.c.l.b16 %v1528
    %v4191 = vunpack.c.h.b16 %v1528
    %v4192 = vunpack.c.l.b16 %v1529
    %v4193 = vunpack.c.h.b16 %v1529
    %v4194 = vunpack.c.l.b16 %v1530
    %v4195 = vunpack.c.h.b16 %v1530
    %v4196 = vunpack.c.l.b16 %v1531
    %v4197 = vunpack.c.h.b16 %v1531
    %v4198 = vunpack.c.l.b16 %v1532
    %v4199 = vunpack.c.h.b16 %v1532
    %v4200 = vunpack.c.l.b16 %v1533
    %v4201 = vunpack.c.h.b16 %v1533
    %v4202 = vunpack.c.l.b16 %v1534
    %v4203 = vunpack.c.h.b16 %v1534
    %v4204 = vunpack.c.l.b16 %v1535
    %v4205 = vunpack.c.h.b16 %v1535
    %v4206 = vunpack.c.l.b16 %v1536
    %v4207 = vunpack.c.h.b16 %v1536
    %v4208 = vunpack.c.l.b16 %v1537
    %v4209 = vunpack.c.h.b16 %v1537
    %v4210 = vunpack.c.l.b16 %v1538
    %v4211 = vunpack.c.h.b16 %v1538
    %v4212 = vunpack.c.l.b16 %v1539
    %v4213 = vunpack.c.h.b16 %v1539
    %v4214 = vunpack.c.l.b16 %v1540
    %v4215 = vunpack.c.h.b16 %v1540
    %v4216 = vunpack.c.l.b16 %v1541
    %v4217 = vunpack.c.h.b16 %v1541
    %v4218 = vunpack.c.l.b16 %v1542
    %v4219 = vunpack.c.h.b16 %v1542
    %v4220 = vunpack.c.l.b16 %v1543
    %v4221 = vunpack.c.h.b16 %v1543
    %v4222 = vunpack.c.l.b16 %v1544
    %v4223 = vunpack.c.h.b16 %v1544
    %v4224 = vunpack.c.l.b16 %v1545
    %v4225 = vunpack.c.h.b16 %v1545
    %v4226 = vunpack.c.l.b16 %v1546
    %v4227 = vunpack.c.h.b16 %v1546
    %v4228 = vunpack.c.l.b16 %v1547
    %v4229 = vunpack.c.h.b16 %v1547
    %v4230 = vunpack.c.l.b16 %v1548
    %v4231 = vunpack.c.h.b16 %v1548
    %v4232 = vunpack.c.l.b16 %v1549
    %v4233 = vunpack.c.h.b16 %v1549
    %v4234 = vunpack.c.l.b16 %v1550
    %v4235 = vunpack.c.h.b16 %v1550
    %v4236 = vunpack.c.l.b16 %v1551
    %v4237 = vunpack.c.h.b16 %v1551
    %v4238 = vunpack.c.l.b16 %v1552
    %v4239 = vunpack.c.h.b16 %v1552
    %v4240 = vunpack.c.l.b16 %v1553
    %v4241 = vunpack.c.h.b16 %v1553
    %v4242 = vunpack.c.l.b16 %v1554
    %v4243 = vunpack.c.h.b16 %v1554
    %v4244 = vunpack.c.l.b16 %v1555
    %v4245 = vunpack.c.h.b16 %v1555
    %v4246 = vunpack.c.l.b16 %v1556
    %v4247 = vunpack.c.h.b16 %v1556
    %v4248 = vunpack.c.l.b16 %v1557
    %v4249 = vunpack.c.h.b16 %v1557
    %v4250 = vunpack.c.l.b16 %v1558
    %v4251 = vunpack.c.h.b16 %v1558
    %v4252 = vunpack.c.l.b16 %v1559
    %v4253 = vunpack.c.h.b16 %v1559
    %v4254 = vunpack.c.l.b16 %v1560
    %v4255 = vunpack.c.h.b16 %v1560
    %v4256 = vunpack.c.l.b16 %v1561
    %v4257 = vunpack.c.h.b16 %v1561
    %v4258 = vunpack.c.l.b16 %v1562
    %v4259 = vunpack.c.h.b16 %v1562
    %v4260 = vunpack.c.l.b16 %v1563
    %v4261 = vunpack.c.h.b16 %v1563
    %v4262 = vunpack.c.l.b16 %v1564
    %v4263 = vunpack.c.h.b16 %v1564
    %v4264 = vunpack.c.l.b16 %v1565
    %v4265 = vunpack.c.h.b16 %v1565
    %v4266 = vunpack.c.l.b16 %v1566
    %v4267 = vunpack.c.h.b16 %v1566
    %v4268 = vunpack.c.l.b16 %v1567
    %v4269 = vunpack.c.h.b16 %v1567
    %v4270 = vunpack.c.l.b16 %v1568
    %v4271 = vunpack.c.h.b16 %v1568
    %v4272 = vunpack.c.l.b16 %v1569
    %v4273 = vunpack.c.h.b16 %v1569
    %v4274 = vunpack.c.l.b16 %v1570
    %v4275 = vunpack.c.h.b16 %v1570
    %v4276 = vunpack.c.l.b16 %v1571
    %v4277 = vunpack.c.h.b16 %v1571
    %v4278 = vunpack.c.l.b16 %v1572
    %v4279 = vunpack.c.h.b16 %v1572
    %v4280 = vunpack.c.l.b16 %v1573
    %v4281 = vunpack.c.h.b16 %v1573
    %v4282 = vunpack.c.l.b16 %v1574
    %v4283 = vunpack.c.h.b16 %v1574
    %v4284 = vunpack.c.l.b16 %v1575
    %v4285 = vunpack.c.h.b16 %v1575
    %v4286 = vunpack.c.l.b16 %v1576
    %v4287 = vunpack.c.h.b16 %v1576
    %v4288 = vunpack.c.l.b16 %v1577
    %v4289 = vunpack.c.h.b16 %v1577
    %v4290 = vunpack.c.l.b16 %v1578
    %v4291 = vunpack.c.h.b16 %v1578
    %v4292 = vunpack.c.l.b16 %v1579
    %v4293 = vunpack.c.h.b16 %v1579
    %v4294 = vunpack.c.l.b16 %v1580
    %v4295 = vunpack.c.h.b16 %v1580
    %v4296 = vunpack.c.l.b16 %v1581
    %v4297 = vunpack.c.h.b16 %v1581
    %v4298 = vunpack.c.l.b16 %v1582
    %v4299 = vunpack.c.h.b16 %v1582
    %v4300 = vunpack.c.l.b16 %v1583
    %v4301 = vunpack.c.h.b16 %v1583
    %v4302 = vunpack.c.l.b16 %v1584
    %v4303 = vunpack.c.h.b16 %v1584
    %v4304 = vunpack.c.l.b16 %v1585
    %v4305 = vunpack.c.h.b16 %v1585
    %v4306 = vunpack.c.l.b16 %v1586
    %v4307 = vunpack.c.h.b16 %v1586
    %v4308 = vunpack.c.l.b16 %v1587
    %v4309 = vunpack.c.h.b16 %v1587
    %v4310 = vunpack.c.l.b16 %v1588
    %v4311 = vunpack.c.h.b16 %v1588
    %v4312 = vunpack.c.l.b16 %v1589
    %v4313 = vunpack.c.h.b16 %v1589
    %v4314 = vunpack.c.l.b16 %v1590
    %v4315 = vunpack.c.h.b16 %v1590
    %v4316 = vunpack.c.l.b16 %v1591
    %v4317 = vunpack.c.h.b16 %v1591
    %v4318 = vunpack.c.l.b16 %v1592
    %v4319 = vunpack.c.h.b16 %v1592
    %v4320 = vunpack.c.l.b16 %v1593
    %v4321 = vunpack.c.h.b16 %v1593
    %v4322 = vunpack.c.l.b16 %v1594
    %v4323 = vunpack.c.h.b16 %v1594
    %v4324 = vunpack.c.l.b16 %v1595
    %v4325 = vunpack.c.h.b16 %v1595
    %v4326 = vunpack.c.l.b16 %v1596
    %v4327 = vunpack.c.h.b16 %v1596
    %v4328 = vunpack.c.l.b16 %v1597
    %v4329 = vunpack.c.h.b16 %v1597
    %v4330 = vunpack.c.l.b16 %v1598
    %v4331 = vunpack.c.h.b16 %v1598
    %v4332 = vunpack.c.l.b16 %v1599
    %v4333 = vunpack.c.h.b16 %v1599
    %v4334 = vunpack.c.l.b16 %v1600
    %v4335 = vunpack.c.h.b16 %v1600
    %v4336 = vunpack.c.l.b16 %v1601
    %v4337 = vunpack.c.h.b16 %v1601
    %v4338 = vunpack.c.l.b16 %v1602
    %v4339 = vunpack.c.h.b16 %v1602
    %v4340 = vunpack.c.l.b16 %v1603
    %v4341 = vunpack.c.h.b16 %v1603
    %v4342 = vunpack.c.l.b16 %v1604
    %v4343 = vunpack.c.h.b16 %v1604
    %v4344 = vunpack.c.l.b16 %v1605
    %v4345 = vunpack.c.h.b16 %v1605
    %v4346 = vunpack.c.l.b16 %v1606
    %v4347 = vunpack.c.h.b16 %v1606
    %v4348 = vunpack.c.l.b16 %v1607
    %v4349 = vunpack.c.h.b16 %v1607
    %v4350 = vunpack.c.l.b16 %v1608
    %v4351 = vunpack.c.h.b16 %v1608
    %v4352 = vunpack.c.l.b16 %v1609
    %v4353 = vunpack.c.h.b16 %v1609
    %v4354 = vunpack.c.l.b16 %v1610
    %v4355 = vunpack.c.h.b16 %v1610
    %v4356 = vunpack.c.l.b16 %v1611
    %v4357 = vunpack.c.h.b16 %v1611
    %v4358 = vunpack.c.l.b16 %v1612
    %v4359 = vunpack.c.h.b16 %v1612
    %v4360 = vunpack.c.l.b16 %v1613
    %v4361 = vunpack.c.h.b16 %v1613
    %v4362 = vunpack.c.l.b16 %v1614
    %v4363 = vunpack.c.h.b16 %v1614
    %v4364 = vunpack.c.l.b16 %v1615
    %v4365 = vunpack.c.h.b16 %v1615
    %v4366 = vunpack.c.l.b16 %v1616
    %v4367 = vunpack.c.h.b16 %v1616
    %v4368 = vunpack.c.l.b16 %v1617
    %v4369 = vunpack.c.h.b16 %v1617
    %v4370 = vunpack.c.l.b16 %v1618
    %v4371 = vunpack.c.h.b16 %v1618
    %v4372 = vunpack.c.l.b16 %v1619
    %v4373 = vunpack.c.h.b16 %v1619
    %v4374 = vunpack.c.l.b16 %v1620
    %v4375 = vunpack.c.h.b16 %v1620
    %v4376 = vunpack.c.l.b16 %v1621
    %v4377 = vunpack.c.h.b16 %v1621
    %v4378 = vunpack.c.l.b16 %v1622
    %v4379 = vunpack.c.h.b16 %v1622
    %v4380 = vunpack.c.l.b16 %v1623
    %v4381 = vunpack.c.h.b16 %v1623
    %v4382 = vunpack.c.l.b16 %v1624
    %v4383 = vunpack.c.h.b16 %v1624
    %v4384 = vunpack.c.l.b16 %v1625
    %v4385 = vunpack.c.h.b16 %v1625
    %v4386 = vunpack.c.l.b16 %v1626
    %v4387 = vunpack.c.h.b16 %v1626
    %v4388 = vunpack.c.l.b16 %v1627
    %v4389 = vunpack.c.h.b16 %v1627
    %v4390 = vunpack.c.l.b16 %v1628
    %v4391 = vunpack.c.h.b16 %v1628
    %v4392 = vunpack.c.l.b16 %v1629
    %v4393 = vunpack.c.h.b16 %v1629
    %v4394 = vunpack.c.l.b16 %v1630
    %v4395 = vunpack.c.h.b16 %v1630
    %v4396 = vunpack.c.l.b16 %v1631
    %v4397 = vunpack.c.h.b16 %v1631
    %v4398 = vunpack.c.l.b16 %v1632
    %v4399 = vunpack.c.h.b16 %v1632
    %v4400 = vunpack.c.l.b16 %v1633
    %v4401 = vunpack.c.h.b16 %v1633
    %v4402 = vunpack.c.l.b16 %v1634
    %v4403 = vunpack.c.h.b16 %v1634
    %v4404 = vunpack.c.l.b16 %v1635
    %v4405 = vunpack.c.h.b16 %v1635
    %v4406 = vunpack.c.l.b16 %v1636
    %v4407 = vunpack.c.h.b16 %v1636
    %v4408 = vunpack.c.l.b16 %v1637
    %v4409 = vunpack.c.h.b16 %v1637
    %v4410 = vunpack.c.l.b16 %v1638
    %v4411 = vunpack.c.h.b16 %v1638
    %v4412 = vunpack.c.l.b16 %v1639
    %v4413 = vunpack.c.h.b16 %v1639
    %v4414 = vunpack.c.l.b16 %v1640
    %v4415 = vunpack.c.h.b16 %v1640
    %v4416 = vunpack.c.l.b16 %v1641
    %v4417 = vunpack.c.h.b16 %v1641
    %v4418 = vunpack.c.l.b16 %v1642
    %v4419 = vunpack.c.h.b16 %v1642
    %v4420 = vunpack.c.l.b16 %v1643
    %v4421 = vunpack.c.h.b16 %v1643
    %v4422 = vunpack.c.l.b16 %v1644
    %v4423 = vunpack.c.h.b16 %v1644
    %v4424 = vunpack.c.l.b16 %v1645
    %v4425 = vunpack.c.h.b16 %v1645
    %v4426 = vunpack.c.l.b16 %v1646
    %v4427 = vunpack.c.h.b16 %v1646
    %v4428 = vunpack.c.l.b16 %v1647
    %v4429 = vunpack.c.h.b16 %v1647
    %v4430 = vunpack.c.l.b16 %v1648
    %v4431 = vunpack.c.h.b16 %v1648
    %v4432 = vunpack.c.l.b16 %v1649
    %v4433 = vunpack.c.h.b16 %v1649
    %v4434 = vunpack.c.l.b16 %v1650
    %v4435 = vunpack.c.h.b16 %v1650
    %v4436 = vunpack.c.l.b16 %v1651
    %v4437 = vunpack.c.h.b16 %v1651
    %v4438 = vunpack.c.l.b16 %v1652
    %v4439 = vunpack.c.h.b16 %v1652
    %v4440 = vunpack.c.l.b16 %v1653
    %v4441 = vunpack.c.h.b16 %v1653
    %v4442 = vunpack.c.l.b16 %v1654
    %v4443 = vunpack.c.h.b16 %v1654
    %v4444 = vunpack.c.l.b16 %v1655
    %v4445 = vunpack.c.h.b16 %v1655
    %v4446 = vunpack.c.l.b16 %v1656
    %v4447 = vunpack.c.h.b16 %v1656
    %v4448 = vunpack.c.l.b16 %v1657
    %v4449 = vunpack.c.h.b16 %v1657
    %v4450 = vunpack.c.l.b16 %v1658
    %v4451 = vunpack.c.h.b16 %v1658
    %v4452 = vunpack.c.l.b16 %v1659
    %v4453 = vunpack.c.h.b16 %v1659
    %v4454 = vunpack.c.l.b16 %v1660
    %v4455 = vunpack.c.h.b16 %v1660
    %v4456 = vunpack.c.l.b16 %v1661
    %v4457 = vunpack.c.h.b16 %v1661
    %v4458 = vunpack.c.l.b16 %v1662
    %v4459 = vunpack.c.h.b16 %v1662
    %v4460 = vunpack.c.l.b16 %v1663
    %v4461 = vunpack.c.h.b16 %v1663
    %v4462 = vunpack.c.l.b16 %v1664
    %v4463 = vunpack.c.h.b16 %v1664
    %v4464 = vunpack.c.l.b16 %v1665
    %v4465 = vunpack.c.h.b16 %v1665
    %v4466 = vunpack.c.l.b16 %v1666
    %v4467 = vunpack.c.h.b16 %v1666
    %v4468 = vunpack.c.l.b16 %v1667
    %v4469 = vunpack.c.h.b16 %v1667
    %v4470 = vunpack.c.l.b16 %v1668
    %v4471 = vunpack.c.h.b16 %v1668
    %v4472 = vunpack.c.l.b16 %v1669
    %v4473 = vunpack.c.h.b16 %v1669
    %v4474 = vunpack.c.l.b16 %v1670
    %v4475 = vunpack.c.h.b16 %v1670
    %v4476 = vunpack.c.l.b16 %v1671
    %v4477 = vunpack.c.h.b16 %v1671
    %v4478 = vunpack.c.l.b16 %v1672
    %v4479 = vunpack.c.h.b16 %v1672
    %v4480 = vunpack.c.l.b16 %v1673
    %v4481 = vunpack.c.h.b16 %v1673
    %v4482 = vunpack.c.l.b16 %v1674
    %v4483 = vunpack.c.h.b16 %v1674
    %v4484 = vunpack.c.l.b16 %v1675
    %v4485 = vunpack.c.h.b16 %v1675
    %v4486 = vunpack.c.l.b16 %v1676
    %v4487 = vunpack.c.h.b16 %v1676
    %v4488 = vunpack.c.l.b16 %v1677
    %v4489 = vunpack.c.h.b16 %v1677
    %v4490 = vunpack.c.l.b16 %v1678
    %v4491 = vunpack.c.h.b16 %v1678
    %v4492 = vunpack.c.l.b16 %v1679
    %v4493 = vunpack.c.h.b16 %v1679
    %v4494 = vunpack.c.l.b16 %v1680
    %v4495 = vunpack.c.h.b16 %v1680
    %v4496 = vunpack.c.l.b16 %v1681
    %v4497 = vunpack.c.h.b16 %v1681
    %v4498 = vunpack.c.l.b16 %v1682
    %v4499 = vunpack.c.h.b16 %v1682
    %v4500 = vunpack.c.l.b16 %v1683
    %v4501 = vunpack.c.h.b16 %v1683
    %v4502 = vunpack.c.l.b16 %v1684
    %v4503 = vunpack.c.h.b16 %v1684
    %v4504 = vunpack.c.l.b16 %v1685
    %v4505 = vunpack.c.h.b16 %v1685
    %v4506 = vunpack.c.l.b16 %v1686
    %v4507 = vunpack.c.h.b16 %v1686
    %v4508 = vunpack.c.l.b16 %v1687
    %v4509 = vunpack.c.h.b16 %v1687
    %v4510 = vunpack.c.l.b16 %v1688
    %v4511 = vunpack.c.h.b16 %v1688
    %v4512 = vunpack.c.l.b16 %v1689
    %v4513 = vunpack.c.h.b16 %v1689
    %v4514 = vunpack.c.l.b16 %v1690
    %v4515 = vunpack.c.h.b16 %v1690
    %v4516 = vunpack.c.l.b16 %v1691
    %v4517 = vunpack.c.h.b16 %v1691
    %v4518 = vunpack.c.l.b16 %v1692
    %v4519 = vunpack.c.h.b16 %v1692
    %v4520 = vunpack.c.l.b16 %v1693
    %v4521 = vunpack.c.h.b16 %v1693
    %v4522 = vunpack.c.l.b16 %v1694
    %v4523 = vunpack.c.h.b16 %v1694
    %v4524 = vunpack.c.l.b16 %v1695
    %v4525 = vunpack.c.h.b16 %v1695
    %v4526 = vunpack.c.l.b16 %v1696
    %v4527 = vunpack.c.h.b16 %v1696
    %v4528 = vunpack.c.l.b16 %v1697
    %v4529 = vunpack.c.h.b16 %v1697
    %v4530 = vunpack.c.l.b16 %v1698
    %v4531 = vunpack.c.h.b16 %v1698
    %v4532 = vunpack.c.l.b16 %v1699
    %v4533 = vunpack.c.h.b16 %v1699
    %v4534 = vunpack.c.l.b16 %v1700
    %v4535 = vunpack.c.h.b16 %v1700
    %v4536 = vunpack.c.l.b16 %v1701
    %v4537 = vunpack.c.h.b16 %v1701
    %v4538 = vunpack.c.l.b16 %v1702
    %v4539 = vunpack.c.h.b16 %v1702
    %v4540 = vunpack.c.l.b16 %v1703
    %v4541 = vunpack.c.h.b16 %v1703
    %v4542 = vunpack.c.l.b16 %v1704
    %v4543 = vunpack.c.h.b16 %v1704
    %v4544 = vunpack.c.l.b16 %v1705
    %v4545 = vunpack.c.h.b16 %v1705
    %v4546 = vunpack.c.l.b16 %v1706
    %v4547 = vunpack.c.h.b16 %v1706
    %v4548 = vunpack.c.l.b16 %v1707
    %v4549 = vunpack.c.h.b16 %v1707
    %v4550 = vunpack.c.l.b16 %v1708
    %v4551 = vunpack.c.h.b16 %v1708
    %v4552 = vunpack.c.l.b16 %v1709
    %v4553 = vunpack.c.h.b16 %v1709
    %v4554 = vunpack.c.l.b16 %v1710
    %v4555 = vunpack.c.h.b16 %v1710
    %v4556 = vunpack.c.l.b16 %v1711
    %v4557 = vunpack.c.h.b16 %v1711
    %v4558 = vunpack.c.l.b16 %v1712
    %v4559 = vunpack.c.h.b16 %v1712
    %v4560 = vunpack.c.l.b16 %v1713
    %v4561 = vunpack.c.h.b16 %v1713
    %v4562 = vunpack.c.l.b16 %v1714
    %v4563 = vunpack.c.h.b16 %v1714
    %v4564 = vunpack.c.l.b16 %v1715
    %v4565 = vunpack.c.h.b16 %v1715
    %v4566 = vunpack.c.l.b16 %v1716
    %v4567 = vunpack.c.h.b16 %v1716
    %v4568 = vunpack.c.l.b16 %v1717
    %v4569 = vunpack.c.h.b16 %v1717
    %v4570 = vunpack.c.l.b16 %v1718
    %v4571 = vunpack.c.h.b16 %v1718
    %v4572 = vunpack.c.l.b16 %v1719
    %v4573 = vunpack.c.h.b16 %v1719
    %v4574 = vunpack.c.l.b16 %v1720
    %v4575 = vunpack.c.h.b16 %v1720
    %v4576 = vunpack.c.l.b16 %v1721
    %v4577 = vunpack.c.h.b16 %v1721
    %v4578 = vunpack.c.l.b16 %v1722
    %v4579 = vunpack.c.h.b16 %v1722
    %v4580 = vunpack.c.l.b16 %v1723
    %v4581 = vunpack.c.h.b16 %v1723
    %v4582 = vunpack.c.l.b16 %v1724
    %v4583 = vunpack.c.h.b16 %v1724
    %v4584 = vunpack.c.l.b16 %v1725
    %v4585 = vunpack.c.h.b16 %v1725
    %v4586 = vunpack.c.l.b16 %v1726
    %v4587 = vunpack.c.h.b16 %v1726
    %v4588 = vunpack.c.l.b16 %v1727
    %v4589 = vunpack.c.h.b16 %v1727
    %v4590 = vunpack.c.l.b16 %v1728
    %v4591 = vunpack.c.h.b16 %v1728
    %v4592 = vunpack.c.l.b16 %v1729
    %v4593 = vunpack.c.h.b16 %v1729
    %v4594 = vunpack.c.l.b16 %v1730
    %v4595 = vunpack.c.h.b16 %v1730
    %v4596 = vunpack.c.l.b16 %v1731
    %v4597 = vunpack.c.h.b16 %v1731
    %v4598 = vunpack.c.l.b16 %v1732
    %v4599 = vunpack.c.h.b16 %v1732
    %v4600 = vunpack.c.l.b16 %v1733
    %v4601 = vunpack.c.h.b16 %v1733
    %v4602 = vunpack.c.l.b16 %v1734
    %v4603 = vunpack.c.h.b16 %v1734
    %v4604 = vunpack.c.l.b16 %v1735
    %v4605 = vunpack.c.h.b16 %v1735
    %v4606 = vunpack.c.l.b16 %v1736
    %v4607 = vunpack.c.h.b16 %v1736
    %v4608 = vunpack.c.l.b16 %v1737
    %v4609 = vunpack.c.h.b16 %v1737
    %v4610 = vunpack.c.l.b16 %v1738
    %v4611 = vunpack.c.h.b16 %v1738
    %v4612 = vunpack.c.l.b16 %v1739
    %v4613 = vunpack.c.h.b16 %v1739
    %v4614 = vunpack.c.l.b16 %v1740
    %v4615 = vunpack.c.h.b16 %v1740
    %v4616 = vunpack.c.l.b16 %v1741
    %v4617 = vunpack.c.h.b16 %v1741
    %v4618 = vunpack.c.l.b16 %v1742
    %v4619 = vunpack.c.h.b16 %v1742
    %v4620 = vunpack.c.l.b16 %v1743
    %v4621 = vunpack.c.h.b16 %v1743
    %v4622 = vunpack.c.l.b16 %v1744
    %v4623 = vunpack.c.h.b16 %v1744
    %v4624 = vunpack.c.l.b16 %v1745
    %v4625 = vunpack.c.h.b16 %v1745
    %v4626 = vunpack.c.l.b16 %v1746
    %v4627 = vunpack.c.h.b16 %v1746
    %v4628 = vunpack.c.l.b16 %v1747
    %v4629 = vunpack.c.h.b16 %v1747
    %v4630 = vunpack.c.l.b16 %v1748
    %v4631 = vunpack.c.h.b16 %v1748
    %v4632 = vunpack.c.l.b16 %v1749
    %v4633 = vunpack.c.h.b16 %v1749
    %v4634 = vunpack.c.l.b16 %v1750
    %v4635 = vunpack.c.h.b16 %v1750
    %v4636 = vunpack.c.l.b16 %v1751
    %v4637 = vunpack.c.h.b16 %v1751
    %v4638 = vunpack.c.l.b16 %v1752
    %v4639 = vunpack.c.h.b16 %v1752
    %v4640 = vunpack.c.l.b16 %v1753
    %v4641 = vunpack.c.h.b16 %v1753
    %v4642 = vunpack.c.l.b16 %v1754
    %v4643 = vunpack.c.h.b16 %v1754
    %v4644 = vunpack.c.l.b16 %v1755
    %v4645 = vunpack.c.h.b16 %v1755
    %v4646 = vunpack.c.l.b16 %v1756
    %v4647 = vunpack.c.h.b16 %v1756
    %v4648 = vunpack.c.l.b16 %v1757
    %v4649 = vunpack.c.h.b16 %v1757
    %v4650 = vunpack.c.l.b16 %v1758
    %v4651 = vunpack.c.h.b16 %v1758
    %v4652 = vunpack.c.l.b16 %v1759
    %v4653 = vunpack.c.h.b16 %v1759
    %v4654 = vunpack.c.l.b16 %v1760
    %v4655 = vunpack.c.h.b16 %v1760
    %v4656 = vunpack.c.l.b16 %v1761
    %v4657 = vunpack.c.h.b16 %v1761
    %v4658 = vunpack.c.l.b16 %v1762
    %v4659 = vunpack.c.h.b16 %v1762
    %v4660 = vunpack.c.l.b16 %v1763
    %v4661 = vunpack.c.h.b16 %v1763
    %v4662 = vunpack.c.l.b16 %v1764
    %v4663 = vunpack.c.h.b16 %v1764
    %v4664 = vunpack.c.l.b16 %v1765
    %v4665 = vunpack.c.h.b16 %v1765
    %v4666 = vunpack.c.l.b16 %v1766
    %v4667 = vunpack.c.h.b16 %v1766
    %v4668 = vunpack.c.l.b16 %v1767
    %v4669 = vunpack.c.h.b16 %v1767
    %v4670 = vunpack.c.l.b16 %v1768
    %v4671 = vunpack.c.h.b16 %v1768
    %v4672 = vunpack.c.l.b16 %v1769
    %v4673 = vunpack.c.h.b16 %v1769
    %v4674 = vunpack.c.l.b16 %v1770
    %v4675 = vunpack.c.h.b16 %v1770
    %v4676 = vunpack.c.l.b16 %v1771
    %v4677 = vunpack.c.h.b16 %v1771
    %v4678 = vunpack.c.l.b16 %v1772
    %v4679 = vunpack.c.h.b16 %v1772
    %v4680 = vunpack.c.l.b16 %v1773
    %v4681 = vunpack.c.h.b16 %v1773
    %v4682 = vunpack.c.l.b16 %v1774
    %v4683 = vunpack.c.h.b16 %v1774
    %v4684 = vunpack.c.l.b16 %v1775
    %v4685 = vunpack.c.h.b16 %v1775
    %v4686 = vunpack.c.l.b16 %v1776
    %v4687 = vunpack.c.h.b16 %v1776
    %v4688 = vunpack.c.l.b16 %v1777
    %v4689 = vunpack.c.h.b16 %v1777
    %v4690 = vunpack.c.l.b16 %v1778
    %v4691 = vunpack.c.h.b16 %v1778
    %v4692 = vunpack.c.l.b16 %v1779
    %v4693 = vunpack.c.h.b16 %v1779
    %v4694 = vunpack.c.l.b16 %v1780
    %v4695 = vunpack.c.h.b16 %v1780
    %v4696 = vunpack.c.l.b16 %v1781
    %v4697 = vunpack.c.h.b16 %v1781
    %v4698 = vunpack.c.l.b16 %v1782
    %v4699 = vunpack.c.h.b16 %v1782
    %v4700 = vunpack.c.l.b16 %v1783
    %v4701 = vunpack.c.h.b16 %v1783
    %v4702 = vunpack.c.l.b16 %v1784
    %v4703 = vunpack.c.h.b16 %v1784
    %v4704 = vunpack.c.l.b16 %v1785
    %v4705 = vunpack.c.h.b16 %v1785
    %v4706 = vunpack.c.l.b16 %v1786
    %v4707 = vunpack.c.h.b16 %v1786
    %v4708 = vunpack.c.l.b16 %v1787
    %v4709 = vunpack.c.h.b16 %v1787
    %v4710 = vunpack.c.l.b16 %v1788
    %v4711 = vunpack.c.h.b16 %v1788
    %v4712 = vunpack.c.l.b16 %v1789
    %v4713 = vunpack.c.h.b16 %v1789
    %v4714 = vunpack.c.l.b16 %v1790
    %v4715 = vunpack.c.h.b16 %v1790
    %v4716 = vunpack.c.l.b16 %v1791
    %v4717 = vunpack.c.h.b16 %v1791
    %v4718 = vunpack.c.l.b16 %v1792
    %v4719 = vunpack.c.h.b16 %v1792
    %v4720 = vunpack.c.l.b16 %v1793
    %v4721 = vunpack.c.h.b16 %v1793
    %v4722 = vunpack.c.l.b16 %v1794
    %v4723 = vunpack.c.h.b16 %v1794
    %v4724 = vunpack.c.l.b16 %v1795
    %v4725 = vunpack.c.h.b16 %v1795
    %v4726 = vunpack.c.l.b16 %v1796
    %v4727 = vunpack.c.h.b16 %v1796
    %v4728 = vunpack.c.l.b16 %v1797
    %v4729 = vunpack.c.h.b16 %v1797
    %v4730 = vunpack.c.l.b16 %v1798
    %v4731 = vunpack.c.h.b16 %v1798
    %v4732 = vunpack.c.l.b16 %v1799
    %v4733 = vunpack.c.h.b16 %v1799
    %v4734 = vunpack.c.l.b16 %v1800
    %v4735 = vunpack.c.h.b16 %v1800
    %v4736 = vunpack.c.l.b16 %v1801
    %v4737 = vunpack.c.h.b16 %v1801
    %v4738 = vunpack.c.l.b16 %v1802
    %v4739 = vunpack.c.h.b16 %v1802
    %v4740 = vunpack.c.l.b16 %v1803
    %v4741 = vunpack.c.h.b16 %v1803
    %v4742 = vunpack.c.l.b16 %v1804
    %v4743 = vunpack.c.h.b16 %v1804
    %v4744 = vunpack.c.l.b16 %v1805
    %v4745 = vunpack.c.h.b16 %v1805
    %v4746 = vunpack.c.l.b16 %v1806
    %v4747 = vunpack.c.h.b16 %v1806
    %v4748 = vunpack.c.l.b16 %v1807
    %v4749 = vunpack.c.h.b16 %v1807
    %v4750 = vunpack.c.l.b16 %v1808
    %v4751 = vunpack.c.h.b16 %v1808
    %v4752 = vunpack.c.l.b16 %v1809
    %v4753 = vunpack.c.h.b16 %v1809
    %v4754 = vunpack.c.l.b16 %v1810
    %v4755 = vunpack.c.h.b16 %v1810
    %v4756 = vunpack.c.l.b16 %v1811
    %v4757 = vunpack.c.h.b16 %v1811
    %v4758 = vunpack.c.l.b16 %v1812
    %v4759 = vunpack.c.h.b16 %v1812
    %v4760 = vunpack.c.l.b16 %v1813
    %v4761 = vunpack.c.h.b16 %v1813
    %v4762 = vunpack.c.l.b16 %v1814
    %v4763 = vunpack.c.h.b16 %v1814
    %v4764 = vunpack.c.l.b16 %v1815
    %v4765 = vunpack.c.h.b16 %v1815
    %v4766 = vunpack.c.l.b16 %v1816
    %v4767 = vunpack.c.h.b16 %v1816
    %v4768 = vunpack.c.l.b16 %v1817
    %v4769 = vunpack.c.h.b16 %v1817
    %v4770 = vunpack.c.l.b16 %v1818
    %v4771 = vunpack.c.h.b16 %v1818
    %v4772 = vunpack.c.l.b16 %v1819
    %v4773 = vunpack.c.h.b16 %v1819
    %v4774 = vunpack.c.l.b16 %v1820
    %v4775 = vunpack.c.h.b16 %v1820
    %v4776 = vunpack.c.l.b16 %v1821
    %v4777 = vunpack.c.h.b16 %v1821
    %v4778 = vunpack.c.l.b16 %v1822
    %v4779 = vunpack.c.h.b16 %v1822
    %v4780 = vunpack.c.l.b16 %v1823
    %v4781 = vunpack.c.h.b16 %v1823
    %v4782 = vunpack.c.l.b16 %v1824
    %v4783 = vunpack.c.h.b16 %v1824
    %v4784 = vunpack.c.l.b16 %v1825
    %v4785 = vunpack.c.h.b16 %v1825
    %v4786 = vunpack.c.l.b16 %v1826
    %v4787 = vunpack.c.h.b16 %v1826
    %v4788 = vunpack.c.l.b16 %v1827
    %v4789 = vunpack.c.h.b16 %v1827
    %v4790 = vunpack.c.l.b16 %v1828
    %v4791 = vunpack.c.h.b16 %v1828
    %v4792 = vunpack.c.l.b16 %v1829
    %v4793 = vunpack.c.h.b16 %v1829
    %v4794 = vunpack.c.l.b16 %v1830
    %v4795 = vunpack.c.h.b16 %v1830
    %v4796 = vunpack.c.l.b16 %v1831
    %v4797 = vunpack.c.h.b16 %v1831
    %v4798 = vunpack.c.l.b16 %v1832
    %v4799 = vunpack.c.h.b16 %v1832
    %v4800 = vunpack.c.l.b16 %v1833
    %v4801 = vunpack.c.h.b16 %v1833
    %v4802 = vunpack.c.l.b16 %v1834
    %v4803 = vunpack.c.h.b16 %v1834
    %v4804 = vunpack.c.l.b16 %v1835
    %v4805 = vunpack.c.h.b16 %v1835
    %v4806 = vunpack.c.l.b16 %v1836
    %v4807 = vunpack.c.h.b16 %v1836
    %v4808 = vunpack.c.l.b16 %v1837
    %v4809 = vunpack.c.h.b16 %v1837
    %v4810 = vunpack.c.l.b16 %v1838
    %v4811 = vunpack.c.h.b16 %v1838
    %v4812 = vunpack.c.l.b16 %v1839
    %v4813 = vunpack.c.h.b16 %v1839
    %v4814 = vunpack.c.l.b16 %v1840
    %v4815 = vunpack.c.h.b16 %v1840
    %v4816 = vunpack.c.l.b16 %v1841
    %v4817 = vunpack.c.h.b16 %v1841
    %v4818 = vunpack.c.l.b16 %v1842
    %v4819 = vunpack.c.h.b16 %v1842
    %v4820 = vunpack.c.l.b16 %v1843
    %v4821 = vunpack.c.h.b16 %v1843
    %v4822 = vunpack.c.l.b16 %v1844
    %v4823 = vunpack.c.h.b16 %v1844
    %v4824 = vunpack.c.l.b16 %v1845
    %v4825 = vunpack.c.h.b16 %v1845
    %v4826 = vunpack.c.l.b16 %v1846
    %v4827 = vunpack.c.h.b16 %v1846
    %v4828 = vunpack.c.l.b16 %v1847
    %v4829 = vunpack.c.h.b16 %v1847
    %v4830 = vunpack.c.l.b16 %v1848
    %v4831 = vunpack.c.h.b16 %v1848
    %v4832 = vunpack.c.l.b16 %v1849
    %v4833 = vunpack.c.h.b16 %v1849
    %v4834 = vunpack.c.l.b16 %v1850
    %v4835 = vunpack.c.h.b16 %v1850
    %v4836 = vunpack.c.l.b16 %v1851
    %v4837 = vunpack.c.h.b16 %v1851
    %v4838 = vunpack.c.l.b16 %v1852
    %v4839 = vunpack.c.h.b16 %v1852
    %v4840 = vunpack.c.l.b16 %v1853
    %v4841 = vunpack.c.h.b16 %v1853
    %v4842 = vunpack.c.l.b16 %v1854
    %v4843 = vunpack.c.h.b16 %v1854
    %v4844 = vunpack.c.l.b16 %v1855
    %v4845 = vunpack.c.h.b16 %v1855
    %v4846 = vunpack.c.l.b16 %v1856
    %v4847 = vunpack.c.h.b16 %v1856
    %v4848 = vunpack.c.l.b16 %v1857
    %v4849 = vunpack.c.h.b16 %v1857
    %v4850 = vunpack.c.l.b16 %v1858
    %v4851 = vunpack.c.h.b16 %v1858
    %v4852 = vunpack.c.l.b16 %v1859
    %v4853 = vunpack.c.h.b16 %v1859
    %v4854 = vunpack.c.l.b16 %v1860
    %v4855 = vunpack.c.h.b16 %v1860
    %v4856 = vunpack.c.l.b16 %v1861
    %v4857 = vunpack.c.h.b16 %v1861
    %v4858 = vunpack.c.l.b16 %v1862
    %v4859 = vunpack.c.h.b16 %v1862
    %v4860 = vunpack.c.l.b16 %v1863
    %v4861 = vunpack.c.h.b16 %v1863
    %v4862 = vunpack.c.l.b16 %v1864
    %v4863 = vunpack.c.h.b16 %v1864
    %v4864 = vunpack.c.l.b16 %v1865
    %v4865 = vunpack.c.h.b16 %v1865
    %v4866 = vunpack.c.l.b16 %v1866
    %v4867 = vunpack.c.h.b16 %v1866
    %v4868 = vunpack.c.l.b16 %v1867
    %v4869 = vunpack.c.h.b16 %v1867
    %v4870 = vunpack.c.l.b16 %v1868
    %v4871 = vunpack.c.h.b16 %v1868
    %v4872 = vunpack.c.l.b16 %v1869
    %v4873 = vunpack.c.h.b16 %v1869
    %v4874 = vunpack.c.l.b16 %v1870
    %v4875 = vunpack.c.h.b16 %v1870
    %v4876 = vunpack.c.l.b16 %v1871
    %v4877 = vunpack.c.h.b16 %v1871
    %v4878 = vunpack.c.l.b16 %v1872
    %v4879 = vunpack.c.h.b16 %v1872
    %v4880 = vunpack.c.l.b16 %v1873
    %v4881 = vunpack.c.h.b16 %v1873
    %v4882 = vunpack.c.l.b16 %v1874
    %v4883 = vunpack.c.h.b16 %v1874
    %v4884 = vunpack.c.l.b16 %v1875
    %v4885 = vunpack.c.h.b16 %v1875
    %v4886 = vunpack.c.l.b16 %v1876
    %v4887 = vunpack.c.h.b16 %v1876
    %v4888 = vunpack.c.l.b16 %v1877
    %v4889 = vunpack.c.h.b16 %v1877
    %v4890 = vunpack.c.l.b16 %v1878
    %v4891 = vunpack.c.h.b16 %v1878
    %v4892 = vunpack.c.l.b16 %v1879
    %v4893 = vunpack.c.h.b16 %v1879
    %v4894 = vunpack.c.l.b16 %v1880
    %v4895 = vunpack.c.h.b16 %v1880
    %v4896 = vunpack.c.l.b16 %v1881
    %v4897 = vunpack.c.h.b16 %v1881
    %v4898 = vunpack.c.l.b16 %v1882
    %v4899 = vunpack.c.h.b16 %v1882
    %v4900 = vunpack.c.l.b16 %v1883
    %v4901 = vunpack.c.h.b16 %v1883
    %v4902 = vunpack.c.l.b16 %v1884
    %v4903 = vunpack.c.h.b16 %v1884
    %v4904 = vunpack.c.l.b16 %v1885
    %v4905 = vunpack.c.h.b16 %v1885
    %v4906 = vunpack.c.l.b16 %v1886
    %v4907 = vunpack.c.h.b16 %v1886
    %v4908 = vunpack.c.l.b16 %v1887
    %v4909 = vunpack.c.h.b16 %v1887
    %v4910 = vunpack.c.l.b16 %v1888
    %v4911 = vunpack.c.h.b16 %v1888
    %v4912 = vunpack.c.l.b16 %v1889
    %v4913 = vunpack.c.h.b16 %v1889
    %v4914 = vunpack.c.l.b16 %v1890
    %v4915 = vunpack.c.h.b16 %v1890
    %v4916 = vunpack.c.l.b16 %v1891
    %v4917 = vunpack.c.h.b16 %v1891
    %v4918 = vunpack.c.l.b16 %v1892
    %v4919 = vunpack.c.h.b16 %v1892
    %v4920 = vunpack.c.l.b16 %v1893
    %v4921 = vunpack.c.h.b16 %v1893
    %v4922 = vunpack.c.l.b16 %v1894
    %v4923 = vunpack.c.h.b16 %v1894
    %v4924 = vunpack.c.l.b16 %v1895
    %v4925 = vunpack.c.h.b16 %v1895
    %v4926 = vunpack.c.l.b16 %v1896
    %v4927 = vunpack.c.h.b16 %v1896
    %v4928 = vunpack.c.l.b16 %v1897
    %v4929 = vunpack.c.h.b16 %v1897
    %v4930 = vunpack.c.l.b16 %v1898
    %v4931 = vunpack.c.h.b16 %v1898
    %v4932 = vunpack.c.l.b16 %v1899
    %v4933 = vunpack.c.h.b16 %v1899
    %v4934 = vunpack.c.l.b16 %v1900
    %v4935 = vunpack.c.h.b16 %v1900
    %v4936 = vunpack.c.l.b16 %v1901
    %v4937 = vunpack.c.h.b16 %v1901
    %v4938 = vunpack.c.l.b16 %v1902
    %v4939 = vunpack.c.h.b16 %v1902
    %v4940 = vunpack.c.l.b16 %v1903
    %v4941 = vunpack.c.h.b16 %v1903
    %v4942 = vunpack.c.l.b16 %v1904
    %v4943 = vunpack.c.h.b16 %v1904
    %v4944 = vunpack.c.l.b16 %v1905
    %v4945 = vunpack.c.h.b16 %v1905
    %v4946 = vunpack.c.l.b16 %v1906
    %v4947 = vunpack.c.h.b16 %v1906
    %v4948 = vunpack.c.l.b16 %v1907
    %v4949 = vunpack.c.h.b16 %v1907
    %v4950 = vunpack.c.l.b16 %v1908
    %v4951 = vunpack.c.h.b16 %v1908
    %v4952 = vunpack.c.l.b16 %v1909
    %v4953 = vunpack.c.h.b16 %v1909
    %v4954 = vunpack.c.l.b16 %v1910
    %v4955 = vunpack.c.h.b16 %v1910
    %v4956 = vunpack.c.l.b16 %v1911
    %v4957 = vunpack.c.h.b16 %v1911
    %v4958 = vunpack.c.l.b16 %v1912
    %v4959 = vunpack.c.h.b16 %v1912
    %v4960 = vunpack.c.l.b16 %v1913
    %v4961 = vunpack.c.h.b16 %v1913
    %v4962 = vunpack.c.l.b16 %v1914
    %v4963 = vunpack.c.h.b16 %v1914
    %v4964 = vunpack.c.l.b16 %v1915
    %v4965 = vunpack.c.h.b16 %v1915
    %v4966 = vunpack.c.l.b16 %v1916
    %v4967 = vunpack.c.h.b16 %v1916
    %v4968 = vunpack.c.l.b16 %v1917
    %v4969 = vunpack.c.h.b16 %v1917
    %v4970 = vunpack.c.l.b16 %v1918
    %v4971 = vunpack.c.h.b16 %v1918
    %v4972 = vunpack.c.l.b16 %v1919
    %v4973 = vunpack.c.h.b16 %v1919
    %v4974 = vunpack.c.l.b16 %v1920
    %v4975 = vunpack.c.h.b16 %v1920
    %v4976 = vunpack.c.l.b16 %v1921
    %v4977 = vunpack.c.h.b16 %v1921
    %v4978 = vunpack.c.l.b16 %v1922
    %v4979 = vunpack.c.h.b16 %v1922
    %v4980 = vunpack.c.l.b16 %v1923
    %v4981 = vunpack.c.h.b16 %v1923
    %v4982 = vunpack.c.l.b16 %v1924
    %v4983 = vunpack.c.h.b16 %v1924
    %v4984 = vunpack.c.l.b16 %v1925
    %v4985 = vunpack.c.h.b16 %v1925
    %v4986 = vunpack.c.l.b16 %v1926
    %v4987 = vunpack.c.h.b16 %v1926
    %v4988 = vunpack.c.l.b16 %v1927
    %v4989 = vunpack.c.h.b16 %v1927
    %v4990 = vunpack.c.l.b16 %v1928
    %v4991 = vunpack.c.h.b16 %v1928
    %v4992 = vunpack.c.l.b16 %v1929
    %v4993 = vunpack.c.h.b16 %v1929
    %v4994 = vunpack.c.l.b16 %v1930
    %v4995 = vunpack.c.h.b16 %v1930
    %v4996 = vunpack.c.l.b16 %v1931
    %v4997 = vunpack.c.h.b16 %v1931
    %v4998 = vunpack.c.l.b16 %v1932
    %v4999 = vunpack.c.h.b16 %v1932
    %v5000 = vunpack.c.l.b16 %v1933
    %v5001 = vunpack.c.h.b16 %v1933
    %v5002 = vunpack.c.l.b16 %v1934
    %v5003 = vunpack.c.h.b16 %v1934
    %v5004 = vunpack.c.l.b16 %v1935
    %v5005 = vunpack.c.h.b16 %v1935
    %v5006 = vunpack.c.l.b16 %v1936
    %v5007 = vunpack.c.h.b16 %v1936
    %v5008 = vunpack.c.l.b16 %v1937
    %v5009 = vunpack.c.h.b16 %v1937
    %v5010 = vunpack.c.l.b16 %v1938
    %v5011 = vunpack.c.h.b16 %v1938
    %v5012 = vunpack.c.l.b16 %v1939
    %v5013 = vunpack.c.h.b16 %v1939
    %v5014 = vunpack.c.l.b16 %v1940
    %v5015 = vunpack.c.h.b16 %v1940
    %v5016 = vunpack.c.l.b16 %v1941
    %v5017 = vunpack.c.h.b16 %v1941
    %v5018 = vunpack.c.l.b16 %v1942
    %v5019 = vunpack.c.h.b16 %v1942
    %v5020 = vunpack.c.l.b16 %v1943
    %v5021 = vunpack.c.h.b16 %v1943
    %v5022 = vunpack.c.l.b16 %v1944
    %v5023 = vunpack.c.h.b16 %v1944
    %v5024 = vunpack.c.l.b16 %v1945
    %v5025 = vunpack.c.h.b16 %v1945
    %v5026 = vunpack.c.l.b16 %v1946
    %v5027 = vunpack.c.h.b16 %v1946
    %v5028 = vunpack.c.l.b16 %v1947
    %v5029 = vunpack.c.h.b16 %v1947
    %v5030 = vunpack.c.l.b16 %v1948
    %v5031 = vunpack.c.h.b16 %v1948
    %v5032 = vunpack.c.l.b16 %v1949
    %v5033 = vunpack.c.h.b16 %v1949
    %v5034 = vunpack.c.l.b16 %v1950
    %v5035 = vunpack.c.h.b16 %v1950
    %v5036 = vunpack.c.l.b16 %v1951
    %v5037 = vunpack.c.h.b16 %v1951
    %v5038 = vunpack.c.l.b16 %v1952
    %v5039 = vunpack.c.h.b16 %v1952
    %v5040 = vunpack.c.l.b16 %v1953
    %v5041 = vunpack.c.h.b16 %v1953
    %v5042 = vunpack.c.l.b16 %v1954
    %v5043 = vunpack.c.h.b16 %v1954
    %v5044 = vunpack.c.l.b16 %v1955
    %v5045 = vunpack.c.h.b16 %v1955
    %v5046 = vunpack.c.l.b16 %v1956
    %v5047 = vunpack.c.h.b16 %v1956
    %v5048 = vunpack.c.l.b16 %v1957
    %v5049 = vunpack.c.h.b16 %v1957
    %v5050 = vunpack.c.l.b16 %v1958
    %v5051 = vunpack.c.h.b16 %v1958
    %v5052 = vunpack.c.l.b16 %v1959
    %v5053 = vunpack.c.h.b16 %v1959
    %v5054 = vunpack.c.l.b16 %v1960
    %v5055 = vunpack.c.h.b16 %v1960
    %v5056 = vunpack.c.l.b16 %v1961
    %v5057 = vunpack.c.h.b16 %v1961
    %v5058 = vunpack.c.l.b16 %v1962
    %v5059 = vunpack.c.h.b16 %v1962
    %v5060 = vunpack.c.l.b16 %v1963
    %v5061 = vunpack.c.h.b16 %v1963
    %v5062 = vunpack.c.l.b16 %v1964
    %v5063 = vunpack.c.h.b16 %v1964
    %v5064 = vunpack.c.l.b16 %v1965
    %v5065 = vunpack.c.h.b16 %v1965
    %v5066 = vunpack.c.l.b16 %v1966
    %v5067 = vunpack.c.h.b16 %v1966
    %v5068 = vunpack.c.l.b16 %v1967
    %v5069 = vunpack.c.h.b16 %v1967
    %v5070 = vunpack.c.l.b16 %v1968
    %v5071 = vunpack.c.h.b16 %v1968
    %v5072 = vunpack.c.l.b16 %v1969
    %v5073 = vunpack.c.h.b16 %v1969
    %v5074 = vunpack.c.l.b16 %v1970
    %v5075 = vunpack.c.h.b16 %v1970
    %v5076 = vunpack.c.l.b16 %v1971
    %v5077 = vunpack.c.h.b16 %v1971
    %v5078 = vunpack.c.l.b16 %v1972
    %v5079 = vunpack.c.h.b16 %v1972
    %v5080 = vunpack.c.l.b16 %v1973
    %v5081 = vunpack.c.h.b16 %v1973
    %v5082 = vunpack.c.l.b16 %v1974
    %v5083 = vunpack.c.h.b16 %v1974
    %v5084 = vunpack.c.l.b16 %v1975
    %v5085 = vunpack.c.h.b16 %v1975
    %v5086 = vunpack.c.l.b16 %v1976
    %v5087 = vunpack.c.h.b16 %v1976
    %v5088 = vunpack.c.l.b16 %v1977
    %v5089 = vunpack.c.h.b16 %v1977
    %v5090 = vunpack.c.l.b16 %v1978
    %v5091 = vunpack.c.h.b16 %v1978
    %v5092 = vunpack.c.l.b16 %v1979
    %v5093 = vunpack.c.h.b16 %v1979
    %v5094 = vpack.c.b16 %v3054, %v3046
    %v5095 = vpack.c.b16 %v3055, %v3047
    %v5096 = vpack.c.b16 %v3056, %v3048
    %v5097 = vpack.c.b16 %v3057, %v3049
    %v5098 = vpack.c.b16 %v3058, %v3050
    %v5099 = vpack.c.b16 %v3059, %v3051
    %v5100 = vpack.c.b16 %v3060, %v3052
    %v5101 = vpack.c.b16 %v3061, %v3053
    %v5102 = vpack.c.b16 %v3070, %v3062
    %v5103 = vpack.c.b16 %v3071, %v3063
    %v5104 = vpack.c.b16 %v3072, %v3064
    %v5105 = vpack.c.b16 %v3073, %v3065
    %v5106 = vpack.c.b16 %v3074, %v3066
    %v5107 = vpack.c.b16 %v3075, %v3067
    %v5108 = vpack.c.b16 %v3076, %v3068
    %v5109 = vpack.c.b16 %v3077, %v3069
    %v5110 = vpack.c.b16 %v3086, %v3078
    %v5111 = vpack.c.b16 %v3087, %v3079
    %v5112 = vpack.c.b16 %v3088, %v3080
    %v5113 = vpack.c.b16 %v3089, %v3081
    %v5114 = vpack.c.b16 %v3090, %v3082
    %v5115 = vpack.c.b16 %v3091, %v3083
    %v5116 = vpack.c.b16 %v3092, %v3084
    %v5117 = vpack.c.b16 %v3093, %v3085
    %v5118 = vpack.c.b16 %v3102, %v3094
    %v5119 = vpack.c.b16 %v3103, %v3095
    %v5120 = vpack.c.b16 %v3104, %v3096
    %v5121 = vpack.c.b16 %v3105, %v3097
    %v5122 = vpack.c.b16 %v3106, %v3098
    %v5123 = vpack.c.b16 %v3107, %v3099
    %v5124 = vpack.c.b16 %v3108, %v3100
    %v5125 = vpack.c.b16 %v3109, %v3101
    %v5126 = vpack.c.b16 %v3118, %v3110
    %v5127 = vpack.c.b16 %v3119, %v3111
    %v5128 = vpack.c.b16 %v3120, %v3112
    %v5129 = vpack.c.b16 %v3121, %v3113
    %v5130 = vpack.c.b16 %v3122, %v3114
    %v5131 = vpack.c.b16 %v3123, %v3115
    %v5132 = vpack.c.b16 %v3124, %v3116
    %v5133 = vpack.c.b16 %v3125, %v3117
    %v5134 = vpack.c.b16 %v3134, %v3126
    %v5135 = vpack.c.b16 %v3135, %v3127
    %v5136 = vpack.c.b16 %v3136, %v3128
    %v5137 = vpack.c.b16 %v3137, %v3129
    %v5138 = vpack.c.b16 %v3138, %v3130
    %v5139 = vpack.c.b16 %v3139, %v3131
    %v5140 = vpack.c.b16 %v3140, %v3132
    %v5141 = vpack.c.b16 %v3141, %v3133
    %v5142 = vpack.c.b16 %v3150, %v3142
    %v5143 = vpack.c.b16 %v3151, %v3143
    %v5144 = vpack.c.b16 %v3152, %v3144
    %v5145 = vpack.c.b16 %v3153, %v3145
    %v5146 = vpack.c.b16 %v3154, %v3146
    %v5147 = vpack.c.b16 %v3155, %v3147
    %v5148 = vpack.c.b16 %v3156, %v3148
    %v5149 = vpack.c.b16 %v3157, %v3149
    %v5150 = vpack.c.b16 %v3166, %v3158
    %v5151 = vpack.c.b16 %v3167, %v3159
    %v5152 = vpack.c.b16 %v3168, %v3160
    %v5153 = vpack.c.b16 %v3169, %v3161
    %v5154 = vpack.c.b16 %v3170, %v3162
    %v5155 = vpack.c.b16 %v3171, %v3163
    %v5156 = vpack.c.b16 %v3172, %v3164
    %v5157 = vpack.c.b16 %v3173, %v3165
    %v5158 = vpack.c.b16 %v3182, %v3174
    %v5159 = vpack.c.b16 %v3183, %v3175
    %v5160 = vpack.c.b16 %v3184, %v3176
    %v5161 = vpack.c.b16 %v3185, %v3177
    %v5162 = vpack.c.b16 %v3186, %v3178
    %v5163 = vpack.c.b16 %v3187, %v3179
    %v5164 = vpack.c.b16 %v3188, %v3180
    %v5165 = vpack.c.b16 %v3189, %v3181
    %v5166 = vpack.c.b16 %v3198, %v3190
    %v5167 = vpack.c.b16 %v3199, %v3191
    %v5168 = vpack.c.b16 %v3200, %v3192
    %v5169 = vpack.c.b16 %v3201, %v3193
    %v5170 = vpack.c.b16 %v3202, %v3194
    %v5171 = vpack.c.b16 %v3203, %v3195
    %v5172 = vpack.c.b16 %v3204, %v3196
    %v5173 = vpack.c.b16 %v3205, %v3197
    %v5174 = vpack.c.b16 %v3214, %v3206
    %v5175 = vpack.c.b16 %v3215, %v3207
    %v5176 = vpack.c.b16 %v3216, %v3208
    %v5177 = vpack.c.b16 %v3217, %v3209
    %v5178 = vpack.c.b16 %v3218, %v3210
    %v5179 = vpack.c.b16 %v3219, %v3211
    %v5180 = vpack.c.b16 %v3220, %v3212
    %v5181 = vpack.c.b16 %v3221, %v3213
    %v5182 = vpack.c.b16 %v3230, %v3222
    %v5183 = vpack.c.b16 %v3231, %v3223
    %v5184 = vpack.c.b16 %v3232, %v3224
    %v5185 = vpack.c.b16 %v3233, %v3225
    %v5186 = vpack.c.b16 %v3234, %v3226
    %v5187 = vpack.c.b16 %v3235, %v3227
    %v5188 = vpack.c.b16 %v3236, %v3228
    %v5189 = vpack.c.b16 %v3237, %v3229
    %v5190 = vpack.c.b16 %v3246, %v3238
    %v5191 = vpack.c.b16 %v3247, %v3239
    %v5192 = vpack.c.b16 %v3248, %v3240
    %v5193 = vpack.c.b16 %v3249, %v3241
    %v5194 = vpack.c.b16 %v3250, %v3242
    %v5195 = vpack.c.b16 %v3251, %v3243
    %v5196 = vpack.c.b16 %v3252, %v3244
    %v5197 = vpack.c.b16 %v3253, %v3245
    %v5198 = vpack.c.b16 %v3262, %v3254
    %v5199 = vpack.c.b16 %v3263, %v3255
    %v5200 = vpack.c.b16 %v3264, %v3256
    %v5201 = vpack.c.b16 %v3265, %v3257
    %v5202 = vpack.c.b16 %v3266, %v3258
    %v5203 = vpack.c.b16 %v3267, %v3259
    %v5204 = vpack.c.b16 %v3268, %v3260
    %v5205 = vpack.c.b16 %v3269, %v3261
    %v5206 = vpack.c.b16 %v3278, %v3270
    %v5207 = vpack.c.b16 %v3279, %v3271
    %v5208 = vpack.c.b16 %v3280, %v3272
    %v5209 = vpack.c.b16 %v3281, %v3273
    %v5210 = vpack.c.b16 %v3282, %v3274
    %v5211 = vpack.c.b16 %v3283, %v3275
    %v5212 = vpack.c.b16 %v3284, %v3276
    %v5213 = vpack.c.b16 %v3285, %v3277
    %v5214 = vpack.c.b16 %v3294, %v3286
    %v5215 = vpack.c.b16 %v3295, %v3287
    %v5216 = vpack.c.b16 %v3296, %v3288
    %v5217 = vpack.c.b16 %v3297, %v3289
    %v5218 = vpack.c.b16 %v3298, %v3290
    %v5219 = vpack.c.b16 %v3299, %v3291
    %v5220 = vpack.c.b16 %v3300, %v3292
    %v5221 = vpack.c.b16 %v3301, %v3293
    %v5222 = vpack.c.b16 %v3310, %v3302
    %v5223 = vpack.c.b16 %v3311, %v3303
    %v5224 = vpack.c.b16 %v3312, %v3304
    %v5225 = vpack.c.b16 %v3313, %v3305
    %v5226 = vpack.c.b16 %v3314, %v3306
    %v5227 = vpack.c.b16 %v3315, %v3307
    %v5228 = vpack.c.b16 %v3316, %v3308
    %v5229 = vpack.c.b16 %v3317, %v3309
    %v5230 = vpack.c.b16 %v3326, %v3318
    %v5231 = vpack.c.b16 %v3327, %v3319
    %v5232 = vpack.c.b16 %v3328, %v3320
    %v5233 = vpack.c.b16 %v3329, %v3321
    %v5234 = vpack.c.b16 %v3330, %v3322
    %v5235 = vpack.c.b16 %v3331, %v3323
    %v5236 = vpack.c.b16 %v3332, %v3324
    %v5237 = vpack.c.b16 %v3333, %v3325
    %v5238 = vpack.c.b16 %v3342, %v3334
    %v5239 = vpack.c.b16 %v3343, %v3335
    %v5240 = vpack.c.b16 %v3344, %v3336
    %v5241 = vpack.c.b16 %v3345, %v3337
    %v5242 = vpack.c.b16 %v3346, %v3338
    %v5243 = vpack.c.b16 %v3347, %v3339
    %v5244 = vpack.c.b16 %v3348, %v3340
    %v5245 = vpack.c.b16 %v3349, %v3341
    %v5246 = vpack.c.b16 %v3358, %v3350
    %v5247 = vpack.c.b16 %v3359, %v3351
    %v5248 = vpack.c.b16 %v3360, %v3352
    %v5249 = vpack.c.b16 %v3361, %v3353
    %v5250 = vpack.c.b16 %v3362, %v3354
    %v5251 = vpack.c.b16 %v3363, %v3355
    %v5252 = vpack.c.b16 %v3364, %v3356
    %v5253 = vpack.c.b16 %v3365, %v3357
    %v5254 = vpack.c.b16 %v3374, %v3366
    %v5255 = vpack.c.b16 %v3375, %v3367
    %v5256 = vpack.c.b16 %v3376, %v3368
    %v5257 = vpack.c.b16 %v3377, %v3369
    %v5258 = vpack.c.b16 %v3378, %v3370
    %v5259 = vpack.c.b16 %v3379, %v3371
    %v5260 = vpack.c.b16 %v3380, %v3372
    %v5261 = vpack.c.b16 %v3381, %v3373
    %v5262 = vpack.c.b16 %v3390, %v3382
    %v5263 = vpack.c.b16 %v3391, %v3383
    %v5264 = vpack.c.b16 %v3392, %v3384
    %v5265 = vpack.c.b16 %v3393, %v3385
    %v5266 = vpack.c.b16 %v3394, %v3386
    %v5267 = vpack.c.b16 %v3395, %v3387
    %v5268 = vpack.c.b16 %v3396, %v3388
    %v5269 = vpack.c.b16 %v3397, %v3389
    %v5270 = vpack.c.b16 %v3406, %v3398
    %v5271 = vpack.c.b16 %v3407, %v3399
    %v5272 = vpack.c.b16 %v3408, %v3400
    %v5273 = vpack.c.b16 %v3409, %v3401
    %v5274 = vpack.c.b16 %v3410, %v3402
    %v5275 = vpack.c.b16 %v3411, %v3403
    %v5276 = vpack.c.b16 %v3412, %v3404
    %v5277 = vpack.c.b16 %v3413, %v3405
    %v5278 = vpack.c.b16 %v3422, %v3414
    %v5279 = vpack.c.b16 %v3423, %v3415
    %v5280 = vpack.c.b16 %v3424, %v3416
    %v5281 = vpack.c.b16 %v3425, %v3417
    %v5282 = vpack.c.b16 %v3426, %v3418
    %v5283 = vpack.c.b16 %v3427, %v3419
    %v5284 = vpack.c.b16 %v3428, %v3420
    %v5285 = vpack.c.b16 %v3429, %v3421
    %v5286 = vpack.c.b16 %v3438, %v3430
    %v5287 = vpack.c.b16 %v3439, %v3431
    %v5288 = vpack.c.b16 %v3440, %v3432
    %v5289 = vpack.c.b16 %v3441, %v3433
    %v5290 = vpack.c.b16 %v3442, %v3434
    %v5291 = vpack.c.b16 %v3443, %v3435
    %v5292 = vpack.c.b16 %v3444, %v3436
    %v5293 = vpack.c.b16 %v3445, %v3437
    %v5294 = vpack.c.b16 %v3454, %v3446
    %v5295 = vpack.c.b16 %v3455, %v3447
    %v5296 = vpack.c.b16 %v3456, %v3448
    %v5297 = vpack.c.b16 %v3457, %v3449
    %v5298 = vpack.c.b16 %v3458, %v3450
    %v5299 = vpack.c.b16 %v3459, %v3451
    %v5300 = vpack.c.b16 %v3460, %v3452
    %v5301 = vpack.c.b16 %v3461, %v3453
    %v5302 = vpack.c.b16 %v3470, %v3462
    %v5303 = vpack.c.b16 %v3471, %v3463
    %v5304 = vpack.c.b16 %v3472, %v3464
    %v5305 = vpack.c.b16 %v3473, %v3465
    %v5306 = vpack.c.b16 %v3474, %v3466
    %v5307 = vpack.c.b16 %v3475, %v3467
    %v5308 = vpack.c.b16 %v3476, %v3468
    %v5309 = vpack.c.b16 %v3477, %v3469
    %v5310 = vpack.c.b16 %v3486, %v3478
    %v5311 = vpack.c.b16 %v3487, %v3479
    %v5312 = vpack.c.b16 %v3488, %v3480
    %v5313 = vpack.c.b16 %v3489, %v3481
    %v5314 = vpack.c.b16 %v3490, %v3482
    %v5315 = vpack.c.b16 %v3491, %v3483
    %v5316 = vpack.c.b16 %v3492, %v3484
    %v5317 = vpack.c.b16 %v3493, %v3485
    %v5318 = vpack.c.b16 %v3502, %v3494
    %v5319 = vpack.c.b16 %v3503, %v3495
    %v5320 = vpack.c.b16 %v3504, %v3496
    %v5321 = vpack.c.b16 %v3505, %v3497
    %v5322 = vpack.c.b16 %v3506, %v3498
    %v5323 = vpack.c.b16 %v3507, %v3499
    %v5324 = vpack.c.b16 %v3508, %v3500
    %v5325 = vpack.c.b16 %v3509, %v3501
    %v5326 = vpack.c.b16 %v3518, %v3510
    %v5327 = vpack.c.b16 %v3519, %v3511
    %v5328 = vpack.c.b16 %v3520, %v3512
    %v5329 = vpack.c.b16 %v3521, %v3513
    %v5330 = vpack.c.b16 %v3522, %v3514
    %v5331 = vpack.c.b16 %v3523, %v3515
    %v5332 = vpack.c.b16 %v3524, %v3516
    %v5333 = vpack.c.b16 %v3525, %v3517
    %v5334 = vpack.c.b16 %v3534, %v3526
    %v5335 = vpack.c.b16 %v3535, %v3527
    %v5336 = vpack.c.b16 %v3536, %v3528
    %v5337 = vpack.c.b16 %v3537, %v3529
    %v5338 = vpack.c.b16 %v3538, %v3530
    %v5339 = vpack.c.b16 %v3539, %v3531
    %v5340 = vpack.c.b16 %v3540, %v3532
    %v5341 = vpack.c.b16 %v3541, %v3533
    %v5342 = vpack.c.b16 %v3550, %v3542
    %v5343 = vpack.c.b16 %v3551, %v3543
    %v5344 = vpack.c.b16 %v3552, %v3544
    %v5345 = vpack.c.b16 %v3553, %v3545
    %v5346 = vpack.c.b16 %v3554, %v3546
    %v5347 = vpack.c.b16 %v3555, %v3547
    %v5348 = vpack.c.b16 %v3556, %v3548
    %v5349 = vpack.c.b16 %v3557, %v3549
    %v5350 = vpack.c.b16 %v3566, %v3558
    %v5351 = vpack.c.b16 %v3567, %v3559
    %v5352 = vpack.c.b16 %v3568, %v3560
    %v5353 = vpack.c.b16 %v3569, %v3561
    %v5354 = vpack.c.b16 %v3570, %v3562
    %v5355 = vpack.c.b16 %v3571, %v3563
    %v5356 = vpack.c.b16 %v3572, %v3564
    %v5357 = vpack.c.b16 %v3573, %v3565
    %v5358 = vpack.c.b16 %v3582, %v3574
    %v5359 = vpack.c.b16 %v3583, %v3575
    %v5360 = vpack.c.b16 %v3584, %v3576
    %v5361 = vpack.c.b16 %v3585, %v3577
    %v5362 = vpack.c.b16 %v3586, %v3578
    %v5363 = vpack.c.b16 %v3587, %v3579
    %v5364 = vpack.c.b16 %v3588, %v3580
    %v5365 = vpack.c.b16 %v3589, %v3581
    %v5366 = vpack.c.b16 %v3598, %v3590
    %v5367 = vpack.c.b16 %v3599, %v3591
    %v5368 = vpack.c.b16 %v3600, %v3592
    %v5369 = vpack.c.b16 %v3601, %v3593
    %v5370 = vpack.c.b16 %v3602, %v3594
    %v5371 = vpack.c.b16 %v3603, %v3595
    %v5372 = vpack.c.b16 %v3604, %v3596
    %v5373 = vpack.c.b16 %v3605, %v3597
    %v5374 = vpack.c.b16 %v3614, %v3606
    %v5375 = vpack.c.b16 %v3615, %v3607
    %v5376 = vpack.c.b16 %v3616, %v3608
    %v5377 = vpack.c.b16 %v3617, %v3609
    %v5378 = vpack.c.b16 %v3618, %v3610
    %v5379 = vpack.c.b16 %v3619, %v3611
    %v5380 = vpack.c.b16 %v3620, %v3612
    %v5381 = vpack.c.b16 %v3621, %v3613
    %v5382 = vpack.c.b16 %v3630, %v3622
    %v5383 = vpack.c.b16 %v3631, %v3623
    %v5384 = vpack.c.b16 %v3632, %v3624
    %v5385 = vpack.c.b16 %v3633, %v3625
    %v5386 = vpack.c.b16 %v3634, %v3626
    %v5387 = vpack.c.b16 %v3635, %v3627
    %v5388 = vpack.c.b16 %v3636, %v3628
    %v5389 = vpack.c.b16 %v3637, %v3629
    %v5390 = vpack.c.b16 %v3646, %v3638
    %v5391 = vpack.c.b16 %v3647, %v3639
    %v5392 = vpack.c.b16 %v3648, %v3640
    %v5393 = vpack.c.b16 %v3649, %v3641
    %v5394 = vpack.c.b16 %v3650, %v3642
    %v5395 = vpack.c.b16 %v3651, %v3643
    %v5396 = vpack.c.b16 %v3652, %v3644
    %v5397 = vpack.c.b16 %v3653, %v3645
    %v5398 = vpack.c.b16 %v3662, %v3654
    %v5399 = vpack.c.b16 %v3663, %v3655
    %v5400 = vpack.c.b16 %v3664, %v3656
    %v5401 = vpack.c.b16 %v3665, %v3657
    %v5402 = vpack.c.b16 %v3666, %v3658
    %v5403 = vpack.c.b16 %v3667, %v3659
    %v5404 = vpack.c.b16 %v3668, %v3660
    %v5405 = vpack.c.b16 %v3669, %v3661
    %v5406 = vpack.c.b16 %v3678, %v3670
    %v5407 = vpack.c.b16 %v3679, %v3671
    %v5408 = vpack.c.b16 %v3680, %v3672
    %v5409 = vpack.c.b16 %v3681, %v3673
    %v5410 = vpack.c.b16 %v3682, %v3674
    %v5411 = vpack.c.b16 %v3683, %v3675
    %v5412 = vpack.c.b16 %v3684, %v3676
    %v5413 = vpack.c.b16 %v3685, %v3677
    %v5414 = vpack.c.b16 %v3694, %v3686
    %v5415 = vpack.c.b16 %v3695, %v3687
    %v5416 = vpack.c.b16 %v3696, %v3688
    %v5417 = vpack.c.b16 %v3697, %v3689
    %v5418 = vpack.c.b16 %v3698, %v3690
    %v5419 = vpack.c.b16 %v3699, %v3691
    %v5420 = vpack.c.b16 %v3700, %v3692
    %v5421 = vpack.c.b16 %v3701, %v3693
    %v5422 = vpack.c.b16 %v3710, %v3702
    %v5423 = vpack.c.b16 %v3711, %v3703
    %v5424 = vpack.c.b16 %v3712, %v3704
    %v5425 = vpack.c.b16 %v3713, %v3705
    %v5426 = vpack.c.b16 %v3714, %v3706
    %v5427 = vpack.c.b16 %v3715, %v3707
    %v5428 = vpack.c.b16 %v3716, %v3708
    %v5429 = vpack.c.b16 %v3717, %v3709
    %v5430 = vpack.c.b16 %v3726, %v3718
    %v5431 = vpack.c.b16 %v3727, %v3719
    %v5432 = vpack.c.b16 %v3728, %v3720
    %v5433 = vpack.c.b16 %v3729, %v3721
    %v5434 = vpack.c.b16 %v3730, %v3722
    %v5435 = vpack.c.b16 %v3731, %v3723
    %v5436 = vpack.c.b16 %v3732, %v3724
    %v5437 = vpack.c.b16 %v3733, %v3725
    %v5438 = vpack.c.b16 %v3742, %v3734
    %v5439 = vpack.c.b16 %v3743, %v3735
    %v5440 = vpack.c.b16 %v3744, %v3736
    %v5441 = vpack.c.b16 %v3745, %v3737
    %v5442 = vpack.c.b16 %v3746, %v3738
    %v5443 = vpack.c.b16 %v3747, %v3739
    %v5444 = vpack.c.b16 %v3748, %v3740
    %v5445 = vpack.c.b16 %v3749, %v3741
    %v5446 = vpack.c.b16 %v3758, %v3750
    %v5447 = vpack.c.b16 %v3759, %v3751
    %v5448 = vpack.c.b16 %v3760, %v3752
    %v5449 = vpack.c.b16 %v3761, %v3753
    %v5450 = vpack.c.b16 %v3762, %v3754
    %v5451 = vpack.c.b16 %v3763, %v3755
    %v5452 = vpack.c.b16 %v3764, %v3756
    %v5453 = vpack.c.b16 %v3765, %v3757
    %v5454 = vpack.c.b16 %v3774, %v3766
    %v5455 = vpack.c.b16 %v3775, %v3767
    %v5456 = vpack.c.b16 %v3776, %v3768
    %v5457 = vpack.c.b16 %v3777, %v3769
    %v5458 = vpack.c.b16 %v3778, %v3770
    %v5459 = vpack.c.b16 %v3779, %v3771
    %v5460 = vpack.c.b16 %v3780, %v3772
    %v5461 = vpack.c.b16 %v3781, %v3773
    %v5462 = vpack.c.b16 %v3790, %v3782
    %v5463 = vpack.c.b16 %v3791, %v3783
    %v5464 = vpack.c.b16 %v3792, %v3784
    %v5465 = vpack.c.b16 %v3793, %v3785
    %v5466 = vpack.c.b16 %v3794, %v3786
    %v5467 = vpack.c.b16 %v3795, %v3787
    %v5468 = vpack.c.b16 %v3796, %v3788
    %v5469 = vpack.c.b16 %v3797, %v3789
    %v5470 = vpack.c.b16 %v3806, %v3798
    %v5471 = vpack.c.b16 %v3807, %v3799
    %v5472 = vpack.c.b16 %v3808, %v3800
    %v5473 = vpack.c.b16 %v3809, %v3801
    %v5474 = vpack.c.b16 %v3810, %v3802
    %v5475 = vpack.c.b16 %v3811, %v3803
    %v5476 = vpack.c.b16 %v3812, %v3804
    %v5477 = vpack.c.b16 %v3813, %v3805
    %v5478 = vpack.c.b16 %v3822, %v3814
    %v5479 = vpack.c.b16 %v3823, %v3815
    %v5480 = vpack.c.b16 %v3824, %v3816
    %v5481 = vpack.c.b16 %v3825, %v3817
    %v5482 = vpack.c.b16 %v3826, %v3818
    %v5483 = vpack.c.b16 %v3827, %v3819
    %v5484 = vpack.c.b16 %v3828, %v3820
    %v5485 = vpack.c.b16 %v3829, %v3821
    %v5486 = vpack.c.b16 %v3838, %v3830
    %v5487 = vpack.c.b16 %v3839, %v3831
    %v5488 = vpack.c.b16 %v3840, %v3832
    %v5489 = vpack.c.b16 %v3841, %v3833
    %v5490 = vpack.c.b16 %v3842, %v3834
    %v5491 = vpack.c.b16 %v3843, %v3835
    %v5492 = vpack.c.b16 %v3844, %v3836
    %v5493 = vpack.c.b16 %v3845, %v3837
    %v5494 = vpack.c.b16 %v3854, %v3846
    %v5495 = vpack.c.b16 %v3855, %v3847
    %v5496 = vpack.c.b16 %v3856, %v3848
    %v5497 = vpack.c.b16 %v3857, %v3849
    %v5498 = vpack.c.b16 %v3858, %v3850
    %v5499 = vpack.c.b16 %v3859, %v3851
    %v5500 = vpack.c.b16 %v3860, %v3852
    %v5501 = vpack.c.b16 %v3861, %v3853
    %v5502 = vpack.c.b16 %v3870, %v3862
    %v5503 = vpack.c.b16 %v3871, %v3863
    %v5504 = vpack.c.b16 %v3872, %v3864
    %v5505 = vpack.c.b16 %v3873, %v3865
    %v5506 = vpack.c.b16 %v3874, %v3866
    %v5507 = vpack.c.b16 %v3875, %v3867
    %v5508 = vpack.c.b16 %v3876, %v3868
    %v5509 = vpack.c.b16 %v3877, %v3869
    %v5510 = vpack.c.b16 %v3886, %v3878
    %v5511 = vpack.c.b16 %v3887, %v3879
    %v5512 = vpack.c.b16 %v3888, %v3880
    %v5513 = vpack.c.b16 %v3889, %v3881
    %v5514 = vpack.c.b16 %v3890, %v3882
    %v5515 = vpack.c.b16 %v3891, %v3883
    %v5516 = vpack.c.b16 %v3892, %v3884
    %v5517 = vpack.c.b16 %v3893, %v3885
    %v5518 = vpack.c.b16 %v3902, %v3894
    %v5519 = vpack.c.b16 %v3903, %v3895
    %v5520 = vpack.c.b16 %v3904, %v3896
    %v5521 = vpack.c.b16 %v3905, %v3897
    %v5522 = vpack.c.b16 %v3906, %v3898
    %v5523 = vpack.c.b16 %v3907, %v3899
    %v5524 = vpack.c.b16 %v3908, %v3900
    %v5525 = vpack.c.b16 %v3909, %v3901
    %v5526 = vpack.c.b16 %v3918, %v3910
    %v5527 = vpack.c.b16 %v3919, %v3911
    %v5528 = vpack.c.b16 %v3920, %v3912
    %v5529 = vpack.c.b16 %v3921, %v3913
    %v5530 = vpack.c.b16 %v3922, %v3914
    %v5531 = vpack.c.b16 %v3923, %v3915
    %v5532 = vpack.c.b16 %v3924, %v3916
    %v5533 = vpack.c.b16 %v3925, %v3917
    %v5534 = vpack.c.b16 %v3934, %v3926
    %v5535 = vpack.c.b16 %v3935, %v3927
    %v5536 = vpack.c.b16 %v3936, %v3928
    %v5537 = vpack.c.b16 %v3937, %v3929
    %v5538 = vpack.c.b16 %v3938, %v3930
    %v5539 = vpack.c.b16 %v3939, %v3931
    %v5540 = vpack.c.b16 %v3940, %v3932
    %v5541 = vpack.c.b16 %v3941, %v3933
    %v5542 = vpack.c.b16 %v3950, %v3942
    %v5543 = vpack.c.b16 %v3951, %v3943
    %v5544 = vpack.c.b16 %v3952, %v3944
    %v5545 = vpack.c.b16 %v3953, %v3945
    %v5546 = vpack.c.b16 %v3954, %v3946
    %v5547 = vpack.c.b16 %v3955, %v3947
    %v5548 = vpack.c.b16 %v3956, %v3948
    %v5549 = vpack.c.b16 %v3957, %v3949
    %v5550 = vpack.c.b16 %v3966, %v3958
    %v5551 = vpack.c.b16 %v3967, %v3959
    %v5552 = vpack.c.b16 %v3968, %v3960
    %v5553 = vpack.c.b16 %v3969, %v3961
    %v5554 = vpack.c.b16 %v3970, %v3962
    %v5555 = vpack.c.b16 %v3971, %v3963
    %v5556 = vpack.c.b16 %v3972, %v3964
    %v5557 = vpack.c.b16 %v3973, %v3965
    %v5558 = vpack.c.b16 %v3982, %v3974
    %v5559 = vpack.c.b16 %v3983, %v3975
    %v5560 = vpack.c.b16 %v3984, %v3976
    %v5561 = vpack.c.b16 %v3985, %v3977
    %v5562 = vpack.c.b16 %v3986, %v3978
    %v5563 = vpack.c.b16 %v3987, %v3979
    %v5564 = vpack.c.b16 %v3988, %v3980
    %v5565 = vpack.c.b16 %v3989, %v3981
    %v5566 = vpack.c.b16 %v3998, %v3990
    %v5567 = vpack.c.b16 %v3999, %v3991
    %v5568 = vpack.c.b16 %v4000, %v3992
    %v5569 = vpack.c.b16 %v4001, %v3993
    %v5570 = vpack.c.b16 %v4002, %v3994
    %v5571 = vpack.c.b16 %v4003, %v3995
    %v5572 = vpack.c.b16 %v4004, %v3996
    %v5573 = vpack.c.b16 %v4005, %v3997
    %v5574 = vpack.c.b16 %v4014, %v4006
    %v5575 = vpack.c.b16 %v4015, %v4007
    %v5576 = vpack.c.b16 %v4016, %v4008
    %v5577 = vpack.c.b16 %v4017, %v4009
    %v5578 = vpack.c.b16 %v4018, %v4010
    %v5579 = vpack.c.b16 %v4019, %v4011
    %v5580 = vpack.c.b16 %v4020, %v4012
    %v5581 = vpack.c.b16 %v4021, %v4013
    %v5582 = vpack.c.b16 %v4030, %v4022
    %v5583 = vpack.c.b16 %v4031, %v4023
    %v5584 = vpack.c.b16 %v4032, %v4024
    %v5585 = vpack.c.b16 %v4033, %v4025
    %v5586 = vpack.c.b16 %v4034, %v4026
    %v5587 = vpack.c.b16 %v4035, %v4027
    %v5588 = vpack.c.b16 %v4036, %v4028
    %v5589 = vpack.c.b16 %v4037, %v4029
    %v5590 = vpack.c.b16 %v4046, %v4038
    %v5591 = vpack.c.b16 %v4047, %v4039
    %v5592 = vpack.c.b16 %v4048, %v4040
    %v5593 = vpack.c.b16 %v4049, %v4041
    %v5594 = vpack.c.b16 %v4050, %v4042
    %v5595 = vpack.c.b16 %v4051, %v4043
    %v5596 = vpack.c.b16 %v4052, %v4044
    %v5597 = vpack.c.b16 %v4053, %v4045
    %v5598 = vpack.c.b16 %v4062, %v4054
    %v5599 = vpack.c.b16 %v4063, %v4055
    %v5600 = vpack.c.b16 %v4064, %v4056
    %v5601 = vpack.c.b16 %v4065, %v4057
    %v5602 = vpack.c.b16 %v4066, %v4058
    %v5603 = vpack.c.b16 %v4067, %v4059
    %v5604 = vpack.c.b16 %v4068, %v4060
    %v5605 = vpack.c.b16 %v4069, %v4061
    %v5606 = vpack.c.b16 %v4078, %v4070
    %v5607 = vpack.c.b16 %v4079, %v4071
    %v5608 = vpack.c.b16 %v4080, %v4072
    %v5609 = vpack.c.b16 %v4081, %v4073
    %v5610 = vpack.c.b16 %v4082, %v4074
    %v5611 = vpack.c.b16 %v4083, %v4075
    %v5612 = vpack.c.b16 %v4084, %v4076
    %v5613 = vpack.c.b16 %v4085, %v4077
    %v5614 = vpack.c.b16 %v4094, %v4086
    %v5615 = vpack.c.b16 %v4095, %v4087
    %v5616 = vpack.c.b16 %v4096, %v4088
    %v5617 = vpack.c.b16 %v4097, %v4089
    %v5618 = vpack.c.b16 %v4098, %v4090
    %v5619 = vpack.c.b16 %v4099, %v4091
    %v5620 = vpack.c.b16 %v4100, %v4092
    %v5621 = vpack.c.b16 %v4101, %v4093
    %v5622 = vpack.c.b16 %v4110, %v4102
    %v5623 = vpack.c.b16 %v4111, %v4103
    %v5624 = vpack.c.b16 %v4112, %v4104
    %v5625 = vpack.c.b16 %v4113, %v4105
    %v5626 = vpack.c.b16 %v4114, %v4106
    %v5627 = vpack.c.b16 %v4115, %v4107
    %v5628 = vpack.c.b16 %v4116, %v4108
    %v5629 = vpack.c.b16 %v4117, %v4109
    %v5630 = vpack.c.b16 %v4126, %v4118
    %v5631 = vpack.c.b16 %v4127, %v4119
    %v5632 = vpack.c.b16 %v4128, %v4120
    %v5633 = vpack.c.b16 %v4129, %v4121
    %v5634 = vpack.c.b16 %v4130, %v4122
    %v5635 = vpack.c.b16 %v4131, %v4123
    %v5636 = vpack.c.b16 %v4132, %v4124
    %v5637 = vpack.c.b16 %v4133, %v4125
    %v5638 = vpack.c.b16 %v4142, %v4134
    %v5639 = vpack.c.b16 %v4143, %v4135
    %v5640 = vpack.c.b16 %v4144, %v4136
    %v5641 = vpack.c.b16 %v4145, %v4137
    %v5642 = vpack.c.b16 %v4146, %v4138
    %v5643 = vpack.c.b16 %v4147, %v4139
    %v5644 = vpack.c.b16 %v4148, %v4140
    %v5645 = vpack.c.b16 %v4149, %v4141
    %v5646 = vpack.c.b16 %v4158, %v4150
    %v5647 = vpack.c.b16 %v4159, %v4151
    %v5648 = vpack.c.b16 %v4160, %v4152
    %v5649 = vpack.c.b16 %v4161, %v4153
    %v5650 = vpack.c.b16 %v4162, %v4154
    %v5651 = vpack.c.b16 %v4163, %v4155
    %v5652 = vpack.c.b16 %v4164, %v4156
    %v5653 = vpack.c.b16 %v4165, %v4157
    %v5654 = vpack.c.b16 %v4174, %v4166
    %v5655 = vpack.c.b16 %v4175, %v4167
    %v5656 = vpack.c.b16 %v4176, %v4168
    %v5657 = vpack.c.b16 %v4177, %v4169
    %v5658 = vpack.c.b16 %v4178, %v4170
    %v5659 = vpack.c.b16 %v4179, %v4171
    %v5660 = vpack.c.b16 %v4180, %v4172
    %v5661 = vpack.c.b16 %v4181, %v4173
    %v5662 = vpack.c.b16 %v4190, %v4182
    %v5663 = vpack.c.b16 %v4191, %v4183
    %v5664 = vpack.c.b16 %v4192, %v4184
    %v5665 = vpack.c.b16 %v4193, %v4185
    %v5666 = vpack.c.b16 %v4194, %v4186
    %v5667 = vpack.c.b16 %v4195, %v4187
    %v5668 = vpack.c.b16 %v4196, %v4188
    %v5669 = vpack.c.b16 %v4197, %v4189
    %v5670 = vpack.c.b16 %v4206, %v4198
    %v5671 = vpack.c.b16 %v4207, %v4199
    %v5672 = vpack.c.b16 %v4208, %v4200
    %v5673 = vpack.c.b16 %v4209, %v4201
    %v5674 = vpack.c.b16 %v4210, %v4202
    %v5675 = vpack.c.b16 %v4211, %v4203
    %v5676 = vpack.c.b16 %v4212, %v4204
    %v5677 = vpack.c.b16 %v4213, %v4205
    %v5678 = vpack.c.b16 %v4222, %v4214
    %v5679 = vpack.c.b16 %v4223, %v4215
    %v5680 = vpack.c.b16 %v4224, %v4216
    %v5681 = vpack.c.b16 %v4225, %v4217
    %v5682 = vpack.c.b16 %v4226, %v4218
    %v5683 = vpack.c.b16 %v4227, %v4219
    %v5684 = vpack.c.b16 %v4228, %v4220
    %v5685 = vpack.c.b16 %v4229, %v4221
    %v5686 = vpack.c.b16 %v4238, %v4230
    %v5687 = vpack.c.b16 %v4239, %v4231
    %v5688 = vpack.c.b16 %v4240, %v4232
    %v5689 = vpack.c.b16 %v4241, %v4233
    %v5690 = vpack.c.b16 %v4242, %v4234
    %v5691 = vpack.c.b16 %v4243, %v4235
    %v5692 = vpack.c.b16 %v4244, %v4236
    %v5693 = vpack.c.b16 %v4245, %v4237
    %v5694 = vpack.c.b16 %v4254, %v4246
    %v5695 = vpack.c.b16 %v4255, %v4247
    %v5696 = vpack.c.b16 %v4256, %v4248
    %v5697 = vpack.c.b16 %v4257, %v4249
    %v5698 = vpack.c.b16 %v4258, %v4250
    %v5699 = vpack.c.b16 %v4259, %v4251
    %v5700 = vpack.c.b16 %v4260, %v4252
    %v5701 = vpack.c.b16 %v4261, %v4253
    %v5702 = vpack.c.b16 %v4270, %v4262
    %v5703 = vpack.c.b16 %v4271, %v4263
    %v5704 = vpack.c.b16 %v4272, %v4264
    %v5705 = vpack.c.b16 %v4273, %v4265
    %v5706 = vpack.c.b16 %v4274, %v4266
    %v5707 = vpack.c.b16 %v4275, %v4267
    %v5708 = vpack.c.b16 %v4276, %v4268
    %v5709 = vpack.c.b16 %v4277, %v4269
    %v5710 = vpack.c.b16 %v4286, %v4278
    %v5711 = vpack.c.b16 %v4287, %v4279
    %v5712 = vpack.c.b16 %v4288, %v4280
    %v5713 = vpack.c.b16 %v4289, %v4281
    %v5714 = vpack.c.b16 %v4290, %v4282
    %v5715 = vpack.c.b16 %v4291, %v4283
    %v5716 = vpack.c.b16 %v4292, %v4284
    %v5717 = vpack.c.b16 %v4293, %v4285
    %v5718 = vpack.c.b16 %v4302, %v4294
    %v5719 = vpack.c.b16 %v4303, %v4295
    %v5720 = vpack.c.b16 %v4304, %v4296
    %v5721 = vpack.c.b16 %v4305, %v4297
    %v5722 = vpack.c.b16 %v4306, %v4298
    %v5723 = vpack.c.b16 %v4307, %v4299
    %v5724 = vpack.c.b16 %v4308, %v4300
    %v5725 = vpack.c.b16 %v4309, %v4301
    %v5726 = vpack.c.b16 %v4318, %v4310
    %v5727 = vpack.c.b16 %v4319, %v4311
    %v5728 = vpack.c.b16 %v4320, %v4312
    %v5729 = vpack.c.b16 %v4321, %v4313
    %v5730 = vpack.c.b16 %v4322, %v4314
    %v5731 = vpack.c.b16 %v4323, %v4315
    %v5732 = vpack.c.b16 %v4324, %v4316
    %v5733 = vpack.c.b16 %v4325, %v4317
    %v5734 = vpack.c.b16 %v4334, %v4326
    %v5735 = vpack.c.b16 %v4335, %v4327
    %v5736 = vpack.c.b16 %v4336, %v4328
    %v5737 = vpack.c.b16 %v4337, %v4329
    %v5738 = vpack.c.b16 %v4338, %v4330
    %v5739 = vpack.c.b16 %v4339, %v4331
    %v5740 = vpack.c.b16 %v4340, %v4332
    %v5741 = vpack.c.b16 %v4341, %v4333
    %v5742 = vpack.c.b16 %v4350, %v4342
    %v5743 = vpack.c.b16 %v4351, %v4343
    %v5744 = vpack.c.b16 %v4352, %v4344
    %v5745 = vpack.c.b16 %v4353, %v4345
    %v5746 = vpack.c.b16 %v4354, %v4346
    %v5747 = vpack.c.b16 %v4355, %v4347
    %v5748 = vpack.c.b16 %v4356, %v4348
    %v5749 = vpack.c.b16 %v4357, %v4349
    %v5750 = vpack.c.b16 %v4366, %v4358
    %v5751 = vpack.c.b16 %v4367, %v4359
    %v5752 = vpack.c.b16 %v4368, %v4360
    %v5753 = vpack.c.b16 %v4369, %v4361
    %v5754 = vpack.c.b16 %v4370, %v4362
    %v5755 = vpack.c.b16 %v4371, %v4363
    %v5756 = vpack.c.b16 %v4372, %v4364
    %v5757 = vpack.c.b16 %v4373, %v4365
    %v5758 = vpack.c.b16 %v4382, %v4374
    %v5759 = vpack.c.b16 %v4383, %v4375
    %v5760 = vpack.c.b16 %v4384, %v4376
    %v5761 = vpack.c.b16 %v4385, %v4377
    %v5762 = vpack.c.b16 %v4386, %v4378
    %v5763 = vpack.c.b16 %v4387, %v4379
    %v5764 = vpack.c.b16 %v4388, %v4380
    %v5765 = vpack.c.b16 %v4389, %v4381
    %v5766 = vpack.c.b16 %v4398, %v4390
    %v5767 = vpack.c.b16 %v4399, %v4391
    %v5768 = vpack.c.b16 %v4400, %v4392
    %v5769 = vpack.c.b16 %v4401, %v4393
    %v5770 = vpack.c.b16 %v4402, %v4394
    %v5771 = vpack.c.b16 %v4403, %v4395
    %v5772 = vpack.c.b16 %v4404, %v4396
    %v5773 = vpack.c.b16 %v4405, %v4397
    %v5774 = vpack.c.b16 %v4414, %v4406
    %v5775 = vpack.c.b16 %v4415, %v4407
    %v5776 = vpack.c.b16 %v4416, %v4408
    %v5777 = vpack.c.b16 %v4417, %v4409
    %v5778 = vpack.c.b16 %v4418, %v4410
    %v5779 = vpack.c.b16 %v4419, %v4411
    %v5780 = vpack.c.b16 %v4420, %v4412
    %v5781 = vpack.c.b16 %v4421, %v4413
    %v5782 = vpack.c.b16 %v4430, %v4422
    %v5783 = vpack.c.b16 %v4431, %v4423
    %v5784 = vpack.c.b16 %v4432, %v4424
    %v5785 = vpack.c.b16 %v4433, %v4425
    %v5786 = vpack.c.b16 %v4434, %v4426
    %v5787 = vpack.c.b16 %v4435, %v4427
    %v5788 = vpack.c.b16 %v4436, %v4428
    %v5789 = vpack.c.b16 %v4437, %v4429
    %v5790 = vpack.c.b16 %v4446, %v4438
    %v5791 = vpack.c.b16 %v4447, %v4439
    %v5792 = vpack.c.b16 %v4448, %v4440
    %v5793 = vpack.c.b16 %v4449, %v4441
    %v5794 = vpack.c.b16 %v4450, %v4442
    %v5795 = vpack.c.b16 %v4451, %v4443
    %v5796 = vpack.c.b16 %v4452, %v4444
    %v5797 = vpack.c.b16 %v4453, %v4445
    %v5798 = vpack.c.b16 %v4462, %v4454
    %v5799 = vpack.c.b16 %v4463, %v4455
    %v5800 = vpack.c.b16 %v4464, %v4456
    %v5801 = vpack.c.b16 %v4465, %v4457
    %v5802 = vpack.c.b16 %v4466, %v4458
    %v5803 = vpack.c.b16 %v4467, %v4459
    %v5804 = vpack.c.b16 %v4468, %v4460
    %v5805 = vpack.c.b16 %v4469, %v4461
    %v5806 = vpack.c.b16 %v4478, %v4470
    %v5807 = vpack.c.b16 %v4479, %v4471
    %v5808 = vpack.c.b16 %v4480, %v4472
    %v5809 = vpack.c.b16 %v4481, %v4473
    %v5810 = vpack.c.b16 %v4482, %v4474
    %v5811 = vpack.c.b16 %v4483, %v4475
    %v5812 = vpack.c.b16 %v4484, %v4476
    %v5813 = vpack.c.b16 %v4485, %v4477
    %v5814 = vpack.c.b16 %v4494, %v4486
    %v5815 = vpack.c.b16 %v4495, %v4487
    %v5816 = vpack.c.b16 %v4496, %v4488
    %v5817 = vpack.c.b16 %v4497, %v4489
    %v5818 = vpack.c.b16 %v4498, %v4490
    %v5819 = vpack.c.b16 %v4499, %v4491
    %v5820 = vpack.c.b16 %v4500, %v4492
    %v5821 = vpack.c.b16 %v4501, %v4493
    %v5822 = vpack.c.b16 %v4510, %v4502
    %v5823 = vpack.c.b16 %v4511, %v4503
    %v5824 = vpack.c.b16 %v4512, %v4504
    %v5825 = vpack.c.b16 %v4513, %v4505
    %v5826 = vpack.c.b16 %v4514, %v4506
    %v5827 = vpack.c.b16 %v4515, %v4507
    %v5828 = vpack.c.b16 %v4516, %v4508
    %v5829 = vpack.c.b16 %v4517, %v4509
    %v5830 = vpack.c.b16 %v4526, %v4518
    %v5831 = vpack.c.b16 %v4527, %v4519
    %v5832 = vpack.c.b16 %v4528, %v4520
    %v5833 = vpack.c.b16 %v4529, %v4521
    %v5834 = vpack.c.b16 %v4530, %v4522
    %v5835 = vpack.c.b16 %v4531, %v4523
    %v5836 = vpack.c.b16 %v4532, %v4524
    %v5837 = vpack.c.b16 %v4533, %v4525
    %v5838 = vpack.c.b16 %v4542, %v4534
    %v5839 = vpack.c.b16 %v4543, %v4535
    %v5840 = vpack.c.b16 %v4544, %v4536
    %v5841 = vpack.c.b16 %v4545, %v4537
    %v5842 = vpack.c.b16 %v4546, %v4538
    %v5843 = vpack.c.b16 %v4547, %v4539
    %v5844 = vpack.c.b16 %v4548, %v4540
    %v5845 = vpack.c.b16 %v4549, %v4541
    %v5846 = vpack.c.b16 %v4558, %v4550
    %v5847 = vpack.c.b16 %v4559, %v4551
    %v5848 = vpack.c.b16 %v4560, %v4552
    %v5849 = vpack.c.b16 %v4561, %v4553
    %v5850 = vpack.c.b16 %v4562, %v4554
    %v5851 = vpack.c.b16 %v4563, %v4555
    %v5852 = vpack.c.b16 %v4564, %v4556
    %v5853 = vpack.c.b16 %v4565, %v4557
    %v5854 = vpack.c.b16 %v4574, %v4566
    %v5855 = vpack.c.b16 %v4575, %v4567
    %v5856 = vpack.c.b16 %v4576, %v4568
    %v5857 = vpack.c.b16 %v4577, %v4569
    %v5858 = vpack.c.b16 %v4578, %v4570
    %v5859 = vpack.c.b16 %v4579, %v4571
    %v5860 = vpack.c.b16 %v4580, %v4572
    %v5861 = vpack.c.b16 %v4581, %v4573
    %v5862 = vpack.c.b16 %v4590, %v4582
    %v5863 = vpack.c.b16 %v4591, %v4583
    %v5864 = vpack.c.b16 %v4592, %v4584
    %v5865 = vpack.c.b16 %v4593, %v4585
    %v5866 = vpack.c.b16 %v4594, %v4586
    %v5867 = vpack.c.b16 %v4595, %v4587
    %v5868 = vpack.c.b16 %v4596, %v4588
    %v5869 = vpack.c.b16 %v4597, %v4589
    %v5870 = vpack.c.b16 %v4606, %v4598
    %v5871 = vpack.c.b16 %v4607, %v4599
    %v5872 = vpack.c.b16 %v4608, %v4600
    %v5873 = vpack.c.b16 %v4609, %v4601
    %v5874 = vpack.c.b16 %v4610, %v4602
    %v5875 = vpack.c.b16 %v4611, %v4603
    %v5876 = vpack.c.b16 %v4612, %v4604
    %v5877 = vpack.c.b16 %v4613, %v4605
    %v5878 = vpack.c.b16 %v4622, %v4614
    %v5879 = vpack.c.b16 %v4623, %v4615
    %v5880 = vpack.c.b16 %v4624, %v4616
    %v5881 = vpack.c.b16 %v4625, %v4617
    %v5882 = vpack.c.b16 %v4626, %v4618
    %v5883 = vpack.c.b16 %v4627, %v4619
    %v5884 = vpack.c.b16 %v4628, %v4620
    %v5885 = vpack.c.b16 %v4629, %v4621
    %v5886 = vpack.c.b16 %v4638, %v4630
    %v5887 = vpack.c.b16 %v4639, %v4631
    %v5888 = vpack.c.b16 %v4640, %v4632
    %v5889 = vpack.c.b16 %v4641, %v4633
    %v5890 = vpack.c.b16 %v4642, %v4634
    %v5891 = vpack.c.b16 %v4643, %v4635
    %v5892 = vpack.c.b16 %v4644, %v4636
    %v5893 = vpack.c.b16 %v4645, %v4637
    %v5894 = vpack.c.b16 %v4654, %v4646
    %v5895 = vpack.c.b16 %v4655, %v4647
    %v5896 = vpack.c.b16 %v4656, %v4648
    %v5897 = vpack.c.b16 %v4657, %v4649
    %v5898 = vpack.c.b16 %v4658, %v4650
    %v5899 = vpack.c.b16 %v4659, %v4651
    %v5900 = vpack.c.b16 %v4660, %v4652
    %v5901 = vpack.c.b16 %v4661, %v4653
    %v5902 = vpack.c.b16 %v4670, %v4662
    %v5903 = vpack.c.b16 %v4671, %v4663
    %v5904 = vpack.c.b16 %v4672, %v4664
    %v5905 = vpack.c.b16 %v4673, %v4665
    %v5906 = vpack.c.b16 %v4674, %v4666
    %v5907 = vpack.c.b16 %v4675, %v4667
    %v5908 = vpack.c.b16 %v4676, %v4668
    %v5909 = vpack.c.b16 %v4677, %v4669
    %v5910 = vpack.c.b16 %v4686, %v4678
    %v5911 = vpack.c.b16 %v4687, %v4679
    %v5912 = vpack.c.b16 %v4688, %v4680
    %v5913 = vpack.c.b16 %v4689, %v4681
    %v5914 = vpack.c.b16 %v4690, %v4682
    %v5915 = vpack.c.b16 %v4691, %v4683
    %v5916 = vpack.c.b16 %v4692, %v4684
    %v5917 = vpack.c.b16 %v4693, %v4685
    %v5918 = vpack.c.b16 %v4702, %v4694
    %v5919 = vpack.c.b16 %v4703, %v4695
    %v5920 = vpack.c.b16 %v4704, %v4696
    %v5921 = vpack.c.b16 %v4705, %v4697
    %v5922 = vpack.c.b16 %v4706, %v4698
    %v5923 = vpack.c.b16 %v4707, %v4699
    %v5924 = vpack.c.b16 %v4708, %v4700
    %v5925 = vpack.c.b16 %v4709, %v4701
    %v5926 = vpack.c.b16 %v4718, %v4710
    %v5927 = vpack.c.b16 %v4719, %v4711
    %v5928 = vpack.c.b16 %v4720, %v4712
    %v5929 = vpack.c.b16 %v4721, %v4713
    %v5930 = vpack.c.b16 %v4722, %v4714
    %v5931 = vpack.c.b16 %v4723, %v4715
    %v5932 = vpack.c.b16 %v4724, %v4716
    %v5933 = vpack.c.b16 %v4725, %v4717
    %v5934 = vpack.c.b16 %v4734, %v4726
    %v5935 = vpack.c.b16 %v4735, %v4727
    %v5936 = vpack.c.b16 %v4736, %v4728
    %v5937 = vpack.c.b16 %v4737, %v4729
    %v5938 = vpack.c.b16 %v4738, %v4730
    %v5939 = vpack.c.b16 %v4739, %v4731
    %v5940 = vpack.c.b16 %v4740, %v4732
    %v5941 = vpack.c.b16 %v4741, %v4733
    %v5942 = vpack.c.b16 %v4750, %v4742
    %v5943 = vpack.c.b16 %v4751, %v4743
    %v5944 = vpack.c.b16 %v4752, %v4744
    %v5945 = vpack.c.b16 %v4753, %v4745
    %v5946 = vpack.c.b16 %v4754, %v4746
    %v5947 = vpack.c.b16 %v4755, %v4747
    %v5948 = vpack.c.b16 %v4756, %v4748
    %v5949 = vpack.c.b16 %v4757, %v4749
    %v5950 = vpack.c.b16 %v4766, %v4758
    %v5951 = vpack.c.b16 %v4767, %v4759
    %v5952 = vpack.c.b16 %v4768, %v4760
    %v5953 = vpack.c.b16 %v4769, %v4761
    %v5954 = vpack.c.b16 %v4770, %v4762
    %v5955 = vpack.c.b16 %v4771, %v4763
    %v5956 = vpack.c.b16 %v4772, %v4764
    %v5957 = vpack.c.b16 %v4773, %v4765
    %v5958 = vpack.c.b16 %v4782, %v4774
    %v5959 = vpack.c.b16 %v4783, %v4775
    %v5960 = vpack.c.b16 %v4784, %v4776
    %v5961 = vpack.c.b16 %v4785, %v4777
    %v5962 = vpack.c.b16 %v4786, %v4778
    %v5963 = vpack.c.b16 %v4787, %v4779
    %v5964 = vpack.c.b16 %v4788, %v4780
    %v5965 = vpack.c.b16 %v4789, %v4781
    %v5966 = vpack.c.b16 %v4798, %v4790
    %v5967 = vpack.c.b16 %v4799, %v4791
    %v5968 = vpack.c.b16 %v4800, %v4792
    %v5969 = vpack.c.b16 %v4801, %v4793
    %v5970 = vpack.c.b16 %v4802, %v4794
    %v5971 = vpack.c.b16 %v4803, %v4795
    %v5972 = vpack.c.b16 %v4804, %v4796
    %v5973 = vpack.c.b16 %v4805, %v4797
    %v5974 = vpack.c.b16 %v4814, %v4806
    %v5975 = vpack.c.b16 %v4815, %v4807
    %v5976 = vpack.c.b16 %v4816, %v4808
    %v5977 = vpack.c.b16 %v4817, %v4809
    %v5978 = vpack.c.b16 %v4818, %v4810
    %v5979 = vpack.c.b16 %v4819, %v4811
    %v5980 = vpack.c.b16 %v4820, %v4812
    %v5981 = vpack.c.b16 %v4821, %v4813
    %v5982 = vpack.c.b16 %v4830, %v4822
    %v5983 = vpack.c.b16 %v4831, %v4823
    %v5984 = vpack.c.b16 %v4832, %v4824
    %v5985 = vpack.c.b16 %v4833, %v4825
    %v5986 = vpack.c.b16 %v4834, %v4826
    %v5987 = vpack.c.b16 %v4835, %v4827
    %v5988 = vpack.c.b16 %v4836, %v4828
    %v5989 = vpack.c.b16 %v4837, %v4829
    %v5990 = vpack.c.b16 %v4846, %v4838
    %v5991 = vpack.c.b16 %v4847, %v4839
    %v5992 = vpack.c.b16 %v4848, %v4840
    %v5993 = vpack.c.b16 %v4849, %v4841
    %v5994 = vpack.c.b16 %v4850, %v4842
    %v5995 = vpack.c.b16 %v4851, %v4843
    %v5996 = vpack.c.b16 %v4852, %v4844
    %v5997 = vpack.c.b16 %v4853, %v4845
    %v5998 = vpack.c.b16 %v4862, %v4854
    %v5999 = vpack.c.b16 %v4863, %v4855
    %v6000 = vpack.c.b16 %v4864, %v4856
    %v6001 = vpack.c.b16 %v4865, %v4857
    %v6002 = vpack.c.b16 %v4866, %v4858
    %v6003 = vpack.c.b16 %v4867, %v4859
    %v6004 = vpack.c.b16 %v4868, %v4860
    %v6005 = vpack.c.b16 %v4869, %v4861
    %v6006 = vpack.c.b16 %v4878, %v4870
    %v6007 = vpack.c.b16 %v4879, %v4871
    %v6008 = vpack.c.b16 %v4880, %v4872
    %v6009 = vpack.c.b16 %v4881, %v4873
    %v6010 = vpack.c.b16 %v4882, %v4874
    %v6011 = vpack.c.b16 %v4883, %v4875
    %v6012 = vpack.c.b16 %v4884, %v4876
    %v6013 = vpack.c.b16 %v4885, %v4877
    %v6014 = vpack.c.b16 %v4894, %v4886
    %v6015 = vpack.c.b16 %v4895, %v4887
    %v6016 = vpack.c.b16 %v4896, %v4888
    %v6017 = vpack.c.b16 %v4897, %v4889
    %v6018 = vpack.c.b16 %v4898, %v4890
    %v6019 = vpack.c.b16 %v4899, %v4891
    %v6020 = vpack.c.b16 %v4900, %v4892
    %v6021 = vpack.c.b16 %v4901, %v4893
    %v6022 = vpack.c.b16 %v4910, %v4902
    %v6023 = vpack.c.b16 %v4911, %v4903
    %v6024 = vpack.c.b16 %v4912, %v4904
    %v6025 = vpack.c.b16 %v4913, %v4905
    %v6026 = vpack.c.b16 %v4914, %v4906
    %v6027 = vpack.c.b16 %v4915, %v4907
    %v6028 = vpack.c.b16 %v4916, %v4908
    %v6029 = vpack.c.b16 %v4917, %v4909
    %v6030 = vpack.c.b16 %v4926, %v4918
    %v6031 = vpack.c.b16 %v4927, %v4919
    %v6032 = vpack.c.b16 %v4928, %v4920
    %v6033 = vpack.c.b16 %v4929, %v4921
    %v6034 = vpack.c.b16 %v4930, %v4922
    %v6035 = vpack.c.b16 %v4931, %v4923
    %v6036 = vpack.c.b16 %v4932, %v4924
    %v6037 = vpack.c.b16 %v4933, %v4925
    %v6038 = vpack.c.b16 %v4942, %v4934
    %v6039 = vpack.c.b16 %v4943, %v4935
    %v6040 = vpack.c.b16 %v4944, %v4936
    %v6041 = vpack.c.b16 %v4945, %v4937
    %v6042 = vpack.c.b16 %v4946, %v4938
    %v6043 = vpack.c.b16 %v4947, %v4939
    %v6044 = vpack.c.b16 %v4948, %v4940
    %v6045 = vpack.c.b16 %v4949, %v4941
    %v6046 = vpack.c.b16 %v4958, %v4950
    %v6047 = vpack.c.b16 %v4959, %v4951
    %v6048 = vpack.c.b16 %v4960, %v4952
    %v6049 = vpack.c.b16 %v4961, %v4953
    %v6050 = vpack.c.b16 %v4962, %v4954
    %v6051 = vpack.c.b16 %v4963, %v4955
    %v6052 = vpack.c.b16 %v4964, %v4956
    %v6053 = vpack.c.b16 %v4965, %v4957
    %v6054 = vpack.c.b16 %v4974, %v4966
    %v6055 = vpack.c.b16 %v4975, %v4967
    %v6056 = vpack.c.b16 %v4976, %v4968
    %v6057 = vpack.c.b16 %v4977, %v4969
    %v6058 = vpack.c.b16 %v4978, %v4970
    %v6059 = vpack.c.b16 %v4979, %v4971
    %v6060 = vpack.c.b16 %v4980, %v4972
    %v6061 = vpack.c.b16 %v4981, %v4973
    %v6062 = vpack.c.b16 %v4990, %v4982
    %v6063 = vpack.c.b16 %v4991, %v4983
    %v6064 = vpack.c.b16 %v4992, %v4984
    %v6065 = vpack.c.b16 %v4993, %v4985
    %v6066 = vpack.c.b16 %v4994, %v4986
    %v6067 = vpack.c.b16 %v4995, %v4987
    %v6068 = vpack.c.b16 %v4996, %v4988
    %v6069 = vpack.c.b16 %v4997, %v4989
    %v6070 = vpack.c.b16 %v5006, %v4998
    %v6071 = vpack.c.b16 %v5007, %v4999
    %v6072 = vpack.c.b16 %v5008, %v5000
    %v6073 = vpack.c.b16 %v5009, %v5001
    %v6074 = vpack.c.b16 %v5010, %v5002
    %v6075 = vpack.c.b16 %v5011, %v5003
    %v6076 = vpack.c.b16 %v5012, %v5004
    %v6077 = vpack.c.b16 %v5013, %v5005
    %v6078 = vpack.c.b16 %v5022, %v5014
    %v6079 = vpack.c.b16 %v5023, %v5015
    %v6080 = vpack.c.b16 %v5024, %v5016
    %v6081 = vpack.c.b16 %v5025, %v5017
    %v6082 = vpack.c.b16 %v5026, %v5018
    %v6083 = vpack.c.b16 %v5027, %v5019
    %v6084 = vpack.c.b16 %v5028, %v5020
    %v6085 = vpack.c.b16 %v5029, %v5021
    %v6086 = vpack.c.b16 %v5038, %v5030
    %v6087 = vpack.c.b16 %v5039, %v5031
    %v6088 = vpack.c.b16 %v5040, %v5032
    %v6089 = vpack.c.b16 %v5041, %v5033
    %v6090 = vpack.c.b16 %v5042, %v5034
    %v6091 = vpack.c.b16 %v5043, %v5035
    %v6092 = vpack.c.b16 %v5044, %v5036
    %v6093 = vpack.c.b16 %v5045, %v5037
    %v6094 = vpack.c.b16 %v5054, %v5046
    %v6095 = vpack.c.b16 %v5055, %v5047
    %v6096 = vpack.c.b16 %v5056, %v5048
    %v6097 = vpack.c.b16 %v5057, %v5049
    %v6098 = vpack.c.b16 %v5058, %v5050
    %v6099 = vpack.c.b16 %v5059, %v5051
    %v6100 = vpack.c.b16 %v5060, %v5052
    %v6101 = vpack.c.b16 %v5061, %v5053
    %v6102 = vpack.c.b16 %v5070, %v5062
    %v6103 = vpack.c.b16 %v5071, %v5063
    %v6104 = vpack.c.b16 %v5072, %v5064
    %v6105 = vpack.c.b16 %v5073, %v5065
    %v6106 = vpack.c.b16 %v5074, %v5066
    %v6107 = vpack.c.b16 %v5075, %v5067
    %v6108 = vpack.c.b16 %v5076, %v5068
    %v6109 = vpack.c.b16 %v5077, %v5069
    %v6110 = vpack.c.b16 %v5086, %v5078
    %v6111 = vpack.c.b16 %v5087, %v5079
    %v6112 = vpack.c.b16 %v5088, %v5080
    %v6113 = vpack.c.b16 %v5089, %v5081
    %v6114 = vpack.c.b16 %v5090, %v5082
    %v6115 = vpack.c.b16 %v5091, %v5083
    %v6116 = vpack.c.b16 %v5092, %v5084
    %v6117 = vpack.c.b16 %v5093, %v5085
    %7142 = vmatprep.subr.bf16.mxu0 %v5095
    %7143 = vmatpush1.bf16.msra.mxu0 %v5094
    %7144 = vmatprep.subr.bf16.mxu0 %v5103
    %7145 = vmatpush1.bf16.msra.mxu0 %v5102
    %7146 = vmatprep.subr.bf16.mxu0 %v5111
    %7147 = vmatpush1.bf16.msra.mxu0 %v5110
    %7148 = vmatprep.subr.bf16.mxu0 %v5119
    %7149 = vmatpush1.bf16.msra.mxu0 %v5118
    %7150 = vmatprep.subr.bf16.mxu0 %v5127
    %7151 = vmatpush1.bf16.msra.mxu0 %v5126
    %7152 = vmatprep.subr.bf16.mxu0 %v5135
    %7153 = vmatpush1.bf16.msra.mxu0 %v5134
    %7154 = vmatprep.subr.bf16.mxu0 %v5143
    %7155 = vmatpush1.bf16.msra.mxu0 %v5142
    %7156 = vmatprep.subr.bf16.mxu0 %v5151
    %7157 = vmatpush1.bf16.msra.mxu0 %v5150
    %7158 = vmatprep.subr.bf16.mxu0 %v5159
    %7159 = vmatpush1.bf16.msra.mxu0 %v5158
    %7160 = vmatprep.subr.bf16.mxu0 %v5167
    %7161 = vmatpush1.bf16.msra.mxu0 %v5166
    %7162 = vmatprep.subr.bf16.mxu0 %v5175
    %7163 = vmatpush1.bf16.msra.mxu0 %v5174
    %7164 = vmatprep.subr.bf16.mxu0 %v5183
    %7165 = vmatpush1.bf16.msra.mxu0 %v5182
    %7166 = vmatprep.subr.bf16.mxu0 %v5191
    %7167 = vmatpush1.bf16.msra.mxu0 %v5190
    %7168 = vmatprep.subr.bf16.mxu0 %v5199
    %7169 = vmatpush1.bf16.msra.mxu0 %v5198
    %7170 = vmatprep.subr.bf16.mxu0 %v5207
    %7171 = vmatpush1.bf16.msra.mxu0 %v5206
    %7172 = vmatprep.subr.bf16.mxu0 %v5215
    %7173 = vmatpush1.bf16.msra.mxu0 %v5214
    %7174 = vmatprep.mubr.bf16.mxu0 %v941
    %7175 = vmatmul.mubr.bf16.gmra.mrb[0].mxu0 %v940
    %v7176 = vpop.f32.mrb[0].mxu0
    %v7177 = vadd.f32 %v1985, %v7176
    %v7178 = vpop.f32.mrb[0].mxu0
    %v7179 = vadd.f32 %v1989, %v7178
    %v7180 = vpop.f32.mrb[0].mxu0
    %v7181 = vpop.f32.mrb[0].mxu0
    %7182 = vdwg.mxu0
    %7183 = vmatprep.subr.bf16.mxu0 %v5223
    %7184 = vmatpush1.bf16.msra.mxu0 %v5222
    %7185 = vmatprep.subr.bf16.mxu0 %v5231
    %7186 = vmatpush1.bf16.msra.mxu0 %v5230
    %7187 = vmatprep.subr.bf16.mxu0 %v5239
    %7188 = vmatpush1.bf16.msra.mxu0 %v5238
    %7189 = vmatprep.subr.bf16.mxu0 %v5247
    %7190 = vmatpush1.bf16.msra.mxu0 %v5246
    %7191 = vmatprep.subr.bf16.mxu0 %v5255
    %7192 = vmatpush1.bf16.msra.mxu0 %v5254
    %7193 = vmatprep.subr.bf16.mxu0 %v5263
    %7194 = vmatpush1.bf16.msra.mxu0 %v5262
    %7195 = vmatprep.subr.bf16.mxu0 %v5271
    %7196 = vmatpush1.bf16.msra.mxu0 %v5270
    %7197 = vmatprep.subr.bf16.mxu0 %v5279
    %7198 = vmatpush1.bf16.msra.mxu0 %v5278
    %7199 = vmatprep.subr.bf16.mxu0 %v5287
    %7200 = vmatpush1.bf16.msra.mxu0 %v5286
    %7201 = vmatprep.subr.bf16.mxu0 %v5295
    %7202 = vmatpush1.bf16.msra.mxu0 %v5294
    %7203 = vmatprep.subr.bf16.mxu0 %v5303
    %7204 = vmatpush1.bf16.msra.mxu0 %v5302
    %7205 = vmatprep.subr.bf16.mxu0 %v5311
    %7206 = vmatpush1.bf16.msra.mxu0 %v5310
    %7207 = vmatprep.subr.bf16.mxu0 %v5319
    %7208 = vmatpush1.bf16.msra.mxu0 %v5318
    %7209 = vmatprep.subr.bf16.mxu0 %v5327
    %7210 = vmatpush1.bf16.msra.mxu0 %v5326
    %7211 = vmatprep.subr.bf16.mxu0 %v5335
    %7212 = vmatpush1.bf16.msra.mxu0 %v5334
    %7213 = vmatprep.subr.bf16.mxu0 %v5343
    %7214 = vmatpush1.bf16.msra.mxu0 %v5342
    %7215 = vmatprep.mubr.bf16.mxu0 %v943
    %7216 = vmatmul.mubr.bf16.gmra.mrb[0].mxu0 %v942
    %v7217 = vpop.f32.mrb[0].mxu0
    %v7218 = vadd.f32 %v7177, %v7217
    %v7219 = vpop.f32.mrb[0].mxu0
    %v7220 = vadd.f32 %v7179, %v7219
    %v7221 = vpop.f32.mrb[0].mxu0
    %v7222 = vpop.f32.mrb[0].mxu0
    %7223 = vdwg.mxu0
    %7224 = vmatprep.subr.bf16.mxu0 %v5351
    %7225 = vmatpush1.bf16.msra.mxu0 %v5350
    %7226 = vmatprep.subr.bf16.mxu0 %v5359
    %7227 = vmatpush1.bf16.msra.mxu0 %v5358
    %7228 = vmatprep.subr.bf16.mxu0 %v5367
    %7229 = vmatpush1.bf16.msra.mxu0 %v5366
    %7230 = vmatprep.subr.bf16.mxu0 %v5375
    %7231 = vmatpush1.bf16.msra.mxu0 %v5374
    %7232 = vmatprep.subr.bf16.mxu0 %v5383
    %7233 = vmatpush1.bf16.msra.mxu0 %v5382
    %7234 = vmatprep.subr.bf16.mxu0 %v5391
    %7235 = vmatpush1.bf16.msra.mxu0 %v5390
    %7236 = vmatprep.subr.bf16.mxu0 %v5399
    %7237 = vmatpush1.bf16.msra.mxu0 %v5398
    %7238 = vmatprep.subr.bf16.mxu0 %v5407
    %7239 = vmatpush1.bf16.msra.mxu0 %v5406
    %7240 = vmatprep.subr.bf16.mxu0 %v5415
    %7241 = vmatpush1.bf16.msra.mxu0 %v5414
    %7242 = vmatprep.subr.bf16.mxu0 %v5423
    %7243 = vmatpush1.bf16.msra.mxu0 %v5422
    %7244 = vmatprep.subr.bf16.mxu0 %v5431
    %7245 = vmatpush1.bf16.msra.mxu0 %v5430
    %7246 = vmatprep.subr.bf16.mxu0 %v5439
    %7247 = vmatpush1.bf16.msra.mxu0 %v5438
    %7248 = vmatprep.subr.bf16.mxu0 %v5447
    %7249 = vmatpush1.bf16.msra.mxu0 %v5446
    %7250 = vmatprep.subr.bf16.mxu0 %v5455
    %7251 = vmatpush1.bf16.msra.mxu0 %v5454
    %7252 = vmatprep.subr.bf16.mxu0 %v5463
    %7253 = vmatpush1.bf16.msra.mxu0 %v5462
    %7254 = vmatprep.subr.bf16.mxu0 %v5471
    %7255 = vmatpush1.bf16.msra.mxu0 %v5470
    %7256 = vmatprep.mubr.bf16.mxu0 %v945
    %7257 = vmatmul.mubr.bf16.gmra.mrb[0].mxu0 %v944
    %v7258 = vpop.f32.mrb[0].mxu0
    %v7259 = vadd.f32 %v7218, %v7258
    %v7260 = vpop.f32.mrb[0].mxu0
    %v7261 = vadd.f32 %v7220, %v7260
    %v7262 = vpop.f32.mrb[0].mxu0
    %v7263 = vpop.f32.mrb[0].mxu0
    %7264 = vdwg.mxu0
    %7265 = vmatprep.subr.bf16.mxu0 %v5479
    %7266 = vmatpush1.bf16.msra.mxu0 %v5478
    %7267 = vmatprep.subr.bf16.mxu0 %v5487
    %7268 = vmatpush1.bf16.msra.mxu0 %v5486
    %7269 = vmatprep.subr.bf16.mxu0 %v5495
    %7270 = vmatpush1.bf16.msra.mxu0 %v5494
    %7271 = vmatprep.subr.bf16.mxu0 %v5503
    %7272 = vmatpush1.bf16.msra.mxu0 %v5502
    %7273 = vmatprep.subr.bf16.mxu0 %v5511
    %7274 = vmatpush1.bf16.msra.mxu0 %v5510
    %7275 = vmatprep.subr.bf16.mxu0 %v5519
    %7276 = vmatpush1.bf16.msra.mxu0 %v5518
    %7277 = vmatprep.subr.bf16.mxu0 %v5527
    %7278 = vmatpush1.bf16.msra.mxu0 %v5526
    %7279 = vmatprep.subr.bf16.mxu0 %v5535
    %7280 = vmatpush1.bf16.msra.mxu0 %v5534
    %7281 = vmatprep.subr.bf16.mxu0 %v5543
    %7282 = vmatpush1.bf16.msra.mxu0 %v5542
    %7283 = vmatprep.subr.bf16.mxu0 %v5551
    %7284 = vmatpush1.bf16.msra.mxu0 %v5550
    %7285 = vmatprep.subr.bf16.mxu0 %v5559
    %7286 = vmatpush1.bf16.msra.mxu0 %v5558
    %7287 = vmatprep.subr.bf16.mxu0 %v5567
    %7288 = vmatpush1.bf16.msra.mxu0 %v5566
    %7289 = vmatprep.subr.bf16.mxu0 %v5575
    %7290 = vmatpush1.bf16.msra.mxu0 %v5574
    %7291 = vmatprep.subr.bf16.mxu0 %v5583
    %7292 = vmatpush1.bf16.msra.mxu0 %v5582
    %7293 = vmatprep.subr.bf16.mxu0 %v5591
    %7294 = vmatpush1.bf16.msra.mxu0 %v5590
    %7295 = vmatprep.subr.bf16.mxu0 %v5599
    %7296 = vmatpush1.bf16.msra.mxu0 %v5598
    %7297 = vmatprep.mubr.bf16.mxu0 %v947
    %7298 = vmatmul.mubr.bf16.gmra.mrb[0].mxu0 %v946
    %v7299 = vpop.f32.mrb[0].mxu0
    %v7300 = vadd.f32 %v7259, %v7299
    %v7301 = vpop.f32.mrb[0].mxu0
    %v7302 = vadd.f32 %v7261, %v7301
    %v7303 = vpop.f32.mrb[0].mxu0
    %v7304 = vpop.f32.mrb[0].mxu0
    %7305 = vdwg.mxu0
    %7306 = vmatprep.subr.bf16.mxu0 %v5607
    %7307 = vmatpush1.bf16.msra.mxu0 %v5606
    %7308 = vmatprep.subr.bf16.mxu0 %v5615
    %7309 = vmatpush1.bf16.msra.mxu0 %v5614
    %7310 = vmatprep.subr.bf16.mxu0 %v5623
    %7311 = vmatpush1.bf16.msra.mxu0 %v5622
    %7312 = vmatprep.subr.bf16.mxu0 %v5631
    %7313 = vmatpush1.bf16.msra.mxu0 %v5630
    %7314 = vmatprep.subr.bf16.mxu0 %v5639
    %7315 = vmatpush1.bf16.msra.mxu0 %v5638
    %7316 = vmatprep.subr.bf16.mxu0 %v5647
    %7317 = vmatpush1.bf16.msra.mxu0 %v5646
    %7318 = vmatprep.subr.bf16.mxu0 %v5655
    %7319 = vmatpush1.bf16.msra.mxu0 %v5654
    %7320 = vmatprep.subr.bf16.mxu0 %v5663
    %7321 = vmatpush1.bf16.msra.mxu0 %v5662
    %7322 = vmatprep.subr.bf16.mxu0 %v5671
    %7323 = vmatpush1.bf16.msra.mxu0 %v5670
    %7324 = vmatprep.subr.bf16.mxu0 %v5679
    %7325 = vmatpush1.bf16.msra.mxu0 %v5678
    %7326 = vmatprep.subr.bf16.mxu0 %v5687
    %7327 = vmatpush1.bf16.msra.mxu0 %v5686
    %7328 = vmatprep.subr.bf16.mxu0 %v5695
    %7329 = vmatpush1.bf16.msra.mxu0 %v5694
    %7330 = vmatprep.subr.bf16.mxu0 %v5703
    %7331 = vmatpush1.bf16.msra.mxu0 %v5702
    %7332 = vmatprep.subr.bf16.mxu0 %v5711
    %7333 = vmatpush1.bf16.msra.mxu0 %v5710
    %7334 = vmatprep.subr.bf16.mxu0 %v5719
    %7335 = vmatpush1.bf16.msra.mxu0 %v5718
    %7336 = vmatprep.subr.bf16.mxu0 %v5727
    %7337 = vmatpush1.bf16.msra.mxu0 %v5726
    %7338 = vmatprep.mubr.bf16.mxu0 %v949
    %7339 = vmatmul.mubr.bf16.gmra.mrb[0].mxu0 %v948
    %v7340 = vpop.f32.mrb[0].mxu0
    %v7341 = vadd.f32 %v7300, %v7340
    %v7342 = vpop.f32.mrb[0].mxu0
    %v7343 = vadd.f32 %v7302, %v7342
    %v7344 = vpop.f32.mrb[0].mxu0
    %v7345 = vpop.f32.mrb[0].mxu0
    %7346 = vdwg.mxu0
    %7347 = vmatprep.subr.bf16.mxu0 %v5735
    %7348 = vmatpush1.bf16.msra.mxu0 %v5734
    %7349 = vmatprep.subr.bf16.mxu0 %v5743
    %7350 = vmatpush1.bf16.msra.mxu0 %v5742
    %7351 = vmatprep.subr.bf16.mxu0 %v5751
    %7352 = vmatpush1.bf16.msra.mxu0 %v5750
    %7353 = vmatprep.subr.bf16.mxu0 %v5759
    %7354 = vmatpush1.bf16.msra.mxu0 %v5758
    %7355 = vmatprep.subr.bf16.mxu0 %v5767
    %7356 = vmatpush1.bf16.msra.mxu0 %v5766
    %7357 = vmatprep.subr.bf16.mxu0 %v5775
    %7358 = vmatpush1.bf16.msra.mxu0 %v5774
    %7359 = vmatprep.subr.bf16.mxu0 %v5783
    %7360 = vmatpush1.bf16.msra.mxu0 %v5782
    %7361 = vmatprep.subr.bf16.mxu0 %v5791
    %7362 = vmatpush1.bf16.msra.mxu0 %v5790
    %7363 = vmatprep.subr.bf16.mxu0 %v5799
    %7364 = vmatpush1.bf16.msra.mxu0 %v5798
    %7365 = vmatprep.subr.bf16.mxu0 %v5807
    %7366 = vmatpush1.bf16.msra.mxu0 %v5806
    %7367 = vmatprep.subr.bf16.mxu0 %v5815
    %7368 = vmatpush1.bf16.msra.mxu0 %v5814
    %7369 = vmatprep.subr.bf16.mxu0 %v5823
    %7370 = vmatpush1.bf16.msra.mxu0 %v5822
    %7371 = vmatprep.subr.bf16.mxu0 %v5831
    %7372 = vmatpush1.bf16.msra.mxu0 %v5830
    %7373 = vmatprep.subr.bf16.mxu0 %v5839
    %7374 = vmatpush1.bf16.msra.mxu0 %v5838
    %7375 = vmatprep.subr.bf16.mxu0 %v5847
    %7376 = vmatpush1.bf16.msra.mxu0 %v5846
    %7377 = vmatprep.subr.bf16.mxu0 %v5855
    %7378 = vmatpush1.bf16.msra.mxu0 %v5854
    %7379 = vmatprep.mubr.bf16.mxu0 %v951
    %7380 = vmatmul.mubr.bf16.gmra.mrb[0].mxu0 %v950
    %v7381 = vpop.f32.mrb[0].mxu0
    %v7382 = vadd.f32 %v7341, %v7381
    %v7383 = vpop.f32.mrb[0].mxu0
    %v7384 = vadd.f32 %v7343, %v7383
    %v7385 = vpop.f32.mrb[0].mxu0
    %v7386 = vpop.f32.mrb[0].mxu0
    %7387 = vdwg.mxu0
    %7388 = vmatprep.subr.bf16.mxu0 %v5863
    %7389 = vmatpush1.bf16.msra.mxu0 %v5862
    %7390 = vmatprep.subr.bf16.mxu0 %v5871
    %7391 = vmatpush1.bf16.msra.mxu0 %v5870
    %7392 = vmatprep.subr.bf16.mxu0 %v5879
    %7393 = vmatpush1.bf16.msra.mxu0 %v5878
    %7394 = vmatprep.subr.bf16.mxu0 %v5887
    %7395 = vmatpush1.bf16.msra.mxu0 %v5886
    %7396 = vmatprep.subr.bf16.mxu0 %v5895
    %7397 = vmatpush1.bf16.msra.mxu0 %v5894
    %7398 = vmatprep.subr.bf16.mxu0 %v5903
    %7399 = vmatpush1.bf16.msra.mxu0 %v5902
    %7400 = vmatprep.subr.bf16.mxu0 %v5911
    %7401 = vmatpush1.bf16.msra.mxu0 %v5910
    %7402 = vmatprep.subr.bf16.mxu0 %v5919
    %7403 = vmatpush1.bf16.msra.mxu0 %v5918
    %7404 = vmatprep.subr.bf16.mxu0 %v5927
    %7405 = vmatpush1.bf16.msra.mxu0 %v5926
    %7406 = vmatprep.subr.bf16.mxu0 %v5935
    %7407 = vmatpush1.bf16.msra.mxu0 %v5934
    %7408 = vmatprep.subr.bf16.mxu0 %v5943
    %7409 = vmatpush1.bf16.msra.mxu0 %v5942
    %7410 = vmatprep.subr.bf16.mxu0 %v5951
    %7411 = vmatpush1.bf16.msra.mxu0 %v5950
    %7412 = vmatprep.subr.bf16.mxu0 %v5959
    %7413 = vmatpush1.bf16.msra.mxu0 %v5958
    %7414 = vmatprep.subr.bf16.mxu0 %v5967
    %7415 = vmatpush1.bf16.msra.mxu0 %v5966
    %7416 = vmatprep.subr.bf16.mxu0 %v5975
    %7417 = vmatpush1.bf16.msra.mxu0 %v5974
    %7418 = vmatprep.subr.bf16.mxu0 %v5983
    %7419 = vmatpush1.bf16.msra.mxu0 %v5982
    %7420 = vmatprep.mubr.bf16.mxu0 %v953
    %7421 = vmatmul.mubr.bf16.gmra.mrb[0].mxu0 %v952
    %v7422 = vpop.f32.mrb[0].mxu0
    %v7423 = vadd.f32 %v7382, %v7422
    %v7424 = vpop.f32.mrb[0].mxu0
    %v7425 = vadd.f32 %v7384, %v7424
    %v7426 = vpop.f32.mrb[0].mxu0
    %v7427 = vpop.f32.mrb[0].mxu0
    %7428 = vdwg.mxu0
    %7429 = vmatprep.subr.bf16.mxu0 %v5991
    %7430 = vmatpush1.bf16.msra.mxu0 %v5990
    %7431 = vmatprep.subr.bf16.mxu0 %v5999
    %7432 = vmatpush1.bf16.msra.mxu0 %v5998
    %7433 = vmatprep.subr.bf16.mxu0 %v6007
    %7434 = vmatpush1.bf16.msra.mxu0 %v6006
    %7435 = vmatprep.subr.bf16.mxu0 %v6015
    %7436 = vmatpush1.bf16.msra.mxu0 %v6014
    %7437 = vmatprep.subr.bf16.mxu0 %v6023
    %7438 = vmatpush1.bf16.msra.mxu0 %v6022
    %7439 = vmatprep.subr.bf16.mxu0 %v6031
    %7440 = vmatpush1.bf16.msra.mxu0 %v6030
    %7441 = vmatprep.subr.bf16.mxu0 %v6039
    %7442 = vmatpush1.bf16.msra.mxu0 %v6038
    %7443 = vmatprep.subr.bf16.mxu0 %v6047
    %7444 = vmatpush1.bf16.msra.mxu0 %v6046
    %7445 = vmatprep.subr.bf16.mxu0 %v6055
    %7446 = vmatpush1.bf16.msra.mxu0 %v6054
    %7447 = vmatprep.subr.bf16.mxu0 %v6063
    %7448 = vmatpush1.bf16.msra.mxu0 %v6062
    %7449 = vmatprep.subr.bf16.mxu0 %v6071
    %7450 = vmatpush1.bf16.msra.mxu0 %v6070
    %7451 = vmatprep.subr.bf16.mxu0 %v6079
    %7452 = vmatpush1.bf16.msra.mxu0 %v6078
    %7453 = vmatprep.subr.bf16.mxu0 %v6087
    %7454 = vmatpush1.bf16.msra.mxu0 %v6086
    %7455 = vmatprep.subr.bf16.mxu0 %v6095
    %7456 = vmatpush1.bf16.msra.mxu0 %v6094
    %7457 = vmatprep.subr.bf16.mxu0 %v6103
    %7458 = vmatpush1.bf16.msra.mxu0 %v6102
    %7459 = vmatprep.subr.bf16.mxu0 %v6111
    %7460 = vmatpush1.bf16.msra.mxu0 %v6110
    %7461 = vmatprep.mubr.bf16.mxu0 %v955
    %7462 = vmatmul.mubr.bf16.gmra.mrb[0].mxu0 %v954
    %v7463 = vpop.f32.mrb[0].mxu0
    %v7464 = vadd.f32 %v7423, %v7463
    %v7465 = vpop.f32.mrb[0].mxu0
    %v7466 = vadd.f32 %v7425, %v7465
    %v7467 = vpop.f32.mrb[0].mxu0
    %v7468 = vpop.f32.mrb[0].mxu0
    %7469 = vdwg.mxu0
    %7470 = vmatprep.subr.bf16.mxu0 %v5097
    %7471 = vmatpush1.bf16.msra.mxu0 %v5096
    %7472 = vmatprep.subr.bf16.mxu0 %v5105
    %7473 = vmatpush1.bf16.msra.mxu0 %v5104
    %7474 = vmatprep.subr.bf16.mxu0 %v5113
    %7475 = vmatpush1.bf16.msra.mxu0 %v5112
    %7476 = vmatprep.subr.bf16.mxu0 %v5121
    %7477 = vmatpush1.bf16.msra.mxu0 %v5120
    %7478 = vmatprep.subr.bf16.mxu0 %v5129
    %7479 = vmatpush1.bf16.msra.mxu0 %v5128
    %7480 = vmatprep.subr.bf16.mxu0 %v5137
    %7481 = vmatpush1.bf16.msra.mxu0 %v5136
    %7482 = vmatprep.subr.bf16.mxu0 %v5145
    %7483 = vmatpush1.bf16.msra.mxu0 %v5144
    %7484 = vmatprep.subr.bf16.mxu0 %v5153
    %7485 = vmatpush1.bf16.msra.mxu0 %v5152
    %7486 = vmatprep.subr.bf16.mxu0 %v5161
    %7487 = vmatpush1.bf16.msra.mxu0 %v5160
    %7488 = vmatprep.subr.bf16.mxu0 %v5169
    %7489 = vmatpush1.bf16.msra.mxu0 %v5168
    %7490 = vmatprep.subr.bf16.mxu0 %v5177
    %7491 = vmatpush1.bf16.msra.mxu0 %v5176
    %7492 = vmatprep.subr.bf16.mxu0 %v5185
    %7493 = vmatpush1.bf16.msra.mxu0 %v5184
    %7494 = vmatprep.subr.bf16.mxu0 %v5193
    %7495 = vmatpush1.bf16.msra.mxu0 %v5192
    %7496 = vmatprep.subr.bf16.mxu0 %v5201
    %7497 = vmatpush1.bf16.msra.mxu0 %v5200
    %7498 = vmatprep.subr.bf16.mxu0 %v5209
    %7499 = vmatpush1.bf16.msra.mxu0 %v5208
    %7500 = vmatprep.subr.bf16.mxu0 %v5217
    %7501 = vmatpush1.bf16.msra.mxu0 %v5216
    %7502 = vmatprep.mubr.bf16.mxu0 %v941
    %7503 = vmatmul.mubr.bf16.gmra.mrb[0].mxu0 %v940
    %v7504 = vpop.f32.mrb[0].mxu0
    %v7505 = vadd.f32 %v1993, %v7504
    %v7506 = vpop.f32.mrb[0].mxu0
    %v7507 = vadd.f32 %v1997, %v7506
    %v7508 = vpop.f32.mrb[0].mxu0
    %v7509 = vpop.f32.mrb[0].mxu0
    %7510 = vdwg.mxu0
    %7511 = vmatprep.subr.bf16.mxu0 %v5225
    %7512 = vmatpush1.bf16.msra.mxu0 %v5224
    %7513 = vmatprep.subr.bf16.mxu0 %v5233
    %7514 = vmatpush1.bf16.msra.mxu0 %v5232
    %7515 = vmatprep.subr.bf16.mxu0 %v5241
    %7516 = vmatpush1.bf16.msra.mxu0 %v5240
    %7517 = vmatprep.subr.bf16.mxu0 %v5249
    %7518 = vmatpush1.bf16.msra.mxu0 %v5248
    %7519 = vmatprep.subr.bf16.mxu0 %v5257
    %7520 = vmatpush1.bf16.msra.mxu0 %v5256
    %7521 = vmatprep.subr.bf16.mxu0 %v5265
    %7522 = vmatpush1.bf16.msra.mxu0 %v5264
    %7523 = vmatprep.subr.bf16.mxu0 %v5273
    %7524 = vmatpush1.bf16.msra.mxu0 %v5272
    %7525 = vmatprep.subr.bf16.mxu0 %v5281
    %7526 = vmatpush1.bf16.msra.mxu0 %v5280
    %7527 = vmatprep.subr.bf16.mxu0 %v5289
    %7528 = vmatpush1.bf16.msra.mxu0 %v5288
    %7529 = vmatprep.subr.bf16.mxu0 %v5297
    %7530 = vmatpush1.bf16.msra.mxu0 %v5296
    %7531 = vmatprep.subr.bf16.mxu0 %v5305
    %7532 = vmatpush1.bf16.msra.mxu0 %v5304
    %7533 = vmatprep.subr.bf16.mxu0 %v5313
    %7534 = vmatpush1.bf16.msra.mxu0 %v5312
    %7535 = vmatprep.subr.bf16.mxu0 %v5321
    %7536 = vmatpush1.bf16.msra.mxu0 %v5320
    %7537 = vmatprep.subr.bf16.mxu0 %v5329
    %7538 = vmatpush1.bf16.msra.mxu0 %v5328
    %7539 = vmatprep.subr.bf16.mxu0 %v5337
    %7540 = vmatpush1.bf16.msra.mxu0 %v5336
    %7541 = vmatprep.subr.bf16.mxu0 %v5345
    %7542 = vmatpush1.bf16.msra.mxu0 %v5344
    %7543 = vmatprep.mubr.bf16.mxu0 %v943
    %7544 = vmatmul.mubr.bf16.gmra.mrb[0].mxu0 %v942
    %v7545 = vpop.f32.mrb[0].mxu0
    %v7546 = vadd.f32 %v7505, %v7545
    %v7547 = vpop.f32.mrb[0].mxu0
    %v7548 = vadd.f32 %v7507, %v7547
    %v7549 = vpop.f32.mrb[0].mxu0
    %v7550 = vpop.f32.mrb[0].mxu0
    %7551 = vdwg.mxu0
    %7552 = vmatprep.subr.bf16.mxu0 %v5353
    %7553 = vmatpush1.bf16.msra.mxu0 %v5352
    %7554 = vmatprep.subr.bf16.mxu0 %v5361
    %7555 = vmatpush1.bf16.msra.mxu0 %v5360
    %7556 = vmatprep.subr.bf16.mxu0 %v5369
    %7557 = vmatpush1.bf16.msra.mxu0 %v5368
    %7558 = vmatprep.subr.bf16.mxu0 %v5377
    %7559 = vmatpush1.bf16.msra.mxu0 %v5376
    %7560 = vmatprep.subr.bf16.mxu0 %v5385
    %7561 = vmatpush1.bf16.msra.mxu0 %v5384
    %7562 = vmatprep.subr.bf16.mxu0 %v5393
    %7563 = vmatpush1.bf16.msra.mxu0 %v5392
    %7564 = vmatprep.subr.bf16.mxu0 %v5401
    %7565 = vmatpush1.bf16.msra.mxu0 %v5400
    %7566 = vmatprep.subr.bf16.mxu0 %v5409
    %7567 = vmatpush1.bf16.msra.mxu0 %v5408
    %7568 = vmatprep.subr.bf16.mxu0 %v5417
    %7569 = vmatpush1.bf16.msra.mxu0 %v5416
    %7570 = vmatprep.subr.bf16.mxu0 %v5425
    %7571 = vmatpush1.bf16.msra.mxu0 %v5424
    %7572 = vmatprep.subr.bf16.mxu0 %v5433
    %7573 = vmatpush1.bf16.msra.mxu0 %v5432
    %7574 = vmatprep.subr.bf16.mxu0 %v5441
    %7575 = vmatpush1.bf16.msra.mxu0 %v5440
    %7576 = vmatprep.subr.bf16.mxu0 %v5449
    %7577 = vmatpush1.bf16.msra.mxu0 %v5448
    %7578 = vmatprep.subr.bf16.mxu0 %v5457
    %7579 = vmatpush1.bf16.msra.mxu0 %v5456
    %7580 = vmatprep.subr.bf16.mxu0 %v5465
    %7581 = vmatpush1.bf16.msra.mxu0 %v5464
    %7582 = vmatprep.subr.bf16.mxu0 %v5473
    %7583 = vmatpush1.bf16.msra.mxu0 %v5472
    %7584 = vmatprep.mubr.bf16.mxu0 %v945
    %7585 = vmatmul.mubr.bf16.gmra.mrb[0].mxu0 %v944
    %v7586 = vpop.f32.mrb[0].mxu0
    %v7587 = vadd.f32 %v7546, %v7586
    %v7588 = vpop.f32.mrb[0].mxu0
    %v7589 = vadd.f32 %v7548, %v7588
    %v7590 = vpop.f32.mrb[0].mxu0
    %v7591 = vpop.f32.mrb[0].mxu0
    %7592 = vdwg.mxu0
    %7593 = vmatprep.subr.bf16.mxu0 %v5481
    %7594 = vmatpush1.bf16.msra.mxu0 %v5480
    %7595 = vmatprep.subr.bf16.mxu0 %v5489
    %7596 = vmatpush1.bf16.msra.mxu0 %v5488
    %7597 = vmatprep.subr.bf16.mxu0 %v5497
    %7598 = vmatpush1.bf16.msra.mxu0 %v5496
    %7599 = vmatprep.subr.bf16.mxu0 %v5505
    %7600 = vmatpush1.bf16.msra.mxu0 %v5504
    %7601 = vmatprep.subr.bf16.mxu0 %v5513
    %7602 = vmatpush1.bf16.msra.mxu0 %v5512
    %7603 = vmatprep.subr.bf16.mxu0 %v5521
    %7604 = vmatpush1.bf16.msra.mxu0 %v5520
    %7605 = vmatprep.subr.bf16.mxu0 %v5529
    %7606 = vmatpush1.bf16.msra.mxu0 %v5528
    %7607 = vmatprep.subr.bf16.mxu0 %v5537
    %7608 = vmatpush1.bf16.msra.mxu0 %v5536
    %7609 = vmatprep.subr.bf16.mxu0 %v5545
    %7610 = vmatpush1.bf16.msra.mxu0 %v5544
    %7611 = vmatprep.subr.bf16.mxu0 %v5553
    %7612 = vmatpush1.bf16.msra.mxu0 %v5552
    %7613 = vmatprep.subr.bf16.mxu0 %v5561
    %7614 = vmatpush1.bf16.msra.mxu0 %v5560
    %7615 = vmatprep.subr.bf16.mxu0 %v5569
    %7616 = vmatpush1.bf16.msra.mxu0 %v5568
    %7617 = vmatprep.subr.bf16.mxu0 %v5577
    %7618 = vmatpush1.bf16.msra.mxu0 %v5576
    %7619 = vmatprep.subr.bf16.mxu0 %v5585
    %7620 = vmatpush1.bf16.msra.mxu0 %v5584
    %7621 = vmatprep.subr.bf16.mxu0 %v5593
    %7622 = vmatpush1.bf16.msra.mxu0 %v5592
    %7623 = vmatprep.subr.bf16.mxu0 %v5601
    %7624 = vmatpush1.bf16.msra.mxu0 %v5600
    %7625 = vmatprep.mubr.bf16.mxu0 %v947
    %7626 = vmatmul.mubr.bf16.gmra.mrb[0].mxu0 %v946
    %v7627 = vpop.f32.mrb[0].mxu0
    %v7628 = vadd.f32 %v7587, %v7627
    %v7629 = vpop.f32.mrb[0].mxu0
    %v7630 = vadd.f32 %v7589, %v7629
    %v7631 = vpop.f32.mrb[0].mxu0
    %v7632 = vpop.f32.mrb[0].mxu0
    %7633 = vdwg.mxu0
    %7634 = vmatprep.subr.bf16.mxu0 %v5609
    %7635 = vmatpush1.bf16.msra.mxu0 %v5608
    %7636 = vmatprep.subr.bf16.mxu0 %v5617
    %7637 = vmatpush1.bf16.msra.mxu0 %v5616
    %7638 = vmatprep.subr.bf16.mxu0 %v5625
    %7639 = vmatpush1.bf16.msra.mxu0 %v5624
    %7640 = vmatprep.subr.bf16.mxu0 %v5633
    %7641 = vmatpush1.bf16.msra.mxu0 %v5632
    %7642 = vmatprep.subr.bf16.mxu0 %v5641
    %7643 = vmatpush1.bf16.msra.mxu0 %v5640
    %7644 = vmatprep.subr.bf16.mxu0 %v5649
    %7645 = vmatpush1.bf16.msra.mxu0 %v5648
    %7646 = vmatprep.subr.bf16.mxu0 %v5657
    %7647 = vmatpush1.bf16.msra.mxu0 %v5656
    %7648 = vmatprep.subr.bf16.mxu0 %v5665
    %7649 = vmatpush1.bf16.msra.mxu0 %v5664
    %7650 = vmatprep.subr.bf16.mxu0 %v5673
    %7651 = vmatpush1.bf16.msra.mxu0 %v5672
    %7652 = vmatprep.subr.bf16.mxu0 %v5681
    %7653 = vmatpush1.bf16.msra.mxu0 %v5680
    %7654 = vmatprep.subr.bf16.mxu0 %v5689
    %7655 = vmatpush1.bf16.msra.mxu0 %v5688
    %7656 = vmatprep.subr.bf16.mxu0 %v5697
    %7657 = vmatpush1.bf16.msra.mxu0 %v5696
    %7658 = vmatprep.subr.bf16.mxu0 %v5705
    %7659 = vmatpush1.bf16.msra.mxu0 %v5704
    %7660 = vmatprep.subr.bf16.mxu0 %v5713
    %7661 = vmatpush1.bf16.msra.mxu0 %v5712
    %7662 = vmatprep.subr.bf16.mxu0 %v5721
    %7663 = vmatpush1.bf16.msra.mxu0 %v5720
    %7664 = vmatprep.subr.bf16.mxu0 %v5729
    %7665 = vmatpush1.bf16.msra.mxu0 %v5728
    %7666 = vmatprep.mubr.bf16.mxu0 %v949
    %7667 = vmatmul.mubr.bf16.gmra.mrb[0].mxu0 %v948
    %v7668 = vpop.f32.mrb[0].mxu0
    %v7669 = vadd.f32 %v7628, %v7668
    %v7670 = vpop.f32.mrb[0].mxu0
    %v7671 = vadd.f32 %v7630, %v7670
    %v7672 = vpop.f32.mrb[0].mxu0
    %v7673 = vpop.f32.mrb[0].mxu0
    %7674 = vdwg.mxu0
    %7675 = vmatprep.subr.bf16.mxu0 %v5737
    %7676 = vmatpush1.bf16.msra.mxu0 %v5736
    %7677 = vmatprep.subr.bf16.mxu0 %v5745
    %7678 = vmatpush1.bf16.msra.mxu0 %v5744
    %7679 = vmatprep.subr.bf16.mxu0 %v5753
    %7680 = vmatpush1.bf16.msra.mxu0 %v5752
    %7681 = vmatprep.subr.bf16.mxu0 %v5761
    %7682 = vmatpush1.bf16.msra.mxu0 %v5760
    %7683 = vmatprep.subr.bf16.mxu0 %v5769
    %7684 = vmatpush1.bf16.msra.mxu0 %v5768
    %7685 = vmatprep.subr.bf16.mxu0 %v5777
    %7686 = vmatpush1.bf16.msra.mxu0 %v5776
    %7687 = vmatprep.subr.bf16.mxu0 %v5785
    %7688 = vmatpush1.bf16.msra.mxu0 %v5784
    %7689 = vmatprep.subr.bf16.mxu0 %v5793
    %7690 = vmatpush1.bf16.msra.mxu0 %v5792
    %7691 = vmatprep.subr.bf16.mxu0 %v5801
    %7692 = vmatpush1.bf16.msra.mxu0 %v5800
    %7693 = vmatprep.subr.bf16.mxu0 %v5809
    %7694 = vmatpush1.bf16.msra.mxu0 %v5808
    %7695 = vmatprep.subr.bf16.mxu0 %v5817
    %7696 = vmatpush1.bf16.msra.mxu0 %v5816
    %7697 = vmatprep.subr.bf16.mxu0 %v5825
    %7698 = vmatpush1.bf16.msra.mxu0 %v5824
    %7699 = vmatprep.subr.bf16.mxu0 %v5833
    %7700 = vmatpush1.bf16.msra.mxu0 %v5832
    %7701 = vmatprep.subr.bf16.mxu0 %v5841
    %7702 = vmatpush1.bf16.msra.mxu0 %v5840
    %7703 = vmatprep.subr.bf16.mxu0 %v5849
    %7704 = vmatpush1.bf16.msra.mxu0 %v5848
    %7705 = vmatprep.subr.bf16.mxu0 %v5857
    %7706 = vmatpush1.bf16.msra.mxu0 %v5856
    %7707 = vmatprep.mubr.bf16.mxu0 %v951
    %7708 = vmatmul.mubr.bf16.gmra.mrb[0].mxu0 %v950
    %v7709 = vpop.f32.mrb[0].mxu0
    %v7710 = vadd.f32 %v7669, %v7709
    %v7711 = vpop.f32.mrb[0].mxu0
    %v7712 = vadd.f32 %v7671, %v7711
    %v7713 = vpop.f32.mrb[0].mxu0
    %v7714 = vpop.f32.mrb[0].mxu0
    %7715 = vdwg.mxu0
    %7716 = vmatprep.subr.bf16.mxu0 %v5865
    %7717 = vmatpush1.bf16.msra.mxu0 %v5864
    %7718 = vmatprep.subr.bf16.mxu0 %v5873
    %7719 = vmatpush1.bf16.msra.mxu0 %v5872
    %7720 = vmatprep.subr.bf16.mxu0 %v5881
    %7721 = vmatpush1.bf16.msra.mxu0 %v5880
    %7722 = vmatprep.subr.bf16.mxu0 %v5889
    %7723 = vmatpush1.bf16.msra.mxu0 %v5888
    %7724 = vmatprep.subr.bf16.mxu0 %v5897
    %7725 = vmatpush1.bf16.msra.mxu0 %v5896
    %7726 = vmatprep.subr.bf16.mxu0 %v5905
    %7727 = vmatpush1.bf16.msra.mxu0 %v5904
    %7728 = vmatprep.subr.bf16.mxu0 %v5913
    %7729 = vmatpush1.bf16.msra.mxu0 %v5912
    %7730 = vmatprep.subr.bf16.mxu0 %v5921
    %7731 = vmatpush1.bf16.msra.mxu0 %v5920
    %7732 = vmatprep.subr.bf16.mxu0 %v5929
    %7733 = vmatpush1.bf16.msra.mxu0 %v5928
    %7734 = vmatprep.subr.bf16.mxu0 %v5937
    %7735 = vmatpush1.bf16.msra.mxu0 %v5936
    %7736 = vmatprep.subr.bf16.mxu0 %v5945
    %7737 = vmatpush1.bf16.msra.mxu0 %v5944
    %7738 = vmatprep.subr.bf16.mxu0 %v5953
    %7739 = vmatpush1.bf16.msra.mxu0 %v5952
    %7740 = vmatprep.subr.bf16.mxu0 %v5961
    %7741 = vmatpush1.bf16.msra.mxu0 %v5960
    %7742 = vmatprep.subr.bf16.mxu0 %v5969
    %7743 = vmatpush1.bf16.msra.mxu0 %v5968
    %7744 = vmatprep.subr.bf16.mxu0 %v5977
    %7745 = vmatpush1.bf16.msra.mxu0 %v5976
    %7746 = vmatprep.subr.bf16.mxu0 %v5985
    %7747 = vmatpush1.bf16.msra.mxu0 %v5984
    %7748 = vmatprep.mubr.bf16.mxu0 %v953
    %7749 = vmatmul.mubr.bf16.gmra.mrb[0].mxu0 %v952
    %v7750 = vpop.f32.mrb[0].mxu0
    %v7751 = vadd.f32 %v7710, %v7750
    %v7752 = vpop.f32.mrb[0].mxu0
    %v7753 = vadd.f32 %v7712, %v7752
    %v7754 = vpop.f32.mrb[0].mxu0
    %v7755 = vpop.f32.mrb[0].mxu0
    %7756 = vdwg.mxu0
    %7757 = vmatprep.subr.bf16.mxu0 %v5993
    %7758 = vmatpush1.bf16.msra.mxu0 %v5992
    %7759 = vmatprep.subr.bf16.mxu0 %v6001
    %7760 = vmatpush1.bf16.msra.mxu0 %v6000
    %7761 = vmatprep.subr.bf16.mxu0 %v6009
    %7762 = vmatpush1.bf16.msra.mxu0 %v6008
    %7763 = vmatprep.subr.bf16.mxu0 %v6017
    %7764 = vmatpush1.bf16.msra.mxu0 %v6016
    %7765 = vmatprep.subr.bf16.mxu0 %v6025
    %7766 = vmatpush1.bf16.msra.mxu0 %v6024
    %7767 = vmatprep.subr.bf16.mxu0 %v6033
    %7768 = vmatpush1.bf16.msra.mxu0 %v6032
    %7769 = vmatprep.subr.bf16.mxu0 %v6041
    %7770 = vmatpush1.bf16.msra.mxu0 %v6040
    %7771 = vmatprep.subr.bf16.mxu0 %v6049
    %7772 = vmatpush1.bf16.msra.mxu0 %v6048
    %7773 = vmatprep.subr.bf16.mxu0 %v6057
    %7774 = vmatpush1.bf16.msra.mxu0 %v6056
    %7775 = vmatprep.subr.bf16.mxu0 %v6065
    %7776 = vmatpush1.bf16.msra.mxu0 %v6064
    %7777 = vmatprep.subr.bf16.mxu0 %v6073
    %7778 = vmatpush1.bf16.msra.mxu0 %v6072
    %7779 = vmatprep.subr.bf16.mxu0 %v6081
    %7780 = vmatpush1.bf16.msra.mxu0 %v6080
    %7781 = vmatprep.subr.bf16.mxu0 %v6089
    %7782 = vmatpush1.bf16.msra.mxu0 %v6088
    %7783 = vmatprep.subr.bf16.mxu0 %v6097
    %7784 = vmatpush1.bf16.msra.mxu0 %v6096
    %7785 = vmatprep.subr.bf16.mxu0 %v6105
    %7786 = vmatpush1.bf16.msra.mxu0 %v6104
    %7787 = vmatprep.subr.bf16.mxu0 %v6113
    %7788 = vmatpush1.bf16.msra.mxu0 %v6112
    %7789 = vmatprep.mubr.bf16.mxu0 %v955
    %7790 = vmatmul.mubr.bf16.gmra.mrb[0].mxu0 %v954
    %v7791 = vpop.f32.mrb[0].mxu0
    %v7792 = vadd.f32 %v7751, %v7791
    %v7793 = vpop.f32.mrb[0].mxu0
    %v7794 = vadd.f32 %v7753, %v7793
    %v7795 = vpop.f32.mrb[0].mxu0
    %v7796 = vpop.f32.mrb[0].mxu0
    %7797 = vdwg.mxu0
    %7798 = vmatprep.subr.bf16.mxu0 %v5099
    %7799 = vmatpush1.bf16.msra.mxu0 %v5098
    %7800 = vmatprep.subr.bf16.mxu0 %v5107
    %7801 = vmatpush1.bf16.msra.mxu0 %v5106
    %7802 = vmatprep.subr.bf16.mxu0 %v5115
    %7803 = vmatpush1.bf16.msra.mxu0 %v5114
    %7804 = vmatprep.subr.bf16.mxu0 %v5123
    %7805 = vmatpush1.bf16.msra.mxu0 %v5122
    %7806 = vmatprep.subr.bf16.mxu0 %v5131
    %7807 = vmatpush1.bf16.msra.mxu0 %v5130
    %7808 = vmatprep.subr.bf16.mxu0 %v5139
    %7809 = vmatpush1.bf16.msra.mxu0 %v5138
    %7810 = vmatprep.subr.bf16.mxu0 %v5147
    %7811 = vmatpush1.bf16.msra.mxu0 %v5146
    %7812 = vmatprep.subr.bf16.mxu0 %v5155
    %7813 = vmatpush1.bf16.msra.mxu0 %v5154
    %7814 = vmatprep.subr.bf16.mxu0 %v5163
    %7815 = vmatpush1.bf16.msra.mxu0 %v5162
    %7816 = vmatprep.subr.bf16.mxu0 %v5171
    %7817 = vmatpush1.bf16.msra.mxu0 %v5170
    %7818 = vmatprep.subr.bf16.mxu0 %v5179
    %7819 = vmatpush1.bf16.msra.mxu0 %v5178
    %7820 = vmatprep.subr.bf16.mxu0 %v5187
    %7821 = vmatpush1.bf16.msra.mxu0 %v5186
    %7822 = vmatprep.subr.bf16.mxu0 %v5195
    %7823 = vmatpush1.bf16.msra.mxu0 %v5194
    %7824 = vmatprep.subr.bf16.mxu0 %v5203
    %7825 = vmatpush1.bf16.msra.mxu0 %v5202
    %7826 = vmatprep.subr.bf16.mxu0 %v5211
    %7827 = vmatpush1.bf16.msra.mxu0 %v5210
    %7828 = vmatprep.subr.bf16.mxu0 %v5219
    %7829 = vmatpush1.bf16.msra.mxu0 %v5218
    %7830 = vmatprep.mubr.bf16.mxu0 %v941
    %7831 = vmatmul.mubr.bf16.gmra.mrb[0].mxu0 %v940
    %v7832 = vpop.f32.mrb[0].mxu0
    %v7833 = vadd.f32 %v2001, %v7832
    %v7834 = vpop.f32.mrb[0].mxu0
    %v7835 = vadd.f32 %v2005, %v7834
    %v7836 = vpop.f32.mrb[0].mxu0
    %v7837 = vpop.f32.mrb[0].mxu0
    %7838 = vdwg.mxu0
    %7839 = vmatprep.subr.bf16.mxu0 %v5227
    %7840 = vmatpush1.bf16.msra.mxu0 %v5226
    %7841 = vmatprep.subr.bf16.mxu0 %v5235
    %7842 = vmatpush1.bf16.msra.mxu0 %v5234
    %7843 = vmatprep.subr.bf16.mxu0 %v5243
    %7844 = vmatpush1.bf16.msra.mxu0 %v5242
    %7845 = vmatprep.subr.bf16.mxu0 %v5251
    %7846 = vmatpush1.bf16.msra.mxu0 %v5250
    %7847 = vmatprep.subr.bf16.mxu0 %v5259
    %7848 = vmatpush1.bf16.msra.mxu0 %v5258
    %7849 = vmatprep.subr.bf16.mxu0 %v5267
    %7850 = vmatpush1.bf16.msra.mxu0 %v5266
    %7851 = vmatprep.subr.bf16.mxu0 %v5275
    %7852 = vmatpush1.bf16.msra.mxu0 %v5274
    %7853 = vmatprep.subr.bf16.mxu0 %v5283
    %7854 = vmatpush1.bf16.msra.mxu0 %v5282
    %7855 = vmatprep.subr.bf16.mxu0 %v5291
    %7856 = vmatpush1.bf16.msra.mxu0 %v5290
    %7857 = vmatprep.subr.bf16.mxu0 %v5299
    %7858 = vmatpush1.bf16.msra.mxu0 %v5298
    %7859 = vmatprep.subr.bf16.mxu0 %v5307
    %7860 = vmatpush1.bf16.msra.mxu0 %v5306
    %7861 = vmatprep.subr.bf16.mxu0 %v5315
    %7862 = vmatpush1.bf16.msra.mxu0 %v5314
    %7863 = vmatprep.subr.bf16.mxu0 %v5323
    %7864 = vmatpush1.bf16.msra.mxu0 %v5322
    %7865 = vmatprep.subr.bf16.mxu0 %v5331
    %7866 = vmatpush1.bf16.msra.mxu0 %v5330
    %7867 = vmatprep.subr.bf16.mxu0 %v5339
    %7868 = vmatpush1.bf16.msra.mxu0 %v5338
    %7869 = vmatprep.subr.bf16.mxu0 %v5347
    %7870 = vmatpush1.bf16.msra.mxu0 %v5346
    %7871 = vmatprep.mubr.bf16.mxu0 %v943
    %7872 = vmatmul.mubr.bf16.gmra.mrb[0].mxu0 %v942
    %v7873 = vpop.f32.mrb[0].mxu0
    %v7874 = vadd.f32 %v7833, %v7873
    %v7875 = vpop.f32.mrb[0].mxu0
    %v7876 = vadd.f32 %v7835, %v7875
    %v7877 = vpop.f32.mrb[0].mxu0
    %v7878 = vpop.f32.mrb[0].mxu0
    %7879 = vdwg.mxu0
    %7880 = vmatprep.subr.bf16.mxu0 %v5355
    %7881 = vmatpush1.bf16.msra.mxu0 %v5354
    %7882 = vmatprep.subr.bf16.mxu0 %v5363
    %7883 = vmatpush1.bf16.msra.mxu0 %v5362
    %7884 = vmatprep.subr.bf16.mxu0 %v5371
    %7885 = vmatpush1.bf16.msra.mxu0 %v5370
    %7886 = vmatprep.subr.bf16.mxu0 %v5379
    %7887 = vmatpush1.bf16.msra.mxu0 %v5378
    %7888 = vmatprep.subr.bf16.mxu0 %v5387
    %7889 = vmatpush1.bf16.msra.mxu0 %v5386
    %7890 = vmatprep.subr.bf16.mxu0 %v5395
    %7891 = vmatpush1.bf16.msra.mxu0 %v5394
    %7892 = vmatprep.subr.bf16.mxu0 %v5403
    %7893 = vmatpush1.bf16.msra.mxu0 %v5402
    %7894 = vmatprep.subr.bf16.mxu0 %v5411
    %7895 = vmatpush1.bf16.msra.mxu0 %v5410
    %7896 = vmatprep.subr.bf16.mxu0 %v5419
    %7897 = vmatpush1.bf16.msra.mxu0 %v5418
    %7898 = vmatprep.subr.bf16.mxu0 %v5427
    %7899 = vmatpush1.bf16.msra.mxu0 %v5426
    %7900 = vmatprep.subr.bf16.mxu0 %v5435
    %7901 = vmatpush1.bf16.msra.mxu0 %v5434
    %7902 = vmatprep.subr.bf16.mxu0 %v5443
    %7903 = vmatpush1.bf16.msra.mxu0 %v5442
    %7904 = vmatprep.subr.bf16.mxu0 %v5451
    %7905 = vmatpush1.bf16.msra.mxu0 %v5450
    %7906 = vmatprep.subr.bf16.mxu0 %v5459
    %7907 = vmatpush1.bf16.msra.mxu0 %v5458
    %7908 = vmatprep.subr.bf16.mxu0 %v5467
    %7909 = vmatpush1.bf16.msra.mxu0 %v5466
    %7910 = vmatprep.subr.bf16.mxu0 %v5475
    %7911 = vmatpush1.bf16.msra.mxu0 %v5474
    %7912 = vmatprep.mubr.bf16.mxu0 %v945
    %7913 = vmatmul.mubr.bf16.gmra.mrb[0].mxu0 %v944
    %v7914 = vpop.f32.mrb[0].mxu0
    %v7915 = vadd.f32 %v7874, %v7914
    %v7916 = vpop.f32.mrb[0].mxu0
    %v7917 = vadd.f32 %v7876, %v7916
    %v7918 = vpop.f32.mrb[0].mxu0
    %v7919 = vpop.f32.mrb[0].mxu0
    %7920 = vdwg.mxu0
    %7921 = vmatprep.subr.bf16.mxu0 %v5483
    %7922 = vmatpush1.bf16.msra.mxu0 %v5482
    %7923 = vmatprep.subr.bf16.mxu0 %v5491
    %7924 = vmatpush1.bf16.msra.mxu0 %v5490
    %7925 = vmatprep.subr.bf16.mxu0 %v5499
    %7926 = vmatpush1.bf16.msra.mxu0 %v5498
    %7927 = vmatprep.subr.bf16.mxu0 %v5507
    %7928 = vmatpush1.bf16.msra.mxu0 %v5506
    %7929 = vmatprep.subr.bf16.mxu0 %v5515
    %7930 = vmatpush1.bf16.msra.mxu0 %v5514
    %7931 = vmatprep.subr.bf16.mxu0 %v5523
    %7932 = vmatpush1.bf16.msra.mxu0 %v5522
    %7933 = vmatprep.subr.bf16.mxu0 %v5531
    %7934 = vmatpush1.bf16.msra.mxu0 %v5530
    %7935 = vmatprep.subr.bf16.mxu0 %v5539
    %7936 = vmatpush1.bf16.msra.mxu0 %v5538
    %7937 = vmatprep.subr.bf16.mxu0 %v5547
    %7938 = vmatpush1.bf16.msra.mxu0 %v5546
    %7939 = vmatprep.subr.bf16.mxu0 %v5555
    %7940 = vmatpush1.bf16.msra.mxu0 %v5554
    %7941 = vmatprep.subr.bf16.mxu0 %v5563
    %7942 = vmatpush1.bf16.msra.mxu0 %v5562
    %7943 = vmatprep.subr.bf16.mxu0 %v5571
    %7944 = vmatpush1.bf16.msra.mxu0 %v5570
    %7945 = vmatprep.subr.bf16.mxu0 %v5579
    %7946 = vmatpush1.bf16.msra.mxu0 %v5578
    %7947 = vmatprep.subr.bf16.mxu0 %v5587
    %7948 = vmatpush1.bf16.msra.mxu0 %v5586
    %7949 = vmatprep.subr.bf16.mxu0 %v5595
    %7950 = vmatpush1.bf16.msra.mxu0 %v5594
    %7951 = vmatprep.subr.bf16.mxu0 %v5603
    %7952 = vmatpush1.bf16.msra.mxu0 %v5602
    %7953 = vmatprep.mubr.bf16.mxu0 %v947
    %7954 = vmatmul.mubr.bf16.gmra.mrb[0].mxu0 %v946
    %v7955 = vpop.f32.mrb[0].mxu0
    %v7956 = vadd.f32 %v7915, %v7955
    %v7957 = vpop.f32.mrb[0].mxu0
    %v7958 = vadd.f32 %v7917, %v7957
    %v7959 = vpop.f32.mrb[0].mxu0
    %v7960 = vpop.f32.mrb[0].mxu0
    %7961 = vdwg.mxu0
    %7962 = vmatprep.subr.bf16.mxu0 %v5611
    %7963 = vmatpush1.bf16.msra.mxu0 %v5610
    %7964 = vmatprep.subr.bf16.mxu0 %v5619
    %7965 = vmatpush1.bf16.msra.mxu0 %v5618
    %7966 = vmatprep.subr.bf16.mxu0 %v5627
    %7967 = vmatpush1.bf16.msra.mxu0 %v5626
    %7968 = vmatprep.subr.bf16.mxu0 %v5635
    %7969 = vmatpush1.bf16.msra.mxu0 %v5634
    %7970 = vmatprep.subr.bf16.mxu0 %v5643
    %7971 = vmatpush1.bf16.msra.mxu0 %v5642
    %7972 = vmatprep.subr.bf16.mxu0 %v5651
    %7973 = vmatpush1.bf16.msra.mxu0 %v5650
    %7974 = vmatprep.subr.bf16.mxu0 %v5659
    %7975 = vmatpush1.bf16.msra.mxu0 %v5658
    %7976 = vmatprep.subr.bf16.mxu0 %v5667
    %7977 = vmatpush1.bf16.msra.mxu0 %v5666
    %7978 = vmatprep.subr.bf16.mxu0 %v5675
    %7979 = vmatpush1.bf16.msra.mxu0 %v5674
    %7980 = vmatprep.subr.bf16.mxu0 %v5683
    %7981 = vmatpush1.bf16.msra.mxu0 %v5682
    %7982 = vmatprep.subr.bf16.mxu0 %v5691
    %7983 = vmatpush1.bf16.msra.mxu0 %v5690
    %7984 = vmatprep.subr.bf16.mxu0 %v5699
    %7985 = vmatpush1.bf16.msra.mxu0 %v5698
    %7986 = vmatprep.subr.bf16.mxu0 %v5707
    %7987 = vmatpush1.bf16.msra.mxu0 %v5706
    %7988 = vmatprep.subr.bf16.mxu0 %v5715
    %7989 = vmatpush1.bf16.msra.mxu0 %v5714
    %7990 = vmatprep.subr.bf16.mxu0 %v5723
    %7991 = vmatpush1.bf16.msra.mxu0 %v5722
    %7992 = vmatprep.subr.bf16.mxu0 %v5731
    %7993 = vmatpush1.bf16.msra.mxu0 %v5730
    %7994 = vmatprep.mubr.bf16.mxu0 %v949
    %7995 = vmatmul.mubr.bf16.gmra.mrb[0].mxu0 %v948
    %v7996 = vpop.f32.mrb[0].mxu0
    %v7997 = vadd.f32 %v7956, %v7996
    %v7998 = vpop.f32.mrb[0].mxu0
    %v7999 = vadd.f32 %v7958, %v7998
    %v8000 = vpop.f32.mrb[0].mxu0
    %v8001 = vpop.f32.mrb[0].mxu0
    %8002 = vdwg.mxu0
    %8003 = vmatprep.subr.bf16.mxu0 %v5739
    %8004 = vmatpush1.bf16.msra.mxu0 %v5738
    %8005 = vmatprep.subr.bf16.mxu0 %v5747
    %8006 = vmatpush1.bf16.msra.mxu0 %v5746
    %8007 = vmatprep.subr.bf16.mxu0 %v5755
    %8008 = vmatpush1.bf16.msra.mxu0 %v5754
    %8009 = vmatprep.subr.bf16.mxu0 %v5763
    %8010 = vmatpush1.bf16.msra.mxu0 %v5762
    %8011 = vmatprep.subr.bf16.mxu0 %v5771
    %8012 = vmatpush1.bf16.msra.mxu0 %v5770
    %8013 = vmatprep.subr.bf16.mxu0 %v5779
    %8014 = vmatpush1.bf16.msra.mxu0 %v5778
    %8015 = vmatprep.subr.bf16.mxu0 %v5787
    %8016 = vmatpush1.bf16.msra.mxu0 %v5786
    %8017 = vmatprep.subr.bf16.mxu0 %v5795
    %8018 = vmatpush1.bf16.msra.mxu0 %v5794
    %8019 = vmatprep.subr.bf16.mxu0 %v5803
    %8020 = vmatpush1.bf16.msra.mxu0 %v5802
    %8021 = vmatprep.subr.bf16.mxu0 %v5811
    %8022 = vmatpush1.bf16.msra.mxu0 %v5810
    %8023 = vmatprep.subr.bf16.mxu0 %v5819
    %8024 = vmatpush1.bf16.msra.mxu0 %v5818
    %8025 = vmatprep.subr.bf16.mxu0 %v5827
    %8026 = vmatpush1.bf16.msra.mxu0 %v5826
    %8027 = vmatprep.subr.bf16.mxu0 %v5835
    %8028 = vmatpush1.bf16.msra.mxu0 %v5834
    %8029 = vmatprep.subr.bf16.mxu0 %v5843
    %8030 = vmatpush1.bf16.msra.mxu0 %v5842
    %8031 = vmatprep.subr.bf16.mxu0 %v5851
    %8032 = vmatpush1.bf16.msra.mxu0 %v5850
    %8033 = vmatprep.subr.bf16.mxu0 %v5859
    %8034 = vmatpush1.bf16.msra.mxu0 %v5858
    %8035 = vmatprep.mubr.bf16.mxu0 %v951
    %8036 = vmatmul.mubr.bf16.gmra.mrb[0].mxu0 %v950
    %v8037 = vpop.f32.mrb[0].mxu0
    %v8038 = vadd.f32 %v7997, %v8037
    %v8039 = vpop.f32.mrb[0].mxu0
    %v8040 = vadd.f32 %v7999, %v8039
    %v8041 = vpop.f32.mrb[0].mxu0
    %v8042 = vpop.f32.mrb[0].mxu0
    %8043 = vdwg.mxu0
    %8044 = vmatprep.subr.bf16.mxu0 %v5867
    %8045 = vmatpush1.bf16.msra.mxu0 %v5866
    %8046 = vmatprep.subr.bf16.mxu0 %v5875
    %8047 = vmatpush1.bf16.msra.mxu0 %v5874
    %8048 = vmatprep.subr.bf16.mxu0 %v5883
    %8049 = vmatpush1.bf16.msra.mxu0 %v5882
    %8050 = vmatprep.subr.bf16.mxu0 %v5891
    %8051 = vmatpush1.bf16.msra.mxu0 %v5890
    %8052 = vmatprep.subr.bf16.mxu0 %v5899
    %8053 = vmatpush1.bf16.msra.mxu0 %v5898
    %8054 = vmatprep.subr.bf16.mxu0 %v5907
    %8055 = vmatpush1.bf16.msra.mxu0 %v5906
    %8056 = vmatprep.subr.bf16.mxu0 %v5915
    %8057 = vmatpush1.bf16.msra.mxu0 %v5914
    %8058 = vmatprep.subr.bf16.mxu0 %v5923
    %8059 = vmatpush1.bf16.msra.mxu0 %v5922
    %8060 = vmatprep.subr.bf16.mxu0 %v5931
    %8061 = vmatpush1.bf16.msra.mxu0 %v5930
    %8062 = vmatprep.subr.bf16.mxu0 %v5939
    %8063 = vmatpush1.bf16.msra.mxu0 %v5938
    %8064 = vmatprep.subr.bf16.mxu0 %v5947
    %8065 = vmatpush1.bf16.msra.mxu0 %v5946
    %8066 = vmatprep.subr.bf16.mxu0 %v5955
    %8067 = vmatpush1.bf16.msra.mxu0 %v5954
    %8068 = vmatprep.subr.bf16.mxu0 %v5963
    %8069 = vmatpush1.bf16.msra.mxu0 %v5962
    %8070 = vmatprep.subr.bf16.mxu0 %v5971
    %8071 = vmatpush1.bf16.msra.mxu0 %v5970
    %8072 = vmatprep.subr.bf16.mxu0 %v5979
    %8073 = vmatpush1.bf16.msra.mxu0 %v5978
    %8074 = vmatprep.subr.bf16.mxu0 %v5987
    %8075 = vmatpush1.bf16.msra.mxu0 %v5986
    %8076 = vmatprep.mubr.bf16.mxu0 %v953
    %8077 = vmatmul.mubr.bf16.gmra.mrb[0].mxu0 %v952
    %v8078 = vpop.f32.mrb[0].mxu0
    %v8079 = vadd.f32 %v8038, %v8078
    %v8080 = vpop.f32.mrb[0].mxu0
    %v8081 = vadd.f32 %v8040, %v8080
    %v8082 = vpop.f32.mrb[0].mxu0
    %v8083 = vpop.f32.mrb[0].mxu0
    %8084 = vdwg.mxu0
    %8085 = vmatprep.subr.bf16.mxu0 %v5995
    %8086 = vmatpush1.bf16.msra.mxu0 %v5994
    %8087 = vmatprep.subr.bf16.mxu0 %v6003
    %8088 = vmatpush1.bf16.msra.mxu0 %v6002
    %8089 = vmatprep.subr.bf16.mxu0 %v6011
    %8090 = vmatpush1.bf16.msra.mxu0 %v6010
    %8091 = vmatprep.subr.bf16.mxu0 %v6019
    %8092 = vmatpush1.bf16.msra.mxu0 %v6018
    %8093 = vmatprep.subr.bf16.mxu0 %v6027
    %8094 = vmatpush1.bf16.msra.mxu0 %v6026
    %8095 = vmatprep.subr.bf16.mxu0 %v6035
    %8096 = vmatpush1.bf16.msra.mxu0 %v6034
    %8097 = vmatprep.subr.bf16.mxu0 %v6043
    %8098 = vmatpush1.bf16.msra.mxu0 %v6042
    %8099 = vmatprep.subr.bf16.mxu0 %v6051
    %8100 = vmatpush1.bf16.msra.mxu0 %v6050
    %8101 = vmatprep.subr.bf16.mxu0 %v6059
    %8102 = vmatpush1.bf16.msra.mxu0 %v6058
    %8103 = vmatprep.subr.bf16.mxu0 %v6067
    %8104 = vmatpush1.bf16.msra.mxu0 %v6066
    %8105 = vmatprep.subr.bf16.mxu0 %v6075
    %8106 = vmatpush1.bf16.msra.mxu0 %v6074
    %8107 = vmatprep.subr.bf16.mxu0 %v6083
    %8108 = vmatpush1.bf16.msra.mxu0 %v6082
    %8109 = vmatprep.subr.bf16.mxu0 %v6091
    %8110 = vmatpush1.bf16.msra.mxu0 %v6090
    %8111 = vmatprep.subr.bf16.mxu0 %v6099
    %8112 = vmatpush1.bf16.msra.mxu0 %v6098
    %8113 = vmatprep.subr.bf16.mxu0 %v6107
    %8114 = vmatpush1.bf16.msra.mxu0 %v6106
    %8115 = vmatprep.subr.bf16.mxu0 %v6115
    %8116 = vmatpush1.bf16.msra.mxu0 %v6114
    %8117 = vmatprep.mubr.bf16.mxu0 %v955
    %8118 = vmatmul.mubr.bf16.gmra.mrb[0].mxu0 %v954
    %v8119 = vpop.f32.mrb[0].mxu0
    %v8120 = vadd.f32 %v8079, %v8119
    %v8121 = vpop.f32.mrb[0].mxu0
    %v8122 = vadd.f32 %v8081, %v8121
    %v8123 = vpop.f32.mrb[0].mxu0
    %v8124 = vpop.f32.mrb[0].mxu0
    %8125 = vdwg.mxu0
    %8126 = vmatprep.subr.bf16.mxu0 %v5101
    %8127 = vmatpush1.bf16.msra.mxu0 %v5100
    %8128 = vmatprep.subr.bf16.mxu0 %v5109
    %8129 = vmatpush1.bf16.msra.mxu0 %v5108
    %8130 = vmatprep.subr.bf16.mxu0 %v5117
    %8131 = vmatpush1.bf16.msra.mxu0 %v5116
    %8132 = vmatprep.subr.bf16.mxu0 %v5125
    %8133 = vmatpush1.bf16.msra.mxu0 %v5124
    %8134 = vmatprep.subr.bf16.mxu0 %v5133
    %8135 = vmatpush1.bf16.msra.mxu0 %v5132
    %8136 = vmatprep.subr.bf16.mxu0 %v5141
    %8137 = vmatpush1.bf16.msra.mxu0 %v5140
    %8138 = vmatprep.subr.bf16.mxu0 %v5149
    %8139 = vmatpush1.bf16.msra.mxu0 %v5148
    %8140 = vmatprep.subr.bf16.mxu0 %v5157
    %8141 = vmatpush1.bf16.msra.mxu0 %v5156
    %8142 = vmatprep.subr.bf16.mxu0 %v5165
    %8143 = vmatpush1.bf16.msra.mxu0 %v5164
    %8144 = vmatprep.subr.bf16.mxu0 %v5173
    %8145 = vmatpush1.bf16.msra.mxu0 %v5172
    %8146 = vmatprep.subr.bf16.mxu0 %v5181
    %8147 = vmatpush1.bf16.msra.mxu0 %v5180
    %8148 = vmatprep.subr.bf16.mxu0 %v5189
    %8149 = vmatpush1.bf16.msra.mxu0 %v5188
    %8150 = vmatprep.subr.bf16.mxu0 %v5197
    %8151 = vmatpush1.bf16.msra.mxu0 %v5196
    %8152 = vmatprep.subr.bf16.mxu0 %v5205
    %8153 = vmatpush1.bf16.msra.mxu0 %v5204
    %8154 = vmatprep.subr.bf16.mxu0 %v5213
    %8155 = vmatpush1.bf16.msra.mxu0 %v5212
    %8156 = vmatprep.subr.bf16.mxu0 %v5221
    %8157 = vmatpush1.bf16.msra.mxu0 %v5220
    %8158 = vmatprep.mubr.bf16.mxu0 %v941
    %8159 = vmatmul.mubr.bf16.gmra.mrb[0].mxu0 %v940
    %v8160 = vpop.f32.mrb[0].mxu0
    %v8161 = vadd.f32 %v2009, %v8160
    %v8162 = vpop.f32.mrb[0].mxu0
    %v8163 = vadd.f32 %v2013, %v8162
    %v8164 = vpop.f32.mrb[0].mxu0
    %v8165 = vpop.f32.mrb[0].mxu0
    %8166 = vdwg.mxu0
    %8167 = vmatprep.subr.bf16.mxu0 %v5229
    %8168 = vmatpush1.bf16.msra.mxu0 %v5228
    %8169 = vmatprep.subr.bf16.mxu0 %v5237
    %8170 = vmatpush1.bf16.msra.mxu0 %v5236
    %8171 = vmatprep.subr.bf16.mxu0 %v5245
    %8172 = vmatpush1.bf16.msra.mxu0 %v5244
    %8173 = vmatprep.subr.bf16.mxu0 %v5253
    %8174 = vmatpush1.bf16.msra.mxu0 %v5252
    %8175 = vmatprep.subr.bf16.mxu0 %v5261
    %8176 = vmatpush1.bf16.msra.mxu0 %v5260
    %8177 = vmatprep.subr.bf16.mxu0 %v5269
    %8178 = vmatpush1.bf16.msra.mxu0 %v5268
    %8179 = vmatprep.subr.bf16.mxu0 %v5277
    %8180 = vmatpush1.bf16.msra.mxu0 %v5276
    %8181 = vmatprep.subr.bf16.mxu0 %v5285
    %8182 = vmatpush1.bf16.msra.mxu0 %v5284
    %8183 = vmatprep.subr.bf16.mxu0 %v5293
    %8184 = vmatpush1.bf16.msra.mxu0 %v5292
    %8185 = vmatprep.subr.bf16.mxu0 %v5301
    %8186 = vmatpush1.bf16.msra.mxu0 %v5300
    %8187 = vmatprep.subr.bf16.mxu0 %v5309
    %8188 = vmatpush1.bf16.msra.mxu0 %v5308
    %8189 = vmatprep.subr.bf16.mxu0 %v5317
    %8190 = vmatpush1.bf16.msra.mxu0 %v5316
    %8191 = vmatprep.subr.bf16.mxu0 %v5325
    %8192 = vmatpush1.bf16.msra.mxu0 %v5324
    %8193 = vmatprep.subr.bf16.mxu0 %v5333
    %8194 = vmatpush1.bf16.msra.mxu0 %v5332
    %8195 = vmatprep.subr.bf16.mxu0 %v5341
    %8196 = vmatpush1.bf16.msra.mxu0 %v5340
    %8197 = vmatprep.subr.bf16.mxu0 %v5349
    %8198 = vmatpush1.bf16.msra.mxu0 %v5348
    %8199 = vmatprep.mubr.bf16.mxu0 %v943
    %8200 = vmatmul.mubr.bf16.gmra.mrb[0].mxu0 %v942
    %v8201 = vpop.f32.mrb[0].mxu0
    %v8202 = vadd.f32 %v8161, %v8201
    %v8203 = vpop.f32.mrb[0].mxu0
    %v8204 = vadd.f32 %v8163, %v8203
    %v8205 = vpop.f32.mrb[0].mxu0
    %v8206 = vpop.f32.mrb[0].mxu0
    %8207 = vdwg.mxu0
    %8208 = vmatprep.subr.bf16.mxu0 %v5357
    %8209 = vmatpush1.bf16.msra.mxu0 %v5356
    %8210 = vmatprep.subr.bf16.mxu0 %v5365
    %8211 = vmatpush1.bf16.msra.mxu0 %v5364
    %8212 = vmatprep.subr.bf16.mxu0 %v5373
    %8213 = vmatpush1.bf16.msra.mxu0 %v5372
    %8214 = vmatprep.subr.bf16.mxu0 %v5381
    %8215 = vmatpush1.bf16.msra.mxu0 %v5380
    %8216 = vmatprep.subr.bf16.mxu0 %v5389
    %8217 = vmatpush1.bf16.msra.mxu0 %v5388
    %8218 = vmatprep.subr.bf16.mxu0 %v5397
    %8219 = vmatpush1.bf16.msra.mxu0 %v5396
    %8220 = vmatprep.subr.bf16.mxu0 %v5405
    %8221 = vmatpush1.bf16.msra.mxu0 %v5404
    %8222 = vmatprep.subr.bf16.mxu0 %v5413
    %8223 = vmatpush1.bf16.msra.mxu0 %v5412
    %8224 = vmatprep.subr.bf16.mxu0 %v5421
    %8225 = vmatpush1.bf16.msra.mxu0 %v5420
    %8226 = vmatprep.subr.bf16.mxu0 %v5429
    %8227 = vmatpush1.bf16.msra.mxu0 %v5428
    %8228 = vmatprep.subr.bf16.mxu0 %v5437
    %8229 = vmatpush1.bf16.msra.mxu0 %v5436
    %8230 = vmatprep.subr.bf16.mxu0 %v5445
    %8231 = vmatpush1.bf16.msra.mxu0 %v5444
    %8232 = vmatprep.subr.bf16.mxu0 %v5453
    %8233 = vmatpush1.bf16.msra.mxu0 %v5452
    %8234 = vmatprep.subr.bf16.mxu0 %v5461
    %8235 = vmatpush1.bf16.msra.mxu0 %v5460
    %8236 = vmatprep.subr.bf16.mxu0 %v5469
    %8237 = vmatpush1.bf16.msra.mxu0 %v5468
    %8238 = vmatprep.subr.bf16.mxu0 %v5477
    %8239 = vmatpush1.bf16.msra.mxu0 %v5476
    %8240 = vmatprep.mubr.bf16.mxu0 %v945
    %8241 = vmatmul.mubr.bf16.gmra.mrb[0].mxu0 %v944
    %v8242 = vpop.f32.mrb[0].mxu0
    %v8243 = vadd.f32 %v8202, %v8242
    %v8244 = vpop.f32.mrb[0].mxu0
    %v8245 = vadd.f32 %v8204, %v8244
    %v8246 = vpop.f32.mrb[0].mxu0
    %v8247 = vpop.f32.mrb[0].mxu0
    %8248 = vdwg.mxu0
    %8249 = vmatprep.subr.bf16.mxu0 %v5485
    %8250 = vmatpush1.bf16.msra.mxu0 %v5484
    %8251 = vmatprep.subr.bf16.mxu0 %v5493
    %8252 = vmatpush1.bf16.msra.mxu0 %v5492
    %8253 = vmatprep.subr.bf16.mxu0 %v5501
    %8254 = vmatpush1.bf16.msra.mxu0 %v5500
    %8255 = vmatprep.subr.bf16.mxu0 %v5509
    %8256 = vmatpush1.bf16.msra.mxu0 %v5508
    %8257 = vmatprep.subr.bf16.mxu0 %v5517
    %8258 = vmatpush1.bf16.msra.mxu0 %v5516
    %8259 = vmatprep.subr.bf16.mxu0 %v5525
    %8260 = vmatpush1.bf16.msra.mxu0 %v5524
    %8261 = vmatprep.subr.bf16.mxu0 %v5533
    %8262 = vmatpush1.bf16.msra.mxu0 %v5532
    %8263 = vmatprep.subr.bf16.mxu0 %v5541
    %8264 = vmatpush1.bf16.msra.mxu0 %v5540
    %8265 = vmatprep.subr.bf16.mxu0 %v5549
    %8266 = vmatpush1.bf16.msra.mxu0 %v5548
    %8267 = vmatprep.subr.bf16.mxu0 %v5557
    %8268 = vmatpush1.bf16.msra.mxu0 %v5556
    %8269 = vmatprep.subr.bf16.mxu0 %v5565
    %8270 = vmatpush1.bf16.msra.mxu0 %v5564
    %8271 = vmatprep.subr.bf16.mxu0 %v5573
    %8272 = vmatpush1.bf16.msra.mxu0 %v5572
    %8273 = vmatprep.subr.bf16.mxu0 %v5581
    %8274 = vmatpush1.bf16.msra.mxu0 %v5580
    %8275 = vmatprep.subr.bf16.mxu0 %v5589
    %8276 = vmatpush1.bf16.msra.mxu0 %v5588
    %8277 = vmatprep.subr.bf16.mxu0 %v5597
    %8278 = vmatpush1.bf16.msra.mxu0 %v5596
    %8279 = vmatprep.subr.bf16.mxu0 %v5605
    %8280 = vmatpush1.bf16.msra.mxu0 %v5604
    %8281 = vmatprep.mubr.bf16.mxu0 %v947
    %8282 = vmatmul.mubr.bf16.gmra.mrb[0].mxu0 %v946
    %v8283 = vpop.f32.mrb[0].mxu0
    %v8284 = vadd.f32 %v8243, %v8283
    %v8285 = vpop.f32.mrb[0].mxu0
    %v8286 = vadd.f32 %v8245, %v8285
    %v8287 = vpop.f32.mrb[0].mxu0
    %v8288 = vpop.f32.mrb[0].mxu0
    %8289 = vdwg.mxu0
    %8290 = vmatprep.subr.bf16.mxu0 %v5613
    %8291 = vmatpush1.bf16.msra.mxu0 %v5612
    %8292 = vmatprep.subr.bf16.mxu0 %v5621
    %8293 = vmatpush1.bf16.msra.mxu0 %v5620
    %8294 = vmatprep.subr.bf16.mxu0 %v5629
    %8295 = vmatpush1.bf16.msra.mxu0 %v5628
    %8296 = vmatprep.subr.bf16.mxu0 %v5637
    %8297 = vmatpush1.bf16.msra.mxu0 %v5636
    %8298 = vmatprep.subr.bf16.mxu0 %v5645
    %8299 = vmatpush1.bf16.msra.mxu0 %v5644
    %8300 = vmatprep.subr.bf16.mxu0 %v5653
    %8301 = vmatpush1.bf16.msra.mxu0 %v5652
    %8302 = vmatprep.subr.bf16.mxu0 %v5661
    %8303 = vmatpush1.bf16.msra.mxu0 %v5660
    %8304 = vmatprep.subr.bf16.mxu0 %v5669
    %8305 = vmatpush1.bf16.msra.mxu0 %v5668
    %8306 = vmatprep.subr.bf16.mxu0 %v5677
    %8307 = vmatpush1.bf16.msra.mxu0 %v5676
    %8308 = vmatprep.subr.bf16.mxu0 %v5685
    %8309 = vmatpush1.bf16.msra.mxu0 %v5684
    %8310 = vmatprep.subr.bf16.mxu0 %v5693
    %8311 = vmatpush1.bf16.msra.mxu0 %v5692
    %8312 = vmatprep.subr.bf16.mxu0 %v5701
    %8313 = vmatpush1.bf16.msra.mxu0 %v5700
    %8314 = vmatprep.subr.bf16.mxu0 %v5709
    %8315 = vmatpush1.bf16.msra.mxu0 %v5708
    %8316 = vmatprep.subr.bf16.mxu0 %v5717
    %8317 = vmatpush1.bf16.msra.mxu0 %v5716
    %8318 = vmatprep.subr.bf16.mxu0 %v5725
    %8319 = vmatpush1.bf16.msra.mxu0 %v5724
    %8320 = vmatprep.subr.bf16.mxu0 %v5733
    %8321 = vmatpush1.bf16.msra.mxu0 %v5732
    %8322 = vmatprep.mubr.bf16.mxu0 %v949
    %8323 = vmatmul.mubr.bf16.gmra.mrb[0].mxu0 %v948
    %v8324 = vpop.f32.mrb[0].mxu0
    %v8325 = vadd.f32 %v8284, %v8324
    %v8326 = vpop.f32.mrb[0].mxu0
    %v8327 = vadd.f32 %v8286, %v8326
    %v8328 = vpop.f32.mrb[0].mxu0
    %v8329 = vpop.f32.mrb[0].mxu0
    %8330 = vdwg.mxu0
    %8331 = vmatprep.subr.bf16.mxu0 %v5741
    %8332 = vmatpush1.bf16.msra.mxu0 %v5740
    %8333 = vmatprep.subr.bf16.mxu0 %v5749
    %8334 = vmatpush1.bf16.msra.mxu0 %v5748
    %8335 = vmatprep.subr.bf16.mxu0 %v5757
    %8336 = vmatpush1.bf16.msra.mxu0 %v5756
    %8337 = vmatprep.subr.bf16.mxu0 %v5765
    %8338 = vmatpush1.bf16.msra.mxu0 %v5764
    %8339 = vmatprep.subr.bf16.mxu0 %v5773
    %8340 = vmatpush1.bf16.msra.mxu0 %v5772
    %8341 = vmatprep.subr.bf16.mxu0 %v5781
    %8342 = vmatpush1.bf16.msra.mxu0 %v5780
    %8343 = vmatprep.subr.bf16.mxu0 %v5789
    %8344 = vmatpush1.bf16.msra.mxu0 %v5788
    %8345 = vmatprep.subr.bf16.mxu0 %v5797
    %8346 = vmatpush1.bf16.msra.mxu0 %v5796
    %8347 = vmatprep.subr.bf16.mxu0 %v5805
    %8348 = vmatpush1.bf16.msra.mxu0 %v5804
    %8349 = vmatprep.subr.bf16.mxu0 %v5813
    %8350 = vmatpush1.bf16.msra.mxu0 %v5812
    %8351 = vmatprep.subr.bf16.mxu0 %v5821
    %8352 = vmatpush1.bf16.msra.mxu0 %v5820
    %8353 = vmatprep.subr.bf16.mxu0 %v5829
    %8354 = vmatpush1.bf16.msra.mxu0 %v5828
    %8355 = vmatprep.subr.bf16.mxu0 %v5837
    %8356 = vmatpush1.bf16.msra.mxu0 %v5836
    %8357 = vmatprep.subr.bf16.mxu0 %v5845
    %8358 = vmatpush1.bf16.msra.mxu0 %v5844
    %8359 = vmatprep.subr.bf16.mxu0 %v5853
    %8360 = vmatpush1.bf16.msra.mxu0 %v5852
    %8361 = vmatprep.subr.bf16.mxu0 %v5861
    %8362 = vmatpush1.bf16.msra.mxu0 %v5860
    %8363 = vmatprep.mubr.bf16.mxu0 %v951
    %8364 = vmatmul.mubr.bf16.gmra.mrb[0].mxu0 %v950
    %v8365 = vpop.f32.mrb[0].mxu0
    %v8366 = vadd.f32 %v8325, %v8365
    %v8367 = vpop.f32.mrb[0].mxu0
    %v8368 = vadd.f32 %v8327, %v8367
    %v8369 = vpop.f32.mrb[0].mxu0
    %v8370 = vpop.f32.mrb[0].mxu0
    %8371 = vdwg.mxu0
    %8372 = vmatprep.subr.bf16.mxu0 %v5869
    %8373 = vmatpush1.bf16.msra.mxu0 %v5868
    %8374 = vmatprep.subr.bf16.mxu0 %v5877
    %8375 = vmatpush1.bf16.msra.mxu0 %v5876
    %8376 = vmatprep.subr.bf16.mxu0 %v5885
    %8377 = vmatpush1.bf16.msra.mxu0 %v5884
    %8378 = vmatprep.subr.bf16.mxu0 %v5893
    %8379 = vmatpush1.bf16.msra.mxu0 %v5892
    %8380 = vmatprep.subr.bf16.mxu0 %v5901
    %8381 = vmatpush1.bf16.msra.mxu0 %v5900
    %8382 = vmatprep.subr.bf16.mxu0 %v5909
    %8383 = vmatpush1.bf16.msra.mxu0 %v5908
    %8384 = vmatprep.subr.bf16.mxu0 %v5917
    %8385 = vmatpush1.bf16.msra.mxu0 %v5916
    %8386 = vmatprep.subr.bf16.mxu0 %v5925
    %8387 = vmatpush1.bf16.msra.mxu0 %v5924
    %8388 = vmatprep.subr.bf16.mxu0 %v5933
    %8389 = vmatpush1.bf16.msra.mxu0 %v5932
    %8390 = vmatprep.subr.bf16.mxu0 %v5941
    %8391 = vmatpush1.bf16.msra.mxu0 %v5940
    %8392 = vmatprep.subr.bf16.mxu0 %v5949
    %8393 = vmatpush1.bf16.msra.mxu0 %v5948
    %8394 = vmatprep.subr.bf16.mxu0 %v5957
    %8395 = vmatpush1.bf16.msra.mxu0 %v5956
    %8396 = vmatprep.subr.bf16.mxu0 %v5965
    %8397 = vmatpush1.bf16.msra.mxu0 %v5964
    %8398 = vmatprep.subr.bf16.mxu0 %v5973
    %8399 = vmatpush1.bf16.msra.mxu0 %v5972
    %8400 = vmatprep.subr.bf16.mxu0 %v5981
    %8401 = vmatpush1.bf16.msra.mxu0 %v5980
    %8402 = vmatprep.subr.bf16.mxu0 %v5989
    %8403 = vmatpush1.bf16.msra.mxu0 %v5988
    %8404 = vmatprep.mubr.bf16.mxu0 %v953
    %8405 = vmatmul.mubr.bf16.gmra.mrb[0].mxu0 %v952
    %v8406 = vpop.f32.mrb[0].mxu0
    %v8407 = vadd.f32 %v8366, %v8406
    %v8408 = vpop.f32.mrb[0].mxu0
    %v8409 = vadd.f32 %v8368, %v8408
    %v8410 = vpop.f32.mrb[0].mxu0
    %v8411 = vpop.f32.mrb[0].mxu0
    %8412 = vdwg.mxu0
    %8413 = vmatprep.subr.bf16.mxu0 %v5997
    %8414 = vmatpush1.bf16.msra.mxu0 %v5996
    %8415 = vmatprep.subr.bf16.mxu0 %v6005
    %8416 = vmatpush1.bf16.msra.mxu0 %v6004
    %8417 = vmatprep.subr.bf16.mxu0 %v6013
    %8418 = vmatpush1.bf16.msra.mxu0 %v6012
    %8419 = vmatprep.subr.bf16.mxu0 %v6021
    %8420 = vmatpush1.bf16.msra.mxu0 %v6020
    %8421 = vmatprep.subr.bf16.mxu0 %v6029
    %8422 = vmatpush1.bf16.msra.mxu0 %v6028
    %8423 = vmatprep.subr.bf16.mxu0 %v6037
    %8424 = vmatpush1.bf16.msra.mxu0 %v6036
    %8425 = vmatprep.subr.bf16.mxu0 %v6045
    %8426 = vmatpush1.bf16.msra.mxu0 %v6044
    %8427 = vmatprep.subr.bf16.mxu0 %v6053
    %8428 = vmatpush1.bf16.msra.mxu0 %v6052
    %8429 = vmatprep.subr.bf16.mxu0 %v6061
    %8430 = vmatpush1.bf16.msra.mxu0 %v6060
    %8431 = vmatprep.subr.bf16.mxu0 %v6069
    %8432 = vmatpush1.bf16.msra.mxu0 %v6068
    %8433 = vmatprep.subr.bf16.mxu0 %v6077
    %8434 = vmatpush1.bf16.msra.mxu0 %v6076
    %8435 = vmatprep.subr.bf16.mxu0 %v6085
    %8436 = vmatpush1.bf16.msra.mxu0 %v6084
    %8437 = vmatprep.subr.bf16.mxu0 %v6093
    %8438 = vmatpush1.bf16.msra.mxu0 %v6092
    %8439 = vmatprep.subr.bf16.mxu0 %v6101
    %8440 = vmatpush1.bf16.msra.mxu0 %v6100
    %8441 = vmatprep.subr.bf16.mxu0 %v6109
    %8442 = vmatpush1.bf16.msra.mxu0 %v6108
    %8443 = vmatprep.subr.bf16.mxu0 %v6117
    %8444 = vmatpush1.bf16.msra.mxu0 %v6116
    %8445 = vmatprep.mubr.bf16.mxu0 %v955
    %8446 = vmatmul.mubr.bf16.gmra.mrb[0].mxu0 %v954
    %v8447 = vpop.f32.mrb[0].mxu0
    %v8448 = vadd.f32 %v8407, %v8447
    %v8449 = vpop.f32.mrb[0].mxu0
    %v8450 = vadd.f32 %v8409, %v8449
    %v8451 = vpop.f32.mrb[0].mxu0
    %v8452 = vpop.f32.mrb[0].mxu0
    %8453 = vdwg.mxu0
    %v8454 = vmax.f32 %v7464, 0.0
    %v8455 = vmax.f32 %v7466, 0.0
    %v8456 = vmax.f32 %v7792, 0.0
    %v8457 = vmax.f32 %v7794, 0.0
    %v8458 = vmax.f32 %v8120, 0.0
    %v8459 = vmax.f32 %v8122, 0.0
    %v8460 = vmax.f32 %v8448, 0.0
    %v8461 = vmax.f32 %v8450, 0.0
    %v8462 = vpack.c.bf16 %v8454, %v8454
    %v8463 = vpack.c.bf16 %v8455, %v8455
    %v8464 = vpack.c.bf16 %v8456, %v8456
    %v8465 = vpack.c.bf16 %v8457, %v8457
    %v8466 = vpack.c.bf16 %v8458, %v8458
    %v8467 = vpack.c.bf16 %v8459, %v8459
    %v8468 = vpack.c.bf16 %v8460, %v8460
    %v8469 = vpack.c.bf16 %v8461, %v8461
    %v8470 = vld [vmem:[#allocation11] sm:$0xf]
    %v8471 = vld [vmem:[#allocation11 + $0x4] sm:$0xf]
    %v8472 = vld [vmem:[#allocation11 + $0x8] sm:$0xf]
    %v8473 = vld [vmem:[#allocation11 + $0xc] sm:$0xf]
    %v8474 = vld [vmem:[#allocation11 + $0x10] sm:$0xf]
    %v8475 = vld [vmem:[#allocation11 + $0x14] sm:$0xf]
    %v8476 = vld [vmem:[#allocation11 + $0x18] sm:$0xf]
    %v8477 = vld [vmem:[#allocation11 + $0x1c] sm:$0xf]
    %v8478 = vld [vmem:[#allocation11 + $0x20] sm:$0xf]
    %v8479 = vld [vmem:[#allocation11 + $0x24] sm:$0xf]
    %v8480 = vld [vmem:[#allocation11 + $0x28] sm:$0xf]
    %v8481 = vld [vmem:[#allocation11 + $0x2c] sm:$0xf]
    %v8482 = vld [vmem:[#allocation11 + $0x30] sm:$0xf]
    %v8483 = vld [vmem:[#allocation11 + $0x34] sm:$0xf]
    %v8484 = vld [vmem:[#allocation11 + $0x38] sm:$0xf]
    %v8485 = vld [vmem:[#allocation11 + $0x3c] sm:$0xf]
    %v8486 = vld [vmem:[#allocation11 + $0x40] sm:$0xf]
    %v8487 = vld [vmem:[#allocation11 + $0x44] sm:$0xf]
    %v8488 = vld [vmem:[#allocation11 + $0x48] sm:$0xf]
    %v8489 = vld [vmem:[#allocation11 + $0x4c] sm:$0xf]
    %v8490 = vld [vmem:[#allocation11 + $0x50] sm:$0xf]
    %v8491 = vld [vmem:[#allocation11 + $0x54] sm:$0xf]
    %v8492 = vld [vmem:[#allocation11 + $0x58] sm:$0xf]
    %v8493 = vld [vmem:[#allocation11 + $0x5c] sm:$0xf]
    %v8494 = vld [vmem:[#allocation11 + $0x60] sm:$0xf]
    %v8495 = vld [vmem:[#allocation11 + $0x64] sm:$0xf]
    %v8496 = vld [vmem:[#allocation11 + $0x68] sm:$0xf]
    %v8497 = vld [vmem:[#allocation11 + $0x6c] sm:$0xf]
    %v8498 = vld [vmem:[#allocation11 + $0x70] sm:$0xf]
    %v8499 = vld [vmem:[#allocation11 + $0x74] sm:$0xf]
    %v8500 = vld [vmem:[#allocation11 + $0x78] sm:$0xf]
    %v8501 = vld [vmem:[#allocation11 + $0x7c] sm:$0xf]
    %v8502 = vld [vmem:[#allocation11 + $0x80] sm:$0xf]
    %v8503 = vld [vmem:[#allocation11 + $0x84] sm:$0xf]
    %v8504 = vld [vmem:[#allocation11 + $0x88] sm:$0xf]
    %v8505 = vld [vmem:[#allocation11 + $0x8c] sm:$0xf]
    %v8506 = vld [vmem:[#allocation11 + $0x90] sm:$0xf]
    %v8507 = vld [vmem:[#allocation11 + $0x94] sm:$0xf]
    %v8508 = vld [vmem:[#allocation11 + $0x98] sm:$0xf]
    %v8509 = vld [vmem:[#allocation11 + $0x9c] sm:$0xf]
    %v8510 = vld [vmem:[#allocation11 + $0xa0] sm:$0xf]
    %v8511 = vld [vmem:[#allocation11 + $0xa4] sm:$0xf]
    %v8512 = vld [vmem:[#allocation11 + $0xa8] sm:$0xf]
    %v8513 = vld [vmem:[#allocation11 + $0xac] sm:$0xf]
    %v8514 = vld [vmem:[#allocation11 + $0xb0] sm:$0xf]
    %v8515 = vld [vmem:[#allocation11 + $0xb4] sm:$0xf]
    %v8516 = vld [vmem:[#allocation11 + $0xb8] sm:$0xf]
    %v8517 = vld [vmem:[#allocation11 + $0xbc] sm:$0xf]
    %v8518 = vld [vmem:[#allocation11 + $0xc0] sm:$0xf]
    %v8519 = vld [vmem:[#allocation11 + $0xc4] sm:$0xf]
    %v8520 = vld [vmem:[#allocation11 + $0xc8] sm:$0xf]
    %v8521 = vld [vmem:[#allocation11 + $0xcc] sm:$0xf]
    %v8522 = vld [vmem:[#allocation11 + $0xd0] sm:$0xf]
    %v8523 = vld [vmem:[#allocation11 + $0xd4] sm:$0xf]
    %v8524 = vld [vmem:[#allocation11 + $0xd8] sm:$0xf]
    %v8525 = vld [vmem:[#allocation11 + $0xdc] sm:$0xf]
    %v8526 = vld [vmem:[#allocation11 + $0xe0] sm:$0xf]
    %v8527 = vld [vmem:[#allocation11 + $0xe4] sm:$0xf]
    %v8528 = vld [vmem:[#allocation11 + $0xe8] sm:$0xf]
    %v8529 = vld [vmem:[#allocation11 + $0xec] sm:$0xf]
    %v8530 = vld [vmem:[#allocation11 + $0xf0] sm:$0xf]
    %v8531 = vld [vmem:[#allocation11 + $0xf4] sm:$0xf]
    %v8532 = vld [vmem:[#allocation11 + $0xf8] sm:$0xf]
    %v8533 = vld [vmem:[#allocation11 + $0xfc] sm:$0xf]
    %v8534 = vld [vmem:[#allocation11 + $0x100] sm:$0xf]
    %v8535 = vld [vmem:[#allocation11 + $0x104] sm:$0xf]
    %v8536 = vld [vmem:[#allocation11 + $0x108] sm:$0xf]
    %v8537 = vld [vmem:[#allocation11 + $0x10c] sm:$0xf]
    %v8538 = vld [vmem:[#allocation11 + $0x110] sm:$0xf]
    %v8539 = vld [vmem:[#allocation11 + $0x114] sm:$0xf]
    %v8540 = vld [vmem:[#allocation11 + $0x118] sm:$0xf]
    %v8541 = vld [vmem:[#allocation11 + $0x11c] sm:$0xf]
    %v8542 = vld [vmem:[#allocation11 + $0x120] sm:$0xf]
    %v8543 = vld [vmem:[#allocation11 + $0x124] sm:$0xf]
    %v8544 = vld [vmem:[#allocation11 + $0x128] sm:$0xf]
    %v8545 = vld [vmem:[#allocation11 + $0x12c] sm:$0xf]
    %v8546 = vld [vmem:[#allocation11 + $0x130] sm:$0xf]
    %v8547 = vld [vmem:[#allocation11 + $0x134] sm:$0xf]
    %v8548 = vld [vmem:[#allocation11 + $0x138] sm:$0xf]
    %v8549 = vld [vmem:[#allocation11 + $0x13c] sm:$0xf]
    %v8550 = vld [vmem:[#allocation11 + $0x140] sm:$0xf]
    %v8551 = vld [vmem:[#allocation11 + $0x144] sm:$0xf]
    %v8552 = vld [vmem:[#allocation11 + $0x148] sm:$0xf]
    %v8553 = vld [vmem:[#allocation11 + $0x14c] sm:$0xf]
    %v8554 = vld [vmem:[#allocation11 + $0x150] sm:$0xf]
    %v8555 = vld [vmem:[#allocation11 + $0x154] sm:$0xf]
    %v8556 = vld [vmem:[#allocation11 + $0x158] sm:$0xf]
    %v8557 = vld [vmem:[#allocation11 + $0x15c] sm:$0xf]
    %v8558 = vld [vmem:[#allocation11 + $0x160] sm:$0xf]
    %v8559 = vld [vmem:[#allocation11 + $0x164] sm:$0xf]
    %v8560 = vld [vmem:[#allocation11 + $0x168] sm:$0xf]
    %v8561 = vld [vmem:[#allocation11 + $0x16c] sm:$0xf]
    %v8562 = vld [vmem:[#allocation11 + $0x170] sm:$0xf]
    %v8563 = vld [vmem:[#allocation11 + $0x174] sm:$0xf]
    %v8564 = vld [vmem:[#allocation11 + $0x178] sm:$0xf]
    %v8565 = vld [vmem:[#allocation11 + $0x17c] sm:$0xf]
    %v8566 = vld [vmem:[#allocation11 + $0x180] sm:$0xf]
    %v8567 = vld [vmem:[#allocation11 + $0x184] sm:$0xf]
    %v8568 = vld [vmem:[#allocation11 + $0x188] sm:$0xf]
    %v8569 = vld [vmem:[#allocation11 + $0x18c] sm:$0xf]
    %v8570 = vld [vmem:[#allocation11 + $0x190] sm:$0xf]
    %v8571 = vld [vmem:[#allocation11 + $0x194] sm:$0xf]
    %v8572 = vld [vmem:[#allocation11 + $0x198] sm:$0xf]
    %v8573 = vld [vmem:[#allocation11 + $0x19c] sm:$0xf]
    %v8574 = vld [vmem:[#allocation11 + $0x1a0] sm:$0xf]
    %v8575 = vld [vmem:[#allocation11 + $0x1a4] sm:$0xf]
    %v8576 = vld [vmem:[#allocation11 + $0x1a8] sm:$0xf]
    %v8577 = vld [vmem:[#allocation11 + $0x1ac] sm:$0xf]
    %v8578 = vld [vmem:[#allocation11 + $0x1b0] sm:$0xf]
    %v8579 = vld [vmem:[#allocation11 + $0x1b4] sm:$0xf]
    %v8580 = vld [vmem:[#allocation11 + $0x1b8] sm:$0xf]
    %v8581 = vld [vmem:[#allocation11 + $0x1bc] sm:$0xf]
    %v8582 = vld [vmem:[#allocation11 + $0x1c0] sm:$0xf]
    %v8583 = vld [vmem:[#allocation11 + $0x1c4] sm:$0xf]
    %v8584 = vld [vmem:[#allocation11 + $0x1c8] sm:$0xf]
    %v8585 = vld [vmem:[#allocation11 + $0x1cc] sm:$0xf]
    %v8586 = vld [vmem:[#allocation11 + $0x1d0] sm:$0xf]
    %v8587 = vld [vmem:[#allocation11 + $0x1d4] sm:$0xf]
    %v8588 = vld [vmem:[#allocation11 + $0x1d8] sm:$0xf]
    %v8589 = vld [vmem:[#allocation11 + $0x1dc] sm:$0xf]
    %v8590 = vld [vmem:[#allocation11 + $0x1e0] sm:$0xf]
    %v8591 = vld [vmem:[#allocation11 + $0x1e4] sm:$0xf]
    %v8592 = vld [vmem:[#allocation11 + $0x1e8] sm:$0xf]
    %v8593 = vld [vmem:[#allocation11 + $0x1ec] sm:$0xf]
    %v8594 = vld [vmem:[#allocation11 + $0x1f0] sm:$0xf]
    %v8595 = vld [vmem:[#allocation11 + $0x1f4] sm:$0xf]
    %v8596 = vld [vmem:[#allocation11 + $0x1f8] sm:$0xf]
    %v8597 = vld [vmem:[#allocation11 + $0x1fc] sm:$0xf]
    %v8598 = vld [vmem:[#allocation13] sm:$0x1]
    %v8600 = vlaneseq
    %v8601 = vshrl.u32 %v8600, 7
    %v8602 = vsub.s32 0, %v8601
    %v8603 = vrot.slane %v8598, %v8602
    %v8733 = vunpack.c.l.b16 %v8470
    %v8734 = vunpack.c.l.b16 %v8471
    %v8735 = vunpack.c.l.b16 %v8472
    %v8736 = vunpack.c.l.b16 %v8473
    %v8737 = vunpack.c.l.b16 %v8474
    %v8738 = vunpack.c.l.b16 %v8475
    %v8739 = vunpack.c.l.b16 %v8476
    %v8740 = vunpack.c.l.b16 %v8477
    %v8741 = vunpack.c.l.b16 %v8478
    %v8742 = vunpack.c.l.b16 %v8479
    %v8743 = vunpack.c.l.b16 %v8480
    %v8744 = vunpack.c.l.b16 %v8481
    %v8745 = vunpack.c.l.b16 %v8482
    %v8746 = vunpack.c.l.b16 %v8483
    %v8747 = vunpack.c.l.b16 %v8484
    %v8748 = vunpack.c.l.b16 %v8485
    %v8749 = vunpack.c.l.b16 %v8486
    %v8750 = vunpack.c.l.b16 %v8487
    %v8751 = vunpack.c.l.b16 %v8488
    %v8752 = vunpack.c.l.b16 %v8489
    %v8753 = vunpack.c.l.b16 %v8490
    %v8754 = vunpack.c.l.b16 %v8491
    %v8755 = vunpack.c.l.b16 %v8492
    %v8756 = vunpack.c.l.b16 %v8493
    %v8757 = vunpack.c.l.b16 %v8494
    %v8758 = vunpack.c.l.b16 %v8495
    %v8759 = vunpack.c.l.b16 %v8496
    %v8760 = vunpack.c.l.b16 %v8497
    %v8761 = vunpack.c.l.b16 %v8498
    %v8762 = vunpack.c.l.b16 %v8499
    %v8763 = vunpack.c.l.b16 %v8500
    %v8764 = vunpack.c.l.b16 %v8501
    %v8765 = vunpack.c.l.b16 %v8502
    %v8766 = vunpack.c.l.b16 %v8503
    %v8767 = vunpack.c.l.b16 %v8504
    %v8768 = vunpack.c.l.b16 %v8505
    %v8769 = vunpack.c.l.b16 %v8506
    %v8770 = vunpack.c.l.b16 %v8507
    %v8771 = vunpack.c.l.b16 %v8508
    %v8772 = vunpack.c.l.b16 %v8509
    %v8773 = vunpack.c.l.b16 %v8510
    %v8774 = vunpack.c.l.b16 %v8511
    %v8775 = vunpack.c.l.b16 %v8512
    %v8776 = vunpack.c.l.b16 %v8513
    %v8777 = vunpack.c.l.b16 %v8514
    %v8778 = vunpack.c.l.b16 %v8515
    %v8779 = vunpack.c.l.b16 %v8516
    %v8780 = vunpack.c.l.b16 %v8517
    %v8781 = vunpack.c.l.b16 %v8518
    %v8782 = vunpack.c.l.b16 %v8519
    %v8783 = vunpack.c.l.b16 %v8520
    %v8784 = vunpack.c.l.b16 %v8521
    %v8785 = vunpack.c.l.b16 %v8522
    %v8786 = vunpack.c.l.b16 %v8523
    %v8787 = vunpack.c.l.b16 %v8524
    %v8788 = vunpack.c.l.b16 %v8525
    %v8789 = vunpack.c.l.b16 %v8526
    %v8790 = vunpack.c.l.b16 %v8527
    %v8791 = vunpack.c.l.b16 %v8528
    %v8792 = vunpack.c.l.b16 %v8529
    %v8793 = vunpack.c.l.b16 %v8530
    %v8794 = vunpack.c.l.b16 %v8531
    %v8795 = vunpack.c.l.b16 %v8532
    %v8796 = vunpack.c.l.b16 %v8533
    %v8797 = vunpack.c.l.b16 %v8534
    %v8798 = vunpack.c.l.b16 %v8535
    %v8799 = vunpack.c.l.b16 %v8536
    %v8800 = vunpack.c.l.b16 %v8537
    %v8801 = vunpack.c.l.b16 %v8538
    %v8802 = vunpack.c.l.b16 %v8539
    %v8803 = vunpack.c.l.b16 %v8540
    %v8804 = vunpack.c.l.b16 %v8541
    %v8805 = vunpack.c.l.b16 %v8542
    %v8806 = vunpack.c.l.b16 %v8543
    %v8807 = vunpack.c.l.b16 %v8544
    %v8808 = vunpack.c.l.b16 %v8545
    %v8809 = vunpack.c.l.b16 %v8546
    %v8810 = vunpack.c.l.b16 %v8547
    %v8811 = vunpack.c.l.b16 %v8548
    %v8812 = vunpack.c.l.b16 %v8549
    %v8813 = vunpack.c.l.b16 %v8550
    %v8814 = vunpack.c.l.b16 %v8551
    %v8815 = vunpack.c.l.b16 %v8552
    %v8816 = vunpack.c.l.b16 %v8553
    %v8817 = vunpack.c.l.b16 %v8554
    %v8818 = vunpack.c.l.b16 %v8555
    %v8819 = vunpack.c.l.b16 %v8556
    %v8820 = vunpack.c.l.b16 %v8557
    %v8821 = vunpack.c.l.b16 %v8558
    %v8822 = vunpack.c.l.b16 %v8559
    %v8823 = vunpack.c.l.b16 %v8560
    %v8824 = vunpack.c.l.b16 %v8561
    %v8825 = vunpack.c.l.b16 %v8562
    %v8826 = vunpack.c.l.b16 %v8563
    %v8827 = vunpack.c.l.b16 %v8564
    %v8828 = vunpack.c.l.b16 %v8565
    %v8829 = vunpack.c.l.b16 %v8566
    %v8830 = vunpack.c.l.b16 %v8567
    %v8831 = vunpack.c.l.b16 %v8568
    %v8832 = vunpack.c.l.b16 %v8569
    %v8833 = vunpack.c.l.b16 %v8570
    %v8834 = vunpack.c.l.b16 %v8571
    %v8835 = vunpack.c.l.b16 %v8572
    %v8836 = vunpack.c.l.b16 %v8573
    %v8837 = vunpack.c.l.b16 %v8574
    %v8838 = vunpack.c.l.b16 %v8575
    %v8839 = vunpack.c.l.b16 %v8576
    %v8840 = vunpack.c.l.b16 %v8577
    %v8841 = vunpack.c.l.b16 %v8578
    %v8842 = vunpack.c.l.b16 %v8579
    %v8843 = vunpack.c.l.b16 %v8580
    %v8844 = vunpack.c.l.b16 %v8581
    %v8845 = vunpack.c.l.b16 %v8582
    %v8846 = vunpack.c.l.b16 %v8583
    %v8847 = vunpack.c.l.b16 %v8584
    %v8848 = vunpack.c.l.b16 %v8585
    %v8849 = vunpack.c.l.b16 %v8586
    %v8850 = vunpack.c.l.b16 %v8587
    %v8851 = vunpack.c.l.b16 %v8588
    %v8852 = vunpack.c.l.b16 %v8589
    %v8853 = vunpack.c.l.b16 %v8590
    %v8854 = vunpack.c.l.b16 %v8591
    %v8855 = vunpack.c.l.b16 %v8592
    %v8856 = vunpack.c.l.b16 %v8593
    %v8857 = vunpack.c.l.b16 %v8594
    %v8858 = vunpack.c.l.b16 %v8595
    %v8859 = vunpack.c.l.b16 %v8596
    %v8860 = vunpack.c.l.b16 %v8597
    %v8861 = vpack.c.b16 %v8734, %v8733
    %v8862 = vpack.c.b16 %v8736, %v8735
    %v8863 = vpack.c.b16 %v8738, %v8737
    %v8864 = vpack.c.b16 %v8740, %v8739
    %v8865 = vpack.c.b16 %v8742, %v8741
    %v8866 = vpack.c.b16 %v8744, %v8743
    %v8867 = vpack.c.b16 %v8746, %v8745
    %v8868 = vpack.c.b16 %v8748, %v8747
    %v8869 = vpack.c.b16 %v8750, %v8749
    %v8870 = vpack.c.b16 %v8752, %v8751
    %v8871 = vpack.c.b16 %v8754, %v8753
    %v8872 = vpack.c.b16 %v8756, %v8755
    %v8873 = vpack.c.b16 %v8758, %v8757
    %v8874 = vpack.c.b16 %v8760, %v8759
    %v8875 = vpack.c.b16 %v8762, %v8761
    %v8876 = vpack.c.b16 %v8764, %v8763
    %v8877 = vpack.c.b16 %v8766, %v8765
    %v8878 = vpack.c.b16 %v8768, %v8767
    %v8879 = vpack.c.b16 %v8770, %v8769
    %v8880 = vpack.c.b16 %v8772, %v8771
    %v8881 = vpack.c.b16 %v8774, %v8773
    %v8882 = vpack.c.b16 %v8776, %v8775
    %v8883 = vpack.c.b16 %v8778, %v8777
    %v8884 = vpack.c.b16 %v8780, %v8779
    %v8885 = vpack.c.b16 %v8782, %v8781
    %v8886 = vpack.c.b16 %v8784, %v8783
    %v8887 = vpack.c.b16 %v8786, %v8785
    %v8888 = vpack.c.b16 %v8788, %v8787
    %v8889 = vpack.c.b16 %v8790, %v8789
    %v8890 = vpack.c.b16 %v8792, %v8791
    %v8891 = vpack.c.b16 %v8794, %v8793
    %v8892 = vpack.c.b16 %v8796, %v8795
    %v8893 = vpack.c.b16 %v8798, %v8797
    %v8894 = vpack.c.b16 %v8800, %v8799
    %v8895 = vpack.c.b16 %v8802, %v8801
    %v8896 = vpack.c.b16 %v8804, %v8803
    %v8897 = vpack.c.b16 %v8806, %v8805
    %v8898 = vpack.c.b16 %v8808, %v8807
    %v8899 = vpack.c.b16 %v8810, %v8809
    %v8900 = vpack.c.b16 %v8812, %v8811
    %v8901 = vpack.c.b16 %v8814, %v8813
    %v8902 = vpack.c.b16 %v8816, %v8815
    %v8903 = vpack.c.b16 %v8818, %v8817
    %v8904 = vpack.c.b16 %v8820, %v8819
    %v8905 = vpack.c.b16 %v8822, %v8821
    %v8906 = vpack.c.b16 %v8824, %v8823
    %v8907 = vpack.c.b16 %v8826, %v8825
    %v8908 = vpack.c.b16 %v8828, %v8827
    %v8909 = vpack.c.b16 %v8830, %v8829
    %v8910 = vpack.c.b16 %v8832, %v8831
    %v8911 = vpack.c.b16 %v8834, %v8833
    %v8912 = vpack.c.b16 %v8836, %v8835
    %v8913 = vpack.c.b16 %v8838, %v8837
    %v8914 = vpack.c.b16 %v8840, %v8839
    %v8915 = vpack.c.b16 %v8842, %v8841
    %v8916 = vpack.c.b16 %v8844, %v8843
    %v8917 = vpack.c.b16 %v8846, %v8845
    %v8918 = vpack.c.b16 %v8848, %v8847
    %v8919 = vpack.c.b16 %v8850, %v8849
    %v8920 = vpack.c.b16 %v8852, %v8851
    %v8921 = vpack.c.b16 %v8854, %v8853
    %v8922 = vpack.c.b16 %v8856, %v8855
    %v8923 = vpack.c.b16 %v8858, %v8857
    %v8924 = vpack.c.b16 %v8860, %v8859
    %8989 = vmatprep.subr.bf16.mxu0 0
    %8990 = vmatpush1.bf16.msra.mxu0 %v8861
    %8991 = vmatprep.subr.bf16.mxu0 0
    %8992 = vmatpush1.bf16.msra.mxu0 %v8862
    %8993 = vmatprep.subr.bf16.mxu0 0
    %8994 = vmatpush1.bf16.msra.mxu0 %v8863
    %8995 = vmatprep.subr.bf16.mxu0 0
    %8996 = vmatpush1.bf16.msra.mxu0 %v8864
    %8997 = vmatprep.subr.bf16.mxu0 0
    %8998 = vmatpush1.bf16.msra.mxu0 %v8865
    %8999 = vmatprep.subr.bf16.mxu0 0
    %9000 = vmatpush1.bf16.msra.mxu0 %v8866
    %9001 = vmatprep.subr.bf16.mxu0 0
    %9002 = vmatpush1.bf16.msra.mxu0 %v8867
    %9003 = vmatprep.subr.bf16.mxu0 0
    %9004 = vmatpush1.bf16.msra.mxu0 %v8868
    %9005 = vmatprep.subr.bf16.mxu0 0
    %9006 = vmatpush1.bf16.msra.mxu0 %v8869
    %9007 = vmatprep.subr.bf16.mxu0 0
    %9008 = vmatpush1.bf16.msra.mxu0 %v8870
    %9009 = vmatprep.subr.bf16.mxu0 0
    %9010 = vmatpush1.bf16.msra.mxu0 %v8871
    %9011 = vmatprep.subr.bf16.mxu0 0
    %9012 = vmatpush1.bf16.msra.mxu0 %v8872
    %9013 = vmatprep.subr.bf16.mxu0 0
    %9014 = vmatpush1.bf16.msra.mxu0 %v8873
    %9015 = vmatprep.subr.bf16.mxu0 0
    %9016 = vmatpush1.bf16.msra.mxu0 %v8874
    %9017 = vmatprep.subr.bf16.mxu0 0
    %9018 = vmatpush1.bf16.msra.mxu0 %v8875
    %9019 = vmatprep.subr.bf16.mxu0 0
    %9020 = vmatpush1.bf16.msra.mxu0 %v8876
    %9021 = vmatprep.mubr.bf16.mxu0 %v8463
    %9022 = vmatmul.mubr.bf16.gmra.mrb[0].mxu0 %v8462
    %v9023 = vpop.f32.mrb[0].mxu0
    %v9024 = vadd.f32 %v8603, %v9023
    %v9025 = vpop.f32.mrb[0].mxu0
    %v9026 = vpop.f32.mrb[0].mxu0
    %v9027 = vpop.f32.mrb[0].mxu0
    %9028 = vdwg.mxu0
    %9029 = vmatprep.subr.bf16.mxu0 0
    %9030 = vmatpush1.bf16.msra.mxu0 %v8877
    %9031 = vmatprep.subr.bf16.mxu0 0
    %9032 = vmatpush1.bf16.msra.mxu0 %v8878
    %9033 = vmatprep.subr.bf16.mxu0 0
    %9034 = vmatpush1.bf16.msra.mxu0 %v8879
    %9035 = vmatprep.subr.bf16.mxu0 0
    %9036 = vmatpush1.bf16.msra.mxu0 %v8880
    %9037 = vmatprep.subr.bf16.mxu0 0
    %9038 = vmatpush1.bf16.msra.mxu0 %v8881
    %9039 = vmatprep.subr.bf16.mxu0 0
    %9040 = vmatpush1.bf16.msra.mxu0 %v8882
    %9041 = vmatprep.subr.bf16.mxu0 0
    %9042 = vmatpush1.bf16.msra.mxu0 %v8883
    %9043 = vmatprep.subr.bf16.mxu0 0
    %9044 = vmatpush1.bf16.msra.mxu0 %v8884
    %9045 = vmatprep.subr.bf16.mxu0 0
    %9046 = vmatpush1.bf16.msra.mxu0 %v8885
    %9047 = vmatprep.subr.bf16.mxu0 0
    %9048 = vmatpush1.bf16.msra.mxu0 %v8886
    %9049 = vmatprep.subr.bf16.mxu0 0
    %9050 = vmatpush1.bf16.msra.mxu0 %v8887
    %9051 = vmatprep.subr.bf16.mxu0 0
    %9052 = vmatpush1.bf16.msra.mxu0 %v8888
    %9053 = vmatprep.subr.bf16.mxu0 0
    %9054 = vmatpush1.bf16.msra.mxu0 %v8889
    %9055 = vmatprep.subr.bf16.mxu0 0
    %9056 = vmatpush1.bf16.msra.mxu0 %v8890
    %9057 = vmatprep.subr.bf16.mxu0 0
    %9058 = vmatpush1.bf16.msra.mxu0 %v8891
    %9059 = vmatprep.subr.bf16.mxu0 0
    %9060 = vmatpush1.bf16.msra.mxu0 %v8892
    %9061 = vmatprep.mubr.bf16.mxu0 %v8465
    %9062 = vmatmul.mubr.bf16.gmra.mrb[0].mxu0 %v8464
    %v9063 = vpop.f32.mrb[0].mxu0
    %v9064 = vadd.f32 %v9024, %v9063
    %v9065 = vpop.f32.mrb[0].mxu0
    %v9066 = vpop.f32.mrb[0].mxu0
    %v9067 = vpop.f32.mrb[0].mxu0
    %9068 = vdwg.mxu0
    %9069 = vmatprep.subr.bf16.mxu0 0
    %9070 = vmatpush1.bf16.msra.mxu0 %v8893
    %9071 = vmatprep.subr.bf16.mxu0 0
    %9072 = vmatpush1.bf16.msra.mxu0 %v8894
    %9073 = vmatprep.subr.bf16.mxu0 0
    %9074 = vmatpush1.bf16.msra.mxu0 %v8895
    %9075 = vmatprep.subr.bf16.mxu0 0
    %9076 = vmatpush1.bf16.msra.mxu0 %v8896
    %9077 = vmatprep.subr.bf16.mxu0 0
    %9078 = vmatpush1.bf16.msra.mxu0 %v8897
    %9079 = vmatprep.subr.bf16.mxu0 0
    %9080 = vmatpush1.bf16.msra.mxu0 %v8898
    %9081 = vmatprep.subr.bf16.mxu0 0
    %9082 = vmatpush1.bf16.msra.mxu0 %v8899
    %9083 = vmatprep.subr.bf16.mxu0 0
    %9084 = vmatpush1.bf16.msra.mxu0 %v8900
    %9085 = vmatprep.subr.bf16.mxu0 0
    %9086 = vmatpush1.bf16.msra.mxu0 %v8901
    %9087 = vmatprep.subr.bf16.mxu0 0
    %9088 = vmatpush1.bf16.msra.mxu0 %v8902
    %9089 = vmatprep.subr.bf16.mxu0 0
    %9090 = vmatpush1.bf16.msra.mxu0 %v8903
    %9091 = vmatprep.subr.bf16.mxu0 0
    %9092 = vmatpush1.bf16.msra.mxu0 %v8904
    %9093 = vmatprep.subr.bf16.mxu0 0
    %9094 = vmatpush1.bf16.msra.mxu0 %v8905
    %9095 = vmatprep.subr.bf16.mxu0 0
    %9096 = vmatpush1.bf16.msra.mxu0 %v8906
    %9097 = vmatprep.subr.bf16.mxu0 0
    %9098 = vmatpush1.bf16.msra.mxu0 %v8907
    %9099 = vmatprep.subr.bf16.mxu0 0
    %9100 = vmatpush1.bf16.msra.mxu0 %v8908
    %9101 = vmatprep.mubr.bf16.mxu0 %v8467
    %9102 = vmatmul.mubr.bf16.gmra.mrb[0].mxu0 %v8466
    %v9103 = vpop.f32.mrb[0].mxu0
    %v9104 = vadd.f32 %v9064, %v9103
    %v9105 = vpop.f32.mrb[0].mxu0
    %v9106 = vpop.f32.mrb[0].mxu0
    %v9107 = vpop.f32.mrb[0].mxu0
    %9108 = vdwg.mxu0
    %9109 = vmatprep.subr.bf16.mxu0 0
    %9110 = vmatpush1.bf16.msra.mxu0 %v8909
    %9111 = vmatprep.subr.bf16.mxu0 0
    %9112 = vmatpush1.bf16.msra.mxu0 %v8910
    %9113 = vmatprep.subr.bf16.mxu0 0
    %9114 = vmatpush1.bf16.msra.mxu0 %v8911
    %9115 = vmatprep.subr.bf16.mxu0 0
    %9116 = vmatpush1.bf16.msra.mxu0 %v8912
    %9117 = vmatprep.subr.bf16.mxu0 0
    %9118 = vmatpush1.bf16.msra.mxu0 %v8913
    %9119 = vmatprep.subr.bf16.mxu0 0
    %9120 = vmatpush1.bf16.msra.mxu0 %v8914
    %9121 = vmatprep.subr.bf16.mxu0 0
    %9122 = vmatpush1.bf16.msra.mxu0 %v8915
    %9123 = vmatprep.subr.bf16.mxu0 0
    %9124 = vmatpush1.bf16.msra.mxu0 %v8916
    %9125 = vmatprep.subr.bf16.mxu0 0
    %9126 = vmatpush1.bf16.msra.mxu0 %v8917
    %9127 = vmatprep.subr.bf16.mxu0 0
    %9128 = vmatpush1.bf16.msra.mxu0 %v8918
    %9129 = vmatprep.subr.bf16.mxu0 0
    %9130 = vmatpush1.bf16.msra.mxu0 %v8919
    %9131 = vmatprep.subr.bf16.mxu0 0
    %9132 = vmatpush1.bf16.msra.mxu0 %v8920
    %9133 = vmatprep.subr.bf16.mxu0 0
    %9134 = vmatpush1.bf16.msra.mxu0 %v8921
    %9135 = vmatprep.subr.bf16.mxu0 0
    %9136 = vmatpush1.bf16.msra.mxu0 %v8922
    %9137 = vmatprep.subr.bf16.mxu0 0
    %9138 = vmatpush1.bf16.msra.mxu0 %v8923
    %9139 = vmatprep.subr.bf16.mxu0 0
    %9140 = vmatpush1.bf16.msra.mxu0 %v8924
    %9141 = vmatprep.mubr.bf16.mxu0 %v8469
    %9142 = vmatmul.mubr.bf16.gmra.mrb[0].mxu0 %v8468
    %v9143 = vpop.f32.mrb[0].mxu0
    %v9144 = vadd.f32 %v9104, %v9143
    %v9145 = vpop.f32.mrb[0].mxu0
    %v9146 = vpop.f32.mrb[0].mxu0
    %v9147 = vpop.f32.mrb[0].mxu0
    %9148 = vdwg.mxu0
    %9149 = vst [vmem:[#allocation14] sm:$0x3] %v9144
    // Predicated region
    $region62: #{tpu_custom_call.1} parent=1 // pred_check
      _
    $region63: #{tpu_custom_call.1} parent=1 // pred_check_branch
      %9151 = sbr.rel (0) target = $region65
    $region64: #{tpu_custom_call.1} parent=1 // pred_region
      %s9153 = ssub.s32 32, 32
      %9154 = vsyncadd [#allocation4], %s9153
      %s9156 = sshll.u32 [#allocation14], 4
      %s9157 = int_to_ptr.vmem [resolvable:$true] %s9156
      %9159 = dma.vmem_to_hbm [thread:$0]  %s9157, 32, %s8, [#allocation4]
    $region65: #{tpu_custom_call.1} parent=1 // pred_fallthru
      _
    // Predicated region
    $region66: #{tpu_custom_call.1} parent=1 // pred_check
      _
    $region67: #{tpu_custom_call.1} parent=1 // pred_check_branch
      %9161 = sbr.rel (0) target = $region69
    $region68: #{tpu_custom_call.1} parent=1 // pred_region
      %9162 = dma.done [#allocation4], 32
    $region69: #{tpu_custom_call.1} parent=1 // pred_fallthru
      _
    %9163 = vsyncpa [#allocation3], 1
    %9164 = vsyncpa [#allocation6], 1
    %9165 = vsyncpa [#allocation9], 1
    %9166 = vsyncpa [#allocation12], 1
    %9167 = vsyncpa [#allocation4], 1

</llo_original>
